<compile_context>
chip_gen: v7x
topology: tpu7x:2x2x1
jax: 0.10.0
libtpu: 0.0.40
codegen_flags: <defaults>
</compile_context>

<pallas_src>
import jax
import jax.numpy as jnp
from jax.experimental import pallas as pl
from jax.experimental.pallas import tpu as pltpu


_VMEM_LIMIT = 64 * 1024 * 1024          # scoped VMEM; actual use <= ~16 MB/step
_POOL_TAPS = ((0, 0), (0, 1), (1, 0), (1, 1))


def _round_up(x, m):
    return ((x + m - 1) // m) * m


def _tile_rows(m, target, align=128):
    """Pick (tile, padded_M): tile a multiple of `align` (MXU/v5e friendly),
    padded_M a multiple of tile (no partial last block), and >=2 grid steps
    whenever there is enough work so both v7x TensorCores get used."""
    mp = _round_up(m, align)
    target = max(align, _round_up(target, align))
    steps = max(1, -(-mp // target))
    if steps == 1 and mp >= 2 * align:
        steps = 2
    tile = _round_up(-(-mp // steps), align)
    return tile, _round_up(mp, tile)


# ----------------------------------------------------------------------------
# Pallas kernels
# ----------------------------------------------------------------------------
def _conv_pool_kernel(x_ref, w_ref, b_ref, o_ref):
    """Fused conv(3x3) + bias + ReLU + maxpool(2x2,/2) on one row tile.

    x : (tm, 16*Cin) bf16 -- each row is the 4x4xCin input patch of one pooled
                             output position (union of the 4 pool taps' windows)
    w : (16*Cin, 4*Cout) bf16 -- 3x3 weights scattered once per pool tap (resident)
    b : (1, Cout) f32 (resident)        o : (tm, Cout) bf16
    """
    cout = o_ref.shape[-1]
    y = jnp.dot(x_ref[...], w_ref[...], preferred_element_type=jnp.float32)
    # the four pool taps come back as four Cout-wide lane groups -> VPU max
    y = jnp.maximum(jnp.maximum(y[:, :cout], y[:, cout:2 * cout]),
                    jnp.maximum(y[:, 2 * cout:3 * cout], y[:, 3 * cout:4 * cout]))
    # relu(max(conv) + b) == maxpool(relu(conv + b)) since bias/ReLU are monotone
    o_ref[...] = jnp.maximum(y + b_ref[...], 0.0).astype(o_ref.dtype)


def _conv_pool_mlp_kernel(x_ref, w3_ref, b3_ref, w1_ref, b1_ref,
                          w2_ref, b2_ref, o_ref):
    """conv3 block fused with flatten + Linear(64->20) + ReLU + Linear(20->10).
    FC weights are zero-padded to lane-dense 128-wide slabs; output is (tb,128) f32
    whose first 10 lanes are the logits."""
    c = b3_ref.shape[-1]
    y = jnp.dot(x_ref[...], w3_ref[...], preferred_element_type=jnp.float32)
    y = jnp.maximum(jnp.maximum(y[:, :c], y[:, c:2 * c]),
                    jnp.maximum(y[:, 2 * c:3 * c], y[:, 3 * c:4 * c]))
    y = jnp.maximum(y + b3_ref[...], 0.0)                      # (tb, 64) pooled conv3
    h = jnp.dot(y.astype(jnp.bfloat16), w1_ref[...],
                preferred_element_type=jnp.float32)
    h = jnp.maximum(h + b1_ref[...], 0.0)                      # (tb, 128)
    z = jnp.dot(h.astype(jnp.bfloat16), w2_ref[...],
                preferred_element_type=jnp.float32)
    o_ref[...] = z + b2_ref[...]


# ----------------------------------------------------------------------------
# Layer wrappers (slab construction / tiling / BlockSpecs)
# ----------------------------------------------------------------------------
def _patch_rows(x, ph, pw):
    """x: (N,H,W,C) -> (N*ph*pw, 16*C) rows; row = 4x4xC patch at stride 2, lane
    order ((a*4+b)*C + c).  One patch covers all four 2x2-pool taps at once."""
    # TODO(synk): this strided spatial gather stays in XLA -- pulling it inside
    # the kernel (reading the raw NHWC map once) needs manual/strided DMA and is
    # the remaining HBM-traffic lever.
    n, _, _, c = x.shape
    taps = [x[:, a:a + 2 * ph:2, b:b + 2 * pw:2, :]
            for a in range(4) for b in range(4)]
    return jnp.stack(taps, axis=3).reshape(n * ph * pw, 16 * c)


def conv_relu_pool(x, w_cat, b, *, target_tm):
    """x: (N,H,W,Cin) bf16; w_cat: (16*Cin, 4*Cout) bf16; b: (1,Cout) f32.
    Returns (N, PH, PW, Cout) bf16 with PH = (H-2)//2 (PyTorch floor pooling)."""
    n, h, w, _ = x.shape
    ph, pw = (h - 2) // 2, (w - 2) // 2
    k, cout4 = w_cat.shape
    cout = cout4 // 4

    rows = _patch_rows(x, ph, pw)                     # (M, 16*Cin)
    m = n * ph * pw
    tm, mp = _tile_rows(m, target_tm)
    if mp != m:
        rows = jnp.pad(rows, ((0, mp - m), (0, 0)))   # single pad, fused by XLA

    out = pl.pallas_call(
        _conv_pool_kernel,
        out_shape=jax.ShapeDtypeStruct((mp, cout), jnp.bfloat16),
        grid=(mp // tm,),
        in_specs=[
            pl.BlockSpec((tm, k), lambda i: (i, 0)),
            pl.BlockSpec((k, cout4), lambda i: (0, 0)),   # resident weights
            pl.BlockSpec((1, cout), lambda i: (0, 0)),    # resident bias
        ],
        out_specs=pl.BlockSpec((tm, cout), lambda i: (i, 0)),
        compiler_params=pltpu.CompilerParams(
            dimension_semantics=("parallel",),
            vmem_limit_bytes=_VMEM_LIMIT,
        ),
    )(rows, w_cat, b)
    return out[:m].reshape(n, ph, pw, cout)


def conv3_mlp_head(x, q, *, target_tb=1024):
    """Fused conv3 block + MLP head. x: (N,5,5,128) bf16 -> logits (N,10) f32."""
    n = x.shape[0]
    rows = _patch_rows(x, 1, 1)                       # (N, 2048)
    k = rows.shape[1]
    tb, np_ = _tile_rows(n, target_tb)
    if np_ != n:
        rows = jnp.pad(rows, ((0, np_ - n), (0, 0)))

    out = pl.pallas_call(
        _conv_pool_mlp_kernel,
        out_shape=jax.ShapeDtypeStruct((np_, 128), jnp.float32),
        grid=(np_ // tb,),
        in_specs=[
            pl.BlockSpec((tb, k), lambda i: (i, 0)),
            pl.BlockSpec((k, 256), lambda i: (0, 0)),
            pl.BlockSpec((1, 64), lambda i: (0, 0)),
            pl.BlockSpec((64, 128), lambda i: (0, 0)),
            pl.BlockSpec((1, 128), lambda i: (0, 0)),
            pl.BlockSpec((128, 128), lambda i: (0, 0)),
            pl.BlockSpec((1, 128), lambda i: (0, 0)),
        ],
        out_specs=pl.BlockSpec((tb, 128), lambda i: (i, 0)),
        compiler_params=pltpu.CompilerParams(
            dimension_semantics=("parallel",),
            vmem_limit_bytes=_VMEM_LIMIT,
        ),
    )(rows, q["w3"], q["b3"], q["wl1"], q["bl1"], q["wl2"], q["bl2"])
    return out[:n, :10]


# ----------------------------------------------------------------------------
# Parameters (PyTorch-style init, then one-time layout preparation)
# ----------------------------------------------------------------------------
def init_params(key):
    """Deterministic init mimicking PyTorch default (uniform +-1/sqrt(fan_in))."""
    def uniform(k, shape, fan_in):
        bound = 1.0 / jnp.sqrt(jnp.float32(fan_in))
        return jax.random.uniform(k, shape, jnp.float32, -bound, bound)

    ks = jax.random.split(key, 10)
    return {
        "w1": uniform(ks[0], (64, 1, 3, 3), 1 * 3 * 3),
        "b1": uniform(ks[1], (64,), 1 * 3 * 3),
        "w2": uniform(ks[2], (128, 64, 3, 3), 64 * 3 * 3),
        "b2": uniform(ks[3], (128,), 64 * 3 * 3),
        "w3": uniform(ks[4], (64, 128, 3, 3), 128 * 3 * 3),
        "b3": uniform(ks[5], (64,), 128 * 3 * 3),
        "wl1": uniform(ks[6], (20, 64), 64),
        "bl1": uniform(ks[7], (20,), 64),
        "wl2": uniform(ks[8], (10, 20), 20),
        "bl2": uniform(ks[9], (10,), 20),
    }


def prepare_params(p):
    """Hoisted one-time weight re-layouts.

    Conv: (Cout,Cin,3,3) -> (16*Cin, 4*Cout) bf16, the 3x3 kernel scattered into
    the 4x4 pooled-patch footprint once per 2x2-pool tap, so a single MXU pass
    yields all four pool taps as Cout-wide lane groups.
    FC: transposed and zero-padded to lane-dense 128-wide slabs."""
    def conv_w(w_pt):
        cout, cin = int(w_pt.shape[0]), int(w_pt.shape[1])
        wt = jnp.transpose(w_pt, (2, 3, 1, 0))            # (3,3,Cin,Cout)
        wcat = jnp.zeros((16 * cin, 4 * cout), jnp.float32)
        for j, (dr, dc) in enumerate(_POOL_TAPS):
            for kh in range(3):
                for kw in range(3):
                    r0 = ((dr + kh) * 4 + (dc + kw)) * cin
                    wcat = wcat.at[r0:r0 + cin, j * cout:(j + 1) * cout].set(wt[kh, kw])
        return wcat.astype(jnp.bfloat16)

    q = {
        "w1": conv_w(p["w1"]), "b1": p["b1"].reshape(1, -1),
        "w2": conv_w(p["w2"]), "b2": p["b2"].reshape(1, -1),
        "w3": conv_w(p["w3"]), "b3": p["b3"].reshape(1, -1),
    }
    q["wl1"] = jnp.zeros((64, 128), jnp.bfloat16).at[:, :20].set(
        p["wl1"].T.astype(jnp.bfloat16))
    q["bl1"] = jnp.zeros((1, 128), jnp.float32).at[:, :20].set(p["bl1"])
    q["wl2"] = jnp.zeros((128, 128), jnp.bfloat16).at[:20, :10].set(
        p["wl2"].T.astype(jnp.bfloat16))
    q["bl2"] = jnp.zeros((1, 128), jnp.float32).at[:, :10].set(p["bl2"])
    return q


# ----------------------------------------------------------------------------
# Forward pass
# ----------------------------------------------------------------------------
def mnist_cnn_forward(params, x_nchw):
    """Forward pass matching MNIST_CNN. x_nchw: (N, 1, 28, 28) float32."""
    x = jnp.transpose(x_nchw, (0, 2, 3, 1)).astype(jnp.bfloat16)    # NCHW -> NHWC
    x = conv_relu_pool(x, params["w1"], params["b1"], target_tm=4096)  # (N,13,13,64)
    x = conv_relu_pool(x, params["w2"], params["b2"], target_tm=2048)  # (N,5,5,128)
    return conv3_mlp_head(x, params, target_tb=1024)                   # (N,10) f32


# ----------------------------------------------------------------------------
# Pure-JAX f32 reference (mirrors the PyTorch module) for a loosened-tolerance
# check of the bf16 Pallas path.
# ----------------------------------------------------------------------------
def _reference_forward(p, x_nchw):
    x = jnp.transpose(x_nchw, (0, 2, 3, 1))

    def block(x, w, b):
        y = jax.lax.conv_general_dilated(
            x, jnp.transpose(w, (2, 3, 1, 0)), (1, 1), "VALID",
            dimension_numbers=("NHWC", "HWIO", "NHWC"))
        y = jnp.maximum(y + b, 0.0)
        return jax.lax.reduce_window(y, -jnp.inf, jax.lax.max,
                                     (1, 2, 2, 1), (1, 2, 2, 1), "VALID")

    x = block(x, p["w1"], p["b1"])
    x = block(x, p["w2"], p["b2"])
    x = block(x, p["w3"], p["b3"])
    x = x.reshape(x.shape[0], -1)
    h = jnp.maximum(x @ p["wl1"].T + p["bl1"], 0.0)
    return h @ p["wl2"].T + p["bl2"]


if __name__ == "__main__":
    key = jax.random.PRNGKey(0)
    k_x, k_p = jax.random.split(key)
    # MNIST-shaped input: the architecture requires 28x28 so the final feature
    # map is 1x1x64 (matching nn.Linear(64, 20)).
    x = jax.random.normal(k_x, (2, 1, 28, 28), dtype=jnp.float32)
    raw = init_params(k_p)
    params = prepare_params(raw)

    fwd = jax.jit(mnist_cnn_forward)
    logits = fwd(params, x)
    jax.block_until_ready(logits)

    assert logits.shape == (2, 10), logits.shape
    assert bool(jnp.all(jnp.isfinite(logits))), "non-finite logits"
    # bf16 MXU path vs f32 reference: documented loosened tolerance.
    ref = _reference_forward(raw, x)
    assert bool(jnp.allclose(logits, ref, rtol=1e-1, atol=1e-1)), (
        "max |diff| = %f" % float(jnp.max(jnp.abs(logits - ref))))
    print("KERNEL_OK")
</pallas_src>

<mosaic_0001>
module attributes {stable_mosaic.version = 11 : i64} {
  func.func @_conv_pool_kernel(%arg0: i32, %arg1: memref<256x16xbf16, #tpu.memory_space<vmem>>, %arg2: memref<16x256xbf16, #tpu.memory_space<vmem>>, %arg3: memref<1x64xf32, #tpu.memory_space<vmem>>, %arg4: memref<256x64xbf16, #tpu.memory_space<vmem>>) attributes {dimension_semantics = [#tpu.dimension_semantics<parallel>], iteration_bounds = array<i64: 2>, scalar_prefetch = 0 : i64, scratch_operands = 0 : i64, tpu.core_type = #tpu.core_type<tc>, window_params = [{transform_indices = @transform_0, window_bounds = array<i64: 256, 16>}, {pipeline_mode = #tpu.pipeline_mode<synchronous>, transform_indices = @transform_1, window_bounds = array<i64: 16, 256>}, {pipeline_mode = #tpu.pipeline_mode<synchronous>, transform_indices = @transform_2, window_bounds = array<i64: 1, 64>}, {transform_indices = @transform_3, window_bounds = array<i64: 256, 64>}]} {
    %c0 = arith.constant 0 : index
    %c0_0 = arith.constant 0 : index
    %0 = vector.load %arg1[%c0, %c0_0] : memref<256x16xbf16, #tpu.memory_space<vmem>>, vector<256x16xbf16>
    %c0_1 = arith.constant 0 : index
    %c0_2 = arith.constant 0 : index
    %1 = vector.load %arg2[%c0_1, %c0_2] : memref<16x256xbf16, #tpu.memory_space<vmem>>, vector<16x256xbf16>
    %cst = arith.constant dense<0.000000e+00> : vector<256x256xf32>
    %2 = tpu.matmul %0, %1, %cst {dimension_numbers = #tpu.dot_dimension_numbers<[1], [0], [0], [1], [0, 0, 1, 1], [], []>} : vector<256x16xbf16>, vector<16x256xbf16>, vector<256x256xf32> -> vector<256x256xf32>
    %3 = vector.extract_strided_slice %2 {offsets = [0, 0], sizes = [256, 64], strides = [1, 1]} : vector<256x256xf32> to vector<256x64xf32>
    %4 = vector.extract_strided_slice %2 {offsets = [0, 64], sizes = [256, 64], strides = [1, 1]} : vector<256x256xf32> to vector<256x64xf32>
    %5 = arith.maximumf %3, %4 : vector<256x64xf32>
    %6 = vector.extract_strided_slice %2 {offsets = [0, 128], sizes = [256, 64], strides = [1, 1]} : vector<256x256xf32> to vector<256x64xf32>
    %7 = vector.extract_strided_slice %2 {offsets = [0, 192], sizes = [256, 64], strides = [1, 1]} : vector<256x256xf32> to vector<256x64xf32>
    %8 = arith.maximumf %6, %7 : vector<256x64xf32>
    %9 = arith.maximumf %5, %8 : vector<256x64xf32>
    %c0_3 = arith.constant 0 : index
    %c0_4 = arith.constant 0 : index
    %10 = vector.load %arg3[%c0_3, %c0_4] : memref<1x64xf32, #tpu.memory_space<vmem>>, vector<1x64xf32>
    %11 = vector.broadcast %10 : vector<1x64xf32> to vector<256x64xf32>
    %12 = arith.addf %9, %11 : vector<256x64xf32>
    %cst_5 = arith.constant 0.000000e+00 : f32
    %13 = vector.broadcast %cst_5 : f32 to vector<256x64xf32>
    %14 = arith.maximumf %12, %13 : vector<256x64xf32>
    %15 = arith.truncf %14 : vector<256x64xf32> to vector<256x64xbf16>
    %c0_6 = arith.constant 0 : index
    %c0_7 = arith.constant 0 : index
    %16 = vector.load %arg4[%c0_6, %c0_7] : memref<256x64xbf16, #tpu.memory_space<vmem>>, vector<256x64xbf16>
    tpu.vector_store %arg4[%c0_6, %c0_7], %15 {strides = array<i32>} : memref<256x64xbf16, #tpu.memory_space<vmem>>, vector<256x64xbf16>,
    return
  }
  func.func @transform_0(%arg0: i32) -> (i32, i32) {
    %c0_i32 = arith.constant 0 : i32
    %c0_i32_0 = arith.constant 0 : i32
    return %arg0, %c0_i32 : i32, i32
  }
  func.func @transform_1(%arg0: i32) -> (i32, i32) {
    %c0_i32 = arith.constant 0 : i32
    %c0_i32_0 = arith.constant 0 : i32
    %c0_i32_1 = arith.constant 0 : i32
    return %c0_i32, %c0_i32_0 : i32, i32
  }
  func.func @transform_2(%arg0: i32) -> (i32, i32) {
    %c0_i32 = arith.constant 0 : i32
    %c0_i32_0 = arith.constant 0 : i32
    %c0_i32_1 = arith.constant 0 : i32
    return %c0_i32, %c0_i32_0 : i32, i32
  }
  func.func @transform_3(%arg0: i32) -> (i32, i32) {
    %c0_i32 = arith.constant 0 : i32
    %c0_i32_0 = arith.constant 0 : i32
    return %arg0, %c0_i32 : i32, i32
  }
}

module attributes {stable_mosaic.version = 11 : i64} {
  func.func @_conv_pool_kernel(%arg0: i32, %arg1: memref<128x1024xbf16, #tpu.memory_space<vmem>>, %arg2: memref<1024x512xbf16, #tpu.memory_space<vmem>>, %arg3: memref<1x128xf32, #tpu.memory_space<vmem>>, %arg4: memref<128x128xbf16, #tpu.memory_space<vmem>>) attributes {dimension_semantics = [#tpu.dimension_semantics<parallel>], iteration_bounds = array<i64: 1>, scalar_prefetch = 0 : i64, scratch_operands = 0 : i64, tpu.core_type = #tpu.core_type<tc>, window_params = [{transform_indices = @transform_0, window_bounds = array<i64: 128, 1024>}, {pipeline_mode = #tpu.pipeline_mode<synchronous>, transform_indices = @transform_1, window_bounds = array<i64: 1024, 512>}, {pipeline_mode = #tpu.pipeline_mode<synchronous>, transform_indices = @transform_2, window_bounds = array<i64: 1, 128>}, {transform_indices = @transform_3, window_bounds = array<i64: 128, 128>}]} {
    %c0 = arith.constant 0 : index
    %c0_0 = arith.constant 0 : index
    %0 = vector.load %arg1[%c0, %c0_0] : memref<128x1024xbf16, #tpu.memory_space<vmem>>, vector<128x1024xbf16>
    %c0_1 = arith.constant 0 : index
    %c0_2 = arith.constant 0 : index
    %1 = vector.load %arg2[%c0_1, %c0_2] : memref<1024x512xbf16, #tpu.memory_space<vmem>>, vector<1024x512xbf16>
    %cst = arith.constant dense<0.000000e+00> : vector<128x512xf32>
    %2 = tpu.matmul %0, %1, %cst {dimension_numbers = #tpu.dot_dimension_numbers<[1], [0], [0], [1], [0, 0, 1, 1], [], []>} : vector<128x1024xbf16>, vector<1024x512xbf16>, vector<128x512xf32> -> vector<128x512xf32>
    %3 = vector.extract_strided_slice %2 {offsets = [0, 0], sizes = [128, 128], strides = [1, 1]} : vector<128x512xf32> to vector<128x128xf32>
    %4 = vector.extract_strided_slice %2 {offsets = [0, 128], sizes = [128, 128], strides = [1, 1]} : vector<128x512xf32> to vector<128x128xf32>
    %5 = arith.maximumf %3, %4 : vector<128x128xf32>
    %6 = vector.extract_strided_slice %2 {offsets = [0, 256], sizes = [128, 128], strides = [1, 1]} : vector<128x512xf32> to vector<128x128xf32>
    %7 = vector.extract_strided_slice %2 {offsets = [0, 384], sizes = [128, 128], strides = [1, 1]} : vector<128x512xf32> to vector<128x128xf32>
    %8 = arith.maximumf %6, %7 : vector<128x128xf32>
    %9 = arith.maximumf %5, %8 : vector<128x128xf32>
    %c0_3 = arith.constant 0 : index
    %c0_4 = arith.constant 0 : index
    %10 = vector.load %arg3[%c0_3, %c0_4] : memref<1x128xf32, #tpu.memory_space<vmem>>, vector<1x128xf32>
    %11 = vector.broadcast %10 : vector<1x128xf32> to vector<128x128xf32>
    %12 = arith.addf %9, %11 : vector<128x128xf32>
    %cst_5 = arith.constant 0.000000e+00 : f32
    %13 = vector.broadcast %cst_5 : f32 to vector<128x128xf32>
    %14 = arith.maximumf %12, %13 : vector<128x128xf32>
    %15 = arith.truncf %14 : vector<128x128xf32> to vector<128x128xbf16>
    %c0_6 = arith.constant 0 : index
    %c0_7 = arith.constant 0 : index
    %16 = vector.load %arg4[%c0_6, %c0_7] : memref<128x128xbf16, #tpu.memory_space<vmem>>, vector<128x128xbf16>
    tpu.vector_store %arg4[%c0_6, %c0_7], %15 {strides = array<i32>} : memref<128x128xbf16, #tpu.memory_space<vmem>>, vector<128x128xbf16>,
    return
  }
  func.func @transform_0(%arg0: i32) -> (i32, i32) {
    %c0_i32 = arith.constant 0 : i32
    %c0_i32_0 = arith.constant 0 : i32
    return %arg0, %c0_i32 : i32, i32
  }
  func.func @transform_1(%arg0: i32) -> (i32, i32) {
    %c0_i32 = arith.constant 0 : i32
    %c0_i32_0 = arith.constant 0 : i32
    %c0_i32_1 = arith.constant 0 : i32
    return %c0_i32, %c0_i32_0 : i32, i32
  }
  func.func @transform_2(%arg0: i32) -> (i32, i32) {
    %c0_i32 = arith.constant 0 : i32
    %c0_i32_0 = arith.constant 0 : i32
    %c0_i32_1 = arith.constant 0 : i32
    return %c0_i32, %c0_i32_0 : i32, i32
  }
  func.func @transform_3(%arg0: i32) -> (i32, i32) {
    %c0_i32 = arith.constant 0 : i32
    %c0_i32_0 = arith.constant 0 : i32
    return %arg0, %c0_i32 : i32, i32
  }
}

module attributes {stable_mosaic.version = 11 : i64} {
  func.func @_conv_pool_mlp_kernel(%arg0: i32, %arg1: memref<128x2048xbf16, #tpu.memory_space<vmem>>, %arg2: memref<2048x256xbf16, #tpu.memory_space<vmem>>, %arg3: memref<1x64xf32, #tpu.memory_space<vmem>>, %arg4: memref<64x128xbf16, #tpu.memory_space<vmem>>, %arg5: memref<1x128xf32, #tpu.memory_space<vmem>>, %arg6: memref<128x128xbf16, #tpu.memory_space<vmem>>, %arg7: memref<1x128xf32, #tpu.memory_space<vmem>>, %arg8: memref<128x128xf32, #tpu.memory_space<vmem>>) attributes {dimension_semantics = [#tpu.dimension_semantics<parallel>], iteration_bounds = array<i64: 1>, scalar_prefetch = 0 : i64, scratch_operands = 0 : i64, tpu.core_type = #tpu.core_type<tc>, window_params = [{transform_indices = @transform_0, window_bounds = array<i64: 128, 2048>}, {pipeline_mode = #tpu.pipeline_mode<synchronous>, transform_indices = @transform_1, window_bounds = array<i64: 2048, 256>}, {pipeline_mode = #tpu.pipeline_mode<synchronous>, transform_indices = @transform_2, window_bounds = array<i64: 1, 64>}, {pipeline_mode = #tpu.pipeline_mode<synchronous>, transform_indices = @transform_3, window_bounds = array<i64: 64, 128>}, {pipeline_mode = #tpu.pipeline_mode<synchronous>, transform_indices = @transform_4, window_bounds = array<i64: 1, 128>}, {pipeline_mode = #tpu.pipeline_mode<synchronous>, transform_indices = @transform_5, window_bounds = array<i64: 128, 128>}, {pipeline_mode = #tpu.pipeline_mode<synchronous>, transform_indices = @transform_6, window_bounds = array<i64: 1, 128>}, {transform_indices = @transform_7, window_bounds = array<i64: 128, 128>}]} {
    %c0 = arith.constant 0 : index
    %c0_0 = arith.constant 0 : index
    %0 = vector.load %arg1[%c0, %c0_0] : memref<128x2048xbf16, #tpu.memory_space<vmem>>, vector<128x2048xbf16>
    %c0_1 = arith.constant 0 : index
    %c0_2 = arith.constant 0 : index
    %1 = vector.load %arg2[%c0_1, %c0_2] : memref<2048x256xbf16, #tpu.memory_space<vmem>>, vector<2048x256xbf16>
    %cst = arith.constant dense<0.000000e+00> : vector<128x256xf32>
    %2 = tpu.matmul %0, %1, %cst {dimension_numbers = #tpu.dot_dimension_numbers<[1], [0], [0], [1], [0, 0, 1, 1], [], []>} : vector<128x2048xbf16>, vector<2048x256xbf16>, vector<128x256xf32> -> vector<128x256xf32>
    %3 = vector.extract_strided_slice %2 {offsets = [0, 0], sizes = [128, 64], strides = [1, 1]} : vector<128x256xf32> to vector<128x64xf32>
    %4 = vector.extract_strided_slice %2 {offsets = [0, 64], sizes = [128, 64], strides = [1, 1]} : vector<128x256xf32> to vector<128x64xf32>
    %5 = arith.maximumf %3, %4 : vector<128x64xf32>
    %6 = vector.extract_strided_slice %2 {offsets = [0, 128], sizes = [128, 64], strides = [1, 1]} : vector<128x256xf32> to vector<128x64xf32>
    %7 = vector.extract_strided_slice %2 {offsets = [0, 192], sizes = [128, 64], strides = [1, 1]} : vector<128x256xf32> to vector<128x64xf32>
    %8 = arith.maximumf %6, %7 : vector<128x64xf32>
    %9 = arith.maximumf %5, %8 : vector<128x64xf32>
    %c0_3 = arith.constant 0 : index
    %c0_4 = arith.constant 0 : index
    %10 = vector.load %arg3[%c0_3, %c0_4] : memref<1x64xf32, #tpu.memory_space<vmem>>, vector<1x64xf32>
    %11 = vector.broadcast %10 : vector<1x64xf32> to vector<128x64xf32>
    %12 = arith.addf %9, %11 : vector<128x64xf32>
    %cst_5 = arith.constant 0.000000e+00 : f32
    %13 = vector.broadcast %cst_5 : f32 to vector<128x64xf32>
    %14 = arith.maximumf %12, %13 : vector<128x64xf32>
    %15 = arith.truncf %14 : vector<128x64xf32> to vector<128x64xbf16>
    %c0_6 = arith.constant 0 : index
    %c0_7 = arith.constant 0 : index
    %16 = vector.load %arg4[%c0_6, %c0_7] : memref<64x128xbf16, #tpu.memory_space<vmem>>, vector<64x128xbf16>
    %cst_8 = arith.constant dense<0.000000e+00> : vector<128x128xf32>
    %17 = tpu.matmul %15, %16, %cst_8 {dimension_numbers = #tpu.dot_dimension_numbers<[1], [0], [0], [1], [0, 0, 1, 1], [], []>} : vector<128x64xbf16>, vector<64x128xbf16>, vector<128x128xf32> -> vector<128x128xf32>
    %c0_9 = arith.constant 0 : index
    %c0_10 = arith.constant 0 : index
    %18 = vector.load %arg5[%c0_9, %c0_10] : memref<1x128xf32, #tpu.memory_space<vmem>>, vector<1x128xf32>
    %19 = vector.broadcast %18 : vector<1x128xf32> to vector<128x128xf32>
    %20 = arith.addf %17, %19 : vector<128x128xf32>
    %cst_11 = arith.constant 0.000000e+00 : f32
    %21 = vector.broadcast %cst_11 : f32 to vector<128x128xf32>
    %22 = arith.maximumf %20, %21 : vector<128x128xf32>
    %23 = arith.truncf %22 : vector<128x128xf32> to vector<128x128xbf16>
    %c0_12 = arith.constant 0 : index
    %c0_13 = arith.constant 0 : index
    %24 = vector.load %arg6[%c0_12, %c0_13] : memref<128x128xbf16, #tpu.memory_space<vmem>>, vector<128x128xbf16>
    %cst_14 = arith.constant dense<0.000000e+00> : vector<128x128xf32>
    %25 = tpu.matmul %23, %24, %cst_14 {dimension_numbers = #tpu.dot_dimension_numbers<[1], [0], [0], [1], [0, 0, 1, 1], [], []>} : vector<128x128xbf16>, vector<128x128xbf16>, vector<128x128xf32> -> vector<128x128xf32>
    %c0_15 = arith.constant 0 : index
    %c0_16 = arith.constant 0 : index
    %26 = vector.load %arg7[%c0_15, %c0_16] : memref<1x128xf32, #tpu.memory_space<vmem>>, vector<1x128xf32>
    %27 = vector.broadcast %26 : vector<1x128xf32> to vector<128x128xf32>
    %28 = arith.addf %25, %27 : vector<128x128xf32>
    %c0_17 = arith.constant 0 : index
    %c0_18 = arith.constant 0 : index
    %29 = vector.load %arg8[%c0_17, %c0_18] : memref<128x128xf32, #tpu.memory_space<vmem>>, vector<128x128xf32>
    tpu.vector_store %arg8[%c0_17, %c0_18], %28 {strides = array<i32>} : memref<128x128xf32, #tpu.memory_space<vmem>>, vector<128x128xf32>,
    return
  }
  func.func @transform_0(%arg0: i32) -> (i32, i32) {
    %c0_i32 = arith.constant 0 : i32
    %c0_i32_0 = arith.constant 0 : i32
    return %arg0, %c0_i32 : i32, i32
  }
  func.func @transform_1(%arg0: i32) -> (i32, i32) {
    %c0_i32 = arith.constant 0 : i32
    %c0_i32_0 = arith.constant 0 : i32
    %c0_i32_1 = arith.constant 0 : i32
    return %c0_i32, %c0_i32_0 : i32, i32
  }
  func.func @transform_2(%arg0: i32) -> (i32, i32) {
    %c0_i32 = arith.constant 0 : i32
    %c0_i32_0 = arith.constant 0 : i32
    %c0_i32_1 = arith.constant 0 : i32
    return %c0_i32, %c0_i32_0 : i32, i32
  }
  func.func @transform_3(%arg0: i32) -> (i32, i32) {
    %c0_i32 = arith.constant 0 : i32
    %c0_i32_0 = arith.constant 0 : i32
    %c0_i32_1 = arith.constant 0 : i32
    return %c0_i32, %c0_i32_0 : i32, i32
  }
  func.func @transform_4(%arg0: i32) -> (i32, i32) {
    %c0_i32 = arith.constant 0 : i32
    %c0_i32_0 = arith.constant 0 : i32
    %c0_i32_1 = arith.constant 0 : i32
    return %c0_i32, %c0_i32_0 : i32, i32
  }
  func.func @transform_5(%arg0: i32) -> (i32, i32) {
    %c0_i32 = arith.constant 0 : i32
    %c0_i32_0 = arith.constant 0 : i32
    %c0_i32_1 = arith.constant 0 : i32
    return %c0_i32, %c0_i32_0 : i32, i32
  }
  func.func @transform_6(%arg0: i32) -> (i32, i32) {
    %c0_i32 = arith.constant 0 : i32
    %c0_i32_0 = arith.constant 0 : i32
    %c0_i32_1 = arith.constant 0 : i32
    return %c0_i32, %c0_i32_0 : i32, i32
  }
  func.func @transform_7(%arg0: i32) -> (i32, i32) {
    %c0_i32 = arith.constant 0 : i32
    %c0_i32_0 = arith.constant 0 : i32
    return %arg0, %c0_i32 : i32, i32
  }
}

</mosaic_0001>

<llo_original>
// kernel: mnist_cnn_forward.3
$region0: #{mnist_cnn_forward.3}
  #allocation0 [shape = 'u32[]', space=smem, size = 0x4, offset = 0x4, fixed_abs, tag = 'smem constant byte address 0x4 - core index']
  #allocation1 [shape = 'u32[144,128]{1,0:T(1,128)}', space=vmem, size = 0x12000, scoped, tag = 'internal scratch']
  %s0 = inlined_call_operand.hbm [shape: bf16[512,16], index: 0, kind: input, shape index: {}]
  %s1 = inlined_call_operand.hbm [shape: bf16[16,256], index: 1, kind: input, shape index: {}]
  %s2 = inlined_call_operand.hbm [shape: f32[1,64], index: 2, kind: input, shape index: {}]
  %s3 = inlined_call_operand.hbm [shape: bf16[512,64], index: 3, kind: output, shape index: {}]
  %s4 = sld [smem:[#allocation0]]
  $region57: #{mnist_cnn_forward.3} parent=0
    _
  %s6 = ssub.s32 1, %s4
  %s7 = scalar_select 0, %s6, %s4
  $region1: #{mnist_cnn_forward.3} parent=0
    #allocation2 [shape = 'u8[131072]{0}', space=vmem, size = 0x20000, scoped, tag = 'input window, operand 0']
    #allocation3 [shape = 's32[2]{0}', space=sflag, size = 0x8, scoped, tag = 'scoped memory for mnist_cnn_forward.3']
    #allocation4 [shape = 's32[2]{0}', space=sflag, size = 0x8, scoped, tag = 'scoped memory for mnist_cnn_forward.3']
    #allocation5 [shape = 'u8[8192]{0}', space=vmem, size = 0x2000, scoped, tag = 'input window, operand 1, single buffered']
    #allocation6 [shape = 's32[1]{0}', space=sflag, size = 0x4, scoped, tag = 'scoped memory for mnist_cnn_forward.3']
    #allocation7 [shape = 'u8[512]{0}', space=vmem, size = 0x400, scoped, tag = 'input window, operand 2, single buffered']
    #allocation8 [shape = 'u8[131072]{0}', space=vmem, size = 0x20000, scoped, tag = 'output window, operand 0']
    %8 = vsyncpa [#allocation3], 0
    %s9 = scalar_lea.sflag [#allocation3], 1
    %10 = vsyncpa %s9, 0
    %11 = vsyncpa [#allocation6], 0
    %12 = vsyncpa [#allocation4], 0
    %s13 = scalar_lea.sflag [#allocation4], 1
    %14 = vsyncpa %s13, 0
    loop: start=0, step=1, limit=4
    $region2: #{mnist_cnn_forward.3} parent=1 // loop_pre_header
      _
    $region3: #{mnist_cnn_forward.3} parent=1 // loop_header
      %s16 = sphi 0, %s20
      %p17 = scmp.ge.s32.totalorder %s16, 4
      %s26 = sphi 0, %s28
      %s29 = sphi 0, %s26
      %s30 = sphi 0, %s29
      %s46 = sphi 0, %s30
      %s50 = sphi 0, %s50
      %s52 = sphi 0, %s50
      %s53 = sphi 0, %s52
      %s67 = sphi 0, %s53
      %s71 = sphi 0, %s71
      %s73 = sphi 0, %s71
      %s74 = sphi 0, %s73
      %s88 = sphi 0, %s74
      %s94 = sphi 0, %s96
      %s97 = sphi 0, %s94
      %s98 = sphi 0, %s97
      %s114 = sphi 0, %s98
    $region4: #{mnist_cnn_forward.3} parent=1 // loop_header_branch
      %19 = sbr.rel (%p17) target = $region8
    $region5: #{mnist_cnn_forward.3} parent=1 // loop_body
      %s21 = ssub.s32 %s16, 1
      %s22 = ssub.s32 %s16, 2
      %s23 = sadd.s32 %s16, 1
      %s24 = ssub.s32 %s16, %s23
      %p25 = scmp.eq.s32.totalorder %s24, 0
      %s27 = sadd.s32 %s26, 1
      %s28 = scalar_select %p25, %s26, %s27
      %p31 = pneg %p25
      %p32 = scmp.eq.s32.totalorder %s16, 1
      %p33 = por %p31, %p32
      %p34 = scmp.ne.s32.totalorder %s26, %s29
      %p35 = scmp.eq.s32.totalorder %s16, 0
      %p36 = por %p34, %p35
      %p37 = scmp.ne.s32.totalorder %s26, %s29
      %p38 = scmp.eq.s32.totalorder %s21, 1
      %p39 = por %p37, %p38
      %p40 = scmp.ne.s32.totalorder %s29, %s30
      %p41 = scmp.eq.s32.totalorder %s21, 0
      %p42 = por %p40, %p41
      %p43 = scmp.ne.s32.totalorder %s29, %s30
      %p44 = scmp.eq.s32.totalorder %s22, 1
      %p45 = por %p43, %p44
      %p47 = scmp.ne.s32.totalorder %s30, %s46
      %p48 = scmp.eq.s32.totalorder %s22, 0
      %p49 = por %p47, %p48
      %s51 = sadd.s32 %s50, 1
      %p54 = scmp.eq.s32.totalorder %s16, 1
      %p55 = scmp.ne.s32.totalorder %s50, %s52
      %p56 = scmp.eq.s32.totalorder %s16, 0
      %p57 = por %p55, %p56
      %p58 = scmp.ne.s32.totalorder %s50, %s52
      %p59 = scmp.eq.s32.totalorder %s21, 1
      %p60 = por %p58, %p59
      %p61 = scmp.ne.s32.totalorder %s52, %s53
      %p62 = scmp.eq.s32.totalorder %s21, 0
      %p63 = por %p61, %p62
      %p64 = scmp.ne.s32.totalorder %s52, %s53
      %p65 = scmp.eq.s32.totalorder %s22, 1
      %p66 = por %p64, %p65
      %p68 = scmp.ne.s32.totalorder %s53, %s67
      %p69 = scmp.eq.s32.totalorder %s22, 0
      %p70 = por %p68, %p69
      %s72 = sadd.s32 %s71, 1
      %p75 = scmp.eq.s32.totalorder %s16, 1
      %p76 = scmp.ne.s32.totalorder %s71, %s73
      %p77 = scmp.eq.s32.totalorder %s16, 0
      %p78 = por %p76, %p77
      %p79 = scmp.ne.s32.totalorder %s71, %s73
      %p80 = scmp.eq.s32.totalorder %s21, 1
      %p81 = por %p79, %p80
      %p82 = scmp.ne.s32.totalorder %s73, %s74
      %p83 = scmp.eq.s32.totalorder %s21, 0
      %p84 = por %p82, %p83
      %p85 = scmp.ne.s32.totalorder %s73, %s74
      %p86 = scmp.eq.s32.totalorder %s22, 1
      %p87 = por %p85, %p86
      %p89 = scmp.ne.s32.totalorder %s74, %s88
      %p90 = scmp.eq.s32.totalorder %s22, 0
      %p91 = por %p89, %p90
      %s92 = ssub.s32 %s16, %s23
      %p93 = scmp.eq.s32.totalorder %s92, 0
      %s95 = sadd.s32 %s94, 1
      %s96 = scalar_select %p93, %s94, %s95
      %p99 = pneg %p93
      %p100 = scmp.eq.s32.totalorder %s16, 1
      %p101 = por %p99, %p100
      %p102 = scmp.ne.s32.totalorder %s94, %s97
      %p103 = scmp.eq.s32.totalorder %s16, 0
      %p104 = por %p102, %p103
      %p105 = scmp.ne.s32.totalorder %s94, %s97
      %p106 = scmp.eq.s32.totalorder %s21, 1
      %p107 = por %p105, %p106
      %p108 = scmp.ne.s32.totalorder %s97, %s98
      %p109 = scmp.eq.s32.totalorder %s21, 0
      %p110 = por %p108, %p109
      %p111 = scmp.ne.s32.totalorder %s97, %s98
      %p112 = scmp.eq.s32.totalorder %s22, 1
      %p113 = por %p111, %p112
      %p115 = scmp.ne.s32.totalorder %s98, %s114
      %p116 = scmp.eq.s32.totalorder %s22, 0
      %p117 = por %p115, %p116
      %p118 = scmp.le.s32.totalorder 1, %s16
      %p119 = scmp.lt.s32.totalorder %s16, 3
      %p120 = pnand %p118, %p119
      %p121 = pneg %p120
      // Predicated region
      $region9: #{mnist_cnn_forward.3} parent=5 // pred_check
        _
      $region10: #{mnist_cnn_forward.3} parent=5 // pred_check_branch
        %123 = sbr.rel (%p120) target = $region12
      $region11: #{mnist_cnn_forward.3} parent=5 // pred_region
        %s124 = ssub.s32 %s16, 1
        // Predicated region
        $region13: #{mnist_cnn_forward.3} parent=11 // pred_check
          %p125 = pneg %p63
        $region14: #{mnist_cnn_forward.3} parent=11 // pred_check_branch
          %127 = sbr.rel (%p125) target = $region16
        $region15: #{mnist_cnn_forward.3} parent=11 // pred_region
          %s129 = ssub.s32 256, 256
          %130 = vsyncadd [#allocation6], %s129
          %s131 = sshll.u32 [#allocation5], 4
          %s132 = int_to_ptr.vmem [resolvable:$true] %s131
          %137 = dma.hbm_to_vmem [thread:$0]  %s1, 256, %s132, [#allocation6], 128, 128, 8
        $region16: #{mnist_cnn_forward.3} parent=11 // pred_fallthru
          _
        // Predicated region
        $region17: #{mnist_cnn_forward.3} parent=11 // pred_check
          %p138 = pneg %p84
        $region18: #{mnist_cnn_forward.3} parent=11 // pred_check_branch
          %140 = sbr.rel (%p138) target = $region20
        $region19: #{mnist_cnn_forward.3} parent=11 // pred_region
          %s142 = ssub.s32 16, 16
          %143 = vsyncadd [#allocation6], %s142
          %s145 = sshll.u32 [#allocation7], 4
          %s146 = int_to_ptr.vmem [resolvable:$true] %s145
          %148 = dma.hbm_to_vmem [thread:$0]  %s2, 16, %s146, [#allocation6]
        $region20: #{mnist_cnn_forward.3} parent=11 // pred_fallthru
          _
      $region12: #{mnist_cnn_forward.3} parent=5 // pred_fallthru
        _
      %p149 = scmp.lt.s32.totalorder %s16, 2
      // Predicated region
      $region21: #{mnist_cnn_forward.3} parent=5 // pred_check
        %p150 = pneg %p149
      $region22: #{mnist_cnn_forward.3} parent=5 // pred_check_branch
        %152 = sbr.rel (%p150) target = $region24
      $region23: #{mnist_cnn_forward.3} parent=5 // pred_region
        // Predicated region
        $region25: #{mnist_cnn_forward.3} parent=23 // pred_check
          %p153 = pneg %p36
        $region26: #{mnist_cnn_forward.3} parent=23 // pred_check_branch
          %155 = sbr.rel (%p153) target = $region28
        $region27: #{mnist_cnn_forward.3} parent=23 // pred_region
          %s156 = sand.u32 %s26, 1
          %s157 = scalar_lea.sflag [#allocation3], %s156
          %s158 = sand.u32 %s26, 1
          %s159 = smul.addr %s158, 128
          %s160 = scalar_lea.vmem [#allocation2], %s159
          %s161 = smul.u32 32, %s16
          %s163 = ssub.s32 2048, 2048
          %164 = vsyncadd %s157, %s163
          %s165 = smul.addr %s161, 64
          %s166 = scalar_lea.hbm %s0, %s165
          %s167 = sshll.u32 %s160, 4
          %s168 = int_to_ptr.vmem [resolvable:$true] %s167
          %173 = dma.hbm_to_vmem [thread:$0]  %s166, 2048, %s168, %s157, 64, 64, 4
        $region28: #{mnist_cnn_forward.3} parent=23 // pred_fallthru
          _
      $region24: #{mnist_cnn_forward.3} parent=5 // pred_fallthru
        _
      %p174 = scmp.le.s32.totalorder 1, %s16
      %p175 = scmp.lt.s32.totalorder %s16, 3
      %p176 = pnand %p174, %p175
      %p177 = pneg %p176
      // Predicated region
      $region29: #{mnist_cnn_forward.3} parent=5 // pred_check
        _
      $region30: #{mnist_cnn_forward.3} parent=5 // pred_check_branch
        %179 = sbr.rel (%p176) target = $region32
      $region31: #{mnist_cnn_forward.3} parent=5 // pred_region
        %s180 = ssub.s32 %s16, 1
        %s181 = sand.u32 %s29, 1
        %s182 = scalar_lea.sflag [#allocation3], %s181
        %s183 = sand.u32 %s29, 1
        %s184 = smul.addr %s183, 128
        %s185 = scalar_lea.vmem [#allocation2], %s184
        // Predicated region
        $region33: #{mnist_cnn_forward.3} parent=31 // pred_check
          %p186 = pneg %p42
        $region34: #{mnist_cnn_forward.3} parent=31 // pred_check_branch
          %188 = sbr.rel (%p186) target = $region36
        $region35: #{mnist_cnn_forward.3} parent=31 // pred_region
          %189 = dma.done %s182, 2048
        $region36: #{mnist_cnn_forward.3} parent=31 // pred_fallthru
          _
        // Predicated region
        $region37: #{mnist_cnn_forward.3} parent=31 // pred_check
          %p190 = pneg %p63
        $region38: #{mnist_cnn_forward.3} parent=31 // pred_check_branch
          %192 = sbr.rel (%p190) target = $region40
        $region39: #{mnist_cnn_forward.3} parent=31 // pred_region
          %193 = dma.done [#allocation6], 256
        $region40: #{mnist_cnn_forward.3} parent=31 // pred_fallthru
          _
        // Predicated region
        $region41: #{mnist_cnn_forward.3} parent=31 // pred_check
          %p194 = pneg %p84
        $region42: #{mnist_cnn_forward.3} parent=31 // pred_check_branch
          %196 = sbr.rel (%p194) target = $region44
        $region43: #{mnist_cnn_forward.3} parent=31 // pred_region
          %197 = dma.done [#allocation6], 16
        $region44: #{mnist_cnn_forward.3} parent=31 // pred_fallthru
          _
        %s198 = sand.u32 %s29, 1
        %s199 = scalar_lea.sflag [#allocation3], %s198
        %s200 = sand.u32 %s29, 1
        %s201 = smul.addr %s200, 128
        %s202 = scalar_lea.vmem [#allocation2], %s201
        %p203 = pneg %p42
        %p204 = pneg %p39
        %p205 = pneg %p63
        %p206 = pneg %p60
        %p207 = pneg %p84
        %p208 = pneg %p81
        %p209 = pneg %p110
        %p210 = pneg %p107
        %s211 = sand.u32 %s97, 1
        %s212 = scalar_lea.sflag [#allocation4], %s211
        %s213 = sand.u32 %s97, 1
        %s214 = smul.addr %s213, 128
        %s215 = scalar_lea.vmem [#allocation8], %s214
        %s216 = smul.u32 32, %s21
        %s217 = smul.u32 32, %s21
        %v219 = vld [vmem:[%s185] sm:$0xf]
        %v220 = vld [vmem:[%s185 + $0x4] sm:$0xf]
        %v221 = vld [vmem:[%s185 + $0x8] sm:$0xf]
        %v222 = vld [vmem:[%s185 + $0xc] sm:$0xf]
        %v223 = vld [vmem:[%s185 + $0x10] sm:$0xf]
        %v224 = vld [vmem:[%s185 + $0x14] sm:$0xf]
        %v225 = vld [vmem:[%s185 + $0x18] sm:$0xf]
        %v226 = vld [vmem:[%s185 + $0x1c] sm:$0xf]
        %v227 = vld [vmem:[%s185 + $0x20] sm:$0xf]
        %v228 = vld [vmem:[%s185 + $0x24] sm:$0xf]
        %v229 = vld [vmem:[%s185 + $0x28] sm:$0xf]
        %v230 = vld [vmem:[%s185 + $0x2c] sm:$0xf]
        %v231 = vld [vmem:[%s185 + $0x30] sm:$0xf]
        %v232 = vld [vmem:[%s185 + $0x34] sm:$0xf]
        %v233 = vld [vmem:[%s185 + $0x38] sm:$0xf]
        %v234 = vld [vmem:[%s185 + $0x3c] sm:$0xf]
        %v235 = vld [vmem:[%s185 + $0x40] sm:$0xf]
        %v236 = vld [vmem:[%s185 + $0x44] sm:$0xf]
        %v237 = vld [vmem:[%s185 + $0x48] sm:$0xf]
        %v238 = vld [vmem:[%s185 + $0x4c] sm:$0xf]
        %v239 = vld [vmem:[%s185 + $0x50] sm:$0xf]
        %v240 = vld [vmem:[%s185 + $0x54] sm:$0xf]
        %v241 = vld [vmem:[%s185 + $0x58] sm:$0xf]
        %v242 = vld [vmem:[%s185 + $0x5c] sm:$0xf]
        %v243 = vld [vmem:[%s185 + $0x60] sm:$0xf]
        %v244 = vld [vmem:[%s185 + $0x64] sm:$0xf]
        %v245 = vld [vmem:[%s185 + $0x68] sm:$0xf]
        %v246 = vld [vmem:[%s185 + $0x6c] sm:$0xf]
        %v247 = vld [vmem:[%s185 + $0x70] sm:$0xf]
        %v248 = vld [vmem:[%s185 + $0x74] sm:$0xf]
        %v249 = vld [vmem:[%s185 + $0x78] sm:$0xf]
        %v250 = vld [vmem:[%s185 + $0x7c] sm:$0xf]
        %v251 = vld [vmem:[#allocation5] sm:$0xff]
        %v252 = vld [vmem:[#allocation5 + $0x8] sm:$0xff]
        %v285 = vunpack.c.l.b16 %v219
        %v286 = vunpack.c.l.b16 %v220
        %v287 = vunpack.c.l.b16 %v221
        %v288 = vunpack.c.l.b16 %v222
        %v289 = vunpack.c.l.b16 %v223
        %v290 = vunpack.c.l.b16 %v224
        %v291 = vunpack.c.l.b16 %v225
        %v292 = vunpack.c.l.b16 %v226
        %v293 = vunpack.c.l.b16 %v227
        %v294 = vunpack.c.l.b16 %v228
        %v295 = vunpack.c.l.b16 %v229
        %v296 = vunpack.c.l.b16 %v230
        %v297 = vunpack.c.l.b16 %v231
        %v298 = vunpack.c.l.b16 %v232
        %v299 = vunpack.c.l.b16 %v233
        %v300 = vunpack.c.l.b16 %v234
        %v301 = vunpack.c.l.b16 %v235
        %v302 = vunpack.c.l.b16 %v236
        %v303 = vunpack.c.l.b16 %v237
        %v304 = vunpack.c.l.b16 %v238
        %v305 = vunpack.c.l.b16 %v239
        %v306 = vunpack.c.l.b16 %v240
        %v307 = vunpack.c.l.b16 %v241
        %v308 = vunpack.c.l.b16 %v242
        %v309 = vunpack.c.l.b16 %v243
        %v310 = vunpack.c.l.b16 %v244
        %v311 = vunpack.c.l.b16 %v245
        %v312 = vunpack.c.l.b16 %v246
        %v313 = vunpack.c.l.b16 %v247
        %v314 = vunpack.c.l.b16 %v248
        %v315 = vunpack.c.l.b16 %v249
        %v316 = vunpack.c.l.b16 %v250
        %v317 = vpack.c.b16 %v286, %v285
        %v318 = vpack.c.b16 %v288, %v287
        %v319 = vpack.c.b16 %v290, %v289
        %v320 = vpack.c.b16 %v292, %v291
        %v321 = vpack.c.b16 %v294, %v293
        %v322 = vpack.c.b16 %v296, %v295
        %v323 = vpack.c.b16 %v298, %v297
        %v324 = vpack.c.b16 %v300, %v299
        %v325 = vpack.c.b16 %v302, %v301
        %v326 = vpack.c.b16 %v304, %v303
        %v327 = vpack.c.b16 %v306, %v305
        %v328 = vpack.c.b16 %v308, %v307
        %v329 = vpack.c.b16 %v310, %v309
        %v330 = vpack.c.b16 %v312, %v311
        %v331 = vpack.c.b16 %v314, %v313
        %v332 = vpack.c.b16 %v316, %v315
        %v335 = vunpack.c.l.b16 %v251
        %v336 = vunpack.c.h.b16 %v251
        %v337 = vunpack.c.l.b16 %v252
        %v338 = vunpack.c.h.b16 %v252
        %v339 = vpack.c.b16 %v337, %v335
        %v340 = vpack.c.b16 %v338, %v336
        %vm343 = vcmask 130048
        %v345 = vsel %vm343, %v317, 0
        %v348 = vsel %vm343, %v318, 0
        %v351 = vsel %vm343, %v319, 0
        %v354 = vsel %vm343, %v320, 0
        %v357 = vsel %vm343, %v321, 0
        %v360 = vsel %vm343, %v322, 0
        %v363 = vsel %vm343, %v323, 0
        %v366 = vsel %vm343, %v324, 0
        %v369 = vsel %vm343, %v325, 0
        %v372 = vsel %vm343, %v326, 0
        %v375 = vsel %vm343, %v327, 0
        %v378 = vsel %vm343, %v328, 0
        %v381 = vsel %vm343, %v329, 0
        %v384 = vsel %vm343, %v330, 0
        %v387 = vsel %vm343, %v331, 0
        %v390 = vsel %vm343, %v332, 0
        %392 = vmatprep.subr.bf16.mxu0 %v340
        %393 = vmatpush1.bf16.msra.mxu0 %v339
        %394 = vmatprep.subr.bf16.mxu0 0
        %395 = vmatpush1.bf16.msra.mxu0 0
        %396 = vmatprep.subr.bf16.mxu0 0
        %397 = vmatpush1.bf16.msra.mxu0 0
        %398 = vmatprep.subr.bf16.mxu0 0
        %399 = vmatpush1.bf16.msra.mxu0 0
        %400 = vmatprep.subr.bf16.mxu0 0
        %401 = vmatpush1.bf16.msra.mxu0 0
        %402 = vmatprep.subr.bf16.mxu0 0
        %403 = vmatpush1.bf16.msra.mxu0 0
        %404 = vmatprep.subr.bf16.mxu0 0
        %405 = vmatpush1.bf16.msra.mxu0 0
        %406 = vmatprep.subr.bf16.mxu0 0
        %407 = vmatpush1.bf16.msra.mxu0 0
        %408 = vmatprep.subr.bf16.mxu0 0
        %409 = vmatpush1.bf16.msra.mxu0 0
        %410 = vmatprep.subr.bf16.mxu0 0
        %411 = vmatpush1.bf16.msra.mxu0 0
        %412 = vmatprep.subr.bf16.mxu0 0
        %413 = vmatpush1.bf16.msra.mxu0 0
        %414 = vmatprep.subr.bf16.mxu0 0
        %415 = vmatpush1.bf16.msra.mxu0 0
        %416 = vmatprep.subr.bf16.mxu0 0
        %417 = vmatpush1.bf16.msra.mxu0 0
        %418 = vmatprep.subr.bf16.mxu0 0
        %419 = vmatpush1.bf16.msra.mxu0 0
        %420 = vmatprep.subr.bf16.mxu0 0
        %421 = vmatpush1.bf16.msra.mxu0 0
        %422 = vmatprep.subr.bf16.mxu0 0
        %423 = vmatpush1.bf16.msra.mxu0 0
        %424 = vmatprep.mubr.bf16.mxu0 0
        %425 = vmatmul.mubr.bf16.gmra.mrb[0].mxu0 %v345
        %v426 = vpop.f32.mrb[0].mxu0
        %v427 = vadd.f32 0.0, %v426
        %v428 = vpop.f32.mrb[0].mxu0
        %v429 = vadd.f32 0.0, %v428
        %v430 = vpop.f32.mrb[0].mxu0
        %v431 = vadd.f32 0.0, %v430
        %v432 = vpop.f32.mrb[0].mxu0
        %v433 = vadd.f32 0.0, %v432
        %434 = vmatprep.mubr.bf16.mxu0 0
        %435 = vmatmul.mubr.bf16.gmra.mrb[0].mxu0 %v348
        %v436 = vpop.f32.mrb[0].mxu0
        %v437 = vadd.f32 0.0, %v436
        %v438 = vpop.f32.mrb[0].mxu0
        %v439 = vadd.f32 0.0, %v438
        %v440 = vpop.f32.mrb[0].mxu0
        %v441 = vadd.f32 0.0, %v440
        %v442 = vpop.f32.mrb[0].mxu0
        %v443 = vadd.f32 0.0, %v442
        %444 = vmatprep.mubr.bf16.mxu0 0
        %445 = vmatmul.mubr.bf16.gmra.mrb[0].mxu0 %v351
        %v446 = vpop.f32.mrb[0].mxu0
        %v447 = vadd.f32 0.0, %v446
        %v448 = vpop.f32.mrb[0].mxu0
        %v449 = vadd.f32 0.0, %v448
        %v450 = vpop.f32.mrb[0].mxu0
        %v451 = vadd.f32 0.0, %v450
        %v452 = vpop.f32.mrb[0].mxu0
        %v453 = vadd.f32 0.0, %v452
        %454 = vmatprep.mubr.bf16.mxu0 0
        %455 = vmatmul.mubr.bf16.gmra.mrb[0].mxu0 %v354
        %v456 = vpop.f32.mrb[0].mxu0
        %v457 = vadd.f32 0.0, %v456
        %v458 = vpop.f32.mrb[0].mxu0
        %v459 = vadd.f32 0.0, %v458
        %v460 = vpop.f32.mrb[0].mxu0
        %v461 = vadd.f32 0.0, %v460
        %v462 = vpop.f32.mrb[0].mxu0
        %v463 = vadd.f32 0.0, %v462
        %464 = vmatprep.mubr.bf16.mxu0 0
        %465 = vmatmul.mubr.bf16.gmra.mrb[0].mxu0 %v357
        %v466 = vpop.f32.mrb[0].mxu0
        %v467 = vadd.f32 0.0, %v466
        %v468 = vpop.f32.mrb[0].mxu0
        %v469 = vadd.f32 0.0, %v468
        %v470 = vpop.f32.mrb[0].mxu0
        %v471 = vadd.f32 0.0, %v470
        %v472 = vpop.f32.mrb[0].mxu0
        %v473 = vadd.f32 0.0, %v472
        %474 = vmatprep.mubr.bf16.mxu0 0
        %475 = vmatmul.mubr.bf16.gmra.mrb[0].mxu0 %v360
        %v476 = vpop.f32.mrb[0].mxu0
        %v477 = vadd.f32 0.0, %v476
        %v478 = vpop.f32.mrb[0].mxu0
        %v479 = vadd.f32 0.0, %v478
        %v480 = vpop.f32.mrb[0].mxu0
        %v481 = vadd.f32 0.0, %v480
        %v482 = vpop.f32.mrb[0].mxu0
        %v483 = vadd.f32 0.0, %v482
        %484 = vmatprep.mubr.bf16.mxu0 0
        %485 = vmatmul.mubr.bf16.gmra.mrb[0].mxu0 %v363
        %v486 = vpop.f32.mrb[0].mxu0
        %v487 = vadd.f32 0.0, %v486
        %v488 = vpop.f32.mrb[0].mxu0
        %v489 = vadd.f32 0.0, %v488
        %v490 = vpop.f32.mrb[0].mxu0
        %v491 = vadd.f32 0.0, %v490
        %v492 = vpop.f32.mrb[0].mxu0
        %v493 = vadd.f32 0.0, %v492
        %494 = vmatprep.mubr.bf16.mxu0 0
        %495 = vmatmul.mubr.bf16.gmra.mrb[0].mxu0 %v366
        %v496 = vpop.f32.mrb[0].mxu0
        %v497 = vadd.f32 0.0, %v496
        %v498 = vpop.f32.mrb[0].mxu0
        %v499 = vadd.f32 0.0, %v498
        %v500 = vpop.f32.mrb[0].mxu0
        %v501 = vadd.f32 0.0, %v500
        %v502 = vpop.f32.mrb[0].mxu0
        %v503 = vadd.f32 0.0, %v502
        %504 = vmatprep.mubr.bf16.mxu0 0
        %505 = vmatmul.mubr.bf16.gmra.mrb[0].mxu0 %v369
        %v506 = vpop.f32.mrb[0].mxu0
        %v507 = vadd.f32 0.0, %v506
        %v508 = vpop.f32.mrb[0].mxu0
        %v509 = vadd.f32 0.0, %v508
        %v510 = vpop.f32.mrb[0].mxu0
        %v511 = vadd.f32 0.0, %v510
        %v512 = vpop.f32.mrb[0].mxu0
        %v513 = vadd.f32 0.0, %v512
        %514 = vmatprep.mubr.bf16.mxu0 0
        %515 = vmatmul.mubr.bf16.gmra.mrb[0].mxu0 %v372
        %v516 = vpop.f32.mrb[0].mxu0
        %v517 = vadd.f32 0.0, %v516
        %v518 = vpop.f32.mrb[0].mxu0
        %v519 = vadd.f32 0.0, %v518
        %v520 = vpop.f32.mrb[0].mxu0
        %v521 = vadd.f32 0.0, %v520
        %v522 = vpop.f32.mrb[0].mxu0
        %v523 = vadd.f32 0.0, %v522
        %524 = vmatprep.mubr.bf16.mxu0 0
        %525 = vmatmul.mubr.bf16.gmra.mrb[0].mxu0 %v375
        %v526 = vpop.f32.mrb[0].mxu0
        %v527 = vadd.f32 0.0, %v526
        %v528 = vpop.f32.mrb[0].mxu0
        %v529 = vadd.f32 0.0, %v528
        %v530 = vpop.f32.mrb[0].mxu0
        %v531 = vadd.f32 0.0, %v530
        %v532 = vpop.f32.mrb[0].mxu0
        %v533 = vadd.f32 0.0, %v532
        %534 = vmatprep.mubr.bf16.mxu0 0
        %535 = vmatmul.mubr.bf16.gmra.mrb[0].mxu0 %v378
        %v536 = vpop.f32.mrb[0].mxu0
        %v537 = vadd.f32 0.0, %v536
        %v538 = vpop.f32.mrb[0].mxu0
        %v539 = vadd.f32 0.0, %v538
        %v540 = vpop.f32.mrb[0].mxu0
        %v541 = vadd.f32 0.0, %v540
        %v542 = vpop.f32.mrb[0].mxu0
        %v543 = vadd.f32 0.0, %v542
        %544 = vmatprep.mubr.bf16.mxu0 0
        %545 = vmatmul.mubr.bf16.gmra.mrb[0].mxu0 %v381
        %v546 = vpop.f32.mrb[0].mxu0
        %v547 = vadd.f32 0.0, %v546
        %v548 = vpop.f32.mrb[0].mxu0
        %v549 = vadd.f32 0.0, %v548
        %v550 = vpop.f32.mrb[0].mxu0
        %v551 = vadd.f32 0.0, %v550
        %v552 = vpop.f32.mrb[0].mxu0
        %v553 = vadd.f32 0.0, %v552
        %554 = vmatprep.mubr.bf16.mxu0 0
        %555 = vmatmul.mubr.bf16.gmra.mrb[0].mxu0 %v384
        %v556 = vpop.f32.mrb[0].mxu0
        %v557 = vadd.f32 0.0, %v556
        %v558 = vpop.f32.mrb[0].mxu0
        %v559 = vadd.f32 0.0, %v558
        %v560 = vpop.f32.mrb[0].mxu0
        %v561 = vadd.f32 0.0, %v560
        %v562 = vpop.f32.mrb[0].mxu0
        %v563 = vadd.f32 0.0, %v562
        %564 = vmatprep.mubr.bf16.mxu0 0
        %565 = vmatmul.mubr.bf16.gmra.mrb[0].mxu0 %v387
        %v566 = vpop.f32.mrb[0].mxu0
        %v567 = vadd.f32 0.0, %v566
        %v568 = vpop.f32.mrb[0].mxu0
        %v569 = vadd.f32 0.0, %v568
        %v570 = vpop.f32.mrb[0].mxu0
        %v571 = vadd.f32 0.0, %v570
        %v572 = vpop.f32.mrb[0].mxu0
        %v573 = vadd.f32 0.0, %v572
        %574 = vmatprep.mubr.bf16.mxu0 0
        %575 = vmatmul.mubr.bf16.gmra.mrb[0].mxu0 %v390
        %v576 = vpop.f32.mrb[0].mxu0
        %v577 = vadd.f32 0.0, %v576
        %v578 = vpop.f32.mrb[0].mxu0
        %v579 = vadd.f32 0.0, %v578
        %v580 = vpop.f32.mrb[0].mxu0
        %v581 = vadd.f32 0.0, %v580
        %v582 = vpop.f32.mrb[0].mxu0
        %v583 = vadd.f32 0.0, %v582
        %584 = vdwg.mxu0
        %617 = vrot.lane.b32.xlu0 %v427, 64
        %v618 = vpop.permute.xlu0 %617
        %619 = vrot.lane.b32.xlu0 %v431, 64
        %v620 = vpop.permute.xlu0 %619
        %621 = vrot.lane.b32.xlu0 %v437, 64
        %v622 = vpop.permute.xlu0 %621
        %623 = vrot.lane.b32.xlu0 %v441, 64
        %v624 = vpop.permute.xlu0 %623
        %625 = vrot.lane.b32.xlu0 %v447, 64
        %v626 = vpop.permute.xlu0 %625
        %627 = vrot.lane.b32.xlu0 %v451, 64
        %v628 = vpop.permute.xlu0 %627
        %629 = vrot.lane.b32.xlu0 %v457, 64
        %v630 = vpop.permute.xlu0 %629
        %631 = vrot.lane.b32.xlu0 %v461, 64
        %v632 = vpop.permute.xlu0 %631
        %633 = vrot.lane.b32.xlu0 %v467, 64
        %v634 = vpop.permute.xlu0 %633
        %635 = vrot.lane.b32.xlu0 %v471, 64
        %v636 = vpop.permute.xlu0 %635
        %637 = vrot.lane.b32.xlu0 %v477, 64
        %v638 = vpop.permute.xlu0 %637
        %639 = vrot.lane.b32.xlu0 %v481, 64
        %v640 = vpop.permute.xlu0 %639
        %641 = vrot.lane.b32.xlu0 %v487, 64
        %v642 = vpop.permute.xlu0 %641
        %643 = vrot.lane.b32.xlu0 %v491, 64
        %v644 = vpop.permute.xlu0 %643
        %645 = vrot.lane.b32.xlu0 %v497, 64
        %v646 = vpop.permute.xlu0 %645
        %647 = vrot.lane.b32.xlu0 %v501, 64
        %v648 = vpop.permute.xlu0 %647
        %649 = vrot.lane.b32.xlu0 %v507, 64
        %v650 = vpop.permute.xlu0 %649
        %651 = vrot.lane.b32.xlu0 %v511, 64
        %v652 = vpop.permute.xlu0 %651
        %653 = vrot.lane.b32.xlu0 %v517, 64
        %v654 = vpop.permute.xlu0 %653
        %655 = vrot.lane.b32.xlu0 %v521, 64
        %v656 = vpop.permute.xlu0 %655
        %657 = vrot.lane.b32.xlu0 %v527, 64
        %v658 = vpop.permute.xlu0 %657
        %659 = vrot.lane.b32.xlu0 %v531, 64
        %v660 = vpop.permute.xlu0 %659
        %661 = vrot.lane.b32.xlu0 %v537, 64
        %v662 = vpop.permute.xlu0 %661
        %663 = vrot.lane.b32.xlu0 %v541, 64
        %v664 = vpop.permute.xlu0 %663
        %665 = vrot.lane.b32.xlu0 %v547, 64
        %v666 = vpop.permute.xlu0 %665
        %667 = vrot.lane.b32.xlu0 %v551, 64
        %v668 = vpop.permute.xlu0 %667
        %669 = vrot.lane.b32.xlu0 %v557, 64
        %v670 = vpop.permute.xlu0 %669
        %671 = vrot.lane.b32.xlu0 %v561, 64
        %v672 = vpop.permute.xlu0 %671
        %673 = vrot.lane.b32.xlu0 %v567, 64
        %v674 = vpop.permute.xlu0 %673
        %675 = vrot.lane.b32.xlu0 %v571, 64
        %v676 = vpop.permute.xlu0 %675
        %677 = vrot.lane.b32.xlu0 %v577, 64
        %v678 = vpop.permute.xlu0 %677
        %679 = vrot.lane.b32.xlu0 %v581, 64
        %v680 = vpop.permute.xlu0 %679
        %v713 = vmax.f32 %v427, %v618
        %v714 = vmax.f32 %v431, %v620
        %v715 = vmax.f32 %v437, %v622
        %v716 = vmax.f32 %v441, %v624
        %v717 = vmax.f32 %v447, %v626
        %v718 = vmax.f32 %v451, %v628
        %v719 = vmax.f32 %v457, %v630
        %v720 = vmax.f32 %v461, %v632
        %v721 = vmax.f32 %v467, %v634
        %v722 = vmax.f32 %v471, %v636
        %v723 = vmax.f32 %v477, %v638
        %v724 = vmax.f32 %v481, %v640
        %v725 = vmax.f32 %v487, %v642
        %v726 = vmax.f32 %v491, %v644
        %v727 = vmax.f32 %v497, %v646
        %v728 = vmax.f32 %v501, %v648
        %v729 = vmax.f32 %v507, %v650
        %v730 = vmax.f32 %v511, %v652
        %v731 = vmax.f32 %v517, %v654
        %v732 = vmax.f32 %v521, %v656
        %v733 = vmax.f32 %v527, %v658
        %v734 = vmax.f32 %v531, %v660
        %v735 = vmax.f32 %v537, %v662
        %v736 = vmax.f32 %v541, %v664
        %v737 = vmax.f32 %v547, %v666
        %v738 = vmax.f32 %v551, %v668
        %v739 = vmax.f32 %v557, %v670
        %v740 = vmax.f32 %v561, %v672
        %v741 = vmax.f32 %v567, %v674
        %v742 = vmax.f32 %v571, %v676
        %v743 = vmax.f32 %v577, %v678
        %v744 = vmax.f32 %v581, %v680
        %777 = vrot.lane.b32.xlu0 %v429, 64
        %v778 = vpop.permute.xlu0 %777
        %779 = vrot.lane.b32.xlu0 %v433, 64
        %v780 = vpop.permute.xlu0 %779
        %781 = vrot.lane.b32.xlu0 %v439, 64
        %v782 = vpop.permute.xlu0 %781
        %783 = vrot.lane.b32.xlu0 %v443, 64
        %v784 = vpop.permute.xlu0 %783
        %785 = vrot.lane.b32.xlu0 %v449, 64
        %v786 = vpop.permute.xlu0 %785
        %787 = vrot.lane.b32.xlu0 %v453, 64
        %v788 = vpop.permute.xlu0 %787
        %789 = vrot.lane.b32.xlu0 %v459, 64
        %v790 = vpop.permute.xlu0 %789
        %791 = vrot.lane.b32.xlu0 %v463, 64
        %v792 = vpop.permute.xlu0 %791
        %793 = vrot.lane.b32.xlu0 %v469, 64
        %v794 = vpop.permute.xlu0 %793
        %795 = vrot.lane.b32.xlu0 %v473, 64
        %v796 = vpop.permute.xlu0 %795
        %797 = vrot.lane.b32.xlu0 %v479, 64
        %v798 = vpop.permute.xlu0 %797
        %799 = vrot.lane.b32.xlu0 %v483, 64
        %v800 = vpop.permute.xlu0 %799
        %801 = vrot.lane.b32.xlu0 %v489, 64
        %v802 = vpop.permute.xlu0 %801
        %803 = vrot.lane.b32.xlu0 %v493, 64
        %v804 = vpop.permute.xlu0 %803
        %805 = vrot.lane.b32.xlu0 %v499, 64
        %v806 = vpop.permute.xlu0 %805
        %807 = vrot.lane.b32.xlu0 %v503, 64
        %v808 = vpop.permute.xlu0 %807
        %809 = vrot.lane.b32.xlu0 %v509, 64
        %v810 = vpop.permute.xlu0 %809
        %811 = vrot.lane.b32.xlu0 %v513, 64
        %v812 = vpop.permute.xlu0 %811
        %813 = vrot.lane.b32.xlu0 %v519, 64
        %v814 = vpop.permute.xlu0 %813
        %815 = vrot.lane.b32.xlu0 %v523, 64
        %v816 = vpop.permute.xlu0 %815
        %817 = vrot.lane.b32.xlu0 %v529, 64
        %v818 = vpop.permute.xlu0 %817
        %819 = vrot.lane.b32.xlu0 %v533, 64
        %v820 = vpop.permute.xlu0 %819
        %821 = vrot.lane.b32.xlu0 %v539, 64
        %v822 = vpop.permute.xlu0 %821
        %823 = vrot.lane.b32.xlu0 %v543, 64
        %v824 = vpop.permute.xlu0 %823
        %825 = vrot.lane.b32.xlu0 %v549, 64
        %v826 = vpop.permute.xlu0 %825
        %827 = vrot.lane.b32.xlu0 %v553, 64
        %v828 = vpop.permute.xlu0 %827
        %829 = vrot.lane.b32.xlu0 %v559, 64
        %v830 = vpop.permute.xlu0 %829
        %831 = vrot.lane.b32.xlu0 %v563, 64
        %v832 = vpop.permute.xlu0 %831
        %833 = vrot.lane.b32.xlu0 %v569, 64
        %v834 = vpop.permute.xlu0 %833
        %835 = vrot.lane.b32.xlu0 %v573, 64
        %v836 = vpop.permute.xlu0 %835
        %837 = vrot.lane.b32.xlu0 %v579, 64
        %v838 = vpop.permute.xlu0 %837
        %839 = vrot.lane.b32.xlu0 %v583, 64
        %v840 = vpop.permute.xlu0 %839
        %v873 = vmax.f32 %v429, %v778
        %v874 = vmax.f32 %v433, %v780
        %v875 = vmax.f32 %v439, %v782
        %v876 = vmax.f32 %v443, %v784
        %v877 = vmax.f32 %v449, %v786
        %v878 = vmax.f32 %v453, %v788
        %v879 = vmax.f32 %v459, %v790
        %v880 = vmax.f32 %v463, %v792
        %v881 = vmax.f32 %v469, %v794
        %v882 = vmax.f32 %v473, %v796
        %v883 = vmax.f32 %v479, %v798
        %v884 = vmax.f32 %v483, %v800
        %v885 = vmax.f32 %v489, %v802
        %v886 = vmax.f32 %v493, %v804
        %v887 = vmax.f32 %v499, %v806
        %v888 = vmax.f32 %v503, %v808
        %v889 = vmax.f32 %v509, %v810
        %v890 = vmax.f32 %v513, %v812
        %v891 = vmax.f32 %v519, %v814
        %v892 = vmax.f32 %v523, %v816
        %v893 = vmax.f32 %v529, %v818
        %v894 = vmax.f32 %v533, %v820
        %v895 = vmax.f32 %v539, %v822
        %v896 = vmax.f32 %v543, %v824
        %v897 = vmax.f32 %v549, %v826
        %v898 = vmax.f32 %v553, %v828
        %v899 = vmax.f32 %v559, %v830
        %v900 = vmax.f32 %v563, %v832
        %v901 = vmax.f32 %v569, %v834
        %v902 = vmax.f32 %v573, %v836
        %v903 = vmax.f32 %v579, %v838
        %v904 = vmax.f32 %v583, %v840
        %v905 = vmax.f32 %v713, %v873
        %v906 = vmax.f32 %v714, %v874
        %v907 = vmax.f32 %v715, %v875
        %v908 = vmax.f32 %v716, %v876
        %v909 = vmax.f32 %v717, %v877
        %v910 = vmax.f32 %v718, %v878
        %v911 = vmax.f32 %v719, %v879
        %v912 = vmax.f32 %v720, %v880
        %v913 = vmax.f32 %v721, %v881
        %v914 = vmax.f32 %v722, %v882
        %v915 = vmax.f32 %v723, %v883
        %v916 = vmax.f32 %v724, %v884
        %v917 = vmax.f32 %v725, %v885
        %v918 = vmax.f32 %v726, %v886
        %v919 = vmax.f32 %v727, %v887
        %v920 = vmax.f32 %v728, %v888
        %v921 = vmax.f32 %v729, %v889
        %v922 = vmax.f32 %v730, %v890
        %v923 = vmax.f32 %v731, %v891
        %v924 = vmax.f32 %v732, %v892
        %v925 = vmax.f32 %v733, %v893
        %v926 = vmax.f32 %v734, %v894
        %v927 = vmax.f32 %v735, %v895
        %v928 = vmax.f32 %v736, %v896
        %v929 = vmax.f32 %v737, %v897
        %v930 = vmax.f32 %v738, %v898
        %v931 = vmax.f32 %v739, %v899
        %v932 = vmax.f32 %v740, %v900
        %v933 = vmax.f32 %v741, %v901
        %v934 = vmax.f32 %v742, %v902
        %v935 = vmax.f32 %v743, %v903
        %v936 = vmax.f32 %v744, %v904
        %v937 = vld [vmem:[#allocation7] sm:$0x1]
        %v939 = vlaneseq
        %v940 = vshrl.u32 %v939, 7
        %v941 = vsub.s32 0, %v940
        %v942 = vrot.slane %v937, %v941
        %v944 = vadd.f32 %v905, %v942
        %v945 = vadd.f32 %v906, %v942
        %v946 = vadd.f32 %v907, %v942
        %v947 = vadd.f32 %v908, %v942
        %v948 = vadd.f32 %v909, %v942
        %v949 = vadd.f32 %v910, %v942
        %v950 = vadd.f32 %v911, %v942
        %v951 = vadd.f32 %v912, %v942
        %v952 = vadd.f32 %v913, %v942
        %v953 = vadd.f32 %v914, %v942
        %v954 = vadd.f32 %v915, %v942
        %v955 = vadd.f32 %v916, %v942
        %v956 = vadd.f32 %v917, %v942
        %v957 = vadd.f32 %v918, %v942
        %v958 = vadd.f32 %v919, %v942
        %v959 = vadd.f32 %v920, %v942
        %v960 = vadd.f32 %v921, %v942
        %v961 = vadd.f32 %v922, %v942
        %v962 = vadd.f32 %v923, %v942
        %v963 = vadd.f32 %v924, %v942
        %v964 = vadd.f32 %v925, %v942
        %v965 = vadd.f32 %v926, %v942
        %v966 = vadd.f32 %v927, %v942
        %v967 = vadd.f32 %v928, %v942
        %v968 = vadd.f32 %v929, %v942
        %v969 = vadd.f32 %v930, %v942
        %v970 = vadd.f32 %v931, %v942
        %v971 = vadd.f32 %v932, %v942
        %v972 = vadd.f32 %v933, %v942
        %v973 = vadd.f32 %v934, %v942
        %v974 = vadd.f32 %v935, %v942
        %v975 = vadd.f32 %v936, %v942
        %v976 = vmax.f32 %v944, 0.0
        %v977 = vmax.f32 %v945, 0.0
        %v978 = vmax.f32 %v946, 0.0
        %v979 = vmax.f32 %v947, 0.0
        %v980 = vmax.f32 %v948, 0.0
        %v981 = vmax.f32 %v949, 0.0
        %v982 = vmax.f32 %v950, 0.0
        %v983 = vmax.f32 %v951, 0.0
        %v984 = vmax.f32 %v952, 0.0
        %v985 = vmax.f32 %v953, 0.0
        %v986 = vmax.f32 %v954, 0.0
        %v987 = vmax.f32 %v955, 0.0
        %v988 = vmax.f32 %v956, 0.0
        %v989 = vmax.f32 %v957, 0.0
        %v990 = vmax.f32 %v958, 0.0
        %v991 = vmax.f32 %v959, 0.0
        %v992 = vmax.f32 %v960, 0.0
        %v993 = vmax.f32 %v961, 0.0
        %v994 = vmax.f32 %v962, 0.0
        %v995 = vmax.f32 %v963, 0.0
        %v996 = vmax.f32 %v964, 0.0
        %v997 = vmax.f32 %v965, 0.0
        %v998 = vmax.f32 %v966, 0.0
        %v999 = vmax.f32 %v967, 0.0
        %v1000 = vmax.f32 %v968, 0.0
        %v1001 = vmax.f32 %v969, 0.0
        %v1002 = vmax.f32 %v970, 0.0
        %v1003 = vmax.f32 %v971, 0.0
        %v1004 = vmax.f32 %v972, 0.0
        %v1005 = vmax.f32 %v973, 0.0
        %v1006 = vmax.f32 %v974, 0.0
        %v1007 = vmax.f32 %v975, 0.0
        %v1008 = vpack.c.bf16 %v977, %v976
        %v1009 = vpack.c.bf16 %v979, %v978
        %v1010 = vpack.c.bf16 %v981, %v980
        %v1011 = vpack.c.bf16 %v983, %v982
        %v1012 = vpack.c.bf16 %v985, %v984
        %v1013 = vpack.c.bf16 %v987, %v986
        %v1014 = vpack.c.bf16 %v989, %v988
        %v1015 = vpack.c.bf16 %v991, %v990
        %v1016 = vpack.c.bf16 %v993, %v992
        %v1017 = vpack.c.bf16 %v995, %v994
        %v1018 = vpack.c.bf16 %v997, %v996
        %v1019 = vpack.c.bf16 %v999, %v998
        %v1020 = vpack.c.bf16 %v1001, %v1000
        %v1021 = vpack.c.bf16 %v1003, %v1002
        %v1022 = vpack.c.bf16 %v1005, %v1004
        %v1023 = vpack.c.bf16 %v1007, %v1006
        %v1040 = vunpack.c.l.b16 %v1008
        %v1041 = vunpack.c.h.b16 %v1008
        %v1042 = vunpack.c.l.b16 %v1009
        %v1043 = vunpack.c.h.b16 %v1009
        %v1044 = vunpack.c.l.b16 %v1010
        %v1045 = vunpack.c.h.b16 %v1010
        %v1046 = vunpack.c.l.b16 %v1011
        %v1047 = vunpack.c.h.b16 %v1011
        %v1048 = vunpack.c.l.b16 %v1012
        %v1049 = vunpack.c.h.b16 %v1012
        %v1050 = vunpack.c.l.b16 %v1013
        %v1051 = vunpack.c.h.b16 %v1013
        %v1052 = vunpack.c.l.b16 %v1014
        %v1053 = vunpack.c.h.b16 %v1014
        %v1054 = vunpack.c.l.b16 %v1015
        %v1055 = vunpack.c.h.b16 %v1015
        %v1056 = vunpack.c.l.b16 %v1016
        %v1057 = vunpack.c.h.b16 %v1016
        %v1058 = vunpack.c.l.b16 %v1017
        %v1059 = vunpack.c.h.b16 %v1017
        %v1060 = vunpack.c.l.b16 %v1018
        %v1061 = vunpack.c.h.b16 %v1018
        %v1062 = vunpack.c.l.b16 %v1019
        %v1063 = vunpack.c.h.b16 %v1019
        %v1064 = vunpack.c.l.b16 %v1020
        %v1065 = vunpack.c.h.b16 %v1020
        %v1066 = vunpack.c.l.b16 %v1021
        %v1067 = vunpack.c.h.b16 %v1021
        %v1068 = vunpack.c.l.b16 %v1022
        %v1069 = vunpack.c.h.b16 %v1022
        %v1070 = vunpack.c.l.b16 %v1023
        %v1071 = vunpack.c.h.b16 %v1023
        %v1072 = vpack.c.b16 %v1040, %v1040
        %v1073 = vpack.c.b16 %v1041, %v1041
        %v1074 = vpack.c.b16 %v1042, %v1042
        %v1075 = vpack.c.b16 %v1043, %v1043
        %v1076 = vpack.c.b16 %v1044, %v1044
        %v1077 = vpack.c.b16 %v1045, %v1045
        %v1078 = vpack.c.b16 %v1046, %v1046
        %v1079 = vpack.c.b16 %v1047, %v1047
        %v1080 = vpack.c.b16 %v1048, %v1048
        %v1081 = vpack.c.b16 %v1049, %v1049
        %v1082 = vpack.c.b16 %v1050, %v1050
        %v1083 = vpack.c.b16 %v1051, %v1051
        %v1084 = vpack.c.b16 %v1052, %v1052
        %v1085 = vpack.c.b16 %v1053, %v1053
        %v1086 = vpack.c.b16 %v1054, %v1054
        %v1087 = vpack.c.b16 %v1055, %v1055
        %v1088 = vpack.c.b16 %v1056, %v1056
        %v1089 = vpack.c.b16 %v1057, %v1057
        %v1090 = vpack.c.b16 %v1058, %v1058
        %v1091 = vpack.c.b16 %v1059, %v1059
        %v1092 = vpack.c.b16 %v1060, %v1060
        %v1093 = vpack.c.b16 %v1061, %v1061
        %v1094 = vpack.c.b16 %v1062, %v1062
        %v1095 = vpack.c.b16 %v1063, %v1063
        %v1096 = vpack.c.b16 %v1064, %v1064
        %v1097 = vpack.c.b16 %v1065, %v1065
        %v1098 = vpack.c.b16 %v1066, %v1066
        %v1099 = vpack.c.b16 %v1067, %v1067
        %v1100 = vpack.c.b16 %v1068, %v1068
        %v1101 = vpack.c.b16 %v1069, %v1069
        %v1102 = vpack.c.b16 %v1070, %v1070
        %v1103 = vpack.c.b16 %v1071, %v1071
        %vm1136 = vcmask 519168
        %1137 = vst.msk [vmem:[%s215] sm:$0xf] %vm1136, %v1072
        %1138 = vst.msk [vmem:[%s215 + $0x4] sm:$0xf] %vm1136, %v1073
        %1139 = vst.msk [vmem:[%s215 + $0x8] sm:$0xf] %vm1136, %v1074
        %1140 = vst.msk [vmem:[%s215 + $0xc] sm:$0xf] %vm1136, %v1075
        %1141 = vst.msk [vmem:[%s215 + $0x10] sm:$0xf] %vm1136, %v1076
        %1142 = vst.msk [vmem:[%s215 + $0x14] sm:$0xf] %vm1136, %v1077
        %1143 = vst.msk [vmem:[%s215 + $0x18] sm:$0xf] %vm1136, %v1078
        %1144 = vst.msk [vmem:[%s215 + $0x1c] sm:$0xf] %vm1136, %v1079
        %1145 = vst.msk [vmem:[%s215 + $0x20] sm:$0xf] %vm1136, %v1080
        %1146 = vst.msk [vmem:[%s215 + $0x24] sm:$0xf] %vm1136, %v1081
        %1147 = vst.msk [vmem:[%s215 + $0x28] sm:$0xf] %vm1136, %v1082
        %1148 = vst.msk [vmem:[%s215 + $0x2c] sm:$0xf] %vm1136, %v1083
        %1149 = vst.msk [vmem:[%s215 + $0x30] sm:$0xf] %vm1136, %v1084
        %1150 = vst.msk [vmem:[%s215 + $0x34] sm:$0xf] %vm1136, %v1085
        %1151 = vst.msk [vmem:[%s215 + $0x38] sm:$0xf] %vm1136, %v1086
        %1152 = vst.msk [vmem:[%s215 + $0x3c] sm:$0xf] %vm1136, %v1087
        %1153 = vst.msk [vmem:[%s215 + $0x40] sm:$0xf] %vm1136, %v1088
        %1154 = vst.msk [vmem:[%s215 + $0x44] sm:$0xf] %vm1136, %v1089
        %1155 = vst.msk [vmem:[%s215 + $0x48] sm:$0xf] %vm1136, %v1090
        %1156 = vst.msk [vmem:[%s215 + $0x4c] sm:$0xf] %vm1136, %v1091
        %1157 = vst.msk [vmem:[%s215 + $0x50] sm:$0xf] %vm1136, %v1092
        %1158 = vst.msk [vmem:[%s215 + $0x54] sm:$0xf] %vm1136, %v1093
        %1159 = vst.msk [vmem:[%s215 + $0x58] sm:$0xf] %vm1136, %v1094
        %1160 = vst.msk [vmem:[%s215 + $0x5c] sm:$0xf] %vm1136, %v1095
        %1161 = vst.msk [vmem:[%s215 + $0x60] sm:$0xf] %vm1136, %v1096
        %1162 = vst.msk [vmem:[%s215 + $0x64] sm:$0xf] %vm1136, %v1097
        %1163 = vst.msk [vmem:[%s215 + $0x68] sm:$0xf] %vm1136, %v1098
        %1164 = vst.msk [vmem:[%s215 + $0x6c] sm:$0xf] %vm1136, %v1099
        %1165 = vst.msk [vmem:[%s215 + $0x70] sm:$0xf] %vm1136, %v1100
        %1166 = vst.msk [vmem:[%s215 + $0x74] sm:$0xf] %vm1136, %v1101
        %1167 = vst.msk [vmem:[%s215 + $0x78] sm:$0xf] %vm1136, %v1102
        %1168 = vst.msk [vmem:[%s215 + $0x7c] sm:$0xf] %vm1136, %v1103
        %s1169 = sand.u32 %s97, 1
        %s1170 = scalar_lea.sflag [#allocation4], %s1169
        %s1171 = sand.u32 %s97, 1
        %s1172 = smul.addr %s1171, 128
        %s1173 = scalar_lea.vmem [#allocation8], %s1172
        // Predicated region
        $region45: #{mnist_cnn_forward.3} parent=31 // pred_check
          %p1174 = pneg %p107
        $region46: #{mnist_cnn_forward.3} parent=31 // pred_check_branch
          %1176 = sbr.rel (%p1174) target = $region48
        $region47: #{mnist_cnn_forward.3} parent=31 // pred_region
          %s1177 = smul.u32 32, %s21
          %s1179 = ssub.s32 2048, 2048
          %1180 = vsyncadd %s1170, %s1179
          %s1181 = smul.addr %s1177, 64
          %s1182 = scalar_lea.hbm %s3, %s1181
          %s1183 = sshll.u32 %s1173, 4
          %s1184 = int_to_ptr.vmem [resolvable:$true] %s1183
          %1189 = dma.vmem_to_hbm [thread:$0]  %s1184, 2048, %s1182, %s1170, 64, 64, 4
        $region48: #{mnist_cnn_forward.3} parent=31 // pred_fallthru
          _
      $region32: #{mnist_cnn_forward.3} parent=5 // pred_fallthru
        _
      %p1190 = scmp.le.s32.totalorder 2, %s16
      // Predicated region
      $region49: #{mnist_cnn_forward.3} parent=5 // pred_check
        %p1191 = pneg %p1190
      $region50: #{mnist_cnn_forward.3} parent=5 // pred_check_branch
        %1193 = sbr.rel (%p1191) target = $region52
      $region51: #{mnist_cnn_forward.3} parent=5 // pred_region
        %s1194 = ssub.s32 %s16, 2
        // Predicated region
        $region53: #{mnist_cnn_forward.3} parent=51 // pred_check
          %p1195 = pneg %p113
        $region54: #{mnist_cnn_forward.3} parent=51 // pred_check_branch
          %1197 = sbr.rel (%p1195) target = $region56
        $region55: #{mnist_cnn_forward.3} parent=51 // pred_region
          %s1198 = sand.u32 %s98, 1
          %s1199 = scalar_lea.sflag [#allocation4], %s1198
          %s1200 = sand.u32 %s98, 1
          %s1201 = smul.addr %s1200, 128
          %s1202 = scalar_lea.vmem [#allocation8], %s1201
          %1203 = dma.done %s1199, 2048
        $region56: #{mnist_cnn_forward.3} parent=51 // pred_fallthru
          _
      $region52: #{mnist_cnn_forward.3} parent=5 // pred_fallthru
        _
    $region6: #{mnist_cnn_forward.3} parent=1 // loop_footer
      %s20 = sadd.s32 1, %s16
    $region7: #{mnist_cnn_forward.3} parent=1 // loop_footer_branch
      %15 = sbr.rel target = $region3
    $region8: #{mnist_cnn_forward.3} parent=1 // loop_exit
      _
    %1204 = vsyncpa [#allocation3], 1
    %s1205 = scalar_lea.sflag [#allocation3], 1
    %1206 = vsyncpa %s1205, 1
    %1207 = vsyncpa [#allocation6], 1
    %1208 = vsyncpa [#allocation4], 1
    %s1209 = scalar_lea.sflag [#allocation4], 1
    %1210 = vsyncpa %s1209, 1

// kernel: mnist_cnn_forward.4
$region0: #{mnist_cnn_forward.4}
  #allocation0 [shape = 'u32[]', space=smem, size = 0x4, offset = 0x4, fixed_abs, tag = 'smem constant byte address 0x4 - core index']
  #allocation1 [shape = 'u32[144,128]{1,0:T(1,128)}', space=vmem, size = 0x12000, scoped, tag = 'internal scratch']
  %s0 = inlined_call_operand.hbm [shape: bf16[128,1024], index: 0, kind: input, shape index: {}]
  %s1 = inlined_call_operand.hbm [shape: bf16[1024,512], index: 1, kind: input, shape index: {}]
  %s2 = inlined_call_operand.hbm [shape: f32[1,128], index: 2, kind: input, shape index: {}]
  %s3 = inlined_call_operand.hbm [shape: bf16[128,128], index: 3, kind: output, shape index: {}]
  %s4 = sld [smem:[#allocation0]]
  $region34: #{mnist_cnn_forward.4} parent=0
    _
  %s6 = ssub.s32 1, %s4
  %s7 = scalar_select 0, %s6, %s4
  $region1: #{mnist_cnn_forward.4} parent=0
    #allocation2 [shape = 'u8[262144]{0}', space=vmem, size = 0x40000, scoped, tag = 'input window, operand 0, single buffered']
    #allocation3 [shape = 's32[1]{0}', space=sflag, size = 0x4, scoped, tag = 'scoped memory for mnist_cnn_forward.4']
    #allocation4 [shape = 's32[1]{0}', space=sflag, size = 0x4, scoped, tag = 'scoped memory for mnist_cnn_forward.4']
    #allocation5 [shape = 'u8[1048576]{0}', space=vmem, size = 0x100000, scoped, tag = 'input window, operand 1, single buffered']
    #allocation6 [shape = 's32[1]{0}', space=sflag, size = 0x4, scoped, tag = 'scoped memory for mnist_cnn_forward.4']
    #allocation7 [shape = 'u8[512]{0}', space=vmem, size = 0x400, scoped, tag = 'input window, operand 2, single buffered']
    #allocation8 [shape = 'u8[32768]{0}', space=vmem, size = 0x8000, scoped, tag = 'output window, operand 0, single buffered']
    %8 = vsyncpa [#allocation3], 0
    %9 = vsyncpa [#allocation6], 0
    %10 = vsyncpa [#allocation4], 0
    // Predicated region
    $region2: #{mnist_cnn_forward.4} parent=1 // pred_check
      _
    $region3: #{mnist_cnn_forward.4} parent=1 // pred_check_branch
      %12 = sbr.rel (0) target = $region5
    $region4: #{mnist_cnn_forward.4} parent=1 // pred_region
      %s14 = ssub.s32 8192, 8192
      %15 = vsyncadd [#allocation3], %s14
      %s16 = sshll.u32 [#allocation2], 4
      %s17 = int_to_ptr.vmem [resolvable:$true] %s16
      %22 = dma.hbm_to_vmem [thread:$0]  %s0, 8192, %s17, [#allocation3], 512, 512, 32
    $region5: #{mnist_cnn_forward.4} parent=1 // pred_fallthru
      _
    // Predicated region
    $region6: #{mnist_cnn_forward.4} parent=1 // pred_check
      _
    $region7: #{mnist_cnn_forward.4} parent=1 // pred_check_branch
      %24 = sbr.rel (0) target = $region9
    $region8: #{mnist_cnn_forward.4} parent=1 // pred_region
      %s26 = ssub.s32 32768, 32768
      %27 = vsyncadd [#allocation6], %s26
      %s28 = sshll.u32 [#allocation5], 4
      %s29 = int_to_ptr.vmem [resolvable:$true] %s28
      %34 = dma.hbm_to_vmem [thread:$0]  %s1, 32768, %s29, [#allocation6], 256, 256, 16
    $region9: #{mnist_cnn_forward.4} parent=1 // pred_fallthru
      _
    // Predicated region
    $region10: #{mnist_cnn_forward.4} parent=1 // pred_check
      _
    $region11: #{mnist_cnn_forward.4} parent=1 // pred_check_branch
      %36 = sbr.rel (0) target = $region13
    $region12: #{mnist_cnn_forward.4} parent=1 // pred_region
      %s38 = ssub.s32 16, 16
      %39 = vsyncadd [#allocation6], %s38
      %s41 = sshll.u32 [#allocation7], 4
      %s42 = int_to_ptr.vmem [resolvable:$true] %s41
      %44 = dma.hbm_to_vmem [thread:$0]  %s2, 16, %s42, [#allocation6]
    $region13: #{mnist_cnn_forward.4} parent=1 // pred_fallthru
      _
    // Predicated region
    $region14: #{mnist_cnn_forward.4} parent=1 // pred_check
      _
    $region15: #{mnist_cnn_forward.4} parent=1 // pred_check_branch
      %46 = sbr.rel (0) target = $region17
    $region16: #{mnist_cnn_forward.4} parent=1 // pred_region
      %47 = dma.done [#allocation3], 8192
    $region17: #{mnist_cnn_forward.4} parent=1 // pred_fallthru
      _
    // Predicated region
    $region18: #{mnist_cnn_forward.4} parent=1 // pred_check
      _
    $region19: #{mnist_cnn_forward.4} parent=1 // pred_check_branch
      %49 = sbr.rel (0) target = $region21
    $region20: #{mnist_cnn_forward.4} parent=1 // pred_region
      %50 = dma.done [#allocation6], 32768
    $region21: #{mnist_cnn_forward.4} parent=1 // pred_fallthru
      _
    // Predicated region
    $region22: #{mnist_cnn_forward.4} parent=1 // pred_check
      _
    $region23: #{mnist_cnn_forward.4} parent=1 // pred_check_branch
      %52 = sbr.rel (0) target = $region25
    $region24: #{mnist_cnn_forward.4} parent=1 // pred_region
      %53 = dma.done [#allocation6], 16
    $region25: #{mnist_cnn_forward.4} parent=1 // pred_fallthru
      _
    %v54 = vld [vmem:[#allocation2] sm:$0xff]
    %v55 = vld [vmem:[#allocation2 + $0x8] sm:$0xff]
    %v56 = vld [vmem:[#allocation2 + $0x10] sm:$0xff]
    %v57 = vld [vmem:[#allocation2 + $0x18] sm:$0xff]
    %v58 = vld [vmem:[#allocation2 + $0x20] sm:$0xff]
    %v59 = vld [vmem:[#allocation2 + $0x28] sm:$0xff]
    %v60 = vld [vmem:[#allocation2 + $0x30] sm:$0xff]
    %v61 = vld [vmem:[#allocation2 + $0x38] sm:$0xff]
    %v62 = vld [vmem:[#allocation2 + $0x40] sm:$0xff]
    %v63 = vld [vmem:[#allocation2 + $0x48] sm:$0xff]
    %v64 = vld [vmem:[#allocation2 + $0x50] sm:$0xff]
    %v65 = vld [vmem:[#allocation2 + $0x58] sm:$0xff]
    %v66 = vld [vmem:[#allocation2 + $0x60] sm:$0xff]
    %v67 = vld [vmem:[#allocation2 + $0x68] sm:$0xff]
    %v68 = vld [vmem:[#allocation2 + $0x70] sm:$0xff]
    %v69 = vld [vmem:[#allocation2 + $0x78] sm:$0xff]
    %v70 = vld [vmem:[#allocation2 + $0x80] sm:$0xff]
    %v71 = vld [vmem:[#allocation2 + $0x88] sm:$0xff]
    %v72 = vld [vmem:[#allocation2 + $0x90] sm:$0xff]
    %v73 = vld [vmem:[#allocation2 + $0x98] sm:$0xff]
    %v74 = vld [vmem:[#allocation2 + $0xa0] sm:$0xff]
    %v75 = vld [vmem:[#allocation2 + $0xa8] sm:$0xff]
    %v76 = vld [vmem:[#allocation2 + $0xb0] sm:$0xff]
    %v77 = vld [vmem:[#allocation2 + $0xb8] sm:$0xff]
    %v78 = vld [vmem:[#allocation2 + $0xc0] sm:$0xff]
    %v79 = vld [vmem:[#allocation2 + $0xc8] sm:$0xff]
    %v80 = vld [vmem:[#allocation2 + $0xd0] sm:$0xff]
    %v81 = vld [vmem:[#allocation2 + $0xd8] sm:$0xff]
    %v82 = vld [vmem:[#allocation2 + $0xe0] sm:$0xff]
    %v83 = vld [vmem:[#allocation2 + $0xe8] sm:$0xff]
    %v84 = vld [vmem:[#allocation2 + $0xf0] sm:$0xff]
    %v85 = vld [vmem:[#allocation2 + $0xf8] sm:$0xff]
    %v86 = vld [vmem:[#allocation2 + $0x100] sm:$0xff]
    %v87 = vld [vmem:[#allocation2 + $0x108] sm:$0xff]
    %v88 = vld [vmem:[#allocation2 + $0x110] sm:$0xff]
    %v89 = vld [vmem:[#allocation2 + $0x118] sm:$0xff]
    %v90 = vld [vmem:[#allocation2 + $0x120] sm:$0xff]
    %v91 = vld [vmem:[#allocation2 + $0x128] sm:$0xff]
    %v92 = vld [vmem:[#allocation2 + $0x130] sm:$0xff]
    %v93 = vld [vmem:[#allocation2 + $0x138] sm:$0xff]
    %v94 = vld [vmem:[#allocation2 + $0x140] sm:$0xff]
    %v95 = vld [vmem:[#allocation2 + $0x148] sm:$0xff]
    %v96 = vld [vmem:[#allocation2 + $0x150] sm:$0xff]
    %v97 = vld [vmem:[#allocation2 + $0x158] sm:$0xff]
    %v98 = vld [vmem:[#allocation2 + $0x160] sm:$0xff]
    %v99 = vld [vmem:[#allocation2 + $0x168] sm:$0xff]
    %v100 = vld [vmem:[#allocation2 + $0x170] sm:$0xff]
    %v101 = vld [vmem:[#allocation2 + $0x178] sm:$0xff]
    %v102 = vld [vmem:[#allocation2 + $0x180] sm:$0xff]
    %v103 = vld [vmem:[#allocation2 + $0x188] sm:$0xff]
    %v104 = vld [vmem:[#allocation2 + $0x190] sm:$0xff]
    %v105 = vld [vmem:[#allocation2 + $0x198] sm:$0xff]
    %v106 = vld [vmem:[#allocation2 + $0x1a0] sm:$0xff]
    %v107 = vld [vmem:[#allocation2 + $0x1a8] sm:$0xff]
    %v108 = vld [vmem:[#allocation2 + $0x1b0] sm:$0xff]
    %v109 = vld [vmem:[#allocation2 + $0x1b8] sm:$0xff]
    %v110 = vld [vmem:[#allocation2 + $0x1c0] sm:$0xff]
    %v111 = vld [vmem:[#allocation2 + $0x1c8] sm:$0xff]
    %v112 = vld [vmem:[#allocation2 + $0x1d0] sm:$0xff]
    %v113 = vld [vmem:[#allocation2 + $0x1d8] sm:$0xff]
    %v114 = vld [vmem:[#allocation2 + $0x1e0] sm:$0xff]
    %v115 = vld [vmem:[#allocation2 + $0x1e8] sm:$0xff]
    %v116 = vld [vmem:[#allocation2 + $0x1f0] sm:$0xff]
    %v117 = vld [vmem:[#allocation2 + $0x1f8] sm:$0xff]
    %v118 = vld [vmem:[#allocation5] sm:$0xff]
    %v119 = vld [vmem:[#allocation5 + $0x8] sm:$0xff]
    %v120 = vld [vmem:[#allocation5 + $0x10] sm:$0xff]
    %v121 = vld [vmem:[#allocation5 + $0x18] sm:$0xff]
    %v122 = vld [vmem:[#allocation5 + $0x20] sm:$0xff]
    %v123 = vld [vmem:[#allocation5 + $0x28] sm:$0xff]
    %v124 = vld [vmem:[#allocation5 + $0x30] sm:$0xff]
    %v125 = vld [vmem:[#allocation5 + $0x38] sm:$0xff]
    %v126 = vld [vmem:[#allocation5 + $0x40] sm:$0xff]
    %v127 = vld [vmem:[#allocation5 + $0x48] sm:$0xff]
    %v128 = vld [vmem:[#allocation5 + $0x50] sm:$0xff]
    %v129 = vld [vmem:[#allocation5 + $0x58] sm:$0xff]
    %v130 = vld [vmem:[#allocation5 + $0x60] sm:$0xff]
    %v131 = vld [vmem:[#allocation5 + $0x68] sm:$0xff]
    %v132 = vld [vmem:[#allocation5 + $0x70] sm:$0xff]
    %v133 = vld [vmem:[#allocation5 + $0x78] sm:$0xff]
    %v134 = vld [vmem:[#allocation5 + $0x80] sm:$0xff]
    %v135 = vld [vmem:[#allocation5 + $0x88] sm:$0xff]
    %v136 = vld [vmem:[#allocation5 + $0x90] sm:$0xff]
    %v137 = vld [vmem:[#allocation5 + $0x98] sm:$0xff]
    %v138 = vld [vmem:[#allocation5 + $0xa0] sm:$0xff]
    %v139 = vld [vmem:[#allocation5 + $0xa8] sm:$0xff]
    %v140 = vld [vmem:[#allocation5 + $0xb0] sm:$0xff]
    %v141 = vld [vmem:[#allocation5 + $0xb8] sm:$0xff]
    %v142 = vld [vmem:[#allocation5 + $0xc0] sm:$0xff]
    %v143 = vld [vmem:[#allocation5 + $0xc8] sm:$0xff]
    %v144 = vld [vmem:[#allocation5 + $0xd0] sm:$0xff]
    %v145 = vld [vmem:[#allocation5 + $0xd8] sm:$0xff]
    %v146 = vld [vmem:[#allocation5 + $0xe0] sm:$0xff]
    %v147 = vld [vmem:[#allocation5 + $0xe8] sm:$0xff]
    %v148 = vld [vmem:[#allocation5 + $0xf0] sm:$0xff]
    %v149 = vld [vmem:[#allocation5 + $0xf8] sm:$0xff]
    %v150 = vld [vmem:[#allocation5 + $0x100] sm:$0xff]
    %v151 = vld [vmem:[#allocation5 + $0x108] sm:$0xff]
    %v152 = vld [vmem:[#allocation5 + $0x110] sm:$0xff]
    %v153 = vld [vmem:[#allocation5 + $0x118] sm:$0xff]
    %v154 = vld [vmem:[#allocation5 + $0x120] sm:$0xff]
    %v155 = vld [vmem:[#allocation5 + $0x128] sm:$0xff]
    %v156 = vld [vmem:[#allocation5 + $0x130] sm:$0xff]
    %v157 = vld [vmem:[#allocation5 + $0x138] sm:$0xff]
    %v158 = vld [vmem:[#allocation5 + $0x140] sm:$0xff]
    %v159 = vld [vmem:[#allocation5 + $0x148] sm:$0xff]
    %v160 = vld [vmem:[#allocation5 + $0x150] sm:$0xff]
    %v161 = vld [vmem:[#allocation5 + $0x158] sm:$0xff]
    %v162 = vld [vmem:[#allocation5 + $0x160] sm:$0xff]
    %v163 = vld [vmem:[#allocation5 + $0x168] sm:$0xff]
    %v164 = vld [vmem:[#allocation5 + $0x170] sm:$0xff]
    %v165 = vld [vmem:[#allocation5 + $0x178] sm:$0xff]
    %v166 = vld [vmem:[#allocation5 + $0x180] sm:$0xff]
    %v167 = vld [vmem:[#allocation5 + $0x188] sm:$0xff]
    %v168 = vld [vmem:[#allocation5 + $0x190] sm:$0xff]
    %v169 = vld [vmem:[#allocation5 + $0x198] sm:$0xff]
    %v170 = vld [vmem:[#allocation5 + $0x1a0] sm:$0xff]
    %v171 = vld [vmem:[#allocation5 + $0x1a8] sm:$0xff]
    %v172 = vld [vmem:[#allocation5 + $0x1b0] sm:$0xff]
    %v173 = vld [vmem:[#allocation5 + $0x1b8] sm:$0xff]
    %v174 = vld [vmem:[#allocation5 + $0x1c0] sm:$0xff]
    %v175 = vld [vmem:[#allocation5 + $0x1c8] sm:$0xff]
    %v176 = vld [vmem:[#allocation5 + $0x1d0] sm:$0xff]
    %v177 = vld [vmem:[#allocation5 + $0x1d8] sm:$0xff]
    %v178 = vld [vmem:[#allocation5 + $0x1e0] sm:$0xff]
    %v179 = vld [vmem:[#allocation5 + $0x1e8] sm:$0xff]
    %v180 = vld [vmem:[#allocation5 + $0x1f0] sm:$0xff]
    %v181 = vld [vmem:[#allocation5 + $0x1f8] sm:$0xff]
    %v182 = vld [vmem:[#allocation5 + $0x200] sm:$0xff]
    %v183 = vld [vmem:[#allocation5 + $0x208] sm:$0xff]
    %v184 = vld [vmem:[#allocation5 + $0x210] sm:$0xff]
    %v185 = vld [vmem:[#allocation5 + $0x218] sm:$0xff]
    %v186 = vld [vmem:[#allocation5 + $0x220] sm:$0xff]
    %v187 = vld [vmem:[#allocation5 + $0x228] sm:$0xff]
    %v188 = vld [vmem:[#allocation5 + $0x230] sm:$0xff]
    %v189 = vld [vmem:[#allocation5 + $0x238] sm:$0xff]
    %v190 = vld [vmem:[#allocation5 + $0x240] sm:$0xff]
    %v191 = vld [vmem:[#allocation5 + $0x248] sm:$0xff]
    %v192 = vld [vmem:[#allocation5 + $0x250] sm:$0xff]
    %v193 = vld [vmem:[#allocation5 + $0x258] sm:$0xff]
    %v194 = vld [vmem:[#allocation5 + $0x260] sm:$0xff]
    %v195 = vld [vmem:[#allocation5 + $0x268] sm:$0xff]
    %v196 = vld [vmem:[#allocation5 + $0x270] sm:$0xff]
    %v197 = vld [vmem:[#allocation5 + $0x278] sm:$0xff]
    %v198 = vld [vmem:[#allocation5 + $0x280] sm:$0xff]
    %v199 = vld [vmem:[#allocation5 + $0x288] sm:$0xff]
    %v200 = vld [vmem:[#allocation5 + $0x290] sm:$0xff]
    %v201 = vld [vmem:[#allocation5 + $0x298] sm:$0xff]
    %v202 = vld [vmem:[#allocation5 + $0x2a0] sm:$0xff]
    %v203 = vld [vmem:[#allocation5 + $0x2a8] sm:$0xff]
    %v204 = vld [vmem:[#allocation5 + $0x2b0] sm:$0xff]
    %v205 = vld [vmem:[#allocation5 + $0x2b8] sm:$0xff]
    %v206 = vld [vmem:[#allocation5 + $0x2c0] sm:$0xff]
    %v207 = vld [vmem:[#allocation5 + $0x2c8] sm:$0xff]
    %v208 = vld [vmem:[#allocation5 + $0x2d0] sm:$0xff]
    %v209 = vld [vmem:[#allocation5 + $0x2d8] sm:$0xff]
    %v210 = vld [vmem:[#allocation5 + $0x2e0] sm:$0xff]
    %v211 = vld [vmem:[#allocation5 + $0x2e8] sm:$0xff]
    %v212 = vld [vmem:[#allocation5 + $0x2f0] sm:$0xff]
    %v213 = vld [vmem:[#allocation5 + $0x2f8] sm:$0xff]
    %v214 = vld [vmem:[#allocation5 + $0x300] sm:$0xff]
    %v215 = vld [vmem:[#allocation5 + $0x308] sm:$0xff]
    %v216 = vld [vmem:[#allocation5 + $0x310] sm:$0xff]
    %v217 = vld [vmem:[#allocation5 + $0x318] sm:$0xff]
    %v218 = vld [vmem:[#allocation5 + $0x320] sm:$0xff]
    %v219 = vld [vmem:[#allocation5 + $0x328] sm:$0xff]
    %v220 = vld [vmem:[#allocation5 + $0x330] sm:$0xff]
    %v221 = vld [vmem:[#allocation5 + $0x338] sm:$0xff]
    %v222 = vld [vmem:[#allocation5 + $0x340] sm:$0xff]
    %v223 = vld [vmem:[#allocation5 + $0x348] sm:$0xff]
    %v224 = vld [vmem:[#allocation5 + $0x350] sm:$0xff]
    %v225 = vld [vmem:[#allocation5 + $0x358] sm:$0xff]
    %v226 = vld [vmem:[#allocation5 + $0x360] sm:$0xff]
    %v227 = vld [vmem:[#allocation5 + $0x368] sm:$0xff]
    %v228 = vld [vmem:[#allocation5 + $0x370] sm:$0xff]
    %v229 = vld [vmem:[#allocation5 + $0x378] sm:$0xff]
    %v230 = vld [vmem:[#allocation5 + $0x380] sm:$0xff]
    %v231 = vld [vmem:[#allocation5 + $0x388] sm:$0xff]
    %v232 = vld [vmem:[#allocation5 + $0x390] sm:$0xff]
    %v233 = vld [vmem:[#allocation5 + $0x398] sm:$0xff]
    %v234 = vld [vmem:[#allocation5 + $0x3a0] sm:$0xff]
    %v235 = vld [vmem:[#allocation5 + $0x3a8] sm:$0xff]
    %v236 = vld [vmem:[#allocation5 + $0x3b0] sm:$0xff]
    %v237 = vld [vmem:[#allocation5 + $0x3b8] sm:$0xff]
    %v238 = vld [vmem:[#allocation5 + $0x3c0] sm:$0xff]
    %v239 = vld [vmem:[#allocation5 + $0x3c8] sm:$0xff]
    %v240 = vld [vmem:[#allocation5 + $0x3d0] sm:$0xff]
    %v241 = vld [vmem:[#allocation5 + $0x3d8] sm:$0xff]
    %v242 = vld [vmem:[#allocation5 + $0x3e0] sm:$0xff]
    %v243 = vld [vmem:[#allocation5 + $0x3e8] sm:$0xff]
    %v244 = vld [vmem:[#allocation5 + $0x3f0] sm:$0xff]
    %v245 = vld [vmem:[#allocation5 + $0x3f8] sm:$0xff]
    %v246 = vld [vmem:[#allocation5 + $0x400] sm:$0xff]
    %v247 = vld [vmem:[#allocation5 + $0x408] sm:$0xff]
    %v248 = vld [vmem:[#allocation5 + $0x410] sm:$0xff]
    %v249 = vld [vmem:[#allocation5 + $0x418] sm:$0xff]
    %v250 = vld [vmem:[#allocation5 + $0x420] sm:$0xff]
    %v251 = vld [vmem:[#allocation5 + $0x428] sm:$0xff]
    %v252 = vld [vmem:[#allocation5 + $0x430] sm:$0xff]
    %v253 = vld [vmem:[#allocation5 + $0x438] sm:$0xff]
    %v254 = vld [vmem:[#allocation5 + $0x440] sm:$0xff]
    %v255 = vld [vmem:[#allocation5 + $0x448] sm:$0xff]
    %v256 = vld [vmem:[#allocation5 + $0x450] sm:$0xff]
    %v257 = vld [vmem:[#allocation5 + $0x458] sm:$0xff]
    %v258 = vld [vmem:[#allocation5 + $0x460] sm:$0xff]
    %v259 = vld [vmem:[#allocation5 + $0x468] sm:$0xff]
    %v260 = vld [vmem:[#allocation5 + $0x470] sm:$0xff]
    %v261 = vld [vmem:[#allocation5 + $0x478] sm:$0xff]
    %v262 = vld [vmem:[#allocation5 + $0x480] sm:$0xff]
    %v263 = vld [vmem:[#allocation5 + $0x488] sm:$0xff]
    %v264 = vld [vmem:[#allocation5 + $0x490] sm:$0xff]
    %v265 = vld [vmem:[#allocation5 + $0x498] sm:$0xff]
    %v266 = vld [vmem:[#allocation5 + $0x4a0] sm:$0xff]
    %v267 = vld [vmem:[#allocation5 + $0x4a8] sm:$0xff]
    %v268 = vld [vmem:[#allocation5 + $0x4b0] sm:$0xff]
    %v269 = vld [vmem:[#allocation5 + $0x4b8] sm:$0xff]
    %v270 = vld [vmem:[#allocation5 + $0x4c0] sm:$0xff]
    %v271 = vld [vmem:[#allocation5 + $0x4c8] sm:$0xff]
    %v272 = vld [vmem:[#allocation5 + $0x4d0] sm:$0xff]
    %v273 = vld [vmem:[#allocation5 + $0x4d8] sm:$0xff]
    %v274 = vld [vmem:[#allocation5 + $0x4e0] sm:$0xff]
    %v275 = vld [vmem:[#allocation5 + $0x4e8] sm:$0xff]
    %v276 = vld [vmem:[#allocation5 + $0x4f0] sm:$0xff]
    %v277 = vld [vmem:[#allocation5 + $0x4f8] sm:$0xff]
    %v278 = vld [vmem:[#allocation5 + $0x500] sm:$0xff]
    %v279 = vld [vmem:[#allocation5 + $0x508] sm:$0xff]
    %v280 = vld [vmem:[#allocation5 + $0x510] sm:$0xff]
    %v281 = vld [vmem:[#allocation5 + $0x518] sm:$0xff]
    %v282 = vld [vmem:[#allocation5 + $0x520] sm:$0xff]
    %v283 = vld [vmem:[#allocation5 + $0x528] sm:$0xff]
    %v284 = vld [vmem:[#allocation5 + $0x530] sm:$0xff]
    %v285 = vld [vmem:[#allocation5 + $0x538] sm:$0xff]
    %v286 = vld [vmem:[#allocation5 + $0x540] sm:$0xff]
    %v287 = vld [vmem:[#allocation5 + $0x548] sm:$0xff]
    %v288 = vld [vmem:[#allocation5 + $0x550] sm:$0xff]
    %v289 = vld [vmem:[#allocation5 + $0x558] sm:$0xff]
    %v290 = vld [vmem:[#allocation5 + $0x560] sm:$0xff]
    %v291 = vld [vmem:[#allocation5 + $0x568] sm:$0xff]
    %v292 = vld [vmem:[#allocation5 + $0x570] sm:$0xff]
    %v293 = vld [vmem:[#allocation5 + $0x578] sm:$0xff]
    %v294 = vld [vmem:[#allocation5 + $0x580] sm:$0xff]
    %v295 = vld [vmem:[#allocation5 + $0x588] sm:$0xff]
    %v296 = vld [vmem:[#allocation5 + $0x590] sm:$0xff]
    %v297 = vld [vmem:[#allocation5 + $0x598] sm:$0xff]
    %v298 = vld [vmem:[#allocation5 + $0x5a0] sm:$0xff]
    %v299 = vld [vmem:[#allocation5 + $0x5a8] sm:$0xff]
    %v300 = vld [vmem:[#allocation5 + $0x5b0] sm:$0xff]
    %v301 = vld [vmem:[#allocation5 + $0x5b8] sm:$0xff]
    %v302 = vld [vmem:[#allocation5 + $0x5c0] sm:$0xff]
    %v303 = vld [vmem:[#allocation5 + $0x5c8] sm:$0xff]
    %v304 = vld [vmem:[#allocation5 + $0x5d0] sm:$0xff]
    %v305 = vld [vmem:[#allocation5 + $0x5d8] sm:$0xff]
    %v306 = vld [vmem:[#allocation5 + $0x5e0] sm:$0xff]
    %v307 = vld [vmem:[#allocation5 + $0x5e8] sm:$0xff]
    %v308 = vld [vmem:[#allocation5 + $0x5f0] sm:$0xff]
    %v309 = vld [vmem:[#allocation5 + $0x5f8] sm:$0xff]
    %v310 = vld [vmem:[#allocation5 + $0x600] sm:$0xff]
    %v311 = vld [vmem:[#allocation5 + $0x608] sm:$0xff]
    %v312 = vld [vmem:[#allocation5 + $0x610] sm:$0xff]
    %v313 = vld [vmem:[#allocation5 + $0x618] sm:$0xff]
    %v314 = vld [vmem:[#allocation5 + $0x620] sm:$0xff]
    %v315 = vld [vmem:[#allocation5 + $0x628] sm:$0xff]
    %v316 = vld [vmem:[#allocation5 + $0x630] sm:$0xff]
    %v317 = vld [vmem:[#allocation5 + $0x638] sm:$0xff]
    %v318 = vld [vmem:[#allocation5 + $0x640] sm:$0xff]
    %v319 = vld [vmem:[#allocation5 + $0x648] sm:$0xff]
    %v320 = vld [vmem:[#allocation5 + $0x650] sm:$0xff]
    %v321 = vld [vmem:[#allocation5 + $0x658] sm:$0xff]
    %v322 = vld [vmem:[#allocation5 + $0x660] sm:$0xff]
    %v323 = vld [vmem:[#allocation5 + $0x668] sm:$0xff]
    %v324 = vld [vmem:[#allocation5 + $0x670] sm:$0xff]
    %v325 = vld [vmem:[#allocation5 + $0x678] sm:$0xff]
    %v326 = vld [vmem:[#allocation5 + $0x680] sm:$0xff]
    %v327 = vld [vmem:[#allocation5 + $0x688] sm:$0xff]
    %v328 = vld [vmem:[#allocation5 + $0x690] sm:$0xff]
    %v329 = vld [vmem:[#allocation5 + $0x698] sm:$0xff]
    %v330 = vld [vmem:[#allocation5 + $0x6a0] sm:$0xff]
    %v331 = vld [vmem:[#allocation5 + $0x6a8] sm:$0xff]
    %v332 = vld [vmem:[#allocation5 + $0x6b0] sm:$0xff]
    %v333 = vld [vmem:[#allocation5 + $0x6b8] sm:$0xff]
    %v334 = vld [vmem:[#allocation5 + $0x6c0] sm:$0xff]
    %v335 = vld [vmem:[#allocation5 + $0x6c8] sm:$0xff]
    %v336 = vld [vmem:[#allocation5 + $0x6d0] sm:$0xff]
    %v337 = vld [vmem:[#allocation5 + $0x6d8] sm:$0xff]
    %v338 = vld [vmem:[#allocation5 + $0x6e0] sm:$0xff]
    %v339 = vld [vmem:[#allocation5 + $0x6e8] sm:$0xff]
    %v340 = vld [vmem:[#allocation5 + $0x6f0] sm:$0xff]
    %v341 = vld [vmem:[#allocation5 + $0x6f8] sm:$0xff]
    %v342 = vld [vmem:[#allocation5 + $0x700] sm:$0xff]
    %v343 = vld [vmem:[#allocation5 + $0x708] sm:$0xff]
    %v344 = vld [vmem:[#allocation5 + $0x710] sm:$0xff]
    %v345 = vld [vmem:[#allocation5 + $0x718] sm:$0xff]
    %v346 = vld [vmem:[#allocation5 + $0x720] sm:$0xff]
    %v347 = vld [vmem:[#allocation5 + $0x728] sm:$0xff]
    %v348 = vld [vmem:[#allocation5 + $0x730] sm:$0xff]
    %v349 = vld [vmem:[#allocation5 + $0x738] sm:$0xff]
    %v350 = vld [vmem:[#allocation5 + $0x740] sm:$0xff]
    %v351 = vld [vmem:[#allocation5 + $0x748] sm:$0xff]
    %v352 = vld [vmem:[#allocation5 + $0x750] sm:$0xff]
    %v353 = vld [vmem:[#allocation5 + $0x758] sm:$0xff]
    %v354 = vld [vmem:[#allocation5 + $0x760] sm:$0xff]
    %v355 = vld [vmem:[#allocation5 + $0x768] sm:$0xff]
    %v356 = vld [vmem:[#allocation5 + $0x770] sm:$0xff]
    %v357 = vld [vmem:[#allocation5 + $0x778] sm:$0xff]
    %v358 = vld [vmem:[#allocation5 + $0x780] sm:$0xff]
    %v359 = vld [vmem:[#allocation5 + $0x788] sm:$0xff]
    %v360 = vld [vmem:[#allocation5 + $0x790] sm:$0xff]
    %v361 = vld [vmem:[#allocation5 + $0x798] sm:$0xff]
    %v362 = vld [vmem:[#allocation5 + $0x7a0] sm:$0xff]
    %v363 = vld [vmem:[#allocation5 + $0x7a8] sm:$0xff]
    %v364 = vld [vmem:[#allocation5 + $0x7b0] sm:$0xff]
    %v365 = vld [vmem:[#allocation5 + $0x7b8] sm:$0xff]
    %v366 = vld [vmem:[#allocation5 + $0x7c0] sm:$0xff]
    %v367 = vld [vmem:[#allocation5 + $0x7c8] sm:$0xff]
    %v368 = vld [vmem:[#allocation5 + $0x7d0] sm:$0xff]
    %v369 = vld [vmem:[#allocation5 + $0x7d8] sm:$0xff]
    %v370 = vld [vmem:[#allocation5 + $0x7e0] sm:$0xff]
    %v371 = vld [vmem:[#allocation5 + $0x7e8] sm:$0xff]
    %v372 = vld [vmem:[#allocation5 + $0x7f0] sm:$0xff]
    %v373 = vld [vmem:[#allocation5 + $0x7f8] sm:$0xff]
    %v438 = vunpack.c.l.b16 %v54
    %v439 = vunpack.c.h.b16 %v54
    %v440 = vunpack.c.l.b16 %v55
    %v441 = vunpack.c.h.b16 %v55
    %v442 = vunpack.c.l.b16 %v56
    %v443 = vunpack.c.h.b16 %v56
    %v444 = vunpack.c.l.b16 %v57
    %v445 = vunpack.c.h.b16 %v57
    %v446 = vunpack.c.l.b16 %v58
    %v447 = vunpack.c.h.b16 %v58
    %v448 = vunpack.c.l.b16 %v59
    %v449 = vunpack.c.h.b16 %v59
    %v450 = vunpack.c.l.b16 %v60
    %v451 = vunpack.c.h.b16 %v60
    %v452 = vunpack.c.l.b16 %v61
    %v453 = vunpack.c.h.b16 %v61
    %v454 = vunpack.c.l.b16 %v62
    %v455 = vunpack.c.h.b16 %v62
    %v456 = vunpack.c.l.b16 %v63
    %v457 = vunpack.c.h.b16 %v63
    %v458 = vunpack.c.l.b16 %v64
    %v459 = vunpack.c.h.b16 %v64
    %v460 = vunpack.c.l.b16 %v65
    %v461 = vunpack.c.h.b16 %v65
    %v462 = vunpack.c.l.b16 %v66
    %v463 = vunpack.c.h.b16 %v66
    %v464 = vunpack.c.l.b16 %v67
    %v465 = vunpack.c.h.b16 %v67
    %v466 = vunpack.c.l.b16 %v68
    %v467 = vunpack.c.h.b16 %v68
    %v468 = vunpack.c.l.b16 %v69
    %v469 = vunpack.c.h.b16 %v69
    %v470 = vunpack.c.l.b16 %v70
    %v471 = vunpack.c.h.b16 %v70
    %v472 = vunpack.c.l.b16 %v71
    %v473 = vunpack.c.h.b16 %v71
    %v474 = vunpack.c.l.b16 %v72
    %v475 = vunpack.c.h.b16 %v72
    %v476 = vunpack.c.l.b16 %v73
    %v477 = vunpack.c.h.b16 %v73
    %v478 = vunpack.c.l.b16 %v74
    %v479 = vunpack.c.h.b16 %v74
    %v480 = vunpack.c.l.b16 %v75
    %v481 = vunpack.c.h.b16 %v75
    %v482 = vunpack.c.l.b16 %v76
    %v483 = vunpack.c.h.b16 %v76
    %v484 = vunpack.c.l.b16 %v77
    %v485 = vunpack.c.h.b16 %v77
    %v486 = vunpack.c.l.b16 %v78
    %v487 = vunpack.c.h.b16 %v78
    %v488 = vunpack.c.l.b16 %v79
    %v489 = vunpack.c.h.b16 %v79
    %v490 = vunpack.c.l.b16 %v80
    %v491 = vunpack.c.h.b16 %v80
    %v492 = vunpack.c.l.b16 %v81
    %v493 = vunpack.c.h.b16 %v81
    %v494 = vunpack.c.l.b16 %v82
    %v495 = vunpack.c.h.b16 %v82
    %v496 = vunpack.c.l.b16 %v83
    %v497 = vunpack.c.h.b16 %v83
    %v498 = vunpack.c.l.b16 %v84
    %v499 = vunpack.c.h.b16 %v84
    %v500 = vunpack.c.l.b16 %v85
    %v501 = vunpack.c.h.b16 %v85
    %v502 = vunpack.c.l.b16 %v86
    %v503 = vunpack.c.h.b16 %v86
    %v504 = vunpack.c.l.b16 %v87
    %v505 = vunpack.c.h.b16 %v87
    %v506 = vunpack.c.l.b16 %v88
    %v507 = vunpack.c.h.b16 %v88
    %v508 = vunpack.c.l.b16 %v89
    %v509 = vunpack.c.h.b16 %v89
    %v510 = vunpack.c.l.b16 %v90
    %v511 = vunpack.c.h.b16 %v90
    %v512 = vunpack.c.l.b16 %v91
    %v513 = vunpack.c.h.b16 %v91
    %v514 = vunpack.c.l.b16 %v92
    %v515 = vunpack.c.h.b16 %v92
    %v516 = vunpack.c.l.b16 %v93
    %v517 = vunpack.c.h.b16 %v93
    %v518 = vunpack.c.l.b16 %v94
    %v519 = vunpack.c.h.b16 %v94
    %v520 = vunpack.c.l.b16 %v95
    %v521 = vunpack.c.h.b16 %v95
    %v522 = vunpack.c.l.b16 %v96
    %v523 = vunpack.c.h.b16 %v96
    %v524 = vunpack.c.l.b16 %v97
    %v525 = vunpack.c.h.b16 %v97
    %v526 = vunpack.c.l.b16 %v98
    %v527 = vunpack.c.h.b16 %v98
    %v528 = vunpack.c.l.b16 %v99
    %v529 = vunpack.c.h.b16 %v99
    %v530 = vunpack.c.l.b16 %v100
    %v531 = vunpack.c.h.b16 %v100
    %v532 = vunpack.c.l.b16 %v101
    %v533 = vunpack.c.h.b16 %v101
    %v534 = vunpack.c.l.b16 %v102
    %v535 = vunpack.c.h.b16 %v102
    %v536 = vunpack.c.l.b16 %v103
    %v537 = vunpack.c.h.b16 %v103
    %v538 = vunpack.c.l.b16 %v104
    %v539 = vunpack.c.h.b16 %v104
    %v540 = vunpack.c.l.b16 %v105
    %v541 = vunpack.c.h.b16 %v105
    %v542 = vunpack.c.l.b16 %v106
    %v543 = vunpack.c.h.b16 %v106
    %v544 = vunpack.c.l.b16 %v107
    %v545 = vunpack.c.h.b16 %v107
    %v546 = vunpack.c.l.b16 %v108
    %v547 = vunpack.c.h.b16 %v108
    %v548 = vunpack.c.l.b16 %v109
    %v549 = vunpack.c.h.b16 %v109
    %v550 = vunpack.c.l.b16 %v110
    %v551 = vunpack.c.h.b16 %v110
    %v552 = vunpack.c.l.b16 %v111
    %v553 = vunpack.c.h.b16 %v111
    %v554 = vunpack.c.l.b16 %v112
    %v555 = vunpack.c.h.b16 %v112
    %v556 = vunpack.c.l.b16 %v113
    %v557 = vunpack.c.h.b16 %v113
    %v558 = vunpack.c.l.b16 %v114
    %v559 = vunpack.c.h.b16 %v114
    %v560 = vunpack.c.l.b16 %v115
    %v561 = vunpack.c.h.b16 %v115
    %v562 = vunpack.c.l.b16 %v116
    %v563 = vunpack.c.h.b16 %v116
    %v564 = vunpack.c.l.b16 %v117
    %v565 = vunpack.c.h.b16 %v117
    %v566 = vpack.c.b16 %v446, %v438
    %v567 = vpack.c.b16 %v447, %v439
    %v568 = vpack.c.b16 %v448, %v440
    %v569 = vpack.c.b16 %v449, %v441
    %v570 = vpack.c.b16 %v450, %v442
    %v571 = vpack.c.b16 %v451, %v443
    %v572 = vpack.c.b16 %v452, %v444
    %v573 = vpack.c.b16 %v453, %v445
    %v574 = vpack.c.b16 %v462, %v454
    %v575 = vpack.c.b16 %v463, %v455
    %v576 = vpack.c.b16 %v464, %v456
    %v577 = vpack.c.b16 %v465, %v457
    %v578 = vpack.c.b16 %v466, %v458
    %v579 = vpack.c.b16 %v467, %v459
    %v580 = vpack.c.b16 %v468, %v460
    %v581 = vpack.c.b16 %v469, %v461
    %v582 = vpack.c.b16 %v478, %v470
    %v583 = vpack.c.b16 %v479, %v471
    %v584 = vpack.c.b16 %v480, %v472
    %v585 = vpack.c.b16 %v481, %v473
    %v586 = vpack.c.b16 %v482, %v474
    %v587 = vpack.c.b16 %v483, %v475
    %v588 = vpack.c.b16 %v484, %v476
    %v589 = vpack.c.b16 %v485, %v477
    %v590 = vpack.c.b16 %v494, %v486
    %v591 = vpack.c.b16 %v495, %v487
    %v592 = vpack.c.b16 %v496, %v488
    %v593 = vpack.c.b16 %v497, %v489
    %v594 = vpack.c.b16 %v498, %v490
    %v595 = vpack.c.b16 %v499, %v491
    %v596 = vpack.c.b16 %v500, %v492
    %v597 = vpack.c.b16 %v501, %v493
    %v598 = vpack.c.b16 %v510, %v502
    %v599 = vpack.c.b16 %v511, %v503
    %v600 = vpack.c.b16 %v512, %v504
    %v601 = vpack.c.b16 %v513, %v505
    %v602 = vpack.c.b16 %v514, %v506
    %v603 = vpack.c.b16 %v515, %v507
    %v604 = vpack.c.b16 %v516, %v508
    %v605 = vpack.c.b16 %v517, %v509
    %v606 = vpack.c.b16 %v526, %v518
    %v607 = vpack.c.b16 %v527, %v519
    %v608 = vpack.c.b16 %v528, %v520
    %v609 = vpack.c.b16 %v529, %v521
    %v610 = vpack.c.b16 %v530, %v522
    %v611 = vpack.c.b16 %v531, %v523
    %v612 = vpack.c.b16 %v532, %v524
    %v613 = vpack.c.b16 %v533, %v525
    %v614 = vpack.c.b16 %v542, %v534
    %v615 = vpack.c.b16 %v543, %v535
    %v616 = vpack.c.b16 %v544, %v536
    %v617 = vpack.c.b16 %v545, %v537
    %v618 = vpack.c.b16 %v546, %v538
    %v619 = vpack.c.b16 %v547, %v539
    %v620 = vpack.c.b16 %v548, %v540
    %v621 = vpack.c.b16 %v549, %v541
    %v622 = vpack.c.b16 %v558, %v550
    %v623 = vpack.c.b16 %v559, %v551
    %v624 = vpack.c.b16 %v560, %v552
    %v625 = vpack.c.b16 %v561, %v553
    %v626 = vpack.c.b16 %v562, %v554
    %v627 = vpack.c.b16 %v563, %v555
    %v628 = vpack.c.b16 %v564, %v556
    %v629 = vpack.c.b16 %v565, %v557
    %v950 = vunpack.c.l.b16 %v118
    %v951 = vunpack.c.h.b16 %v118
    %v952 = vunpack.c.l.b16 %v119
    %v953 = vunpack.c.h.b16 %v119
    %v954 = vunpack.c.l.b16 %v120
    %v955 = vunpack.c.h.b16 %v120
    %v956 = vunpack.c.l.b16 %v121
    %v957 = vunpack.c.h.b16 %v121
    %v958 = vunpack.c.l.b16 %v122
    %v959 = vunpack.c.h.b16 %v122
    %v960 = vunpack.c.l.b16 %v123
    %v961 = vunpack.c.h.b16 %v123
    %v962 = vunpack.c.l.b16 %v124
    %v963 = vunpack.c.h.b16 %v124
    %v964 = vunpack.c.l.b16 %v125
    %v965 = vunpack.c.h.b16 %v125
    %v966 = vunpack.c.l.b16 %v126
    %v967 = vunpack.c.h.b16 %v126
    %v968 = vunpack.c.l.b16 %v127
    %v969 = vunpack.c.h.b16 %v127
    %v970 = vunpack.c.l.b16 %v128
    %v971 = vunpack.c.h.b16 %v128
    %v972 = vunpack.c.l.b16 %v129
    %v973 = vunpack.c.h.b16 %v129
    %v974 = vunpack.c.l.b16 %v130
    %v975 = vunpack.c.h.b16 %v130
    %v976 = vunpack.c.l.b16 %v131
    %v977 = vunpack.c.h.b16 %v131
    %v978 = vunpack.c.l.b16 %v132
    %v979 = vunpack.c.h.b16 %v132
    %v980 = vunpack.c.l.b16 %v133
    %v981 = vunpack.c.h.b16 %v133
    %v982 = vunpack.c.l.b16 %v134
    %v983 = vunpack.c.h.b16 %v134
    %v984 = vunpack.c.l.b16 %v135
    %v985 = vunpack.c.h.b16 %v135
    %v986 = vunpack.c.l.b16 %v136
    %v987 = vunpack.c.h.b16 %v136
    %v988 = vunpack.c.l.b16 %v137
    %v989 = vunpack.c.h.b16 %v137
    %v990 = vunpack.c.l.b16 %v138
    %v991 = vunpack.c.h.b16 %v138
    %v992 = vunpack.c.l.b16 %v139
    %v993 = vunpack.c.h.b16 %v139
    %v994 = vunpack.c.l.b16 %v140
    %v995 = vunpack.c.h.b16 %v140
    %v996 = vunpack.c.l.b16 %v141
    %v997 = vunpack.c.h.b16 %v141
    %v998 = vunpack.c.l.b16 %v142
    %v999 = vunpack.c.h.b16 %v142
    %v1000 = vunpack.c.l.b16 %v143
    %v1001 = vunpack.c.h.b16 %v143
    %v1002 = vunpack.c.l.b16 %v144
    %v1003 = vunpack.c.h.b16 %v144
    %v1004 = vunpack.c.l.b16 %v145
    %v1005 = vunpack.c.h.b16 %v145
    %v1006 = vunpack.c.l.b16 %v146
    %v1007 = vunpack.c.h.b16 %v146
    %v1008 = vunpack.c.l.b16 %v147
    %v1009 = vunpack.c.h.b16 %v147
    %v1010 = vunpack.c.l.b16 %v148
    %v1011 = vunpack.c.h.b16 %v148
    %v1012 = vunpack.c.l.b16 %v149
    %v1013 = vunpack.c.h.b16 %v149
    %v1014 = vunpack.c.l.b16 %v150
    %v1015 = vunpack.c.h.b16 %v150
    %v1016 = vunpack.c.l.b16 %v151
    %v1017 = vunpack.c.h.b16 %v151
    %v1018 = vunpack.c.l.b16 %v152
    %v1019 = vunpack.c.h.b16 %v152
    %v1020 = vunpack.c.l.b16 %v153
    %v1021 = vunpack.c.h.b16 %v153
    %v1022 = vunpack.c.l.b16 %v154
    %v1023 = vunpack.c.h.b16 %v154
    %v1024 = vunpack.c.l.b16 %v155
    %v1025 = vunpack.c.h.b16 %v155
    %v1026 = vunpack.c.l.b16 %v156
    %v1027 = vunpack.c.h.b16 %v156
    %v1028 = vunpack.c.l.b16 %v157
    %v1029 = vunpack.c.h.b16 %v157
    %v1030 = vunpack.c.l.b16 %v158
    %v1031 = vunpack.c.h.b16 %v158
    %v1032 = vunpack.c.l.b16 %v159
    %v1033 = vunpack.c.h.b16 %v159
    %v1034 = vunpack.c.l.b16 %v160
    %v1035 = vunpack.c.h.b16 %v160
    %v1036 = vunpack.c.l.b16 %v161
    %v1037 = vunpack.c.h.b16 %v161
    %v1038 = vunpack.c.l.b16 %v162
    %v1039 = vunpack.c.h.b16 %v162
    %v1040 = vunpack.c.l.b16 %v163
    %v1041 = vunpack.c.h.b16 %v163
    %v1042 = vunpack.c.l.b16 %v164
    %v1043 = vunpack.c.h.b16 %v164
    %v1044 = vunpack.c.l.b16 %v165
    %v1045 = vunpack.c.h.b16 %v165
    %v1046 = vunpack.c.l.b16 %v166
    %v1047 = vunpack.c.h.b16 %v166
    %v1048 = vunpack.c.l.b16 %v167
    %v1049 = vunpack.c.h.b16 %v167
    %v1050 = vunpack.c.l.b16 %v168
    %v1051 = vunpack.c.h.b16 %v168
    %v1052 = vunpack.c.l.b16 %v169
    %v1053 = vunpack.c.h.b16 %v169
    %v1054 = vunpack.c.l.b16 %v170
    %v1055 = vunpack.c.h.b16 %v170
    %v1056 = vunpack.c.l.b16 %v171
    %v1057 = vunpack.c.h.b16 %v171
    %v1058 = vunpack.c.l.b16 %v172
    %v1059 = vunpack.c.h.b16 %v172
    %v1060 = vunpack.c.l.b16 %v173
    %v1061 = vunpack.c.h.b16 %v173
    %v1062 = vunpack.c.l.b16 %v174
    %v1063 = vunpack.c.h.b16 %v174
    %v1064 = vunpack.c.l.b16 %v175
    %v1065 = vunpack.c.h.b16 %v175
    %v1066 = vunpack.c.l.b16 %v176
    %v1067 = vunpack.c.h.b16 %v176
    %v1068 = vunpack.c.l.b16 %v177
    %v1069 = vunpack.c.h.b16 %v177
    %v1070 = vunpack.c.l.b16 %v178
    %v1071 = vunpack.c.h.b16 %v178
    %v1072 = vunpack.c.l.b16 %v179
    %v1073 = vunpack.c.h.b16 %v179
    %v1074 = vunpack.c.l.b16 %v180
    %v1075 = vunpack.c.h.b16 %v180
    %v1076 = vunpack.c.l.b16 %v181
    %v1077 = vunpack.c.h.b16 %v181
    %v1078 = vunpack.c.l.b16 %v182
    %v1079 = vunpack.c.h.b16 %v182
    %v1080 = vunpack.c.l.b16 %v183
    %v1081 = vunpack.c.h.b16 %v183
    %v1082 = vunpack.c.l.b16 %v184
    %v1083 = vunpack.c.h.b16 %v184
    %v1084 = vunpack.c.l.b16 %v185
    %v1085 = vunpack.c.h.b16 %v185
    %v1086 = vunpack.c.l.b16 %v186
    %v1087 = vunpack.c.h.b16 %v186
    %v1088 = vunpack.c.l.b16 %v187
    %v1089 = vunpack.c.h.b16 %v187
    %v1090 = vunpack.c.l.b16 %v188
    %v1091 = vunpack.c.h.b16 %v188
    %v1092 = vunpack.c.l.b16 %v189
    %v1093 = vunpack.c.h.b16 %v189
    %v1094 = vunpack.c.l.b16 %v190
    %v1095 = vunpack.c.h.b16 %v190
    %v1096 = vunpack.c.l.b16 %v191
    %v1097 = vunpack.c.h.b16 %v191
    %v1098 = vunpack.c.l.b16 %v192
    %v1099 = vunpack.c.h.b16 %v192
    %v1100 = vunpack.c.l.b16 %v193
    %v1101 = vunpack.c.h.b16 %v193
    %v1102 = vunpack.c.l.b16 %v194
    %v1103 = vunpack.c.h.b16 %v194
    %v1104 = vunpack.c.l.b16 %v195
    %v1105 = vunpack.c.h.b16 %v195
    %v1106 = vunpack.c.l.b16 %v196
    %v1107 = vunpack.c.h.b16 %v196
    %v1108 = vunpack.c.l.b16 %v197
    %v1109 = vunpack.c.h.b16 %v197
    %v1110 = vunpack.c.l.b16 %v198
    %v1111 = vunpack.c.h.b16 %v198
    %v1112 = vunpack.c.l.b16 %v199
    %v1113 = vunpack.c.h.b16 %v199
    %v1114 = vunpack.c.l.b16 %v200
    %v1115 = vunpack.c.h.b16 %v200
    %v1116 = vunpack.c.l.b16 %v201
    %v1117 = vunpack.c.h.b16 %v201
    %v1118 = vunpack.c.l.b16 %v202
    %v1119 = vunpack.c.h.b16 %v202
    %v1120 = vunpack.c.l.b16 %v203
    %v1121 = vunpack.c.h.b16 %v203
    %v1122 = vunpack.c.l.b16 %v204
    %v1123 = vunpack.c.h.b16 %v204
    %v1124 = vunpack.c.l.b16 %v205
    %v1125 = vunpack.c.h.b16 %v205
    %v1126 = vunpack.c.l.b16 %v206
    %v1127 = vunpack.c.h.b16 %v206
    %v1128 = vunpack.c.l.b16 %v207
    %v1129 = vunpack.c.h.b16 %v207
    %v1130 = vunpack.c.l.b16 %v208
    %v1131 = vunpack.c.h.b16 %v208
    %v1132 = vunpack.c.l.b16 %v209
    %v1133 = vunpack.c.h.b16 %v209
    %v1134 = vunpack.c.l.b16 %v210
    %v1135 = vunpack.c.h.b16 %v210
    %v1136 = vunpack.c.l.b16 %v211
    %v1137 = vunpack.c.h.b16 %v211
    %v1138 = vunpack.c.l.b16 %v212
    %v1139 = vunpack.c.h.b16 %v212
    %v1140 = vunpack.c.l.b16 %v213
    %v1141 = vunpack.c.h.b16 %v213
    %v1142 = vunpack.c.l.b16 %v214
    %v1143 = vunpack.c.h.b16 %v214
    %v1144 = vunpack.c.l.b16 %v215
    %v1145 = vunpack.c.h.b16 %v215
    %v1146 = vunpack.c.l.b16 %v216
    %v1147 = vunpack.c.h.b16 %v216
    %v1148 = vunpack.c.l.b16 %v217
    %v1149 = vunpack.c.h.b16 %v217
    %v1150 = vunpack.c.l.b16 %v218
    %v1151 = vunpack.c.h.b16 %v218
    %v1152 = vunpack.c.l.b16 %v219
    %v1153 = vunpack.c.h.b16 %v219
    %v1154 = vunpack.c.l.b16 %v220
    %v1155 = vunpack.c.h.b16 %v220
    %v1156 = vunpack.c.l.b16 %v221
    %v1157 = vunpack.c.h.b16 %v221
    %v1158 = vunpack.c.l.b16 %v222
    %v1159 = vunpack.c.h.b16 %v222
    %v1160 = vunpack.c.l.b16 %v223
    %v1161 = vunpack.c.h.b16 %v223
    %v1162 = vunpack.c.l.b16 %v224
    %v1163 = vunpack.c.h.b16 %v224
    %v1164 = vunpack.c.l.b16 %v225
    %v1165 = vunpack.c.h.b16 %v225
    %v1166 = vunpack.c.l.b16 %v226
    %v1167 = vunpack.c.h.b16 %v226
    %v1168 = vunpack.c.l.b16 %v227
    %v1169 = vunpack.c.h.b16 %v227
    %v1170 = vunpack.c.l.b16 %v228
    %v1171 = vunpack.c.h.b16 %v228
    %v1172 = vunpack.c.l.b16 %v229
    %v1173 = vunpack.c.h.b16 %v229
    %v1174 = vunpack.c.l.b16 %v230
    %v1175 = vunpack.c.h.b16 %v230
    %v1176 = vunpack.c.l.b16 %v231
    %v1177 = vunpack.c.h.b16 %v231
    %v1178 = vunpack.c.l.b16 %v232
    %v1179 = vunpack.c.h.b16 %v232
    %v1180 = vunpack.c.l.b16 %v233
    %v1181 = vunpack.c.h.b16 %v233
    %v1182 = vunpack.c.l.b16 %v234
    %v1183 = vunpack.c.h.b16 %v234
    %v1184 = vunpack.c.l.b16 %v235
    %v1185 = vunpack.c.h.b16 %v235
    %v1186 = vunpack.c.l.b16 %v236
    %v1187 = vunpack.c.h.b16 %v236
    %v1188 = vunpack.c.l.b16 %v237
    %v1189 = vunpack.c.h.b16 %v237
    %v1190 = vunpack.c.l.b16 %v238
    %v1191 = vunpack.c.h.b16 %v238
    %v1192 = vunpack.c.l.b16 %v239
    %v1193 = vunpack.c.h.b16 %v239
    %v1194 = vunpack.c.l.b16 %v240
    %v1195 = vunpack.c.h.b16 %v240
    %v1196 = vunpack.c.l.b16 %v241
    %v1197 = vunpack.c.h.b16 %v241
    %v1198 = vunpack.c.l.b16 %v242
    %v1199 = vunpack.c.h.b16 %v242
    %v1200 = vunpack.c.l.b16 %v243
    %v1201 = vunpack.c.h.b16 %v243
    %v1202 = vunpack.c.l.b16 %v244
    %v1203 = vunpack.c.h.b16 %v244
    %v1204 = vunpack.c.l.b16 %v245
    %v1205 = vunpack.c.h.b16 %v245
    %v1206 = vunpack.c.l.b16 %v246
    %v1207 = vunpack.c.h.b16 %v246
    %v1208 = vunpack.c.l.b16 %v247
    %v1209 = vunpack.c.h.b16 %v247
    %v1210 = vunpack.c.l.b16 %v248
    %v1211 = vunpack.c.h.b16 %v248
    %v1212 = vunpack.c.l.b16 %v249
    %v1213 = vunpack.c.h.b16 %v249
    %v1214 = vunpack.c.l.b16 %v250
    %v1215 = vunpack.c.h.b16 %v250
    %v1216 = vunpack.c.l.b16 %v251
    %v1217 = vunpack.c.h.b16 %v251
    %v1218 = vunpack.c.l.b16 %v252
    %v1219 = vunpack.c.h.b16 %v252
    %v1220 = vunpack.c.l.b16 %v253
    %v1221 = vunpack.c.h.b16 %v253
    %v1222 = vunpack.c.l.b16 %v254
    %v1223 = vunpack.c.h.b16 %v254
    %v1224 = vunpack.c.l.b16 %v255
    %v1225 = vunpack.c.h.b16 %v255
    %v1226 = vunpack.c.l.b16 %v256
    %v1227 = vunpack.c.h.b16 %v256
    %v1228 = vunpack.c.l.b16 %v257
    %v1229 = vunpack.c.h.b16 %v257
    %v1230 = vunpack.c.l.b16 %v258
    %v1231 = vunpack.c.h.b16 %v258
    %v1232 = vunpack.c.l.b16 %v259
    %v1233 = vunpack.c.h.b16 %v259
    %v1234 = vunpack.c.l.b16 %v260
    %v1235 = vunpack.c.h.b16 %v260
    %v1236 = vunpack.c.l.b16 %v261
    %v1237 = vunpack.c.h.b16 %v261
    %v1238 = vunpack.c.l.b16 %v262
    %v1239 = vunpack.c.h.b16 %v262
    %v1240 = vunpack.c.l.b16 %v263
    %v1241 = vunpack.c.h.b16 %v263
    %v1242 = vunpack.c.l.b16 %v264
    %v1243 = vunpack.c.h.b16 %v264
    %v1244 = vunpack.c.l.b16 %v265
    %v1245 = vunpack.c.h.b16 %v265
    %v1246 = vunpack.c.l.b16 %v266
    %v1247 = vunpack.c.h.b16 %v266
    %v1248 = vunpack.c.l.b16 %v267
    %v1249 = vunpack.c.h.b16 %v267
    %v1250 = vunpack.c.l.b16 %v268
    %v1251 = vunpack.c.h.b16 %v268
    %v1252 = vunpack.c.l.b16 %v269
    %v1253 = vunpack.c.h.b16 %v269
    %v1254 = vunpack.c.l.b16 %v270
    %v1255 = vunpack.c.h.b16 %v270
    %v1256 = vunpack.c.l.b16 %v271
    %v1257 = vunpack.c.h.b16 %v271
    %v1258 = vunpack.c.l.b16 %v272
    %v1259 = vunpack.c.h.b16 %v272
    %v1260 = vunpack.c.l.b16 %v273
    %v1261 = vunpack.c.h.b16 %v273
    %v1262 = vunpack.c.l.b16 %v274
    %v1263 = vunpack.c.h.b16 %v274
    %v1264 = vunpack.c.l.b16 %v275
    %v1265 = vunpack.c.h.b16 %v275
    %v1266 = vunpack.c.l.b16 %v276
    %v1267 = vunpack.c.h.b16 %v276
    %v1268 = vunpack.c.l.b16 %v277
    %v1269 = vunpack.c.h.b16 %v277
    %v1270 = vunpack.c.l.b16 %v278
    %v1271 = vunpack.c.h.b16 %v278
    %v1272 = vunpack.c.l.b16 %v279
    %v1273 = vunpack.c.h.b16 %v279
    %v1274 = vunpack.c.l.b16 %v280
    %v1275 = vunpack.c.h.b16 %v280
    %v1276 = vunpack.c.l.b16 %v281
    %v1277 = vunpack.c.h.b16 %v281
    %v1278 = vunpack.c.l.b16 %v282
    %v1279 = vunpack.c.h.b16 %v282
    %v1280 = vunpack.c.l.b16 %v283
    %v1281 = vunpack.c.h.b16 %v283
    %v1282 = vunpack.c.l.b16 %v284
    %v1283 = vunpack.c.h.b16 %v284
    %v1284 = vunpack.c.l.b16 %v285
    %v1285 = vunpack.c.h.b16 %v285
    %v1286 = vunpack.c.l.b16 %v286
    %v1287 = vunpack.c.h.b16 %v286
    %v1288 = vunpack.c.l.b16 %v287
    %v1289 = vunpack.c.h.b16 %v287
    %v1290 = vunpack.c.l.b16 %v288
    %v1291 = vunpack.c.h.b16 %v288
    %v1292 = vunpack.c.l.b16 %v289
    %v1293 = vunpack.c.h.b16 %v289
    %v1294 = vunpack.c.l.b16 %v290
    %v1295 = vunpack.c.h.b16 %v290
    %v1296 = vunpack.c.l.b16 %v291
    %v1297 = vunpack.c.h.b16 %v291
    %v1298 = vunpack.c.l.b16 %v292
    %v1299 = vunpack.c.h.b16 %v292
    %v1300 = vunpack.c.l.b16 %v293
    %v1301 = vunpack.c.h.b16 %v293
    %v1302 = vunpack.c.l.b16 %v294
    %v1303 = vunpack.c.h.b16 %v294
    %v1304 = vunpack.c.l.b16 %v295
    %v1305 = vunpack.c.h.b16 %v295
    %v1306 = vunpack.c.l.b16 %v296
    %v1307 = vunpack.c.h.b16 %v296
    %v1308 = vunpack.c.l.b16 %v297
    %v1309 = vunpack.c.h.b16 %v297
    %v1310 = vunpack.c.l.b16 %v298
    %v1311 = vunpack.c.h.b16 %v298
    %v1312 = vunpack.c.l.b16 %v299
    %v1313 = vunpack.c.h.b16 %v299
    %v1314 = vunpack.c.l.b16 %v300
    %v1315 = vunpack.c.h.b16 %v300
    %v1316 = vunpack.c.l.b16 %v301
    %v1317 = vunpack.c.h.b16 %v301
    %v1318 = vunpack.c.l.b16 %v302
    %v1319 = vunpack.c.h.b16 %v302
    %v1320 = vunpack.c.l.b16 %v303
    %v1321 = vunpack.c.h.b16 %v303
    %v1322 = vunpack.c.l.b16 %v304
    %v1323 = vunpack.c.h.b16 %v304
    %v1324 = vunpack.c.l.b16 %v305
    %v1325 = vunpack.c.h.b16 %v305
    %v1326 = vunpack.c.l.b16 %v306
    %v1327 = vunpack.c.h.b16 %v306
    %v1328 = vunpack.c.l.b16 %v307
    %v1329 = vunpack.c.h.b16 %v307
    %v1330 = vunpack.c.l.b16 %v308
    %v1331 = vunpack.c.h.b16 %v308
    %v1332 = vunpack.c.l.b16 %v309
    %v1333 = vunpack.c.h.b16 %v309
    %v1334 = vunpack.c.l.b16 %v310
    %v1335 = vunpack.c.h.b16 %v310
    %v1336 = vunpack.c.l.b16 %v311
    %v1337 = vunpack.c.h.b16 %v311
    %v1338 = vunpack.c.l.b16 %v312
    %v1339 = vunpack.c.h.b16 %v312
    %v1340 = vunpack.c.l.b16 %v313
    %v1341 = vunpack.c.h.b16 %v313
    %v1342 = vunpack.c.l.b16 %v314
    %v1343 = vunpack.c.h.b16 %v314
    %v1344 = vunpack.c.l.b16 %v315
    %v1345 = vunpack.c.h.b16 %v315
    %v1346 = vunpack.c.l.b16 %v316
    %v1347 = vunpack.c.h.b16 %v316
    %v1348 = vunpack.c.l.b16 %v317
    %v1349 = vunpack.c.h.b16 %v317
    %v1350 = vunpack.c.l.b16 %v318
    %v1351 = vunpack.c.h.b16 %v318
    %v1352 = vunpack.c.l.b16 %v319
    %v1353 = vunpack.c.h.b16 %v319
    %v1354 = vunpack.c.l.b16 %v320
    %v1355 = vunpack.c.h.b16 %v320
    %v1356 = vunpack.c.l.b16 %v321
    %v1357 = vunpack.c.h.b16 %v321
    %v1358 = vunpack.c.l.b16 %v322
    %v1359 = vunpack.c.h.b16 %v322
    %v1360 = vunpack.c.l.b16 %v323
    %v1361 = vunpack.c.h.b16 %v323
    %v1362 = vunpack.c.l.b16 %v324
    %v1363 = vunpack.c.h.b16 %v324
    %v1364 = vunpack.c.l.b16 %v325
    %v1365 = vunpack.c.h.b16 %v325
    %v1366 = vunpack.c.l.b16 %v326
    %v1367 = vunpack.c.h.b16 %v326
    %v1368 = vunpack.c.l.b16 %v327
    %v1369 = vunpack.c.h.b16 %v327
    %v1370 = vunpack.c.l.b16 %v328
    %v1371 = vunpack.c.h.b16 %v328
    %v1372 = vunpack.c.l.b16 %v329
    %v1373 = vunpack.c.h.b16 %v329
    %v1374 = vunpack.c.l.b16 %v330
    %v1375 = vunpack.c.h.b16 %v330
    %v1376 = vunpack.c.l.b16 %v331
    %v1377 = vunpack.c.h.b16 %v331
    %v1378 = vunpack.c.l.b16 %v332
    %v1379 = vunpack.c.h.b16 %v332
    %v1380 = vunpack.c.l.b16 %v333
    %v1381 = vunpack.c.h.b16 %v333
    %v1382 = vunpack.c.l.b16 %v334
    %v1383 = vunpack.c.h.b16 %v334
    %v1384 = vunpack.c.l.b16 %v335
    %v1385 = vunpack.c.h.b16 %v335
    %v1386 = vunpack.c.l.b16 %v336
    %v1387 = vunpack.c.h.b16 %v336
    %v1388 = vunpack.c.l.b16 %v337
    %v1389 = vunpack.c.h.b16 %v337
    %v1390 = vunpack.c.l.b16 %v338
    %v1391 = vunpack.c.h.b16 %v338
    %v1392 = vunpack.c.l.b16 %v339
    %v1393 = vunpack.c.h.b16 %v339
    %v1394 = vunpack.c.l.b16 %v340
    %v1395 = vunpack.c.h.b16 %v340
    %v1396 = vunpack.c.l.b16 %v341
    %v1397 = vunpack.c.h.b16 %v341
    %v1398 = vunpack.c.l.b16 %v342
    %v1399 = vunpack.c.h.b16 %v342
    %v1400 = vunpack.c.l.b16 %v343
    %v1401 = vunpack.c.h.b16 %v343
    %v1402 = vunpack.c.l.b16 %v344
    %v1403 = vunpack.c.h.b16 %v344
    %v1404 = vunpack.c.l.b16 %v345
    %v1405 = vunpack.c.h.b16 %v345
    %v1406 = vunpack.c.l.b16 %v346
    %v1407 = vunpack.c.h.b16 %v346
    %v1408 = vunpack.c.l.b16 %v347
    %v1409 = vunpack.c.h.b16 %v347
    %v1410 = vunpack.c.l.b16 %v348
    %v1411 = vunpack.c.h.b16 %v348
    %v1412 = vunpack.c.l.b16 %v349
    %v1413 = vunpack.c.h.b16 %v349
    %v1414 = vunpack.c.l.b16 %v350
    %v1415 = vunpack.c.h.b16 %v350
    %v1416 = vunpack.c.l.b16 %v351
    %v1417 = vunpack.c.h.b16 %v351
    %v1418 = vunpack.c.l.b16 %v352
    %v1419 = vunpack.c.h.b16 %v352
    %v1420 = vunpack.c.l.b16 %v353
    %v1421 = vunpack.c.h.b16 %v353
    %v1422 = vunpack.c.l.b16 %v354
    %v1423 = vunpack.c.h.b16 %v354
    %v1424 = vunpack.c.l.b16 %v355
    %v1425 = vunpack.c.h.b16 %v355
    %v1426 = vunpack.c.l.b16 %v356
    %v1427 = vunpack.c.h.b16 %v356
    %v1428 = vunpack.c.l.b16 %v357
    %v1429 = vunpack.c.h.b16 %v357
    %v1430 = vunpack.c.l.b16 %v358
    %v1431 = vunpack.c.h.b16 %v358
    %v1432 = vunpack.c.l.b16 %v359
    %v1433 = vunpack.c.h.b16 %v359
    %v1434 = vunpack.c.l.b16 %v360
    %v1435 = vunpack.c.h.b16 %v360
    %v1436 = vunpack.c.l.b16 %v361
    %v1437 = vunpack.c.h.b16 %v361
    %v1438 = vunpack.c.l.b16 %v362
    %v1439 = vunpack.c.h.b16 %v362
    %v1440 = vunpack.c.l.b16 %v363
    %v1441 = vunpack.c.h.b16 %v363
    %v1442 = vunpack.c.l.b16 %v364
    %v1443 = vunpack.c.h.b16 %v364
    %v1444 = vunpack.c.l.b16 %v365
    %v1445 = vunpack.c.h.b16 %v365
    %v1446 = vunpack.c.l.b16 %v366
    %v1447 = vunpack.c.h.b16 %v366
    %v1448 = vunpack.c.l.b16 %v367
    %v1449 = vunpack.c.h.b16 %v367
    %v1450 = vunpack.c.l.b16 %v368
    %v1451 = vunpack.c.h.b16 %v368
    %v1452 = vunpack.c.l.b16 %v369
    %v1453 = vunpack.c.h.b16 %v369
    %v1454 = vunpack.c.l.b16 %v370
    %v1455 = vunpack.c.h.b16 %v370
    %v1456 = vunpack.c.l.b16 %v371
    %v1457 = vunpack.c.h.b16 %v371
    %v1458 = vunpack.c.l.b16 %v372
    %v1459 = vunpack.c.h.b16 %v372
    %v1460 = vunpack.c.l.b16 %v373
    %v1461 = vunpack.c.h.b16 %v373
    %v1462 = vpack.c.b16 %v954, %v950
    %v1463 = vpack.c.b16 %v955, %v951
    %v1464 = vpack.c.b16 %v956, %v952
    %v1465 = vpack.c.b16 %v957, %v953
    %v1466 = vpack.c.b16 %v962, %v958
    %v1467 = vpack.c.b16 %v963, %v959
    %v1468 = vpack.c.b16 %v964, %v960
    %v1469 = vpack.c.b16 %v965, %v961
    %v1470 = vpack.c.b16 %v970, %v966
    %v1471 = vpack.c.b16 %v971, %v967
    %v1472 = vpack.c.b16 %v972, %v968
    %v1473 = vpack.c.b16 %v973, %v969
    %v1474 = vpack.c.b16 %v978, %v974
    %v1475 = vpack.c.b16 %v979, %v975
    %v1476 = vpack.c.b16 %v980, %v976
    %v1477 = vpack.c.b16 %v981, %v977
    %v1478 = vpack.c.b16 %v986, %v982
    %v1479 = vpack.c.b16 %v987, %v983
    %v1480 = vpack.c.b16 %v988, %v984
    %v1481 = vpack.c.b16 %v989, %v985
    %v1482 = vpack.c.b16 %v994, %v990
    %v1483 = vpack.c.b16 %v995, %v991
    %v1484 = vpack.c.b16 %v996, %v992
    %v1485 = vpack.c.b16 %v997, %v993
    %v1486 = vpack.c.b16 %v1002, %v998
    %v1487 = vpack.c.b16 %v1003, %v999
    %v1488 = vpack.c.b16 %v1004, %v1000
    %v1489 = vpack.c.b16 %v1005, %v1001
    %v1490 = vpack.c.b16 %v1010, %v1006
    %v1491 = vpack.c.b16 %v1011, %v1007
    %v1492 = vpack.c.b16 %v1012, %v1008
    %v1493 = vpack.c.b16 %v1013, %v1009
    %v1494 = vpack.c.b16 %v1018, %v1014
    %v1495 = vpack.c.b16 %v1019, %v1015
    %v1496 = vpack.c.b16 %v1020, %v1016
    %v1497 = vpack.c.b16 %v1021, %v1017
    %v1498 = vpack.c.b16 %v1026, %v1022
    %v1499 = vpack.c.b16 %v1027, %v1023
    %v1500 = vpack.c.b16 %v1028, %v1024
    %v1501 = vpack.c.b16 %v1029, %v1025
    %v1502 = vpack.c.b16 %v1034, %v1030
    %v1503 = vpack.c.b16 %v1035, %v1031
    %v1504 = vpack.c.b16 %v1036, %v1032
    %v1505 = vpack.c.b16 %v1037, %v1033
    %v1506 = vpack.c.b16 %v1042, %v1038
    %v1507 = vpack.c.b16 %v1043, %v1039
    %v1508 = vpack.c.b16 %v1044, %v1040
    %v1509 = vpack.c.b16 %v1045, %v1041
    %v1510 = vpack.c.b16 %v1050, %v1046
    %v1511 = vpack.c.b16 %v1051, %v1047
    %v1512 = vpack.c.b16 %v1052, %v1048
    %v1513 = vpack.c.b16 %v1053, %v1049
    %v1514 = vpack.c.b16 %v1058, %v1054
    %v1515 = vpack.c.b16 %v1059, %v1055
    %v1516 = vpack.c.b16 %v1060, %v1056
    %v1517 = vpack.c.b16 %v1061, %v1057
    %v1518 = vpack.c.b16 %v1066, %v1062
    %v1519 = vpack.c.b16 %v1067, %v1063
    %v1520 = vpack.c.b16 %v1068, %v1064
    %v1521 = vpack.c.b16 %v1069, %v1065
    %v1522 = vpack.c.b16 %v1074, %v1070
    %v1523 = vpack.c.b16 %v1075, %v1071
    %v1524 = vpack.c.b16 %v1076, %v1072
    %v1525 = vpack.c.b16 %v1077, %v1073
    %v1526 = vpack.c.b16 %v1082, %v1078
    %v1527 = vpack.c.b16 %v1083, %v1079
    %v1528 = vpack.c.b16 %v1084, %v1080
    %v1529 = vpack.c.b16 %v1085, %v1081
    %v1530 = vpack.c.b16 %v1090, %v1086
    %v1531 = vpack.c.b16 %v1091, %v1087
    %v1532 = vpack.c.b16 %v1092, %v1088
    %v1533 = vpack.c.b16 %v1093, %v1089
    %v1534 = vpack.c.b16 %v1098, %v1094
    %v1535 = vpack.c.b16 %v1099, %v1095
    %v1536 = vpack.c.b16 %v1100, %v1096
    %v1537 = vpack.c.b16 %v1101, %v1097
    %v1538 = vpack.c.b16 %v1106, %v1102
    %v1539 = vpack.c.b16 %v1107, %v1103
    %v1540 = vpack.c.b16 %v1108, %v1104
    %v1541 = vpack.c.b16 %v1109, %v1105
    %v1542 = vpack.c.b16 %v1114, %v1110
    %v1543 = vpack.c.b16 %v1115, %v1111
    %v1544 = vpack.c.b16 %v1116, %v1112
    %v1545 = vpack.c.b16 %v1117, %v1113
    %v1546 = vpack.c.b16 %v1122, %v1118
    %v1547 = vpack.c.b16 %v1123, %v1119
    %v1548 = vpack.c.b16 %v1124, %v1120
    %v1549 = vpack.c.b16 %v1125, %v1121
    %v1550 = vpack.c.b16 %v1130, %v1126
    %v1551 = vpack.c.b16 %v1131, %v1127
    %v1552 = vpack.c.b16 %v1132, %v1128
    %v1553 = vpack.c.b16 %v1133, %v1129
    %v1554 = vpack.c.b16 %v1138, %v1134
    %v1555 = vpack.c.b16 %v1139, %v1135
    %v1556 = vpack.c.b16 %v1140, %v1136
    %v1557 = vpack.c.b16 %v1141, %v1137
    %v1558 = vpack.c.b16 %v1146, %v1142
    %v1559 = vpack.c.b16 %v1147, %v1143
    %v1560 = vpack.c.b16 %v1148, %v1144
    %v1561 = vpack.c.b16 %v1149, %v1145
    %v1562 = vpack.c.b16 %v1154, %v1150
    %v1563 = vpack.c.b16 %v1155, %v1151
    %v1564 = vpack.c.b16 %v1156, %v1152
    %v1565 = vpack.c.b16 %v1157, %v1153
    %v1566 = vpack.c.b16 %v1162, %v1158
    %v1567 = vpack.c.b16 %v1163, %v1159
    %v1568 = vpack.c.b16 %v1164, %v1160
    %v1569 = vpack.c.b16 %v1165, %v1161
    %v1570 = vpack.c.b16 %v1170, %v1166
    %v1571 = vpack.c.b16 %v1171, %v1167
    %v1572 = vpack.c.b16 %v1172, %v1168
    %v1573 = vpack.c.b16 %v1173, %v1169
    %v1574 = vpack.c.b16 %v1178, %v1174
    %v1575 = vpack.c.b16 %v1179, %v1175
    %v1576 = vpack.c.b16 %v1180, %v1176
    %v1577 = vpack.c.b16 %v1181, %v1177
    %v1578 = vpack.c.b16 %v1186, %v1182
    %v1579 = vpack.c.b16 %v1187, %v1183
    %v1580 = vpack.c.b16 %v1188, %v1184
    %v1581 = vpack.c.b16 %v1189, %v1185
    %v1582 = vpack.c.b16 %v1194, %v1190
    %v1583 = vpack.c.b16 %v1195, %v1191
    %v1584 = vpack.c.b16 %v1196, %v1192
    %v1585 = vpack.c.b16 %v1197, %v1193
    %v1586 = vpack.c.b16 %v1202, %v1198
    %v1587 = vpack.c.b16 %v1203, %v1199
    %v1588 = vpack.c.b16 %v1204, %v1200
    %v1589 = vpack.c.b16 %v1205, %v1201
    %v1590 = vpack.c.b16 %v1210, %v1206
    %v1591 = vpack.c.b16 %v1211, %v1207
    %v1592 = vpack.c.b16 %v1212, %v1208
    %v1593 = vpack.c.b16 %v1213, %v1209
    %v1594 = vpack.c.b16 %v1218, %v1214
    %v1595 = vpack.c.b16 %v1219, %v1215
    %v1596 = vpack.c.b16 %v1220, %v1216
    %v1597 = vpack.c.b16 %v1221, %v1217
    %v1598 = vpack.c.b16 %v1226, %v1222
    %v1599 = vpack.c.b16 %v1227, %v1223
    %v1600 = vpack.c.b16 %v1228, %v1224
    %v1601 = vpack.c.b16 %v1229, %v1225
    %v1602 = vpack.c.b16 %v1234, %v1230
    %v1603 = vpack.c.b16 %v1235, %v1231
    %v1604 = vpack.c.b16 %v1236, %v1232
    %v1605 = vpack.c.b16 %v1237, %v1233
    %v1606 = vpack.c.b16 %v1242, %v1238
    %v1607 = vpack.c.b16 %v1243, %v1239
    %v1608 = vpack.c.b16 %v1244, %v1240
    %v1609 = vpack.c.b16 %v1245, %v1241
    %v1610 = vpack.c.b16 %v1250, %v1246
    %v1611 = vpack.c.b16 %v1251, %v1247
    %v1612 = vpack.c.b16 %v1252, %v1248
    %v1613 = vpack.c.b16 %v1253, %v1249
    %v1614 = vpack.c.b16 %v1258, %v1254
    %v1615 = vpack.c.b16 %v1259, %v1255
    %v1616 = vpack.c.b16 %v1260, %v1256
    %v1617 = vpack.c.b16 %v1261, %v1257
    %v1618 = vpack.c.b16 %v1266, %v1262
    %v1619 = vpack.c.b16 %v1267, %v1263
    %v1620 = vpack.c.b16 %v1268, %v1264
    %v1621 = vpack.c.b16 %v1269, %v1265
    %v1622 = vpack.c.b16 %v1274, %v1270
    %v1623 = vpack.c.b16 %v1275, %v1271
    %v1624 = vpack.c.b16 %v1276, %v1272
    %v1625 = vpack.c.b16 %v1277, %v1273
    %v1626 = vpack.c.b16 %v1282, %v1278
    %v1627 = vpack.c.b16 %v1283, %v1279
    %v1628 = vpack.c.b16 %v1284, %v1280
    %v1629 = vpack.c.b16 %v1285, %v1281
    %v1630 = vpack.c.b16 %v1290, %v1286
    %v1631 = vpack.c.b16 %v1291, %v1287
    %v1632 = vpack.c.b16 %v1292, %v1288
    %v1633 = vpack.c.b16 %v1293, %v1289
    %v1634 = vpack.c.b16 %v1298, %v1294
    %v1635 = vpack.c.b16 %v1299, %v1295
    %v1636 = vpack.c.b16 %v1300, %v1296
    %v1637 = vpack.c.b16 %v1301, %v1297
    %v1638 = vpack.c.b16 %v1306, %v1302
    %v1639 = vpack.c.b16 %v1307, %v1303
    %v1640 = vpack.c.b16 %v1308, %v1304
    %v1641 = vpack.c.b16 %v1309, %v1305
    %v1642 = vpack.c.b16 %v1314, %v1310
    %v1643 = vpack.c.b16 %v1315, %v1311
    %v1644 = vpack.c.b16 %v1316, %v1312
    %v1645 = vpack.c.b16 %v1317, %v1313
    %v1646 = vpack.c.b16 %v1322, %v1318
    %v1647 = vpack.c.b16 %v1323, %v1319
    %v1648 = vpack.c.b16 %v1324, %v1320
    %v1649 = vpack.c.b16 %v1325, %v1321
    %v1650 = vpack.c.b16 %v1330, %v1326
    %v1651 = vpack.c.b16 %v1331, %v1327
    %v1652 = vpack.c.b16 %v1332, %v1328
    %v1653 = vpack.c.b16 %v1333, %v1329
    %v1654 = vpack.c.b16 %v1338, %v1334
    %v1655 = vpack.c.b16 %v1339, %v1335
    %v1656 = vpack.c.b16 %v1340, %v1336
    %v1657 = vpack.c.b16 %v1341, %v1337
    %v1658 = vpack.c.b16 %v1346, %v1342
    %v1659 = vpack.c.b16 %v1347, %v1343
    %v1660 = vpack.c.b16 %v1348, %v1344
    %v1661 = vpack.c.b16 %v1349, %v1345
    %v1662 = vpack.c.b16 %v1354, %v1350
    %v1663 = vpack.c.b16 %v1355, %v1351
    %v1664 = vpack.c.b16 %v1356, %v1352
    %v1665 = vpack.c.b16 %v1357, %v1353
    %v1666 = vpack.c.b16 %v1362, %v1358
    %v1667 = vpack.c.b16 %v1363, %v1359
    %v1668 = vpack.c.b16 %v1364, %v1360
    %v1669 = vpack.c.b16 %v1365, %v1361
    %v1670 = vpack.c.b16 %v1370, %v1366
    %v1671 = vpack.c.b16 %v1371, %v1367
    %v1672 = vpack.c.b16 %v1372, %v1368
    %v1673 = vpack.c.b16 %v1373, %v1369
    %v1674 = vpack.c.b16 %v1378, %v1374
    %v1675 = vpack.c.b16 %v1379, %v1375
    %v1676 = vpack.c.b16 %v1380, %v1376
    %v1677 = vpack.c.b16 %v1381, %v1377
    %v1678 = vpack.c.b16 %v1386, %v1382
    %v1679 = vpack.c.b16 %v1387, %v1383
    %v1680 = vpack.c.b16 %v1388, %v1384
    %v1681 = vpack.c.b16 %v1389, %v1385
    %v1682 = vpack.c.b16 %v1394, %v1390
    %v1683 = vpack.c.b16 %v1395, %v1391
    %v1684 = vpack.c.b16 %v1396, %v1392
    %v1685 = vpack.c.b16 %v1397, %v1393
    %v1686 = vpack.c.b16 %v1402, %v1398
    %v1687 = vpack.c.b16 %v1403, %v1399
    %v1688 = vpack.c.b16 %v1404, %v1400
    %v1689 = vpack.c.b16 %v1405, %v1401
    %v1690 = vpack.c.b16 %v1410, %v1406
    %v1691 = vpack.c.b16 %v1411, %v1407
    %v1692 = vpack.c.b16 %v1412, %v1408
    %v1693 = vpack.c.b16 %v1413, %v1409
    %v1694 = vpack.c.b16 %v1418, %v1414
    %v1695 = vpack.c.b16 %v1419, %v1415
    %v1696 = vpack.c.b16 %v1420, %v1416
    %v1697 = vpack.c.b16 %v1421, %v1417
    %v1698 = vpack.c.b16 %v1426, %v1422
    %v1699 = vpack.c.b16 %v1427, %v1423
    %v1700 = vpack.c.b16 %v1428, %v1424
    %v1701 = vpack.c.b16 %v1429, %v1425
    %v1702 = vpack.c.b16 %v1434, %v1430
    %v1703 = vpack.c.b16 %v1435, %v1431
    %v1704 = vpack.c.b16 %v1436, %v1432
    %v1705 = vpack.c.b16 %v1437, %v1433
    %v1706 = vpack.c.b16 %v1442, %v1438
    %v1707 = vpack.c.b16 %v1443, %v1439
    %v1708 = vpack.c.b16 %v1444, %v1440
    %v1709 = vpack.c.b16 %v1445, %v1441
    %v1710 = vpack.c.b16 %v1450, %v1446
    %v1711 = vpack.c.b16 %v1451, %v1447
    %v1712 = vpack.c.b16 %v1452, %v1448
    %v1713 = vpack.c.b16 %v1453, %v1449
    %v1714 = vpack.c.b16 %v1458, %v1454
    %v1715 = vpack.c.b16 %v1459, %v1455
    %v1716 = vpack.c.b16 %v1460, %v1456
    %v1717 = vpack.c.b16 %v1461, %v1457
    %1974 = vmatprep.subr.bf16.mxu0 %v1463
    %1975 = vmatpush1.bf16.msra.mxu0 %v1462
    %1976 = vmatprep.subr.bf16.mxu0 %v1467
    %1977 = vmatpush1.bf16.msra.mxu0 %v1466
    %1978 = vmatprep.subr.bf16.mxu0 %v1471
    %1979 = vmatpush1.bf16.msra.mxu0 %v1470
    %1980 = vmatprep.subr.bf16.mxu0 %v1475
    %1981 = vmatpush1.bf16.msra.mxu0 %v1474
    %1982 = vmatprep.subr.bf16.mxu0 %v1479
    %1983 = vmatpush1.bf16.msra.mxu0 %v1478
    %1984 = vmatprep.subr.bf16.mxu0 %v1483
    %1985 = vmatpush1.bf16.msra.mxu0 %v1482
    %1986 = vmatprep.subr.bf16.mxu0 %v1487
    %1987 = vmatpush1.bf16.msra.mxu0 %v1486
    %1988 = vmatprep.subr.bf16.mxu0 %v1491
    %1989 = vmatpush1.bf16.msra.mxu0 %v1490
    %1990 = vmatprep.subr.bf16.mxu0 %v1495
    %1991 = vmatpush1.bf16.msra.mxu0 %v1494
    %1992 = vmatprep.subr.bf16.mxu0 %v1499
    %1993 = vmatpush1.bf16.msra.mxu0 %v1498
    %1994 = vmatprep.subr.bf16.mxu0 %v1503
    %1995 = vmatpush1.bf16.msra.mxu0 %v1502
    %1996 = vmatprep.subr.bf16.mxu0 %v1507
    %1997 = vmatpush1.bf16.msra.mxu0 %v1506
    %1998 = vmatprep.subr.bf16.mxu0 %v1511
    %1999 = vmatpush1.bf16.msra.mxu0 %v1510
    %2000 = vmatprep.subr.bf16.mxu0 %v1515
    %2001 = vmatpush1.bf16.msra.mxu0 %v1514
    %2002 = vmatprep.subr.bf16.mxu0 %v1519
    %2003 = vmatpush1.bf16.msra.mxu0 %v1518
    %2004 = vmatprep.subr.bf16.mxu0 %v1523
    %2005 = vmatpush1.bf16.msra.mxu0 %v1522
    %2006 = vmatprep.mubr.bf16.mxu0 %v567
    %2007 = vmatmul.mubr.bf16.gmra.mrb[0].mxu0 %v566
    %v2008 = vpop.f32.mrb[0].mxu0
    %v2009 = vadd.f32 0.0, %v2008
    %v2010 = vpop.f32.mrb[0].mxu0
    %v2011 = vadd.f32 0.0, %v2010
    %v2012 = vpop.f32.mrb[0].mxu0
    %v2013 = vadd.f32 0.0, %v2012
    %v2014 = vpop.f32.mrb[0].mxu0
    %v2015 = vadd.f32 0.0, %v2014
    %2016 = vmatprep.mubr.bf16.mxu0 %v575
    %2017 = vmatmul.mubr.bf16.gmra.mrb[0].mxu0 %v574
    %v2018 = vpop.f32.mrb[0].mxu0
    %v2019 = vadd.f32 0.0, %v2018
    %v2020 = vpop.f32.mrb[0].mxu0
    %v2021 = vadd.f32 0.0, %v2020
    %v2022 = vpop.f32.mrb[0].mxu0
    %v2023 = vadd.f32 0.0, %v2022
    %v2024 = vpop.f32.mrb[0].mxu0
    %v2025 = vadd.f32 0.0, %v2024
    %2026 = vmatprep.mubr.bf16.mxu0 %v583
    %2027 = vmatmul.mubr.bf16.gmra.mrb[0].mxu0 %v582
    %v2028 = vpop.f32.mrb[0].mxu0
    %v2029 = vadd.f32 0.0, %v2028
    %v2030 = vpop.f32.mrb[0].mxu0
    %v2031 = vadd.f32 0.0, %v2030
    %v2032 = vpop.f32.mrb[0].mxu0
    %v2033 = vadd.f32 0.0, %v2032
    %v2034 = vpop.f32.mrb[0].mxu0
    %v2035 = vadd.f32 0.0, %v2034
    %2036 = vmatprep.mubr.bf16.mxu0 %v591
    %2037 = vmatmul.mubr.bf16.gmra.mrb[0].mxu0 %v590
    %v2038 = vpop.f32.mrb[0].mxu0
    %v2039 = vadd.f32 0.0, %v2038
    %v2040 = vpop.f32.mrb[0].mxu0
    %v2041 = vadd.f32 0.0, %v2040
    %v2042 = vpop.f32.mrb[0].mxu0
    %v2043 = vadd.f32 0.0, %v2042
    %v2044 = vpop.f32.mrb[0].mxu0
    %v2045 = vadd.f32 0.0, %v2044
    %2046 = vmatprep.mubr.bf16.mxu0 %v599
    %2047 = vmatmul.mubr.bf16.gmra.mrb[0].mxu0 %v598
    %v2048 = vpop.f32.mrb[0].mxu0
    %v2049 = vadd.f32 0.0, %v2048
    %v2050 = vpop.f32.mrb[0].mxu0
    %v2051 = vadd.f32 0.0, %v2050
    %v2052 = vpop.f32.mrb[0].mxu0
    %v2053 = vadd.f32 0.0, %v2052
    %v2054 = vpop.f32.mrb[0].mxu0
    %v2055 = vadd.f32 0.0, %v2054
    %2056 = vmatprep.mubr.bf16.mxu0 %v607
    %2057 = vmatmul.mubr.bf16.gmra.mrb[0].mxu0 %v606
    %v2058 = vpop.f32.mrb[0].mxu0
    %v2059 = vadd.f32 0.0, %v2058
    %v2060 = vpop.f32.mrb[0].mxu0
    %v2061 = vadd.f32 0.0, %v2060
    %v2062 = vpop.f32.mrb[0].mxu0
    %v2063 = vadd.f32 0.0, %v2062
    %v2064 = vpop.f32.mrb[0].mxu0
    %v2065 = vadd.f32 0.0, %v2064
    %2066 = vmatprep.mubr.bf16.mxu0 %v615
    %2067 = vmatmul.mubr.bf16.gmra.mrb[0].mxu0 %v614
    %v2068 = vpop.f32.mrb[0].mxu0
    %v2069 = vadd.f32 0.0, %v2068
    %v2070 = vpop.f32.mrb[0].mxu0
    %v2071 = vadd.f32 0.0, %v2070
    %v2072 = vpop.f32.mrb[0].mxu0
    %v2073 = vadd.f32 0.0, %v2072
    %v2074 = vpop.f32.mrb[0].mxu0
    %v2075 = vadd.f32 0.0, %v2074
    %2076 = vmatprep.mubr.bf16.mxu0 %v623
    %2077 = vmatmul.mubr.bf16.gmra.mrb[0].mxu0 %v622
    %v2078 = vpop.f32.mrb[0].mxu0
    %v2079 = vadd.f32 0.0, %v2078
    %v2080 = vpop.f32.mrb[0].mxu0
    %v2081 = vadd.f32 0.0, %v2080
    %v2082 = vpop.f32.mrb[0].mxu0
    %v2083 = vadd.f32 0.0, %v2082
    %v2084 = vpop.f32.mrb[0].mxu0
    %v2085 = vadd.f32 0.0, %v2084
    %2086 = vdwg.mxu0
    %2087 = vmatprep.subr.bf16.mxu0 %v1527
    %2088 = vmatpush1.bf16.msra.mxu0 %v1526
    %2089 = vmatprep.subr.bf16.mxu0 %v1531
    %2090 = vmatpush1.bf16.msra.mxu0 %v1530
    %2091 = vmatprep.subr.bf16.mxu0 %v1535
    %2092 = vmatpush1.bf16.msra.mxu0 %v1534
    %2093 = vmatprep.subr.bf16.mxu0 %v1539
    %2094 = vmatpush1.bf16.msra.mxu0 %v1538
    %2095 = vmatprep.subr.bf16.mxu0 %v1543
    %2096 = vmatpush1.bf16.msra.mxu0 %v1542
    %2097 = vmatprep.subr.bf16.mxu0 %v1547
    %2098 = vmatpush1.bf16.msra.mxu0 %v1546
    %2099 = vmatprep.subr.bf16.mxu0 %v1551
    %2100 = vmatpush1.bf16.msra.mxu0 %v1550
    %2101 = vmatprep.subr.bf16.mxu0 %v1555
    %2102 = vmatpush1.bf16.msra.mxu0 %v1554
    %2103 = vmatprep.subr.bf16.mxu0 %v1559
    %2104 = vmatpush1.bf16.msra.mxu0 %v1558
    %2105 = vmatprep.subr.bf16.mxu0 %v1563
    %2106 = vmatpush1.bf16.msra.mxu0 %v1562
    %2107 = vmatprep.subr.bf16.mxu0 %v1567
    %2108 = vmatpush1.bf16.msra.mxu0 %v1566
    %2109 = vmatprep.subr.bf16.mxu0 %v1571
    %2110 = vmatpush1.bf16.msra.mxu0 %v1570
    %2111 = vmatprep.subr.bf16.mxu0 %v1575
    %2112 = vmatpush1.bf16.msra.mxu0 %v1574
    %2113 = vmatprep.subr.bf16.mxu0 %v1579
    %2114 = vmatpush1.bf16.msra.mxu0 %v1578
    %2115 = vmatprep.subr.bf16.mxu0 %v1583
    %2116 = vmatpush1.bf16.msra.mxu0 %v1582
    %2117 = vmatprep.subr.bf16.mxu0 %v1587
    %2118 = vmatpush1.bf16.msra.mxu0 %v1586
    %2119 = vmatprep.mubr.bf16.mxu0 %v569
    %2120 = vmatmul.mubr.bf16.gmra.mrb[0].mxu0 %v568
    %v2121 = vpop.f32.mrb[0].mxu0
    %v2122 = vadd.f32 %v2009, %v2121
    %v2123 = vpop.f32.mrb[0].mxu0
    %v2124 = vadd.f32 %v2011, %v2123
    %v2125 = vpop.f32.mrb[0].mxu0
    %v2126 = vadd.f32 %v2013, %v2125
    %v2127 = vpop.f32.mrb[0].mxu0
    %v2128 = vadd.f32 %v2015, %v2127
    %2129 = vmatprep.mubr.bf16.mxu0 %v577
    %2130 = vmatmul.mubr.bf16.gmra.mrb[0].mxu0 %v576
    %v2131 = vpop.f32.mrb[0].mxu0
    %v2132 = vadd.f32 %v2019, %v2131
    %v2133 = vpop.f32.mrb[0].mxu0
    %v2134 = vadd.f32 %v2021, %v2133
    %v2135 = vpop.f32.mrb[0].mxu0
    %v2136 = vadd.f32 %v2023, %v2135
    %v2137 = vpop.f32.mrb[0].mxu0
    %v2138 = vadd.f32 %v2025, %v2137
    %2139 = vmatprep.mubr.bf16.mxu0 %v585
    %2140 = vmatmul.mubr.bf16.gmra.mrb[0].mxu0 %v584
    %v2141 = vpop.f32.mrb[0].mxu0
    %v2142 = vadd.f32 %v2029, %v2141
    %v2143 = vpop.f32.mrb[0].mxu0
    %v2144 = vadd.f32 %v2031, %v2143
    %v2145 = vpop.f32.mrb[0].mxu0
    %v2146 = vadd.f32 %v2033, %v2145
    %v2147 = vpop.f32.mrb[0].mxu0
    %v2148 = vadd.f32 %v2035, %v2147
    %2149 = vmatprep.mubr.bf16.mxu0 %v593
    %2150 = vmatmul.mubr.bf16.gmra.mrb[0].mxu0 %v592
    %v2151 = vpop.f32.mrb[0].mxu0
    %v2152 = vadd.f32 %v2039, %v2151
    %v2153 = vpop.f32.mrb[0].mxu0
    %v2154 = vadd.f32 %v2041, %v2153
    %v2155 = vpop.f32.mrb[0].mxu0
    %v2156 = vadd.f32 %v2043, %v2155
    %v2157 = vpop.f32.mrb[0].mxu0
    %v2158 = vadd.f32 %v2045, %v2157
    %2159 = vmatprep.mubr.bf16.mxu0 %v601
    %2160 = vmatmul.mubr.bf16.gmra.mrb[0].mxu0 %v600
    %v2161 = vpop.f32.mrb[0].mxu0
    %v2162 = vadd.f32 %v2049, %v2161
    %v2163 = vpop.f32.mrb[0].mxu0
    %v2164 = vadd.f32 %v2051, %v2163
    %v2165 = vpop.f32.mrb[0].mxu0
    %v2166 = vadd.f32 %v2053, %v2165
    %v2167 = vpop.f32.mrb[0].mxu0
    %v2168 = vadd.f32 %v2055, %v2167
    %2169 = vmatprep.mubr.bf16.mxu0 %v609
    %2170 = vmatmul.mubr.bf16.gmra.mrb[0].mxu0 %v608
    %v2171 = vpop.f32.mrb[0].mxu0
    %v2172 = vadd.f32 %v2059, %v2171
    %v2173 = vpop.f32.mrb[0].mxu0
    %v2174 = vadd.f32 %v2061, %v2173
    %v2175 = vpop.f32.mrb[0].mxu0
    %v2176 = vadd.f32 %v2063, %v2175
    %v2177 = vpop.f32.mrb[0].mxu0
    %v2178 = vadd.f32 %v2065, %v2177
    %2179 = vmatprep.mubr.bf16.mxu0 %v617
    %2180 = vmatmul.mubr.bf16.gmra.mrb[0].mxu0 %v616
    %v2181 = vpop.f32.mrb[0].mxu0
    %v2182 = vadd.f32 %v2069, %v2181
    %v2183 = vpop.f32.mrb[0].mxu0
    %v2184 = vadd.f32 %v2071, %v2183
    %v2185 = vpop.f32.mrb[0].mxu0
    %v2186 = vadd.f32 %v2073, %v2185
    %v2187 = vpop.f32.mrb[0].mxu0
    %v2188 = vadd.f32 %v2075, %v2187
    %2189 = vmatprep.mubr.bf16.mxu0 %v625
    %2190 = vmatmul.mubr.bf16.gmra.mrb[0].mxu0 %v624
    %v2191 = vpop.f32.mrb[0].mxu0
    %v2192 = vadd.f32 %v2079, %v2191
    %v2193 = vpop.f32.mrb[0].mxu0
    %v2194 = vadd.f32 %v2081, %v2193
    %v2195 = vpop.f32.mrb[0].mxu0
    %v2196 = vadd.f32 %v2083, %v2195
    %v2197 = vpop.f32.mrb[0].mxu0
    %v2198 = vadd.f32 %v2085, %v2197
    %2199 = vdwg.mxu0
    %2200 = vmatprep.subr.bf16.mxu0 %v1591
    %2201 = vmatpush1.bf16.msra.mxu0 %v1590
    %2202 = vmatprep.subr.bf16.mxu0 %v1595
    %2203 = vmatpush1.bf16.msra.mxu0 %v1594
    %2204 = vmatprep.subr.bf16.mxu0 %v1599
    %2205 = vmatpush1.bf16.msra.mxu0 %v1598
    %2206 = vmatprep.subr.bf16.mxu0 %v1603
    %2207 = vmatpush1.bf16.msra.mxu0 %v1602
    %2208 = vmatprep.subr.bf16.mxu0 %v1607
    %2209 = vmatpush1.bf16.msra.mxu0 %v1606
    %2210 = vmatprep.subr.bf16.mxu0 %v1611
    %2211 = vmatpush1.bf16.msra.mxu0 %v1610
    %2212 = vmatprep.subr.bf16.mxu0 %v1615
    %2213 = vmatpush1.bf16.msra.mxu0 %v1614
    %2214 = vmatprep.subr.bf16.mxu0 %v1619
    %2215 = vmatpush1.bf16.msra.mxu0 %v1618
    %2216 = vmatprep.subr.bf16.mxu0 %v1623
    %2217 = vmatpush1.bf16.msra.mxu0 %v1622
    %2218 = vmatprep.subr.bf16.mxu0 %v1627
    %2219 = vmatpush1.bf16.msra.mxu0 %v1626
    %2220 = vmatprep.subr.bf16.mxu0 %v1631
    %2221 = vmatpush1.bf16.msra.mxu0 %v1630
    %2222 = vmatprep.subr.bf16.mxu0 %v1635
    %2223 = vmatpush1.bf16.msra.mxu0 %v1634
    %2224 = vmatprep.subr.bf16.mxu0 %v1639
    %2225 = vmatpush1.bf16.msra.mxu0 %v1638
    %2226 = vmatprep.subr.bf16.mxu0 %v1643
    %2227 = vmatpush1.bf16.msra.mxu0 %v1642
    %2228 = vmatprep.subr.bf16.mxu0 %v1647
    %2229 = vmatpush1.bf16.msra.mxu0 %v1646
    %2230 = vmatprep.subr.bf16.mxu0 %v1651
    %2231 = vmatpush1.bf16.msra.mxu0 %v1650
    %2232 = vmatprep.mubr.bf16.mxu0 %v571
    %2233 = vmatmul.mubr.bf16.gmra.mrb[0].mxu0 %v570
    %v2234 = vpop.f32.mrb[0].mxu0
    %v2235 = vadd.f32 %v2122, %v2234
    %v2236 = vpop.f32.mrb[0].mxu0
    %v2237 = vadd.f32 %v2124, %v2236
    %v2238 = vpop.f32.mrb[0].mxu0
    %v2239 = vadd.f32 %v2126, %v2238
    %v2240 = vpop.f32.mrb[0].mxu0
    %v2241 = vadd.f32 %v2128, %v2240
    %2242 = vmatprep.mubr.bf16.mxu0 %v579
    %2243 = vmatmul.mubr.bf16.gmra.mrb[0].mxu0 %v578
    %v2244 = vpop.f32.mrb[0].mxu0
    %v2245 = vadd.f32 %v2132, %v2244
    %v2246 = vpop.f32.mrb[0].mxu0
    %v2247 = vadd.f32 %v2134, %v2246
    %v2248 = vpop.f32.mrb[0].mxu0
    %v2249 = vadd.f32 %v2136, %v2248
    %v2250 = vpop.f32.mrb[0].mxu0
    %v2251 = vadd.f32 %v2138, %v2250
    %2252 = vmatprep.mubr.bf16.mxu0 %v587
    %2253 = vmatmul.mubr.bf16.gmra.mrb[0].mxu0 %v586
    %v2254 = vpop.f32.mrb[0].mxu0
    %v2255 = vadd.f32 %v2142, %v2254
    %v2256 = vpop.f32.mrb[0].mxu0
    %v2257 = vadd.f32 %v2144, %v2256
    %v2258 = vpop.f32.mrb[0].mxu0
    %v2259 = vadd.f32 %v2146, %v2258
    %v2260 = vpop.f32.mrb[0].mxu0
    %v2261 = vadd.f32 %v2148, %v2260
    %2262 = vmatprep.mubr.bf16.mxu0 %v595
    %2263 = vmatmul.mubr.bf16.gmra.mrb[0].mxu0 %v594
    %v2264 = vpop.f32.mrb[0].mxu0
    %v2265 = vadd.f32 %v2152, %v2264
    %v2266 = vpop.f32.mrb[0].mxu0
    %v2267 = vadd.f32 %v2154, %v2266
    %v2268 = vpop.f32.mrb[0].mxu0
    %v2269 = vadd.f32 %v2156, %v2268
    %v2270 = vpop.f32.mrb[0].mxu0
    %v2271 = vadd.f32 %v2158, %v2270
    %2272 = vmatprep.mubr.bf16.mxu0 %v603
    %2273 = vmatmul.mubr.bf16.gmra.mrb[0].mxu0 %v602
    %v2274 = vpop.f32.mrb[0].mxu0
    %v2275 = vadd.f32 %v2162, %v2274
    %v2276 = vpop.f32.mrb[0].mxu0
    %v2277 = vadd.f32 %v2164, %v2276
    %v2278 = vpop.f32.mrb[0].mxu0
    %v2279 = vadd.f32 %v2166, %v2278
    %v2280 = vpop.f32.mrb[0].mxu0
    %v2281 = vadd.f32 %v2168, %v2280
    %2282 = vmatprep.mubr.bf16.mxu0 %v611
    %2283 = vmatmul.mubr.bf16.gmra.mrb[0].mxu0 %v610
    %v2284 = vpop.f32.mrb[0].mxu0
    %v2285 = vadd.f32 %v2172, %v2284
    %v2286 = vpop.f32.mrb[0].mxu0
    %v2287 = vadd.f32 %v2174, %v2286
    %v2288 = vpop.f32.mrb[0].mxu0
    %v2289 = vadd.f32 %v2176, %v2288
    %v2290 = vpop.f32.mrb[0].mxu0
    %v2291 = vadd.f32 %v2178, %v2290
    %2292 = vmatprep.mubr.bf16.mxu0 %v619
    %2293 = vmatmul.mubr.bf16.gmra.mrb[0].mxu0 %v618
    %v2294 = vpop.f32.mrb[0].mxu0
    %v2295 = vadd.f32 %v2182, %v2294
    %v2296 = vpop.f32.mrb[0].mxu0
    %v2297 = vadd.f32 %v2184, %v2296
    %v2298 = vpop.f32.mrb[0].mxu0
    %v2299 = vadd.f32 %v2186, %v2298
    %v2300 = vpop.f32.mrb[0].mxu0
    %v2301 = vadd.f32 %v2188, %v2300
    %2302 = vmatprep.mubr.bf16.mxu0 %v627
    %2303 = vmatmul.mubr.bf16.gmra.mrb[0].mxu0 %v626
    %v2304 = vpop.f32.mrb[0].mxu0
    %v2305 = vadd.f32 %v2192, %v2304
    %v2306 = vpop.f32.mrb[0].mxu0
    %v2307 = vadd.f32 %v2194, %v2306
    %v2308 = vpop.f32.mrb[0].mxu0
    %v2309 = vadd.f32 %v2196, %v2308
    %v2310 = vpop.f32.mrb[0].mxu0
    %v2311 = vadd.f32 %v2198, %v2310
    %2312 = vdwg.mxu0
    %2313 = vmatprep.subr.bf16.mxu0 %v1655
    %2314 = vmatpush1.bf16.msra.mxu0 %v1654
    %2315 = vmatprep.subr.bf16.mxu0 %v1659
    %2316 = vmatpush1.bf16.msra.mxu0 %v1658
    %2317 = vmatprep.subr.bf16.mxu0 %v1663
    %2318 = vmatpush1.bf16.msra.mxu0 %v1662
    %2319 = vmatprep.subr.bf16.mxu0 %v1667
    %2320 = vmatpush1.bf16.msra.mxu0 %v1666
    %2321 = vmatprep.subr.bf16.mxu0 %v1671
    %2322 = vmatpush1.bf16.msra.mxu0 %v1670
    %2323 = vmatprep.subr.bf16.mxu0 %v1675
    %2324 = vmatpush1.bf16.msra.mxu0 %v1674
    %2325 = vmatprep.subr.bf16.mxu0 %v1679
    %2326 = vmatpush1.bf16.msra.mxu0 %v1678
    %2327 = vmatprep.subr.bf16.mxu0 %v1683
    %2328 = vmatpush1.bf16.msra.mxu0 %v1682
    %2329 = vmatprep.subr.bf16.mxu0 %v1687
    %2330 = vmatpush1.bf16.msra.mxu0 %v1686
    %2331 = vmatprep.subr.bf16.mxu0 %v1691
    %2332 = vmatpush1.bf16.msra.mxu0 %v1690
    %2333 = vmatprep.subr.bf16.mxu0 %v1695
    %2334 = vmatpush1.bf16.msra.mxu0 %v1694
    %2335 = vmatprep.subr.bf16.mxu0 %v1699
    %2336 = vmatpush1.bf16.msra.mxu0 %v1698
    %2337 = vmatprep.subr.bf16.mxu0 %v1703
    %2338 = vmatpush1.bf16.msra.mxu0 %v1702
    %2339 = vmatprep.subr.bf16.mxu0 %v1707
    %2340 = vmatpush1.bf16.msra.mxu0 %v1706
    %2341 = vmatprep.subr.bf16.mxu0 %v1711
    %2342 = vmatpush1.bf16.msra.mxu0 %v1710
    %2343 = vmatprep.subr.bf16.mxu0 %v1715
    %2344 = vmatpush1.bf16.msra.mxu0 %v1714
    %2345 = vmatprep.mubr.bf16.mxu0 %v573
    %2346 = vmatmul.mubr.bf16.gmra.mrb[0].mxu0 %v572
    %v2347 = vpop.f32.mrb[0].mxu0
    %v2348 = vadd.f32 %v2235, %v2347
    %v2349 = vpop.f32.mrb[0].mxu0
    %v2350 = vadd.f32 %v2237, %v2349
    %v2351 = vpop.f32.mrb[0].mxu0
    %v2352 = vadd.f32 %v2239, %v2351
    %v2353 = vpop.f32.mrb[0].mxu0
    %v2354 = vadd.f32 %v2241, %v2353
    %2355 = vmatprep.mubr.bf16.mxu0 %v581
    %2356 = vmatmul.mubr.bf16.gmra.mrb[0].mxu0 %v580
    %v2357 = vpop.f32.mrb[0].mxu0
    %v2358 = vadd.f32 %v2245, %v2357
    %v2359 = vpop.f32.mrb[0].mxu0
    %v2360 = vadd.f32 %v2247, %v2359
    %v2361 = vpop.f32.mrb[0].mxu0
    %v2362 = vadd.f32 %v2249, %v2361
    %v2363 = vpop.f32.mrb[0].mxu0
    %v2364 = vadd.f32 %v2251, %v2363
    %2365 = vmatprep.mubr.bf16.mxu0 %v589
    %2366 = vmatmul.mubr.bf16.gmra.mrb[0].mxu0 %v588
    %v2367 = vpop.f32.mrb[0].mxu0
    %v2368 = vadd.f32 %v2255, %v2367
    %v2369 = vpop.f32.mrb[0].mxu0
    %v2370 = vadd.f32 %v2257, %v2369
    %v2371 = vpop.f32.mrb[0].mxu0
    %v2372 = vadd.f32 %v2259, %v2371
    %v2373 = vpop.f32.mrb[0].mxu0
    %v2374 = vadd.f32 %v2261, %v2373
    %2375 = vmatprep.mubr.bf16.mxu0 %v597
    %2376 = vmatmul.mubr.bf16.gmra.mrb[0].mxu0 %v596
    %v2377 = vpop.f32.mrb[0].mxu0
    %v2378 = vadd.f32 %v2265, %v2377
    %v2379 = vpop.f32.mrb[0].mxu0
    %v2380 = vadd.f32 %v2267, %v2379
    %v2381 = vpop.f32.mrb[0].mxu0
    %v2382 = vadd.f32 %v2269, %v2381
    %v2383 = vpop.f32.mrb[0].mxu0
    %v2384 = vadd.f32 %v2271, %v2383
    %2385 = vmatprep.mubr.bf16.mxu0 %v605
    %2386 = vmatmul.mubr.bf16.gmra.mrb[0].mxu0 %v604
    %v2387 = vpop.f32.mrb[0].mxu0
    %v2388 = vadd.f32 %v2275, %v2387
    %v2389 = vpop.f32.mrb[0].mxu0
    %v2390 = vadd.f32 %v2277, %v2389
    %v2391 = vpop.f32.mrb[0].mxu0
    %v2392 = vadd.f32 %v2279, %v2391
    %v2393 = vpop.f32.mrb[0].mxu0
    %v2394 = vadd.f32 %v2281, %v2393
    %2395 = vmatprep.mubr.bf16.mxu0 %v613
    %2396 = vmatmul.mubr.bf16.gmra.mrb[0].mxu0 %v612
    %v2397 = vpop.f32.mrb[0].mxu0
    %v2398 = vadd.f32 %v2285, %v2397
    %v2399 = vpop.f32.mrb[0].mxu0
    %v2400 = vadd.f32 %v2287, %v2399
    %v2401 = vpop.f32.mrb[0].mxu0
    %v2402 = vadd.f32 %v2289, %v2401
    %v2403 = vpop.f32.mrb[0].mxu0
    %v2404 = vadd.f32 %v2291, %v2403
    %2405 = vmatprep.mubr.bf16.mxu0 %v621
    %2406 = vmatmul.mubr.bf16.gmra.mrb[0].mxu0 %v620
    %v2407 = vpop.f32.mrb[0].mxu0
    %v2408 = vadd.f32 %v2295, %v2407
    %v2409 = vpop.f32.mrb[0].mxu0
    %v2410 = vadd.f32 %v2297, %v2409
    %v2411 = vpop.f32.mrb[0].mxu0
    %v2412 = vadd.f32 %v2299, %v2411
    %v2413 = vpop.f32.mrb[0].mxu0
    %v2414 = vadd.f32 %v2301, %v2413
    %2415 = vmatprep.mubr.bf16.mxu0 %v629
    %2416 = vmatmul.mubr.bf16.gmra.mrb[0].mxu0 %v628
    %v2417 = vpop.f32.mrb[0].mxu0
    %v2418 = vadd.f32 %v2305, %v2417
    %v2419 = vpop.f32.mrb[0].mxu0
    %v2420 = vadd.f32 %v2307, %v2419
    %v2421 = vpop.f32.mrb[0].mxu0
    %v2422 = vadd.f32 %v2309, %v2421
    %v2423 = vpop.f32.mrb[0].mxu0
    %v2424 = vadd.f32 %v2311, %v2423
    %2425 = vdwg.mxu0
    %2426 = vmatprep.subr.bf16.mxu0 %v1465
    %2427 = vmatpush1.bf16.msra.mxu0 %v1464
    %2428 = vmatprep.subr.bf16.mxu0 %v1469
    %2429 = vmatpush1.bf16.msra.mxu0 %v1468
    %2430 = vmatprep.subr.bf16.mxu0 %v1473
    %2431 = vmatpush1.bf16.msra.mxu0 %v1472
    %2432 = vmatprep.subr.bf16.mxu0 %v1477
    %2433 = vmatpush1.bf16.msra.mxu0 %v1476
    %2434 = vmatprep.subr.bf16.mxu0 %v1481
    %2435 = vmatpush1.bf16.msra.mxu0 %v1480
    %2436 = vmatprep.subr.bf16.mxu0 %v1485
    %2437 = vmatpush1.bf16.msra.mxu0 %v1484
    %2438 = vmatprep.subr.bf16.mxu0 %v1489
    %2439 = vmatpush1.bf16.msra.mxu0 %v1488
    %2440 = vmatprep.subr.bf16.mxu0 %v1493
    %2441 = vmatpush1.bf16.msra.mxu0 %v1492
    %2442 = vmatprep.subr.bf16.mxu0 %v1497
    %2443 = vmatpush1.bf16.msra.mxu0 %v1496
    %2444 = vmatprep.subr.bf16.mxu0 %v1501
    %2445 = vmatpush1.bf16.msra.mxu0 %v1500
    %2446 = vmatprep.subr.bf16.mxu0 %v1505
    %2447 = vmatpush1.bf16.msra.mxu0 %v1504
    %2448 = vmatprep.subr.bf16.mxu0 %v1509
    %2449 = vmatpush1.bf16.msra.mxu0 %v1508
    %2450 = vmatprep.subr.bf16.mxu0 %v1513
    %2451 = vmatpush1.bf16.msra.mxu0 %v1512
    %2452 = vmatprep.subr.bf16.mxu0 %v1517
    %2453 = vmatpush1.bf16.msra.mxu0 %v1516
    %2454 = vmatprep.subr.bf16.mxu0 %v1521
    %2455 = vmatpush1.bf16.msra.mxu0 %v1520
    %2456 = vmatprep.subr.bf16.mxu0 %v1525
    %2457 = vmatpush1.bf16.msra.mxu0 %v1524
    %2458 = vmatprep.mubr.bf16.mxu0 %v567
    %2459 = vmatmul.mubr.bf16.gmra.mrb[0].mxu0 %v566
    %v2460 = vpop.f32.mrb[0].mxu0
    %v2461 = vadd.f32 0.0, %v2460
    %v2462 = vpop.f32.mrb[0].mxu0
    %v2463 = vadd.f32 0.0, %v2462
    %v2464 = vpop.f32.mrb[0].mxu0
    %v2465 = vadd.f32 0.0, %v2464
    %v2466 = vpop.f32.mrb[0].mxu0
    %v2467 = vadd.f32 0.0, %v2466
    %2468 = vmatprep.mubr.bf16.mxu0 %v575
    %2469 = vmatmul.mubr.bf16.gmra.mrb[0].mxu0 %v574
    %v2470 = vpop.f32.mrb[0].mxu0
    %v2471 = vadd.f32 0.0, %v2470
    %v2472 = vpop.f32.mrb[0].mxu0
    %v2473 = vadd.f32 0.0, %v2472
    %v2474 = vpop.f32.mrb[0].mxu0
    %v2475 = vadd.f32 0.0, %v2474
    %v2476 = vpop.f32.mrb[0].mxu0
    %v2477 = vadd.f32 0.0, %v2476
    %2478 = vmatprep.mubr.bf16.mxu0 %v583
    %2479 = vmatmul.mubr.bf16.gmra.mrb[0].mxu0 %v582
    %v2480 = vpop.f32.mrb[0].mxu0
    %v2481 = vadd.f32 0.0, %v2480
    %v2482 = vpop.f32.mrb[0].mxu0
    %v2483 = vadd.f32 0.0, %v2482
    %v2484 = vpop.f32.mrb[0].mxu0
    %v2485 = vadd.f32 0.0, %v2484
    %v2486 = vpop.f32.mrb[0].mxu0
    %v2487 = vadd.f32 0.0, %v2486
    %2488 = vmatprep.mubr.bf16.mxu0 %v591
    %2489 = vmatmul.mubr.bf16.gmra.mrb[0].mxu0 %v590
    %v2490 = vpop.f32.mrb[0].mxu0
    %v2491 = vadd.f32 0.0, %v2490
    %v2492 = vpop.f32.mrb[0].mxu0
    %v2493 = vadd.f32 0.0, %v2492
    %v2494 = vpop.f32.mrb[0].mxu0
    %v2495 = vadd.f32 0.0, %v2494
    %v2496 = vpop.f32.mrb[0].mxu0
    %v2497 = vadd.f32 0.0, %v2496
    %2498 = vmatprep.mubr.bf16.mxu0 %v599
    %2499 = vmatmul.mubr.bf16.gmra.mrb[0].mxu0 %v598
    %v2500 = vpop.f32.mrb[0].mxu0
    %v2501 = vadd.f32 0.0, %v2500
    %v2502 = vpop.f32.mrb[0].mxu0
    %v2503 = vadd.f32 0.0, %v2502
    %v2504 = vpop.f32.mrb[0].mxu0
    %v2505 = vadd.f32 0.0, %v2504
    %v2506 = vpop.f32.mrb[0].mxu0
    %v2507 = vadd.f32 0.0, %v2506
    %2508 = vmatprep.mubr.bf16.mxu0 %v607
    %2509 = vmatmul.mubr.bf16.gmra.mrb[0].mxu0 %v606
    %v2510 = vpop.f32.mrb[0].mxu0
    %v2511 = vadd.f32 0.0, %v2510
    %v2512 = vpop.f32.mrb[0].mxu0
    %v2513 = vadd.f32 0.0, %v2512
    %v2514 = vpop.f32.mrb[0].mxu0
    %v2515 = vadd.f32 0.0, %v2514
    %v2516 = vpop.f32.mrb[0].mxu0
    %v2517 = vadd.f32 0.0, %v2516
    %2518 = vmatprep.mubr.bf16.mxu0 %v615
    %2519 = vmatmul.mubr.bf16.gmra.mrb[0].mxu0 %v614
    %v2520 = vpop.f32.mrb[0].mxu0
    %v2521 = vadd.f32 0.0, %v2520
    %v2522 = vpop.f32.mrb[0].mxu0
    %v2523 = vadd.f32 0.0, %v2522
    %v2524 = vpop.f32.mrb[0].mxu0
    %v2525 = vadd.f32 0.0, %v2524
    %v2526 = vpop.f32.mrb[0].mxu0
    %v2527 = vadd.f32 0.0, %v2526
    %2528 = vmatprep.mubr.bf16.mxu0 %v623
    %2529 = vmatmul.mubr.bf16.gmra.mrb[0].mxu0 %v622
    %v2530 = vpop.f32.mrb[0].mxu0
    %v2531 = vadd.f32 0.0, %v2530
    %v2532 = vpop.f32.mrb[0].mxu0
    %v2533 = vadd.f32 0.0, %v2532
    %v2534 = vpop.f32.mrb[0].mxu0
    %v2535 = vadd.f32 0.0, %v2534
    %v2536 = vpop.f32.mrb[0].mxu0
    %v2537 = vadd.f32 0.0, %v2536
    %2538 = vdwg.mxu0
    %2539 = vmatprep.subr.bf16.mxu0 %v1529
    %2540 = vmatpush1.bf16.msra.mxu0 %v1528
    %2541 = vmatprep.subr.bf16.mxu0 %v1533
    %2542 = vmatpush1.bf16.msra.mxu0 %v1532
    %2543 = vmatprep.subr.bf16.mxu0 %v1537
    %2544 = vmatpush1.bf16.msra.mxu0 %v1536
    %2545 = vmatprep.subr.bf16.mxu0 %v1541
    %2546 = vmatpush1.bf16.msra.mxu0 %v1540
    %2547 = vmatprep.subr.bf16.mxu0 %v1545
    %2548 = vmatpush1.bf16.msra.mxu0 %v1544
    %2549 = vmatprep.subr.bf16.mxu0 %v1549
    %2550 = vmatpush1.bf16.msra.mxu0 %v1548
    %2551 = vmatprep.subr.bf16.mxu0 %v1553
    %2552 = vmatpush1.bf16.msra.mxu0 %v1552
    %2553 = vmatprep.subr.bf16.mxu0 %v1557
    %2554 = vmatpush1.bf16.msra.mxu0 %v1556
    %2555 = vmatprep.subr.bf16.mxu0 %v1561
    %2556 = vmatpush1.bf16.msra.mxu0 %v1560
    %2557 = vmatprep.subr.bf16.mxu0 %v1565
    %2558 = vmatpush1.bf16.msra.mxu0 %v1564
    %2559 = vmatprep.subr.bf16.mxu0 %v1569
    %2560 = vmatpush1.bf16.msra.mxu0 %v1568
    %2561 = vmatprep.subr.bf16.mxu0 %v1573
    %2562 = vmatpush1.bf16.msra.mxu0 %v1572
    %2563 = vmatprep.subr.bf16.mxu0 %v1577
    %2564 = vmatpush1.bf16.msra.mxu0 %v1576
    %2565 = vmatprep.subr.bf16.mxu0 %v1581
    %2566 = vmatpush1.bf16.msra.mxu0 %v1580
    %2567 = vmatprep.subr.bf16.mxu0 %v1585
    %2568 = vmatpush1.bf16.msra.mxu0 %v1584
    %2569 = vmatprep.subr.bf16.mxu0 %v1589
    %2570 = vmatpush1.bf16.msra.mxu0 %v1588
    %2571 = vmatprep.mubr.bf16.mxu0 %v569
    %2572 = vmatmul.mubr.bf16.gmra.mrb[0].mxu0 %v568
    %v2573 = vpop.f32.mrb[0].mxu0
    %v2574 = vadd.f32 %v2461, %v2573
    %v2575 = vpop.f32.mrb[0].mxu0
    %v2576 = vadd.f32 %v2463, %v2575
    %v2577 = vpop.f32.mrb[0].mxu0
    %v2578 = vadd.f32 %v2465, %v2577
    %v2579 = vpop.f32.mrb[0].mxu0
    %v2580 = vadd.f32 %v2467, %v2579
    %2581 = vmatprep.mubr.bf16.mxu0 %v577
    %2582 = vmatmul.mubr.bf16.gmra.mrb[0].mxu0 %v576
    %v2583 = vpop.f32.mrb[0].mxu0
    %v2584 = vadd.f32 %v2471, %v2583
    %v2585 = vpop.f32.mrb[0].mxu0
    %v2586 = vadd.f32 %v2473, %v2585
    %v2587 = vpop.f32.mrb[0].mxu0
    %v2588 = vadd.f32 %v2475, %v2587
    %v2589 = vpop.f32.mrb[0].mxu0
    %v2590 = vadd.f32 %v2477, %v2589
    %2591 = vmatprep.mubr.bf16.mxu0 %v585
    %2592 = vmatmul.mubr.bf16.gmra.mrb[0].mxu0 %v584
    %v2593 = vpop.f32.mrb[0].mxu0
    %v2594 = vadd.f32 %v2481, %v2593
    %v2595 = vpop.f32.mrb[0].mxu0
    %v2596 = vadd.f32 %v2483, %v2595
    %v2597 = vpop.f32.mrb[0].mxu0
    %v2598 = vadd.f32 %v2485, %v2597
    %v2599 = vpop.f32.mrb[0].mxu0
    %v2600 = vadd.f32 %v2487, %v2599
    %2601 = vmatprep.mubr.bf16.mxu0 %v593
    %2602 = vmatmul.mubr.bf16.gmra.mrb[0].mxu0 %v592
    %v2603 = vpop.f32.mrb[0].mxu0
    %v2604 = vadd.f32 %v2491, %v2603
    %v2605 = vpop.f32.mrb[0].mxu0
    %v2606 = vadd.f32 %v2493, %v2605
    %v2607 = vpop.f32.mrb[0].mxu0
    %v2608 = vadd.f32 %v2495, %v2607
    %v2609 = vpop.f32.mrb[0].mxu0
    %v2610 = vadd.f32 %v2497, %v2609
    %2611 = vmatprep.mubr.bf16.mxu0 %v601
    %2612 = vmatmul.mubr.bf16.gmra.mrb[0].mxu0 %v600
    %v2613 = vpop.f32.mrb[0].mxu0
    %v2614 = vadd.f32 %v2501, %v2613
    %v2615 = vpop.f32.mrb[0].mxu0
    %v2616 = vadd.f32 %v2503, %v2615
    %v2617 = vpop.f32.mrb[0].mxu0
    %v2618 = vadd.f32 %v2505, %v2617
    %v2619 = vpop.f32.mrb[0].mxu0
    %v2620 = vadd.f32 %v2507, %v2619
    %2621 = vmatprep.mubr.bf16.mxu0 %v609
    %2622 = vmatmul.mubr.bf16.gmra.mrb[0].mxu0 %v608
    %v2623 = vpop.f32.mrb[0].mxu0
    %v2624 = vadd.f32 %v2511, %v2623
    %v2625 = vpop.f32.mrb[0].mxu0
    %v2626 = vadd.f32 %v2513, %v2625
    %v2627 = vpop.f32.mrb[0].mxu0
    %v2628 = vadd.f32 %v2515, %v2627
    %v2629 = vpop.f32.mrb[0].mxu0
    %v2630 = vadd.f32 %v2517, %v2629
    %2631 = vmatprep.mubr.bf16.mxu0 %v617
    %2632 = vmatmul.mubr.bf16.gmra.mrb[0].mxu0 %v616
    %v2633 = vpop.f32.mrb[0].mxu0
    %v2634 = vadd.f32 %v2521, %v2633
    %v2635 = vpop.f32.mrb[0].mxu0
    %v2636 = vadd.f32 %v2523, %v2635
    %v2637 = vpop.f32.mrb[0].mxu0
    %v2638 = vadd.f32 %v2525, %v2637
    %v2639 = vpop.f32.mrb[0].mxu0
    %v2640 = vadd.f32 %v2527, %v2639
    %2641 = vmatprep.mubr.bf16.mxu0 %v625
    %2642 = vmatmul.mubr.bf16.gmra.mrb[0].mxu0 %v624
    %v2643 = vpop.f32.mrb[0].mxu0
    %v2644 = vadd.f32 %v2531, %v2643
    %v2645 = vpop.f32.mrb[0].mxu0
    %v2646 = vadd.f32 %v2533, %v2645
    %v2647 = vpop.f32.mrb[0].mxu0
    %v2648 = vadd.f32 %v2535, %v2647
    %v2649 = vpop.f32.mrb[0].mxu0
    %v2650 = vadd.f32 %v2537, %v2649
    %2651 = vdwg.mxu0
    %2652 = vmatprep.subr.bf16.mxu0 %v1593
    %2653 = vmatpush1.bf16.msra.mxu0 %v1592
    %2654 = vmatprep.subr.bf16.mxu0 %v1597
    %2655 = vmatpush1.bf16.msra.mxu0 %v1596
    %2656 = vmatprep.subr.bf16.mxu0 %v1601
    %2657 = vmatpush1.bf16.msra.mxu0 %v1600
    %2658 = vmatprep.subr.bf16.mxu0 %v1605
    %2659 = vmatpush1.bf16.msra.mxu0 %v1604
    %2660 = vmatprep.subr.bf16.mxu0 %v1609
    %2661 = vmatpush1.bf16.msra.mxu0 %v1608
    %2662 = vmatprep.subr.bf16.mxu0 %v1613
    %2663 = vmatpush1.bf16.msra.mxu0 %v1612
    %2664 = vmatprep.subr.bf16.mxu0 %v1617
    %2665 = vmatpush1.bf16.msra.mxu0 %v1616
    %2666 = vmatprep.subr.bf16.mxu0 %v1621
    %2667 = vmatpush1.bf16.msra.mxu0 %v1620
    %2668 = vmatprep.subr.bf16.mxu0 %v1625
    %2669 = vmatpush1.bf16.msra.mxu0 %v1624
    %2670 = vmatprep.subr.bf16.mxu0 %v1629
    %2671 = vmatpush1.bf16.msra.mxu0 %v1628
    %2672 = vmatprep.subr.bf16.mxu0 %v1633
    %2673 = vmatpush1.bf16.msra.mxu0 %v1632
    %2674 = vmatprep.subr.bf16.mxu0 %v1637
    %2675 = vmatpush1.bf16.msra.mxu0 %v1636
    %2676 = vmatprep.subr.bf16.mxu0 %v1641
    %2677 = vmatpush1.bf16.msra.mxu0 %v1640
    %2678 = vmatprep.subr.bf16.mxu0 %v1645
    %2679 = vmatpush1.bf16.msra.mxu0 %v1644
    %2680 = vmatprep.subr.bf16.mxu0 %v1649
    %2681 = vmatpush1.bf16.msra.mxu0 %v1648
    %2682 = vmatprep.subr.bf16.mxu0 %v1653
    %2683 = vmatpush1.bf16.msra.mxu0 %v1652
    %2684 = vmatprep.mubr.bf16.mxu0 %v571
    %2685 = vmatmul.mubr.bf16.gmra.mrb[0].mxu0 %v570
    %v2686 = vpop.f32.mrb[0].mxu0
    %v2687 = vadd.f32 %v2574, %v2686
    %v2688 = vpop.f32.mrb[0].mxu0
    %v2689 = vadd.f32 %v2576, %v2688
    %v2690 = vpop.f32.mrb[0].mxu0
    %v2691 = vadd.f32 %v2578, %v2690
    %v2692 = vpop.f32.mrb[0].mxu0
    %v2693 = vadd.f32 %v2580, %v2692
    %2694 = vmatprep.mubr.bf16.mxu0 %v579
    %2695 = vmatmul.mubr.bf16.gmra.mrb[0].mxu0 %v578
    %v2696 = vpop.f32.mrb[0].mxu0
    %v2697 = vadd.f32 %v2584, %v2696
    %v2698 = vpop.f32.mrb[0].mxu0
    %v2699 = vadd.f32 %v2586, %v2698
    %v2700 = vpop.f32.mrb[0].mxu0
    %v2701 = vadd.f32 %v2588, %v2700
    %v2702 = vpop.f32.mrb[0].mxu0
    %v2703 = vadd.f32 %v2590, %v2702
    %2704 = vmatprep.mubr.bf16.mxu0 %v587
    %2705 = vmatmul.mubr.bf16.gmra.mrb[0].mxu0 %v586
    %v2706 = vpop.f32.mrb[0].mxu0
    %v2707 = vadd.f32 %v2594, %v2706
    %v2708 = vpop.f32.mrb[0].mxu0
    %v2709 = vadd.f32 %v2596, %v2708
    %v2710 = vpop.f32.mrb[0].mxu0
    %v2711 = vadd.f32 %v2598, %v2710
    %v2712 = vpop.f32.mrb[0].mxu0
    %v2713 = vadd.f32 %v2600, %v2712
    %2714 = vmatprep.mubr.bf16.mxu0 %v595
    %2715 = vmatmul.mubr.bf16.gmra.mrb[0].mxu0 %v594
    %v2716 = vpop.f32.mrb[0].mxu0
    %v2717 = vadd.f32 %v2604, %v2716
    %v2718 = vpop.f32.mrb[0].mxu0
    %v2719 = vadd.f32 %v2606, %v2718
    %v2720 = vpop.f32.mrb[0].mxu0
    %v2721 = vadd.f32 %v2608, %v2720
    %v2722 = vpop.f32.mrb[0].mxu0
    %v2723 = vadd.f32 %v2610, %v2722
    %2724 = vmatprep.mubr.bf16.mxu0 %v603
    %2725 = vmatmul.mubr.bf16.gmra.mrb[0].mxu0 %v602
    %v2726 = vpop.f32.mrb[0].mxu0
    %v2727 = vadd.f32 %v2614, %v2726
    %v2728 = vpop.f32.mrb[0].mxu0
    %v2729 = vadd.f32 %v2616, %v2728
    %v2730 = vpop.f32.mrb[0].mxu0
    %v2731 = vadd.f32 %v2618, %v2730
    %v2732 = vpop.f32.mrb[0].mxu0
    %v2733 = vadd.f32 %v2620, %v2732
    %2734 = vmatprep.mubr.bf16.mxu0 %v611
    %2735 = vmatmul.mubr.bf16.gmra.mrb[0].mxu0 %v610
    %v2736 = vpop.f32.mrb[0].mxu0
    %v2737 = vadd.f32 %v2624, %v2736
    %v2738 = vpop.f32.mrb[0].mxu0
    %v2739 = vadd.f32 %v2626, %v2738
    %v2740 = vpop.f32.mrb[0].mxu0
    %v2741 = vadd.f32 %v2628, %v2740
    %v2742 = vpop.f32.mrb[0].mxu0
    %v2743 = vadd.f32 %v2630, %v2742
    %2744 = vmatprep.mubr.bf16.mxu0 %v619
    %2745 = vmatmul.mubr.bf16.gmra.mrb[0].mxu0 %v618
    %v2746 = vpop.f32.mrb[0].mxu0
    %v2747 = vadd.f32 %v2634, %v2746
    %v2748 = vpop.f32.mrb[0].mxu0
    %v2749 = vadd.f32 %v2636, %v2748
    %v2750 = vpop.f32.mrb[0].mxu0
    %v2751 = vadd.f32 %v2638, %v2750
    %v2752 = vpop.f32.mrb[0].mxu0
    %v2753 = vadd.f32 %v2640, %v2752
    %2754 = vmatprep.mubr.bf16.mxu0 %v627
    %2755 = vmatmul.mubr.bf16.gmra.mrb[0].mxu0 %v626
    %v2756 = vpop.f32.mrb[0].mxu0
    %v2757 = vadd.f32 %v2644, %v2756
    %v2758 = vpop.f32.mrb[0].mxu0
    %v2759 = vadd.f32 %v2646, %v2758
    %v2760 = vpop.f32.mrb[0].mxu0
    %v2761 = vadd.f32 %v2648, %v2760
    %v2762 = vpop.f32.mrb[0].mxu0
    %v2763 = vadd.f32 %v2650, %v2762
    %2764 = vdwg.mxu0
    %2765 = vmatprep.subr.bf16.mxu0 %v1657
    %2766 = vmatpush1.bf16.msra.mxu0 %v1656
    %2767 = vmatprep.subr.bf16.mxu0 %v1661
    %2768 = vmatpush1.bf16.msra.mxu0 %v1660
    %2769 = vmatprep.subr.bf16.mxu0 %v1665
    %2770 = vmatpush1.bf16.msra.mxu0 %v1664
    %2771 = vmatprep.subr.bf16.mxu0 %v1669
    %2772 = vmatpush1.bf16.msra.mxu0 %v1668
    %2773 = vmatprep.subr.bf16.mxu0 %v1673
    %2774 = vmatpush1.bf16.msra.mxu0 %v1672
    %2775 = vmatprep.subr.bf16.mxu0 %v1677
    %2776 = vmatpush1.bf16.msra.mxu0 %v1676
    %2777 = vmatprep.subr.bf16.mxu0 %v1681
    %2778 = vmatpush1.bf16.msra.mxu0 %v1680
    %2779 = vmatprep.subr.bf16.mxu0 %v1685
    %2780 = vmatpush1.bf16.msra.mxu0 %v1684
    %2781 = vmatprep.subr.bf16.mxu0 %v1689
    %2782 = vmatpush1.bf16.msra.mxu0 %v1688
    %2783 = vmatprep.subr.bf16.mxu0 %v1693
    %2784 = vmatpush1.bf16.msra.mxu0 %v1692
    %2785 = vmatprep.subr.bf16.mxu0 %v1697
    %2786 = vmatpush1.bf16.msra.mxu0 %v1696
    %2787 = vmatprep.subr.bf16.mxu0 %v1701
    %2788 = vmatpush1.bf16.msra.mxu0 %v1700
    %2789 = vmatprep.subr.bf16.mxu0 %v1705
    %2790 = vmatpush1.bf16.msra.mxu0 %v1704
    %2791 = vmatprep.subr.bf16.mxu0 %v1709
    %2792 = vmatpush1.bf16.msra.mxu0 %v1708
    %2793 = vmatprep.subr.bf16.mxu0 %v1713
    %2794 = vmatpush1.bf16.msra.mxu0 %v1712
    %2795 = vmatprep.subr.bf16.mxu0 %v1717
    %2796 = vmatpush1.bf16.msra.mxu0 %v1716
    %2797 = vmatprep.mubr.bf16.mxu0 %v573
    %2798 = vmatmul.mubr.bf16.gmra.mrb[0].mxu0 %v572
    %v2799 = vpop.f32.mrb[0].mxu0
    %v2800 = vadd.f32 %v2687, %v2799
    %v2801 = vpop.f32.mrb[0].mxu0
    %v2802 = vadd.f32 %v2689, %v2801
    %v2803 = vpop.f32.mrb[0].mxu0
    %v2804 = vadd.f32 %v2691, %v2803
    %v2805 = vpop.f32.mrb[0].mxu0
    %v2806 = vadd.f32 %v2693, %v2805
    %2807 = vmatprep.mubr.bf16.mxu0 %v581
    %2808 = vmatmul.mubr.bf16.gmra.mrb[0].mxu0 %v580
    %v2809 = vpop.f32.mrb[0].mxu0
    %v2810 = vadd.f32 %v2697, %v2809
    %v2811 = vpop.f32.mrb[0].mxu0
    %v2812 = vadd.f32 %v2699, %v2811
    %v2813 = vpop.f32.mrb[0].mxu0
    %v2814 = vadd.f32 %v2701, %v2813
    %v2815 = vpop.f32.mrb[0].mxu0
    %v2816 = vadd.f32 %v2703, %v2815
    %2817 = vmatprep.mubr.bf16.mxu0 %v589
    %2818 = vmatmul.mubr.bf16.gmra.mrb[0].mxu0 %v588
    %v2819 = vpop.f32.mrb[0].mxu0
    %v2820 = vadd.f32 %v2707, %v2819
    %v2821 = vpop.f32.mrb[0].mxu0
    %v2822 = vadd.f32 %v2709, %v2821
    %v2823 = vpop.f32.mrb[0].mxu0
    %v2824 = vadd.f32 %v2711, %v2823
    %v2825 = vpop.f32.mrb[0].mxu0
    %v2826 = vadd.f32 %v2713, %v2825
    %2827 = vmatprep.mubr.bf16.mxu0 %v597
    %2828 = vmatmul.mubr.bf16.gmra.mrb[0].mxu0 %v596
    %v2829 = vpop.f32.mrb[0].mxu0
    %v2830 = vadd.f32 %v2717, %v2829
    %v2831 = vpop.f32.mrb[0].mxu0
    %v2832 = vadd.f32 %v2719, %v2831
    %v2833 = vpop.f32.mrb[0].mxu0
    %v2834 = vadd.f32 %v2721, %v2833
    %v2835 = vpop.f32.mrb[0].mxu0
    %v2836 = vadd.f32 %v2723, %v2835
    %2837 = vmatprep.mubr.bf16.mxu0 %v605
    %2838 = vmatmul.mubr.bf16.gmra.mrb[0].mxu0 %v604
    %v2839 = vpop.f32.mrb[0].mxu0
    %v2840 = vadd.f32 %v2727, %v2839
    %v2841 = vpop.f32.mrb[0].mxu0
    %v2842 = vadd.f32 %v2729, %v2841
    %v2843 = vpop.f32.mrb[0].mxu0
    %v2844 = vadd.f32 %v2731, %v2843
    %v2845 = vpop.f32.mrb[0].mxu0
    %v2846 = vadd.f32 %v2733, %v2845
    %2847 = vmatprep.mubr.bf16.mxu0 %v613
    %2848 = vmatmul.mubr.bf16.gmra.mrb[0].mxu0 %v612
    %v2849 = vpop.f32.mrb[0].mxu0
    %v2850 = vadd.f32 %v2737, %v2849
    %v2851 = vpop.f32.mrb[0].mxu0
    %v2852 = vadd.f32 %v2739, %v2851
    %v2853 = vpop.f32.mrb[0].mxu0
    %v2854 = vadd.f32 %v2741, %v2853
    %v2855 = vpop.f32.mrb[0].mxu0
    %v2856 = vadd.f32 %v2743, %v2855
    %2857 = vmatprep.mubr.bf16.mxu0 %v621
    %2858 = vmatmul.mubr.bf16.gmra.mrb[0].mxu0 %v620
    %v2859 = vpop.f32.mrb[0].mxu0
    %v2860 = vadd.f32 %v2747, %v2859
    %v2861 = vpop.f32.mrb[0].mxu0
    %v2862 = vadd.f32 %v2749, %v2861
    %v2863 = vpop.f32.mrb[0].mxu0
    %v2864 = vadd.f32 %v2751, %v2863
    %v2865 = vpop.f32.mrb[0].mxu0
    %v2866 = vadd.f32 %v2753, %v2865
    %2867 = vmatprep.mubr.bf16.mxu0 %v629
    %2868 = vmatmul.mubr.bf16.gmra.mrb[0].mxu0 %v628
    %v2869 = vpop.f32.mrb[0].mxu0
    %v2870 = vadd.f32 %v2757, %v2869
    %v2871 = vpop.f32.mrb[0].mxu0
    %v2872 = vadd.f32 %v2759, %v2871
    %v2873 = vpop.f32.mrb[0].mxu0
    %v2874 = vadd.f32 %v2761, %v2873
    %v2875 = vpop.f32.mrb[0].mxu0
    %v2876 = vadd.f32 %v2763, %v2875
    %2877 = vdwg.mxu0
    %v2878 = vmax.f32 %v2348, %v2350
    %v2879 = vmax.f32 %v2352, %v2354
    %v2880 = vmax.f32 %v2358, %v2360
    %v2881 = vmax.f32 %v2362, %v2364
    %v2882 = vmax.f32 %v2368, %v2370
    %v2883 = vmax.f32 %v2372, %v2374
    %v2884 = vmax.f32 %v2378, %v2380
    %v2885 = vmax.f32 %v2382, %v2384
    %v2886 = vmax.f32 %v2388, %v2390
    %v2887 = vmax.f32 %v2392, %v2394
    %v2888 = vmax.f32 %v2398, %v2400
    %v2889 = vmax.f32 %v2402, %v2404
    %v2890 = vmax.f32 %v2408, %v2410
    %v2891 = vmax.f32 %v2412, %v2414
    %v2892 = vmax.f32 %v2418, %v2420
    %v2893 = vmax.f32 %v2422, %v2424
    %v2894 = vmax.f32 %v2800, %v2802
    %v2895 = vmax.f32 %v2804, %v2806
    %v2896 = vmax.f32 %v2810, %v2812
    %v2897 = vmax.f32 %v2814, %v2816
    %v2898 = vmax.f32 %v2820, %v2822
    %v2899 = vmax.f32 %v2824, %v2826
    %v2900 = vmax.f32 %v2830, %v2832
    %v2901 = vmax.f32 %v2834, %v2836
    %v2902 = vmax.f32 %v2840, %v2842
    %v2903 = vmax.f32 %v2844, %v2846
    %v2904 = vmax.f32 %v2850, %v2852
    %v2905 = vmax.f32 %v2854, %v2856
    %v2906 = vmax.f32 %v2860, %v2862
    %v2907 = vmax.f32 %v2864, %v2866
    %v2908 = vmax.f32 %v2870, %v2872
    %v2909 = vmax.f32 %v2874, %v2876
    %v2910 = vmax.f32 %v2878, %v2894
    %v2911 = vmax.f32 %v2879, %v2895
    %v2912 = vmax.f32 %v2880, %v2896
    %v2913 = vmax.f32 %v2881, %v2897
    %v2914 = vmax.f32 %v2882, %v2898
    %v2915 = vmax.f32 %v2883, %v2899
    %v2916 = vmax.f32 %v2884, %v2900
    %v2917 = vmax.f32 %v2885, %v2901
    %v2918 = vmax.f32 %v2886, %v2902
    %v2919 = vmax.f32 %v2887, %v2903
    %v2920 = vmax.f32 %v2888, %v2904
    %v2921 = vmax.f32 %v2889, %v2905
    %v2922 = vmax.f32 %v2890, %v2906
    %v2923 = vmax.f32 %v2891, %v2907
    %v2924 = vmax.f32 %v2892, %v2908
    %v2925 = vmax.f32 %v2893, %v2909
    %v2926 = vld [vmem:[#allocation7] sm:$0x1]
    %v2928 = vlaneseq
    %v2929 = vshrl.u32 %v2928, 7
    %v2930 = vsub.s32 0, %v2929
    %v2931 = vrot.slane %v2926, %v2930
    %v2933 = vadd.f32 %v2910, %v2931
    %v2934 = vadd.f32 %v2911, %v2931
    %v2935 = vadd.f32 %v2912, %v2931
    %v2936 = vadd.f32 %v2913, %v2931
    %v2937 = vadd.f32 %v2914, %v2931
    %v2938 = vadd.f32 %v2915, %v2931
    %v2939 = vadd.f32 %v2916, %v2931
    %v2940 = vadd.f32 %v2917, %v2931
    %v2941 = vadd.f32 %v2918, %v2931
    %v2942 = vadd.f32 %v2919, %v2931
    %v2943 = vadd.f32 %v2920, %v2931
    %v2944 = vadd.f32 %v2921, %v2931
    %v2945 = vadd.f32 %v2922, %v2931
    %v2946 = vadd.f32 %v2923, %v2931
    %v2947 = vadd.f32 %v2924, %v2931
    %v2948 = vadd.f32 %v2925, %v2931
    %v2949 = vmax.f32 %v2933, 0.0
    %v2950 = vmax.f32 %v2934, 0.0
    %v2951 = vmax.f32 %v2935, 0.0
    %v2952 = vmax.f32 %v2936, 0.0
    %v2953 = vmax.f32 %v2937, 0.0
    %v2954 = vmax.f32 %v2938, 0.0
    %v2955 = vmax.f32 %v2939, 0.0
    %v2956 = vmax.f32 %v2940, 0.0
    %v2957 = vmax.f32 %v2941, 0.0
    %v2958 = vmax.f32 %v2942, 0.0
    %v2959 = vmax.f32 %v2943, 0.0
    %v2960 = vmax.f32 %v2944, 0.0
    %v2961 = vmax.f32 %v2945, 0.0
    %v2962 = vmax.f32 %v2946, 0.0
    %v2963 = vmax.f32 %v2947, 0.0
    %v2964 = vmax.f32 %v2948, 0.0
    %v2965 = vpack.c.bf16 %v2950, %v2949
    %v2966 = vpack.c.bf16 %v2952, %v2951
    %v2967 = vpack.c.bf16 %v2954, %v2953
    %v2968 = vpack.c.bf16 %v2956, %v2955
    %v2969 = vpack.c.bf16 %v2958, %v2957
    %v2970 = vpack.c.bf16 %v2960, %v2959
    %v2971 = vpack.c.bf16 %v2962, %v2961
    %v2972 = vpack.c.bf16 %v2964, %v2963
    %v2981 = vunpack.c.l.b16 %v2965
    %v2982 = vunpack.c.h.b16 %v2965
    %v2983 = vunpack.c.l.b16 %v2966
    %v2984 = vunpack.c.h.b16 %v2966
    %v2985 = vunpack.c.l.b16 %v2967
    %v2986 = vunpack.c.h.b16 %v2967
    %v2987 = vunpack.c.l.b16 %v2968
    %v2988 = vunpack.c.h.b16 %v2968
    %v2989 = vunpack.c.l.b16 %v2969
    %v2990 = vunpack.c.h.b16 %v2969
    %v2991 = vunpack.c.l.b16 %v2970
    %v2992 = vunpack.c.h.b16 %v2970
    %v2993 = vunpack.c.l.b16 %v2971
    %v2994 = vunpack.c.h.b16 %v2971
    %v2995 = vunpack.c.l.b16 %v2972
    %v2996 = vunpack.c.h.b16 %v2972
    %v2997 = vpack.c.b16 %v2981, %v2981
    %v2998 = vpack.c.b16 %v2982, %v2982
    %v2999 = vpack.c.b16 %v2983, %v2983
    %v3000 = vpack.c.b16 %v2984, %v2984
    %v3001 = vpack.c.b16 %v2985, %v2985
    %v3002 = vpack.c.b16 %v2986, %v2986
    %v3003 = vpack.c.b16 %v2987, %v2987
    %v3004 = vpack.c.b16 %v2988, %v2988
    %v3005 = vpack.c.b16 %v2989, %v2989
    %v3006 = vpack.c.b16 %v2990, %v2990
    %v3007 = vpack.c.b16 %v2991, %v2991
    %v3008 = vpack.c.b16 %v2992, %v2992
    %v3009 = vpack.c.b16 %v2993, %v2993
    %v3010 = vpack.c.b16 %v2994, %v2994
    %v3011 = vpack.c.b16 %v2995, %v2995
    %v3012 = vpack.c.b16 %v2996, %v2996
    %3029 = vst [vmem:[#allocation8] sm:$0xf] %v2997
    %3030 = vst [vmem:[#allocation8 + $0x4] sm:$0xf] %v2998
    %3031 = vst [vmem:[#allocation8 + $0x8] sm:$0xf] %v2999
    %3032 = vst [vmem:[#allocation8 + $0xc] sm:$0xf] %v3000
    %3033 = vst [vmem:[#allocation8 + $0x10] sm:$0xf] %v3001
    %3034 = vst [vmem:[#allocation8 + $0x14] sm:$0xf] %v3002
    %3035 = vst [vmem:[#allocation8 + $0x18] sm:$0xf] %v3003
    %3036 = vst [vmem:[#allocation8 + $0x1c] sm:$0xf] %v3004
    %3037 = vst [vmem:[#allocation8 + $0x20] sm:$0xf] %v3005
    %3038 = vst [vmem:[#allocation8 + $0x24] sm:$0xf] %v3006
    %3039 = vst [vmem:[#allocation8 + $0x28] sm:$0xf] %v3007
    %3040 = vst [vmem:[#allocation8 + $0x2c] sm:$0xf] %v3008
    %3041 = vst [vmem:[#allocation8 + $0x30] sm:$0xf] %v3009
    %3042 = vst [vmem:[#allocation8 + $0x34] sm:$0xf] %v3010
    %3043 = vst [vmem:[#allocation8 + $0x38] sm:$0xf] %v3011
    %3044 = vst [vmem:[#allocation8 + $0x3c] sm:$0xf] %v3012
    // Predicated region
    $region26: #{mnist_cnn_forward.4} parent=1 // pred_check
      _
    $region27: #{mnist_cnn_forward.4} parent=1 // pred_check_branch
      %3046 = sbr.rel (0) target = $region29
    $region28: #{mnist_cnn_forward.4} parent=1 // pred_region
      %s3048 = ssub.s32 1024, 1024
      %3049 = vsyncadd [#allocation4], %s3048
      %s3050 = sshll.u32 [#allocation8], 4
      %s3051 = int_to_ptr.vmem [resolvable:$true] %s3050
      %3056 = dma.vmem_to_hbm [thread:$0]  %s3051, 1024, %s3, [#allocation4], 64, 64, 4
    $region29: #{mnist_cnn_forward.4} parent=1 // pred_fallthru
      _
    // Predicated region
    $region30: #{mnist_cnn_forward.4} parent=1 // pred_check
      _
    $region31: #{mnist_cnn_forward.4} parent=1 // pred_check_branch
      %3058 = sbr.rel (0) target = $region33
    $region32: #{mnist_cnn_forward.4} parent=1 // pred_region
      %3059 = dma.done [#allocation4], 1024
    $region33: #{mnist_cnn_forward.4} parent=1 // pred_fallthru
      _
    %3060 = vsyncpa [#allocation3], 1
    %3061 = vsyncpa [#allocation6], 1
    %3062 = vsyncpa [#allocation4], 1

// kernel: mnist_cnn_forward.5
$region0: #{mnist_cnn_forward.5}
  #allocation0 [shape = 'u32[]', space=smem, size = 0x4, offset = 0x4, fixed_abs, tag = 'smem constant byte address 0x4 - core index']
  #allocation1 [shape = 'u32[144,128]{1,0:T(1,128)}', space=vmem, size = 0x12000, scoped, tag = 'internal scratch']
  %s0 = inlined_call_operand.hbm [shape: bf16[128,2048], index: 0, kind: input, shape index: {}]
  %s1 = inlined_call_operand.hbm [shape: bf16[2048,256], index: 1, kind: input, shape index: {}]
  %s2 = inlined_call_operand.hbm [shape: f32[1,64], index: 2, kind: input, shape index: {}]
  %s3 = inlined_call_operand.hbm [shape: bf16[64,128], index: 3, kind: input, shape index: {}]
  %s4 = inlined_call_operand.hbm [shape: f32[1,128], index: 4, kind: input, shape index: {}]
  %s5 = inlined_call_operand.hbm [shape: bf16[128,128], index: 5, kind: input, shape index: {}]
  %s6 = inlined_call_operand.hbm [shape: f32[1,128], index: 6, kind: input, shape index: {}]
  %s7 = inlined_call_operand.hbm [shape: f32[128,128], index: 7, kind: output, shape index: {}]
  %s8 = sld [smem:[#allocation0]]
  $region66: #{mnist_cnn_forward.5} parent=0
    _
  %s10 = ssub.s32 1, %s8
  %s11 = scalar_select 0, %s10, %s8
  $region1: #{mnist_cnn_forward.5} parent=0
    #allocation2 [shape = 'u8[524288]{0}', space=vmem, size = 0x80000, scoped, tag = 'input window, operand 0, single buffered']
    #allocation3 [shape = 's32[1]{0}', space=sflag, size = 0x4, scoped, tag = 'scoped memory for mnist_cnn_forward.5']
    #allocation4 [shape = 's32[1]{0}', space=sflag, size = 0x4, scoped, tag = 'scoped memory for mnist_cnn_forward.5']
    #allocation5 [shape = 'u8[1048576]{0}', space=vmem, size = 0x100000, scoped, tag = 'input window, operand 1, single buffered']
    #allocation6 [shape = 's32[1]{0}', space=sflag, size = 0x4, scoped, tag = 'scoped memory for mnist_cnn_forward.5']
    #allocation7 [shape = 'u8[512]{0}', space=vmem, size = 0x400, scoped, tag = 'input window, operand 2, single buffered']
    #allocation8 [shape = 'u8[16384]{0}', space=vmem, size = 0x4000, scoped, tag = 'input window, operand 3, single buffered']
    #allocation9 [shape = 's32[1]{0}', space=sflag, size = 0x4, scoped, tag = 'scoped memory for mnist_cnn_forward.5']
    #allocation10 [shape = 'u8[512]{0}', space=vmem, size = 0x400, scoped, tag = 'input window, operand 4, single buffered']
    #allocation11 [shape = 'u8[32768]{0}', space=vmem, size = 0x8000, scoped, tag = 'input window, operand 5, single buffered']
    #allocation12 [shape = 's32[1]{0}', space=sflag, size = 0x4, scoped, tag = 'scoped memory for mnist_cnn_forward.5']
    #allocation13 [shape = 'u8[512]{0}', space=vmem, size = 0x400, scoped, tag = 'input window, operand 6, single buffered']
    #allocation14 [shape = 'u8[65536]{0}', space=vmem, size = 0x10000, scoped, tag = 'output window, operand 0, single buffered']
    %12 = vsyncpa [#allocation3], 0
    %13 = vsyncpa [#allocation6], 0
    %14 = vsyncpa [#allocation9], 0
    %15 = vsyncpa [#allocation12], 0
    %16 = vsyncpa [#allocation4], 0
    // Predicated region
    $region2: #{mnist_cnn_forward.5} parent=1 // pred_check
      _
    $region3: #{mnist_cnn_forward.5} parent=1 // pred_check_branch
      %18 = sbr.rel (0) target = $region5
    $region4: #{mnist_cnn_forward.5} parent=1 // pred_region
      %s20 = ssub.s32 16384, 16384
      %21 = vsyncadd [#allocation3], %s20
      %s22 = sshll.u32 [#allocation2], 4
      %s23 = int_to_ptr.vmem [resolvable:$true] %s22
      %28 = dma.hbm_to_vmem [thread:$0]  %s0, 16384, %s23, [#allocation3], 1024, 1024, 64
    $region5: #{mnist_cnn_forward.5} parent=1 // pred_fallthru
      _
    // Predicated region
    $region6: #{mnist_cnn_forward.5} parent=1 // pred_check
      _
    $region7: #{mnist_cnn_forward.5} parent=1 // pred_check_branch
      %30 = sbr.rel (0) target = $region9
    $region8: #{mnist_cnn_forward.5} parent=1 // pred_region
      %s32 = ssub.s32 32768, 32768
      %33 = vsyncadd [#allocation6], %s32
      %s34 = sshll.u32 [#allocation5], 4
      %s35 = int_to_ptr.vmem [resolvable:$true] %s34
      %40 = dma.hbm_to_vmem [thread:$0]  %s1, 32768, %s35, [#allocation6], 128, 128, 8
    $region9: #{mnist_cnn_forward.5} parent=1 // pred_fallthru
      _
    // Predicated region
    $region10: #{mnist_cnn_forward.5} parent=1 // pred_check
      _
    $region11: #{mnist_cnn_forward.5} parent=1 // pred_check_branch
      %42 = sbr.rel (0) target = $region13
    $region12: #{mnist_cnn_forward.5} parent=1 // pred_region
      %s44 = ssub.s32 16, 16
      %45 = vsyncadd [#allocation6], %s44
      %s47 = sshll.u32 [#allocation7], 4
      %s48 = int_to_ptr.vmem [resolvable:$true] %s47
      %50 = dma.hbm_to_vmem [thread:$0]  %s2, 16, %s48, [#allocation6]
    $region13: #{mnist_cnn_forward.5} parent=1 // pred_fallthru
      _
    // Predicated region
    $region14: #{mnist_cnn_forward.5} parent=1 // pred_check
      _
    $region15: #{mnist_cnn_forward.5} parent=1 // pred_check_branch
      %52 = sbr.rel (0) target = $region17
    $region16: #{mnist_cnn_forward.5} parent=1 // pred_region
      %s54 = ssub.s32 512, 512
      %55 = vsyncadd [#allocation9], %s54
      %s56 = sshll.u32 [#allocation8], 4
      %s57 = int_to_ptr.vmem [resolvable:$true] %s56
      %62 = dma.hbm_to_vmem [thread:$0]  %s3, 512, %s57, [#allocation9], 64, 64, 4
    $region17: #{mnist_cnn_forward.5} parent=1 // pred_fallthru
      _
    // Predicated region
    $region18: #{mnist_cnn_forward.5} parent=1 // pred_check
      _
    $region19: #{mnist_cnn_forward.5} parent=1 // pred_check_branch
      %64 = sbr.rel (0) target = $region21
    $region20: #{mnist_cnn_forward.5} parent=1 // pred_region
      %s66 = ssub.s32 16, 16
      %67 = vsyncadd [#allocation9], %s66
      %s69 = sshll.u32 [#allocation10], 4
      %s70 = int_to_ptr.vmem [resolvable:$true] %s69
      %72 = dma.hbm_to_vmem [thread:$0]  %s4, 16, %s70, [#allocation9]
    $region21: #{mnist_cnn_forward.5} parent=1 // pred_fallthru
      _
    // Predicated region
    $region22: #{mnist_cnn_forward.5} parent=1 // pred_check
      _
    $region23: #{mnist_cnn_forward.5} parent=1 // pred_check_branch
      %74 = sbr.rel (0) target = $region25
    $region24: #{mnist_cnn_forward.5} parent=1 // pred_region
      %s76 = ssub.s32 1024, 1024
      %77 = vsyncadd [#allocation12], %s76
      %s78 = sshll.u32 [#allocation11], 4
      %s79 = int_to_ptr.vmem [resolvable:$true] %s78
      %84 = dma.hbm_to_vmem [thread:$0]  %s5, 1024, %s79, [#allocation12], 64, 64, 4
    $region25: #{mnist_cnn_forward.5} parent=1 // pred_fallthru
      _
    // Predicated region
    $region26: #{mnist_cnn_forward.5} parent=1 // pred_check
      _
    $region27: #{mnist_cnn_forward.5} parent=1 // pred_check_branch
      %86 = sbr.rel (0) target = $region29
    $region28: #{mnist_cnn_forward.5} parent=1 // pred_region
      %s88 = ssub.s32 16, 16
      %89 = vsyncadd [#allocation12], %s88
      %s91 = sshll.u32 [#allocation13], 4
      %s92 = int_to_ptr.vmem [resolvable:$true] %s91
      %94 = dma.hbm_to_vmem [thread:$0]  %s6, 16, %s92, [#allocation12]
    $region29: #{mnist_cnn_forward.5} parent=1 // pred_fallthru
      _
    // Predicated region
    $region30: #{mnist_cnn_forward.5} parent=1 // pred_check
      _
    $region31: #{mnist_cnn_forward.5} parent=1 // pred_check_branch
      %96 = sbr.rel (0) target = $region33
    $region32: #{mnist_cnn_forward.5} parent=1 // pred_region
      %97 = dma.done [#allocation3], 16384
    $region33: #{mnist_cnn_forward.5} parent=1 // pred_fallthru
      _
    // Predicated region
    $region34: #{mnist_cnn_forward.5} parent=1 // pred_check
      _
    $region35: #{mnist_cnn_forward.5} parent=1 // pred_check_branch
      %99 = sbr.rel (0) target = $region37
    $region36: #{mnist_cnn_forward.5} parent=1 // pred_region
      %100 = dma.done [#allocation6], 32768
    $region37: #{mnist_cnn_forward.5} parent=1 // pred_fallthru
      _
    // Predicated region
    $region38: #{mnist_cnn_forward.5} parent=1 // pred_check
      _
    $region39: #{mnist_cnn_forward.5} parent=1 // pred_check_branch
      %102 = sbr.rel (0) target = $region41
    $region40: #{mnist_cnn_forward.5} parent=1 // pred_region
      %103 = dma.done [#allocation6], 16
    $region41: #{mnist_cnn_forward.5} parent=1 // pred_fallthru
      _
    // Predicated region
    $region42: #{mnist_cnn_forward.5} parent=1 // pred_check
      _
    $region43: #{mnist_cnn_forward.5} parent=1 // pred_check_branch
      %105 = sbr.rel (0) target = $region45
    $region44: #{mnist_cnn_forward.5} parent=1 // pred_region
      %106 = dma.done [#allocation9], 512
    $region45: #{mnist_cnn_forward.5} parent=1 // pred_fallthru
      _
    // Predicated region
    $region46: #{mnist_cnn_forward.5} parent=1 // pred_check
      _
    $region47: #{mnist_cnn_forward.5} parent=1 // pred_check_branch
      %108 = sbr.rel (0) target = $region49
    $region48: #{mnist_cnn_forward.5} parent=1 // pred_region
      %109 = dma.done [#allocation9], 16
    $region49: #{mnist_cnn_forward.5} parent=1 // pred_fallthru
      _
    // Predicated region
    $region50: #{mnist_cnn_forward.5} parent=1 // pred_check
      _
    $region51: #{mnist_cnn_forward.5} parent=1 // pred_check_branch
      %111 = sbr.rel (0) target = $region53
    $region52: #{mnist_cnn_forward.5} parent=1 // pred_region
      %112 = dma.done [#allocation12], 1024
    $region53: #{mnist_cnn_forward.5} parent=1 // pred_fallthru
      _
    // Predicated region
    $region54: #{mnist_cnn_forward.5} parent=1 // pred_check
      _
    $region55: #{mnist_cnn_forward.5} parent=1 // pred_check_branch
      %114 = sbr.rel (0) target = $region57
    $region56: #{mnist_cnn_forward.5} parent=1 // pred_region
      %115 = dma.done [#allocation12], 16
    $region57: #{mnist_cnn_forward.5} parent=1 // pred_fallthru
      _
    %v117 = vld [vmem:[#allocation2] sm:$0xff]
    %v118 = vld [vmem:[#allocation2 + $0x8] sm:$0xff]
    %v119 = vld [vmem:[#allocation2 + $0x10] sm:$0xff]
    %v120 = vld [vmem:[#allocation2 + $0x18] sm:$0xff]
    %v121 = vld [vmem:[#allocation2 + $0x20] sm:$0xff]
    %v122 = vld [vmem:[#allocation2 + $0x28] sm:$0xff]
    %v123 = vld [vmem:[#allocation2 + $0x30] sm:$0xff]
    %v124 = vld [vmem:[#allocation2 + $0x38] sm:$0xff]
    %v125 = vld [vmem:[#allocation2 + $0x40] sm:$0xff]
    %v126 = vld [vmem:[#allocation2 + $0x48] sm:$0xff]
    %v127 = vld [vmem:[#allocation2 + $0x50] sm:$0xff]
    %v128 = vld [vmem:[#allocation2 + $0x58] sm:$0xff]
    %v129 = vld [vmem:[#allocation2 + $0x60] sm:$0xff]
    %v130 = vld [vmem:[#allocation2 + $0x68] sm:$0xff]
    %v131 = vld [vmem:[#allocation2 + $0x70] sm:$0xff]
    %v132 = vld [vmem:[#allocation2 + $0x78] sm:$0xff]
    %v133 = vld [vmem:[#allocation2 + $0x80] sm:$0xff]
    %v134 = vld [vmem:[#allocation2 + $0x88] sm:$0xff]
    %v135 = vld [vmem:[#allocation2 + $0x90] sm:$0xff]
    %v136 = vld [vmem:[#allocation2 + $0x98] sm:$0xff]
    %v137 = vld [vmem:[#allocation2 + $0xa0] sm:$0xff]
    %v138 = vld [vmem:[#allocation2 + $0xa8] sm:$0xff]
    %v139 = vld [vmem:[#allocation2 + $0xb0] sm:$0xff]
    %v140 = vld [vmem:[#allocation2 + $0xb8] sm:$0xff]
    %v141 = vld [vmem:[#allocation2 + $0xc0] sm:$0xff]
    %v142 = vld [vmem:[#allocation2 + $0xc8] sm:$0xff]
    %v143 = vld [vmem:[#allocation2 + $0xd0] sm:$0xff]
    %v144 = vld [vmem:[#allocation2 + $0xd8] sm:$0xff]
    %v145 = vld [vmem:[#allocation2 + $0xe0] sm:$0xff]
    %v146 = vld [vmem:[#allocation2 + $0xe8] sm:$0xff]
    %v147 = vld [vmem:[#allocation2 + $0xf0] sm:$0xff]
    %v148 = vld [vmem:[#allocation2 + $0xf8] sm:$0xff]
    %v149 = vld [vmem:[#allocation2 + $0x100] sm:$0xff]
    %v150 = vld [vmem:[#allocation2 + $0x108] sm:$0xff]
    %v151 = vld [vmem:[#allocation2 + $0x110] sm:$0xff]
    %v152 = vld [vmem:[#allocation2 + $0x118] sm:$0xff]
    %v153 = vld [vmem:[#allocation2 + $0x120] sm:$0xff]
    %v154 = vld [vmem:[#allocation2 + $0x128] sm:$0xff]
    %v155 = vld [vmem:[#allocation2 + $0x130] sm:$0xff]
    %v156 = vld [vmem:[#allocation2 + $0x138] sm:$0xff]
    %v157 = vld [vmem:[#allocation2 + $0x140] sm:$0xff]
    %v158 = vld [vmem:[#allocation2 + $0x148] sm:$0xff]
    %v159 = vld [vmem:[#allocation2 + $0x150] sm:$0xff]
    %v160 = vld [vmem:[#allocation2 + $0x158] sm:$0xff]
    %v161 = vld [vmem:[#allocation2 + $0x160] sm:$0xff]
    %v162 = vld [vmem:[#allocation2 + $0x168] sm:$0xff]
    %v163 = vld [vmem:[#allocation2 + $0x170] sm:$0xff]
    %v164 = vld [vmem:[#allocation2 + $0x178] sm:$0xff]
    %v165 = vld [vmem:[#allocation2 + $0x180] sm:$0xff]
    %v166 = vld [vmem:[#allocation2 + $0x188] sm:$0xff]
    %v167 = vld [vmem:[#allocation2 + $0x190] sm:$0xff]
    %v168 = vld [vmem:[#allocation2 + $0x198] sm:$0xff]
    %v169 = vld [vmem:[#allocation2 + $0x1a0] sm:$0xff]
    %v170 = vld [vmem:[#allocation2 + $0x1a8] sm:$0xff]
    %v171 = vld [vmem:[#allocation2 + $0x1b0] sm:$0xff]
    %v172 = vld [vmem:[#allocation2 + $0x1b8] sm:$0xff]
    %v173 = vld [vmem:[#allocation2 + $0x1c0] sm:$0xff]
    %v174 = vld [vmem:[#allocation2 + $0x1c8] sm:$0xff]
    %v175 = vld [vmem:[#allocation2 + $0x1d0] sm:$0xff]
    %v176 = vld [vmem:[#allocation2 + $0x1d8] sm:$0xff]
    %v177 = vld [vmem:[#allocation2 + $0x1e0] sm:$0xff]
    %v178 = vld [vmem:[#allocation2 + $0x1e8] sm:$0xff]
    %v179 = vld [vmem:[#allocation2 + $0x1f0] sm:$0xff]
    %v180 = vld [vmem:[#allocation2 + $0x1f8] sm:$0xff]
    %v181 = vld [vmem:[#allocation2 + $0x200] sm:$0xff]
    %v182 = vld [vmem:[#allocation2 + $0x208] sm:$0xff]
    %v183 = vld [vmem:[#allocation2 + $0x210] sm:$0xff]
    %v184 = vld [vmem:[#allocation2 + $0x218] sm:$0xff]
    %v185 = vld [vmem:[#allocation2 + $0x220] sm:$0xff]
    %v186 = vld [vmem:[#allocation2 + $0x228] sm:$0xff]
    %v187 = vld [vmem:[#allocation2 + $0x230] sm:$0xff]
    %v188 = vld [vmem:[#allocation2 + $0x238] sm:$0xff]
    %v189 = vld [vmem:[#allocation2 + $0x240] sm:$0xff]
    %v190 = vld [vmem:[#allocation2 + $0x248] sm:$0xff]
    %v191 = vld [vmem:[#allocation2 + $0x250] sm:$0xff]
    %v192 = vld [vmem:[#allocation2 + $0x258] sm:$0xff]
    %v193 = vld [vmem:[#allocation2 + $0x260] sm:$0xff]
    %v194 = vld [vmem:[#allocation2 + $0x268] sm:$0xff]
    %v195 = vld [vmem:[#allocation2 + $0x270] sm:$0xff]
    %v196 = vld [vmem:[#allocation2 + $0x278] sm:$0xff]
    %v197 = vld [vmem:[#allocation2 + $0x280] sm:$0xff]
    %v198 = vld [vmem:[#allocation2 + $0x288] sm:$0xff]
    %v199 = vld [vmem:[#allocation2 + $0x290] sm:$0xff]
    %v200 = vld [vmem:[#allocation2 + $0x298] sm:$0xff]
    %v201 = vld [vmem:[#allocation2 + $0x2a0] sm:$0xff]
    %v202 = vld [vmem:[#allocation2 + $0x2a8] sm:$0xff]
    %v203 = vld [vmem:[#allocation2 + $0x2b0] sm:$0xff]
    %v204 = vld [vmem:[#allocation2 + $0x2b8] sm:$0xff]
    %v205 = vld [vmem:[#allocation2 + $0x2c0] sm:$0xff]
    %v206 = vld [vmem:[#allocation2 + $0x2c8] sm:$0xff]
    %v207 = vld [vmem:[#allocation2 + $0x2d0] sm:$0xff]
    %v208 = vld [vmem:[#allocation2 + $0x2d8] sm:$0xff]
    %v209 = vld [vmem:[#allocation2 + $0x2e0] sm:$0xff]
    %v210 = vld [vmem:[#allocation2 + $0x2e8] sm:$0xff]
    %v211 = vld [vmem:[#allocation2 + $0x2f0] sm:$0xff]
    %v212 = vld [vmem:[#allocation2 + $0x2f8] sm:$0xff]
    %v213 = vld [vmem:[#allocation2 + $0x300] sm:$0xff]
    %v214 = vld [vmem:[#allocation2 + $0x308] sm:$0xff]
    %v215 = vld [vmem:[#allocation2 + $0x310] sm:$0xff]
    %v216 = vld [vmem:[#allocation2 + $0x318] sm:$0xff]
    %v217 = vld [vmem:[#allocation2 + $0x320] sm:$0xff]
    %v218 = vld [vmem:[#allocation2 + $0x328] sm:$0xff]
    %v219 = vld [vmem:[#allocation2 + $0x330] sm:$0xff]
    %v220 = vld [vmem:[#allocation2 + $0x338] sm:$0xff]
    %v221 = vld [vmem:[#allocation2 + $0x340] sm:$0xff]
    %v222 = vld [vmem:[#allocation2 + $0x348] sm:$0xff]
    %v223 = vld [vmem:[#allocation2 + $0x350] sm:$0xff]
    %v224 = vld [vmem:[#allocation2 + $0x358] sm:$0xff]
    %v225 = vld [vmem:[#allocation2 + $0x360] sm:$0xff]
    %v226 = vld [vmem:[#allocation2 + $0x368] sm:$0xff]
    %v227 = vld [vmem:[#allocation2 + $0x370] sm:$0xff]
    %v228 = vld [vmem:[#allocation2 + $0x378] sm:$0xff]
    %v229 = vld [vmem:[#allocation2 + $0x380] sm:$0xff]
    %v230 = vld [vmem:[#allocation2 + $0x388] sm:$0xff]
    %v231 = vld [vmem:[#allocation2 + $0x390] sm:$0xff]
    %v232 = vld [vmem:[#allocation2 + $0x398] sm:$0xff]
    %v233 = vld [vmem:[#allocation2 + $0x3a0] sm:$0xff]
    %v234 = vld [vmem:[#allocation2 + $0x3a8] sm:$0xff]
    %v235 = vld [vmem:[#allocation2 + $0x3b0] sm:$0xff]
    %v236 = vld [vmem:[#allocation2 + $0x3b8] sm:$0xff]
    %v237 = vld [vmem:[#allocation2 + $0x3c0] sm:$0xff]
    %v238 = vld [vmem:[#allocation2 + $0x3c8] sm:$0xff]
    %v239 = vld [vmem:[#allocation2 + $0x3d0] sm:$0xff]
    %v240 = vld [vmem:[#allocation2 + $0x3d8] sm:$0xff]
    %v241 = vld [vmem:[#allocation2 + $0x3e0] sm:$0xff]
    %v242 = vld [vmem:[#allocation2 + $0x3e8] sm:$0xff]
    %v243 = vld [vmem:[#allocation2 + $0x3f0] sm:$0xff]
    %v244 = vld [vmem:[#allocation2 + $0x3f8] sm:$0xff]
    %v245 = vld [vmem:[#allocation5] sm:$0xff]
    %v246 = vld [vmem:[#allocation5 + $0x8] sm:$0xff]
    %v247 = vld [vmem:[#allocation5 + $0x10] sm:$0xff]
    %v248 = vld [vmem:[#allocation5 + $0x18] sm:$0xff]
    %v249 = vld [vmem:[#allocation5 + $0x20] sm:$0xff]
    %v250 = vld [vmem:[#allocation5 + $0x28] sm:$0xff]
    %v251 = vld [vmem:[#allocation5 + $0x30] sm:$0xff]
    %v252 = vld [vmem:[#allocation5 + $0x38] sm:$0xff]
    %v253 = vld [vmem:[#allocation5 + $0x40] sm:$0xff]
    %v254 = vld [vmem:[#allocation5 + $0x48] sm:$0xff]
    %v255 = vld [vmem:[#allocation5 + $0x50] sm:$0xff]
    %v256 = vld [vmem:[#allocation5 + $0x58] sm:$0xff]
    %v257 = vld [vmem:[#allocation5 + $0x60] sm:$0xff]
    %v258 = vld [vmem:[#allocation5 + $0x68] sm:$0xff]
    %v259 = vld [vmem:[#allocation5 + $0x70] sm:$0xff]
    %v260 = vld [vmem:[#allocation5 + $0x78] sm:$0xff]
    %v261 = vld [vmem:[#allocation5 + $0x80] sm:$0xff]
    %v262 = vld [vmem:[#allocation5 + $0x88] sm:$0xff]
    %v263 = vld [vmem:[#allocation5 + $0x90] sm:$0xff]
    %v264 = vld [vmem:[#allocation5 + $0x98] sm:$0xff]
    %v265 = vld [vmem:[#allocation5 + $0xa0] sm:$0xff]
    %v266 = vld [vmem:[#allocation5 + $0xa8] sm:$0xff]
    %v267 = vld [vmem:[#allocation5 + $0xb0] sm:$0xff]
    %v268 = vld [vmem:[#allocation5 + $0xb8] sm:$0xff]
    %v269 = vld [vmem:[#allocation5 + $0xc0] sm:$0xff]
    %v270 = vld [vmem:[#allocation5 + $0xc8] sm:$0xff]
    %v271 = vld [vmem:[#allocation5 + $0xd0] sm:$0xff]
    %v272 = vld [vmem:[#allocation5 + $0xd8] sm:$0xff]
    %v273 = vld [vmem:[#allocation5 + $0xe0] sm:$0xff]
    %v274 = vld [vmem:[#allocation5 + $0xe8] sm:$0xff]
    %v275 = vld [vmem:[#allocation5 + $0xf0] sm:$0xff]
    %v276 = vld [vmem:[#allocation5 + $0xf8] sm:$0xff]
    %v277 = vld [vmem:[#allocation5 + $0x100] sm:$0xff]
    %v278 = vld [vmem:[#allocation5 + $0x108] sm:$0xff]
    %v279 = vld [vmem:[#allocation5 + $0x110] sm:$0xff]
    %v280 = vld [vmem:[#allocation5 + $0x118] sm:$0xff]
    %v281 = vld [vmem:[#allocation5 + $0x120] sm:$0xff]
    %v282 = vld [vmem:[#allocation5 + $0x128] sm:$0xff]
    %v283 = vld [vmem:[#allocation5 + $0x130] sm:$0xff]
    %v284 = vld [vmem:[#allocation5 + $0x138] sm:$0xff]
    %v285 = vld [vmem:[#allocation5 + $0x140] sm:$0xff]
    %v286 = vld [vmem:[#allocation5 + $0x148] sm:$0xff]
    %v287 = vld [vmem:[#allocation5 + $0x150] sm:$0xff]
    %v288 = vld [vmem:[#allocation5 + $0x158] sm:$0xff]
    %v289 = vld [vmem:[#allocation5 + $0x160] sm:$0xff]
    %v290 = vld [vmem:[#allocation5 + $0x168] sm:$0xff]
    %v291 = vld [vmem:[#allocation5 + $0x170] sm:$0xff]
    %v292 = vld [vmem:[#allocation5 + $0x178] sm:$0xff]
    %v293 = vld [vmem:[#allocation5 + $0x180] sm:$0xff]
    %v294 = vld [vmem:[#allocation5 + $0x188] sm:$0xff]
    %v295 = vld [vmem:[#allocation5 + $0x190] sm:$0xff]
    %v296 = vld [vmem:[#allocation5 + $0x198] sm:$0xff]
    %v297 = vld [vmem:[#allocation5 + $0x1a0] sm:$0xff]
    %v298 = vld [vmem:[#allocation5 + $0x1a8] sm:$0xff]
    %v299 = vld [vmem:[#allocation5 + $0x1b0] sm:$0xff]
    %v300 = vld [vmem:[#allocation5 + $0x1b8] sm:$0xff]
    %v301 = vld [vmem:[#allocation5 + $0x1c0] sm:$0xff]
    %v302 = vld [vmem:[#allocation5 + $0x1c8] sm:$0xff]
    %v303 = vld [vmem:[#allocation5 + $0x1d0] sm:$0xff]
    %v304 = vld [vmem:[#allocation5 + $0x1d8] sm:$0xff]
    %v305 = vld [vmem:[#allocation5 + $0x1e0] sm:$0xff]
    %v306 = vld [vmem:[#allocation5 + $0x1e8] sm:$0xff]
    %v307 = vld [vmem:[#allocation5 + $0x1f0] sm:$0xff]
    %v308 = vld [vmem:[#allocation5 + $0x1f8] sm:$0xff]
    %v309 = vld [vmem:[#allocation5 + $0x200] sm:$0xff]
    %v310 = vld [vmem:[#allocation5 + $0x208] sm:$0xff]
    %v311 = vld [vmem:[#allocation5 + $0x210] sm:$0xff]
    %v312 = vld [vmem:[#allocation5 + $0x218] sm:$0xff]
    %v313 = vld [vmem:[#allocation5 + $0x220] sm:$0xff]
    %v314 = vld [vmem:[#allocation5 + $0x228] sm:$0xff]
    %v315 = vld [vmem:[#allocation5 + $0x230] sm:$0xff]
    %v316 = vld [vmem:[#allocation5 + $0x238] sm:$0xff]
    %v317 = vld [vmem:[#allocation5 + $0x240] sm:$0xff]
    %v318 = vld [vmem:[#allocation5 + $0x248] sm:$0xff]
    %v319 = vld [vmem:[#allocation5 + $0x250] sm:$0xff]
    %v320 = vld [vmem:[#allocation5 + $0x258] sm:$0xff]
    %v321 = vld [vmem:[#allocation5 + $0x260] sm:$0xff]
    %v322 = vld [vmem:[#allocation5 + $0x268] sm:$0xff]
    %v323 = vld [vmem:[#allocation5 + $0x270] sm:$0xff]
    %v324 = vld [vmem:[#allocation5 + $0x278] sm:$0xff]
    %v325 = vld [vmem:[#allocation5 + $0x280] sm:$0xff]
    %v326 = vld [vmem:[#allocation5 + $0x288] sm:$0xff]
    %v327 = vld [vmem:[#allocation5 + $0x290] sm:$0xff]
    %v328 = vld [vmem:[#allocation5 + $0x298] sm:$0xff]
    %v329 = vld [vmem:[#allocation5 + $0x2a0] sm:$0xff]
    %v330 = vld [vmem:[#allocation5 + $0x2a8] sm:$0xff]
    %v331 = vld [vmem:[#allocation5 + $0x2b0] sm:$0xff]
    %v332 = vld [vmem:[#allocation5 + $0x2b8] sm:$0xff]
    %v333 = vld [vmem:[#allocation5 + $0x2c0] sm:$0xff]
    %v334 = vld [vmem:[#allocation5 + $0x2c8] sm:$0xff]
    %v335 = vld [vmem:[#allocation5 + $0x2d0] sm:$0xff]
    %v336 = vld [vmem:[#allocation5 + $0x2d8] sm:$0xff]
    %v337 = vld [vmem:[#allocation5 + $0x2e0] sm:$0xff]
    %v338 = vld [vmem:[#allocation5 + $0x2e8] sm:$0xff]
    %v339 = vld [vmem:[#allocation5 + $0x2f0] sm:$0xff]
    %v340 = vld [vmem:[#allocation5 + $0x2f8] sm:$0xff]
    %v341 = vld [vmem:[#allocation5 + $0x300] sm:$0xff]
    %v342 = vld [vmem:[#allocation5 + $0x308] sm:$0xff]
    %v343 = vld [vmem:[#allocation5 + $0x310] sm:$0xff]
    %v344 = vld [vmem:[#allocation5 + $0x318] sm:$0xff]
    %v345 = vld [vmem:[#allocation5 + $0x320] sm:$0xff]
    %v346 = vld [vmem:[#allocation5 + $0x328] sm:$0xff]
    %v347 = vld [vmem:[#allocation5 + $0x330] sm:$0xff]
    %v348 = vld [vmem:[#allocation5 + $0x338] sm:$0xff]
    %v349 = vld [vmem:[#allocation5 + $0x340] sm:$0xff]
    %v350 = vld [vmem:[#allocation5 + $0x348] sm:$0xff]
    %v351 = vld [vmem:[#allocation5 + $0x350] sm:$0xff]
    %v352 = vld [vmem:[#allocation5 + $0x358] sm:$0xff]
    %v353 = vld [vmem:[#allocation5 + $0x360] sm:$0xff]
    %v354 = vld [vmem:[#allocation5 + $0x368] sm:$0xff]
    %v355 = vld [vmem:[#allocation5 + $0x370] sm:$0xff]
    %v356 = vld [vmem:[#allocation5 + $0x378] sm:$0xff]
    %v357 = vld [vmem:[#allocation5 + $0x380] sm:$0xff]
    %v358 = vld [vmem:[#allocation5 + $0x388] sm:$0xff]
    %v359 = vld [vmem:[#allocation5 + $0x390] sm:$0xff]
    %v360 = vld [vmem:[#allocation5 + $0x398] sm:$0xff]
    %v361 = vld [vmem:[#allocation5 + $0x3a0] sm:$0xff]
    %v362 = vld [vmem:[#allocation5 + $0x3a8] sm:$0xff]
    %v363 = vld [vmem:[#allocation5 + $0x3b0] sm:$0xff]
    %v364 = vld [vmem:[#allocation5 + $0x3b8] sm:$0xff]
    %v365 = vld [vmem:[#allocation5 + $0x3c0] sm:$0xff]
    %v366 = vld [vmem:[#allocation5 + $0x3c8] sm:$0xff]
    %v367 = vld [vmem:[#allocation5 + $0x3d0] sm:$0xff]
    %v368 = vld [vmem:[#allocation5 + $0x3d8] sm:$0xff]
    %v369 = vld [vmem:[#allocation5 + $0x3e0] sm:$0xff]
    %v370 = vld [vmem:[#allocation5 + $0x3e8] sm:$0xff]
    %v371 = vld [vmem:[#allocation5 + $0x3f0] sm:$0xff]
    %v372 = vld [vmem:[#allocation5 + $0x3f8] sm:$0xff]
    %v373 = vld [vmem:[#allocation5 + $0x400] sm:$0xff]
    %v374 = vld [vmem:[#allocation5 + $0x408] sm:$0xff]
    %v375 = vld [vmem:[#allocation5 + $0x410] sm:$0xff]
    %v376 = vld [vmem:[#allocation5 + $0x418] sm:$0xff]
    %v377 = vld [vmem:[#allocation5 + $0x420] sm:$0xff]
    %v378 = vld [vmem:[#allocation5 + $0x428] sm:$0xff]
    %v379 = vld [vmem:[#allocation5 + $0x430] sm:$0xff]
    %v380 = vld [vmem:[#allocation5 + $0x438] sm:$0xff]
    %v381 = vld [vmem:[#allocation5 + $0x440] sm:$0xff]
    %v382 = vld [vmem:[#allocation5 + $0x448] sm:$0xff]
    %v383 = vld [vmem:[#allocation5 + $0x450] sm:$0xff]
    %v384 = vld [vmem:[#allocation5 + $0x458] sm:$0xff]
    %v385 = vld [vmem:[#allocation5 + $0x460] sm:$0xff]
    %v386 = vld [vmem:[#allocation5 + $0x468] sm:$0xff]
    %v387 = vld [vmem:[#allocation5 + $0x470] sm:$0xff]
    %v388 = vld [vmem:[#allocation5 + $0x478] sm:$0xff]
    %v389 = vld [vmem:[#allocation5 + $0x480] sm:$0xff]
    %v390 = vld [vmem:[#allocation5 + $0x488] sm:$0xff]
    %v391 = vld [vmem:[#allocation5 + $0x490] sm:$0xff]
    %v392 = vld [vmem:[#allocation5 + $0x498] sm:$0xff]
    %v393 = vld [vmem:[#allocation5 + $0x4a0] sm:$0xff]
    %v394 = vld [vmem:[#allocation5 + $0x4a8] sm:$0xff]
    %v395 = vld [vmem:[#allocation5 + $0x4b0] sm:$0xff]
    %v396 = vld [vmem:[#allocation5 + $0x4b8] sm:$0xff]
    %v397 = vld [vmem:[#allocation5 + $0x4c0] sm:$0xff]
    %v398 = vld [vmem:[#allocation5 + $0x4c8] sm:$0xff]
    %v399 = vld [vmem:[#allocation5 + $0x4d0] sm:$0xff]
    %v400 = vld [vmem:[#allocation5 + $0x4d8] sm:$0xff]
    %v401 = vld [vmem:[#allocation5 + $0x4e0] sm:$0xff]
    %v402 = vld [vmem:[#allocation5 + $0x4e8] sm:$0xff]
    %v403 = vld [vmem:[#allocation5 + $0x4f0] sm:$0xff]
    %v404 = vld [vmem:[#allocation5 + $0x4f8] sm:$0xff]
    %v405 = vld [vmem:[#allocation5 + $0x500] sm:$0xff]
    %v406 = vld [vmem:[#allocation5 + $0x508] sm:$0xff]
    %v407 = vld [vmem:[#allocation5 + $0x510] sm:$0xff]
    %v408 = vld [vmem:[#allocation5 + $0x518] sm:$0xff]
    %v409 = vld [vmem:[#allocation5 + $0x520] sm:$0xff]
    %v410 = vld [vmem:[#allocation5 + $0x528] sm:$0xff]
    %v411 = vld [vmem:[#allocation5 + $0x530] sm:$0xff]
    %v412 = vld [vmem:[#allocation5 + $0x538] sm:$0xff]
    %v413 = vld [vmem:[#allocation5 + $0x540] sm:$0xff]
    %v414 = vld [vmem:[#allocation5 + $0x548] sm:$0xff]
    %v415 = vld [vmem:[#allocation5 + $0x550] sm:$0xff]
    %v416 = vld [vmem:[#allocation5 + $0x558] sm:$0xff]
    %v417 = vld [vmem:[#allocation5 + $0x560] sm:$0xff]
    %v418 = vld [vmem:[#allocation5 + $0x568] sm:$0xff]
    %v419 = vld [vmem:[#allocation5 + $0x570] sm:$0xff]
    %v420 = vld [vmem:[#allocation5 + $0x578] sm:$0xff]
    %v421 = vld [vmem:[#allocation5 + $0x580] sm:$0xff]
    %v422 = vld [vmem:[#allocation5 + $0x588] sm:$0xff]
    %v423 = vld [vmem:[#allocation5 + $0x590] sm:$0xff]
    %v424 = vld [vmem:[#allocation5 + $0x598] sm:$0xff]
    %v425 = vld [vmem:[#allocation5 + $0x5a0] sm:$0xff]
    %v426 = vld [vmem:[#allocation5 + $0x5a8] sm:$0xff]
    %v427 = vld [vmem:[#allocation5 + $0x5b0] sm:$0xff]
    %v428 = vld [vmem:[#allocation5 + $0x5b8] sm:$0xff]
    %v429 = vld [vmem:[#allocation5 + $0x5c0] sm:$0xff]
    %v430 = vld [vmem:[#allocation5 + $0x5c8] sm:$0xff]
    %v431 = vld [vmem:[#allocation5 + $0x5d0] sm:$0xff]
    %v432 = vld [vmem:[#allocation5 + $0x5d8] sm:$0xff]
    %v433 = vld [vmem:[#allocation5 + $0x5e0] sm:$0xff]
    %v434 = vld [vmem:[#allocation5 + $0x5e8] sm:$0xff]
    %v435 = vld [vmem:[#allocation5 + $0x5f0] sm:$0xff]
    %v436 = vld [vmem:[#allocation5 + $0x5f8] sm:$0xff]
    %v437 = vld [vmem:[#allocation5 + $0x600] sm:$0xff]
    %v438 = vld [vmem:[#allocation5 + $0x608] sm:$0xff]
    %v439 = vld [vmem:[#allocation5 + $0x610] sm:$0xff]
    %v440 = vld [vmem:[#allocation5 + $0x618] sm:$0xff]
    %v441 = vld [vmem:[#allocation5 + $0x620] sm:$0xff]
    %v442 = vld [vmem:[#allocation5 + $0x628] sm:$0xff]
    %v443 = vld [vmem:[#allocation5 + $0x630] sm:$0xff]
    %v444 = vld [vmem:[#allocation5 + $0x638] sm:$0xff]
    %v445 = vld [vmem:[#allocation5 + $0x640] sm:$0xff]
    %v446 = vld [vmem:[#allocation5 + $0x648] sm:$0xff]
    %v447 = vld [vmem:[#allocation5 + $0x650] sm:$0xff]
    %v448 = vld [vmem:[#allocation5 + $0x658] sm:$0xff]
    %v449 = vld [vmem:[#allocation5 + $0x660] sm:$0xff]
    %v450 = vld [vmem:[#allocation5 + $0x668] sm:$0xff]
    %v451 = vld [vmem:[#allocation5 + $0x670] sm:$0xff]
    %v452 = vld [vmem:[#allocation5 + $0x678] sm:$0xff]
    %v453 = vld [vmem:[#allocation5 + $0x680] sm:$0xff]
    %v454 = vld [vmem:[#allocation5 + $0x688] sm:$0xff]
    %v455 = vld [vmem:[#allocation5 + $0x690] sm:$0xff]
    %v456 = vld [vmem:[#allocation5 + $0x698] sm:$0xff]
    %v457 = vld [vmem:[#allocation5 + $0x6a0] sm:$0xff]
    %v458 = vld [vmem:[#allocation5 + $0x6a8] sm:$0xff]
    %v459 = vld [vmem:[#allocation5 + $0x6b0] sm:$0xff]
    %v460 = vld [vmem:[#allocation5 + $0x6b8] sm:$0xff]
    %v461 = vld [vmem:[#allocation5 + $0x6c0] sm:$0xff]
    %v462 = vld [vmem:[#allocation5 + $0x6c8] sm:$0xff]
    %v463 = vld [vmem:[#allocation5 + $0x6d0] sm:$0xff]
    %v464 = vld [vmem:[#allocation5 + $0x6d8] sm:$0xff]
    %v465 = vld [vmem:[#allocation5 + $0x6e0] sm:$0xff]
    %v466 = vld [vmem:[#allocation5 + $0x6e8] sm:$0xff]
    %v467 = vld [vmem:[#allocation5 + $0x6f0] sm:$0xff]
    %v468 = vld [vmem:[#allocation5 + $0x6f8] sm:$0xff]
    %v469 = vld [vmem:[#allocation5 + $0x700] sm:$0xff]
    %v470 = vld [vmem:[#allocation5 + $0x708] sm:$0xff]
    %v471 = vld [vmem:[#allocation5 + $0x710] sm:$0xff]
    %v472 = vld [vmem:[#allocation5 + $0x718] sm:$0xff]
    %v473 = vld [vmem:[#allocation5 + $0x720] sm:$0xff]
    %v474 = vld [vmem:[#allocation5 + $0x728] sm:$0xff]
    %v475 = vld [vmem:[#allocation5 + $0x730] sm:$0xff]
    %v476 = vld [vmem:[#allocation5 + $0x738] sm:$0xff]
    %v477 = vld [vmem:[#allocation5 + $0x740] sm:$0xff]
    %v478 = vld [vmem:[#allocation5 + $0x748] sm:$0xff]
    %v479 = vld [vmem:[#allocation5 + $0x750] sm:$0xff]
    %v480 = vld [vmem:[#allocation5 + $0x758] sm:$0xff]
    %v481 = vld [vmem:[#allocation5 + $0x760] sm:$0xff]
    %v482 = vld [vmem:[#allocation5 + $0x768] sm:$0xff]
    %v483 = vld [vmem:[#allocation5 + $0x770] sm:$0xff]
    %v484 = vld [vmem:[#allocation5 + $0x778] sm:$0xff]
    %v485 = vld [vmem:[#allocation5 + $0x780] sm:$0xff]
    %v486 = vld [vmem:[#allocation5 + $0x788] sm:$0xff]
    %v487 = vld [vmem:[#allocation5 + $0x790] sm:$0xff]
    %v488 = vld [vmem:[#allocation5 + $0x798] sm:$0xff]
    %v489 = vld [vmem:[#allocation5 + $0x7a0] sm:$0xff]
    %v490 = vld [vmem:[#allocation5 + $0x7a8] sm:$0xff]
    %v491 = vld [vmem:[#allocation5 + $0x7b0] sm:$0xff]
    %v492 = vld [vmem:[#allocation5 + $0x7b8] sm:$0xff]
    %v493 = vld [vmem:[#allocation5 + $0x7c0] sm:$0xff]
    %v494 = vld [vmem:[#allocation5 + $0x7c8] sm:$0xff]
    %v495 = vld [vmem:[#allocation5 + $0x7d0] sm:$0xff]
    %v496 = vld [vmem:[#allocation5 + $0x7d8] sm:$0xff]
    %v497 = vld [vmem:[#allocation5 + $0x7e0] sm:$0xff]
    %v498 = vld [vmem:[#allocation5 + $0x7e8] sm:$0xff]
    %v499 = vld [vmem:[#allocation5 + $0x7f0] sm:$0xff]
    %v500 = vld [vmem:[#allocation5 + $0x7f8] sm:$0xff]
    %v629 = vunpack.c.l.b16 %v117
    %v630 = vunpack.c.h.b16 %v117
    %v631 = vunpack.c.l.b16 %v118
    %v632 = vunpack.c.h.b16 %v118
    %v633 = vunpack.c.l.b16 %v119
    %v634 = vunpack.c.h.b16 %v119
    %v635 = vunpack.c.l.b16 %v120
    %v636 = vunpack.c.h.b16 %v120
    %v637 = vunpack.c.l.b16 %v121
    %v638 = vunpack.c.h.b16 %v121
    %v639 = vunpack.c.l.b16 %v122
    %v640 = vunpack.c.h.b16 %v122
    %v641 = vunpack.c.l.b16 %v123
    %v642 = vunpack.c.h.b16 %v123
    %v643 = vunpack.c.l.b16 %v124
    %v644 = vunpack.c.h.b16 %v124
    %v645 = vunpack.c.l.b16 %v125
    %v646 = vunpack.c.h.b16 %v125
    %v647 = vunpack.c.l.b16 %v126
    %v648 = vunpack.c.h.b16 %v126
    %v649 = vunpack.c.l.b16 %v127
    %v650 = vunpack.c.h.b16 %v127
    %v651 = vunpack.c.l.b16 %v128
    %v652 = vunpack.c.h.b16 %v128
    %v653 = vunpack.c.l.b16 %v129
    %v654 = vunpack.c.h.b16 %v129
    %v655 = vunpack.c.l.b16 %v130
    %v656 = vunpack.c.h.b16 %v130
    %v657 = vunpack.c.l.b16 %v131
    %v658 = vunpack.c.h.b16 %v131
    %v659 = vunpack.c.l.b16 %v132
    %v660 = vunpack.c.h.b16 %v132
    %v661 = vunpack.c.l.b16 %v133
    %v662 = vunpack.c.h.b16 %v133
    %v663 = vunpack.c.l.b16 %v134
    %v664 = vunpack.c.h.b16 %v134
    %v665 = vunpack.c.l.b16 %v135
    %v666 = vunpack.c.h.b16 %v135
    %v667 = vunpack.c.l.b16 %v136
    %v668 = vunpack.c.h.b16 %v136
    %v669 = vunpack.c.l.b16 %v137
    %v670 = vunpack.c.h.b16 %v137
    %v671 = vunpack.c.l.b16 %v138
    %v672 = vunpack.c.h.b16 %v138
    %v673 = vunpack.c.l.b16 %v139
    %v674 = vunpack.c.h.b16 %v139
    %v675 = vunpack.c.l.b16 %v140
    %v676 = vunpack.c.h.b16 %v140
    %v677 = vunpack.c.l.b16 %v141
    %v678 = vunpack.c.h.b16 %v141
    %v679 = vunpack.c.l.b16 %v142
    %v680 = vunpack.c.h.b16 %v142
    %v681 = vunpack.c.l.b16 %v143
    %v682 = vunpack.c.h.b16 %v143
    %v683 = vunpack.c.l.b16 %v144
    %v684 = vunpack.c.h.b16 %v144
    %v685 = vunpack.c.l.b16 %v145
    %v686 = vunpack.c.h.b16 %v145
    %v687 = vunpack.c.l.b16 %v146
    %v688 = vunpack.c.h.b16 %v146
    %v689 = vunpack.c.l.b16 %v147
    %v690 = vunpack.c.h.b16 %v147
    %v691 = vunpack.c.l.b16 %v148
    %v692 = vunpack.c.h.b16 %v148
    %v693 = vunpack.c.l.b16 %v149
    %v694 = vunpack.c.h.b16 %v149
    %v695 = vunpack.c.l.b16 %v150
    %v696 = vunpack.c.h.b16 %v150
    %v697 = vunpack.c.l.b16 %v151
    %v698 = vunpack.c.h.b16 %v151
    %v699 = vunpack.c.l.b16 %v152
    %v700 = vunpack.c.h.b16 %v152
    %v701 = vunpack.c.l.b16 %v153
    %v702 = vunpack.c.h.b16 %v153
    %v703 = vunpack.c.l.b16 %v154
    %v704 = vunpack.c.h.b16 %v154
    %v705 = vunpack.c.l.b16 %v155
    %v706 = vunpack.c.h.b16 %v155
    %v707 = vunpack.c.l.b16 %v156
    %v708 = vunpack.c.h.b16 %v156
    %v709 = vunpack.c.l.b16 %v157
    %v710 = vunpack.c.h.b16 %v157
    %v711 = vunpack.c.l.b16 %v158
    %v712 = vunpack.c.h.b16 %v158
    %v713 = vunpack.c.l.b16 %v159
    %v714 = vunpack.c.h.b16 %v159
    %v715 = vunpack.c.l.b16 %v160
    %v716 = vunpack.c.h.b16 %v160
    %v717 = vunpack.c.l.b16 %v161
    %v718 = vunpack.c.h.b16 %v161
    %v719 = vunpack.c.l.b16 %v162
    %v720 = vunpack.c.h.b16 %v162
    %v721 = vunpack.c.l.b16 %v163
    %v722 = vunpack.c.h.b16 %v163
    %v723 = vunpack.c.l.b16 %v164
    %v724 = vunpack.c.h.b16 %v164
    %v725 = vunpack.c.l.b16 %v165
    %v726 = vunpack.c.h.b16 %v165
    %v727 = vunpack.c.l.b16 %v166
    %v728 = vunpack.c.h.b16 %v166
    %v729 = vunpack.c.l.b16 %v167
    %v730 = vunpack.c.h.b16 %v167
    %v731 = vunpack.c.l.b16 %v168
    %v732 = vunpack.c.h.b16 %v168
    %v733 = vunpack.c.l.b16 %v169
    %v734 = vunpack.c.h.b16 %v169
    %v735 = vunpack.c.l.b16 %v170
    %v736 = vunpack.c.h.b16 %v170
    %v737 = vunpack.c.l.b16 %v171
    %v738 = vunpack.c.h.b16 %v171
    %v739 = vunpack.c.l.b16 %v172
    %v740 = vunpack.c.h.b16 %v172
    %v741 = vunpack.c.l.b16 %v173
    %v742 = vunpack.c.h.b16 %v173
    %v743 = vunpack.c.l.b16 %v174
    %v744 = vunpack.c.h.b16 %v174
    %v745 = vunpack.c.l.b16 %v175
    %v746 = vunpack.c.h.b16 %v175
    %v747 = vunpack.c.l.b16 %v176
    %v748 = vunpack.c.h.b16 %v176
    %v749 = vunpack.c.l.b16 %v177
    %v750 = vunpack.c.h.b16 %v177
    %v751 = vunpack.c.l.b16 %v178
    %v752 = vunpack.c.h.b16 %v178
    %v753 = vunpack.c.l.b16 %v179
    %v754 = vunpack.c.h.b16 %v179
    %v755 = vunpack.c.l.b16 %v180
    %v756 = vunpack.c.h.b16 %v180
    %v757 = vunpack.c.l.b16 %v181
    %v758 = vunpack.c.h.b16 %v181
    %v759 = vunpack.c.l.b16 %v182
    %v760 = vunpack.c.h.b16 %v182
    %v761 = vunpack.c.l.b16 %v183
    %v762 = vunpack.c.h.b16 %v183
    %v763 = vunpack.c.l.b16 %v184
    %v764 = vunpack.c.h.b16 %v184
    %v765 = vunpack.c.l.b16 %v185
    %v766 = vunpack.c.h.b16 %v185
    %v767 = vunpack.c.l.b16 %v186
    %v768 = vunpack.c.h.b16 %v186
    %v769 = vunpack.c.l.b16 %v187
    %v770 = vunpack.c.h.b16 %v187
    %v771 = vunpack.c.l.b16 %v188
    %v772 = vunpack.c.h.b16 %v188
    %v773 = vunpack.c.l.b16 %v189
    %v774 = vunpack.c.h.b16 %v189
    %v775 = vunpack.c.l.b16 %v190
    %v776 = vunpack.c.h.b16 %v190
    %v777 = vunpack.c.l.b16 %v191
    %v778 = vunpack.c.h.b16 %v191
    %v779 = vunpack.c.l.b16 %v192
    %v780 = vunpack.c.h.b16 %v192
    %v781 = vunpack.c.l.b16 %v193
    %v782 = vunpack.c.h.b16 %v193
    %v783 = vunpack.c.l.b16 %v194
    %v784 = vunpack.c.h.b16 %v194
    %v785 = vunpack.c.l.b16 %v195
    %v786 = vunpack.c.h.b16 %v195
    %v787 = vunpack.c.l.b16 %v196
    %v788 = vunpack.c.h.b16 %v196
    %v789 = vunpack.c.l.b16 %v197
    %v790 = vunpack.c.h.b16 %v197
    %v791 = vunpack.c.l.b16 %v198
    %v792 = vunpack.c.h.b16 %v198
    %v793 = vunpack.c.l.b16 %v199
    %v794 = vunpack.c.h.b16 %v199
    %v795 = vunpack.c.l.b16 %v200
    %v796 = vunpack.c.h.b16 %v200
    %v797 = vunpack.c.l.b16 %v201
    %v798 = vunpack.c.h.b16 %v201
    %v799 = vunpack.c.l.b16 %v202
    %v800 = vunpack.c.h.b16 %v202
    %v801 = vunpack.c.l.b16 %v203
    %v802 = vunpack.c.h.b16 %v203
    %v803 = vunpack.c.l.b16 %v204
    %v804 = vunpack.c.h.b16 %v204
    %v805 = vunpack.c.l.b16 %v205
    %v806 = vunpack.c.h.b16 %v205
    %v807 = vunpack.c.l.b16 %v206
    %v808 = vunpack.c.h.b16 %v206
    %v809 = vunpack.c.l.b16 %v207
    %v810 = vunpack.c.h.b16 %v207
    %v811 = vunpack.c.l.b16 %v208
    %v812 = vunpack.c.h.b16 %v208
    %v813 = vunpack.c.l.b16 %v209
    %v814 = vunpack.c.h.b16 %v209
    %v815 = vunpack.c.l.b16 %v210
    %v816 = vunpack.c.h.b16 %v210
    %v817 = vunpack.c.l.b16 %v211
    %v818 = vunpack.c.h.b16 %v211
    %v819 = vunpack.c.l.b16 %v212
    %v820 = vunpack.c.h.b16 %v212
    %v821 = vunpack.c.l.b16 %v213
    %v822 = vunpack.c.h.b16 %v213
    %v823 = vunpack.c.l.b16 %v214
    %v824 = vunpack.c.h.b16 %v214
    %v825 = vunpack.c.l.b16 %v215
    %v826 = vunpack.c.h.b16 %v215
    %v827 = vunpack.c.l.b16 %v216
    %v828 = vunpack.c.h.b16 %v216
    %v829 = vunpack.c.l.b16 %v217
    %v830 = vunpack.c.h.b16 %v217
    %v831 = vunpack.c.l.b16 %v218
    %v832 = vunpack.c.h.b16 %v218
    %v833 = vunpack.c.l.b16 %v219
    %v834 = vunpack.c.h.b16 %v219
    %v835 = vunpack.c.l.b16 %v220
    %v836 = vunpack.c.h.b16 %v220
    %v837 = vunpack.c.l.b16 %v221
    %v838 = vunpack.c.h.b16 %v221
    %v839 = vunpack.c.l.b16 %v222
    %v840 = vunpack.c.h.b16 %v222
    %v841 = vunpack.c.l.b16 %v223
    %v842 = vunpack.c.h.b16 %v223
    %v843 = vunpack.c.l.b16 %v224
    %v844 = vunpack.c.h.b16 %v224
    %v845 = vunpack.c.l.b16 %v225
    %v846 = vunpack.c.h.b16 %v225
    %v847 = vunpack.c.l.b16 %v226
    %v848 = vunpack.c.h.b16 %v226
    %v849 = vunpack.c.l.b16 %v227
    %v850 = vunpack.c.h.b16 %v227
    %v851 = vunpack.c.l.b16 %v228
    %v852 = vunpack.c.h.b16 %v228
    %v853 = vunpack.c.l.b16 %v229
    %v854 = vunpack.c.h.b16 %v229
    %v855 = vunpack.c.l.b16 %v230
    %v856 = vunpack.c.h.b16 %v230
    %v857 = vunpack.c.l.b16 %v231
    %v858 = vunpack.c.h.b16 %v231
    %v859 = vunpack.c.l.b16 %v232
    %v860 = vunpack.c.h.b16 %v232
    %v861 = vunpack.c.l.b16 %v233
    %v862 = vunpack.c.h.b16 %v233
    %v863 = vunpack.c.l.b16 %v234
    %v864 = vunpack.c.h.b16 %v234
    %v865 = vunpack.c.l.b16 %v235
    %v866 = vunpack.c.h.b16 %v235
    %v867 = vunpack.c.l.b16 %v236
    %v868 = vunpack.c.h.b16 %v236
    %v869 = vunpack.c.l.b16 %v237
    %v870 = vunpack.c.h.b16 %v237
    %v871 = vunpack.c.l.b16 %v238
    %v872 = vunpack.c.h.b16 %v238
    %v873 = vunpack.c.l.b16 %v239
    %v874 = vunpack.c.h.b16 %v239
    %v875 = vunpack.c.l.b16 %v240
    %v876 = vunpack.c.h.b16 %v240
    %v877 = vunpack.c.l.b16 %v241
    %v878 = vunpack.c.h.b16 %v241
    %v879 = vunpack.c.l.b16 %v242
    %v880 = vunpack.c.h.b16 %v242
    %v881 = vunpack.c.l.b16 %v243
    %v882 = vunpack.c.h.b16 %v243
    %v883 = vunpack.c.l.b16 %v244
    %v884 = vunpack.c.h.b16 %v244
    %v885 = vpack.c.b16 %v645, %v629
    %v886 = vpack.c.b16 %v646, %v630
    %v887 = vpack.c.b16 %v647, %v631
    %v888 = vpack.c.b16 %v648, %v632
    %v889 = vpack.c.b16 %v649, %v633
    %v890 = vpack.c.b16 %v650, %v634
    %v891 = vpack.c.b16 %v651, %v635
    %v892 = vpack.c.b16 %v652, %v636
    %v893 = vpack.c.b16 %v653, %v637
    %v894 = vpack.c.b16 %v654, %v638
    %v895 = vpack.c.b16 %v655, %v639
    %v896 = vpack.c.b16 %v656, %v640
    %v897 = vpack.c.b16 %v657, %v641
    %v898 = vpack.c.b16 %v658, %v642
    %v899 = vpack.c.b16 %v659, %v643
    %v900 = vpack.c.b16 %v660, %v644
    %v901 = vpack.c.b16 %v677, %v661
    %v902 = vpack.c.b16 %v678, %v662
    %v903 = vpack.c.b16 %v679, %v663
    %v904 = vpack.c.b16 %v680, %v664
    %v905 = vpack.c.b16 %v681, %v665
    %v906 = vpack.c.b16 %v682, %v666
    %v907 = vpack.c.b16 %v683, %v667
    %v908 = vpack.c.b16 %v684, %v668
    %v909 = vpack.c.b16 %v685, %v669
    %v910 = vpack.c.b16 %v686, %v670
    %v911 = vpack.c.b16 %v687, %v671
    %v912 = vpack.c.b16 %v688, %v672
    %v913 = vpack.c.b16 %v689, %v673
    %v914 = vpack.c.b16 %v690, %v674
    %v915 = vpack.c.b16 %v691, %v675
    %v916 = vpack.c.b16 %v692, %v676
    %v917 = vpack.c.b16 %v709, %v693
    %v918 = vpack.c.b16 %v710, %v694
    %v919 = vpack.c.b16 %v711, %v695
    %v920 = vpack.c.b16 %v712, %v696
    %v921 = vpack.c.b16 %v713, %v697
    %v922 = vpack.c.b16 %v714, %v698
    %v923 = vpack.c.b16 %v715, %v699
    %v924 = vpack.c.b16 %v716, %v700
    %v925 = vpack.c.b16 %v717, %v701
    %v926 = vpack.c.b16 %v718, %v702
    %v927 = vpack.c.b16 %v719, %v703
    %v928 = vpack.c.b16 %v720, %v704
    %v929 = vpack.c.b16 %v721, %v705
    %v930 = vpack.c.b16 %v722, %v706
    %v931 = vpack.c.b16 %v723, %v707
    %v932 = vpack.c.b16 %v724, %v708
    %v933 = vpack.c.b16 %v741, %v725
    %v934 = vpack.c.b16 %v742, %v726
    %v935 = vpack.c.b16 %v743, %v727
    %v936 = vpack.c.b16 %v744, %v728
    %v937 = vpack.c.b16 %v745, %v729
    %v938 = vpack.c.b16 %v746, %v730
    %v939 = vpack.c.b16 %v747, %v731
    %v940 = vpack.c.b16 %v748, %v732
    %v941 = vpack.c.b16 %v749, %v733
    %v942 = vpack.c.b16 %v750, %v734
    %v943 = vpack.c.b16 %v751, %v735
    %v944 = vpack.c.b16 %v752, %v736
    %v945 = vpack.c.b16 %v753, %v737
    %v946 = vpack.c.b16 %v754, %v738
    %v947 = vpack.c.b16 %v755, %v739
    %v948 = vpack.c.b16 %v756, %v740
    %v949 = vpack.c.b16 %v773, %v757
    %v950 = vpack.c.b16 %v774, %v758
    %v951 = vpack.c.b16 %v775, %v759
    %v952 = vpack.c.b16 %v776, %v760
    %v953 = vpack.c.b16 %v777, %v761
    %v954 = vpack.c.b16 %v778, %v762
    %v955 = vpack.c.b16 %v779, %v763
    %v956 = vpack.c.b16 %v780, %v764
    %v957 = vpack.c.b16 %v781, %v765
    %v958 = vpack.c.b16 %v782, %v766
    %v959 = vpack.c.b16 %v783, %v767
    %v960 = vpack.c.b16 %v784, %v768
    %v961 = vpack.c.b16 %v785, %v769
    %v962 = vpack.c.b16 %v786, %v770
    %v963 = vpack.c.b16 %v787, %v771
    %v964 = vpack.c.b16 %v788, %v772
    %v965 = vpack.c.b16 %v805, %v789
    %v966 = vpack.c.b16 %v806, %v790
    %v967 = vpack.c.b16 %v807, %v791
    %v968 = vpack.c.b16 %v808, %v792
    %v969 = vpack.c.b16 %v809, %v793
    %v970 = vpack.c.b16 %v810, %v794
    %v971 = vpack.c.b16 %v811, %v795
    %v972 = vpack.c.b16 %v812, %v796
    %v973 = vpack.c.b16 %v813, %v797
    %v974 = vpack.c.b16 %v814, %v798
    %v975 = vpack.c.b16 %v815, %v799
    %v976 = vpack.c.b16 %v816, %v800
    %v977 = vpack.c.b16 %v817, %v801
    %v978 = vpack.c.b16 %v818, %v802
    %v979 = vpack.c.b16 %v819, %v803
    %v980 = vpack.c.b16 %v820, %v804
    %v981 = vpack.c.b16 %v837, %v821
    %v982 = vpack.c.b16 %v838, %v822
    %v983 = vpack.c.b16 %v839, %v823
    %v984 = vpack.c.b16 %v840, %v824
    %v985 = vpack.c.b16 %v841, %v825
    %v986 = vpack.c.b16 %v842, %v826
    %v987 = vpack.c.b16 %v843, %v827
    %v988 = vpack.c.b16 %v844, %v828
    %v989 = vpack.c.b16 %v845, %v829
    %v990 = vpack.c.b16 %v846, %v830
    %v991 = vpack.c.b16 %v847, %v831
    %v992 = vpack.c.b16 %v848, %v832
    %v993 = vpack.c.b16 %v849, %v833
    %v994 = vpack.c.b16 %v850, %v834
    %v995 = vpack.c.b16 %v851, %v835
    %v996 = vpack.c.b16 %v852, %v836
    %v997 = vpack.c.b16 %v869, %v853
    %v998 = vpack.c.b16 %v870, %v854
    %v999 = vpack.c.b16 %v871, %v855
    %v1000 = vpack.c.b16 %v872, %v856
    %v1001 = vpack.c.b16 %v873, %v857
    %v1002 = vpack.c.b16 %v874, %v858
    %v1003 = vpack.c.b16 %v875, %v859
    %v1004 = vpack.c.b16 %v876, %v860
    %v1005 = vpack.c.b16 %v877, %v861
    %v1006 = vpack.c.b16 %v878, %v862
    %v1007 = vpack.c.b16 %v879, %v863
    %v1008 = vpack.c.b16 %v880, %v864
    %v1009 = vpack.c.b16 %v881, %v865
    %v1010 = vpack.c.b16 %v882, %v866
    %v1011 = vpack.c.b16 %v883, %v867
    %v1012 = vpack.c.b16 %v884, %v868
    %v1397 = vunpack.c.l.b16 %v245
    %v1398 = vunpack.c.h.b16 %v245
    %v1399 = vunpack.c.l.b16 %v246
    %v1400 = vunpack.c.h.b16 %v246
    %v1401 = vunpack.c.l.b16 %v247
    %v1402 = vunpack.c.h.b16 %v247
    %v1403 = vunpack.c.l.b16 %v248
    %v1404 = vunpack.c.h.b16 %v248
    %v1405 = vunpack.c.l.b16 %v249
    %v1406 = vunpack.c.h.b16 %v249
    %v1407 = vunpack.c.l.b16 %v250
    %v1408 = vunpack.c.h.b16 %v250
    %v1409 = vunpack.c.l.b16 %v251
    %v1410 = vunpack.c.h.b16 %v251
    %v1411 = vunpack.c.l.b16 %v252
    %v1412 = vunpack.c.h.b16 %v252
    %v1413 = vunpack.c.l.b16 %v253
    %v1414 = vunpack.c.h.b16 %v253
    %v1415 = vunpack.c.l.b16 %v254
    %v1416 = vunpack.c.h.b16 %v254
    %v1417 = vunpack.c.l.b16 %v255
    %v1418 = vunpack.c.h.b16 %v255
    %v1419 = vunpack.c.l.b16 %v256
    %v1420 = vunpack.c.h.b16 %v256
    %v1421 = vunpack.c.l.b16 %v257
    %v1422 = vunpack.c.h.b16 %v257
    %v1423 = vunpack.c.l.b16 %v258
    %v1424 = vunpack.c.h.b16 %v258
    %v1425 = vunpack.c.l.b16 %v259
    %v1426 = vunpack.c.h.b16 %v259
    %v1427 = vunpack.c.l.b16 %v260
    %v1428 = vunpack.c.h.b16 %v260
    %v1429 = vunpack.c.l.b16 %v261
    %v1430 = vunpack.c.h.b16 %v261
    %v1431 = vunpack.c.l.b16 %v262
    %v1432 = vunpack.c.h.b16 %v262
    %v1433 = vunpack.c.l.b16 %v263
    %v1434 = vunpack.c.h.b16 %v263
    %v1435 = vunpack.c.l.b16 %v264
    %v1436 = vunpack.c.h.b16 %v264
    %v1437 = vunpack.c.l.b16 %v265
    %v1438 = vunpack.c.h.b16 %v265
    %v1439 = vunpack.c.l.b16 %v266
    %v1440 = vunpack.c.h.b16 %v266
    %v1441 = vunpack.c.l.b16 %v267
    %v1442 = vunpack.c.h.b16 %v267
    %v1443 = vunpack.c.l.b16 %v268
    %v1444 = vunpack.c.h.b16 %v268
    %v1445 = vunpack.c.l.b16 %v269
    %v1446 = vunpack.c.h.b16 %v269
    %v1447 = vunpack.c.l.b16 %v270
    %v1448 = vunpack.c.h.b16 %v270
    %v1449 = vunpack.c.l.b16 %v271
    %v1450 = vunpack.c.h.b16 %v271
    %v1451 = vunpack.c.l.b16 %v272
    %v1452 = vunpack.c.h.b16 %v272
    %v1453 = vunpack.c.l.b16 %v273
    %v1454 = vunpack.c.h.b16 %v273
    %v1455 = vunpack.c.l.b16 %v274
    %v1456 = vunpack.c.h.b16 %v274
    %v1457 = vunpack.c.l.b16 %v275
    %v1458 = vunpack.c.h.b16 %v275
    %v1459 = vunpack.c.l.b16 %v276
    %v1460 = vunpack.c.h.b16 %v276
    %v1461 = vunpack.c.l.b16 %v277
    %v1462 = vunpack.c.h.b16 %v277
    %v1463 = vunpack.c.l.b16 %v278
    %v1464 = vunpack.c.h.b16 %v278
    %v1465 = vunpack.c.l.b16 %v279
    %v1466 = vunpack.c.h.b16 %v279
    %v1467 = vunpack.c.l.b16 %v280
    %v1468 = vunpack.c.h.b16 %v280
    %v1469 = vunpack.c.l.b16 %v281
    %v1470 = vunpack.c.h.b16 %v281
    %v1471 = vunpack.c.l.b16 %v282
    %v1472 = vunpack.c.h.b16 %v282
    %v1473 = vunpack.c.l.b16 %v283
    %v1474 = vunpack.c.h.b16 %v283
    %v1475 = vunpack.c.l.b16 %v284
    %v1476 = vunpack.c.h.b16 %v284
    %v1477 = vunpack.c.l.b16 %v285
    %v1478 = vunpack.c.h.b16 %v285
    %v1479 = vunpack.c.l.b16 %v286
    %v1480 = vunpack.c.h.b16 %v286
    %v1481 = vunpack.c.l.b16 %v287
    %v1482 = vunpack.c.h.b16 %v287
    %v1483 = vunpack.c.l.b16 %v288
    %v1484 = vunpack.c.h.b16 %v288
    %v1485 = vunpack.c.l.b16 %v289
    %v1486 = vunpack.c.h.b16 %v289
    %v1487 = vunpack.c.l.b16 %v290
    %v1488 = vunpack.c.h.b16 %v290
    %v1489 = vunpack.c.l.b16 %v291
    %v1490 = vunpack.c.h.b16 %v291
    %v1491 = vunpack.c.l.b16 %v292
    %v1492 = vunpack.c.h.b16 %v292
    %v1493 = vunpack.c.l.b16 %v293
    %v1494 = vunpack.c.h.b16 %v293
    %v1495 = vunpack.c.l.b16 %v294
    %v1496 = vunpack.c.h.b16 %v294
    %v1497 = vunpack.c.l.b16 %v295
    %v1498 = vunpack.c.h.b16 %v295
    %v1499 = vunpack.c.l.b16 %v296
    %v1500 = vunpack.c.h.b16 %v296
    %v1501 = vunpack.c.l.b16 %v297
    %v1502 = vunpack.c.h.b16 %v297
    %v1503 = vunpack.c.l.b16 %v298
    %v1504 = vunpack.c.h.b16 %v298
    %v1505 = vunpack.c.l.b16 %v299
    %v1506 = vunpack.c.h.b16 %v299
    %v1507 = vunpack.c.l.b16 %v300
    %v1508 = vunpack.c.h.b16 %v300
    %v1509 = vunpack.c.l.b16 %v301
    %v1510 = vunpack.c.h.b16 %v301
    %v1511 = vunpack.c.l.b16 %v302
    %v1512 = vunpack.c.h.b16 %v302
    %v1513 = vunpack.c.l.b16 %v303
    %v1514 = vunpack.c.h.b16 %v303
    %v1515 = vunpack.c.l.b16 %v304
    %v1516 = vunpack.c.h.b16 %v304
    %v1517 = vunpack.c.l.b16 %v305
    %v1518 = vunpack.c.h.b16 %v305
    %v1519 = vunpack.c.l.b16 %v306
    %v1520 = vunpack.c.h.b16 %v306
    %v1521 = vunpack.c.l.b16 %v307
    %v1522 = vunpack.c.h.b16 %v307
    %v1523 = vunpack.c.l.b16 %v308
    %v1524 = vunpack.c.h.b16 %v308
    %v1525 = vunpack.c.l.b16 %v309
    %v1526 = vunpack.c.h.b16 %v309
    %v1527 = vunpack.c.l.b16 %v310
    %v1528 = vunpack.c.h.b16 %v310
    %v1529 = vunpack.c.l.b16 %v311
    %v1530 = vunpack.c.h.b16 %v311
    %v1531 = vunpack.c.l.b16 %v312
    %v1532 = vunpack.c.h.b16 %v312
    %v1533 = vunpack.c.l.b16 %v313
    %v1534 = vunpack.c.h.b16 %v313
    %v1535 = vunpack.c.l.b16 %v314
    %v1536 = vunpack.c.h.b16 %v314
    %v1537 = vunpack.c.l.b16 %v315
    %v1538 = vunpack.c.h.b16 %v315
    %v1539 = vunpack.c.l.b16 %v316
    %v1540 = vunpack.c.h.b16 %v316
    %v1541 = vunpack.c.l.b16 %v317
    %v1542 = vunpack.c.h.b16 %v317
    %v1543 = vunpack.c.l.b16 %v318
    %v1544 = vunpack.c.h.b16 %v318
    %v1545 = vunpack.c.l.b16 %v319
    %v1546 = vunpack.c.h.b16 %v319
    %v1547 = vunpack.c.l.b16 %v320
    %v1548 = vunpack.c.h.b16 %v320
    %v1549 = vunpack.c.l.b16 %v321
    %v1550 = vunpack.c.h.b16 %v321
    %v1551 = vunpack.c.l.b16 %v322
    %v1552 = vunpack.c.h.b16 %v322
    %v1553 = vunpack.c.l.b16 %v323
    %v1554 = vunpack.c.h.b16 %v323
    %v1555 = vunpack.c.l.b16 %v324
    %v1556 = vunpack.c.h.b16 %v324
    %v1557 = vunpack.c.l.b16 %v325
    %v1558 = vunpack.c.h.b16 %v325
    %v1559 = vunpack.c.l.b16 %v326
    %v1560 = vunpack.c.h.b16 %v326
    %v1561 = vunpack.c.l.b16 %v327
    %v1562 = vunpack.c.h.b16 %v327
    %v1563 = vunpack.c.l.b16 %v328
    %v1564 = vunpack.c.h.b16 %v328
    %v1565 = vunpack.c.l.b16 %v329
    %v1566 = vunpack.c.h.b16 %v329
    %v1567 = vunpack.c.l.b16 %v330
    %v1568 = vunpack.c.h.b16 %v330
    %v1569 = vunpack.c.l.b16 %v331
    %v1570 = vunpack.c.h.b16 %v331
    %v1571 = vunpack.c.l.b16 %v332
    %v1572 = vunpack.c.h.b16 %v332
    %v1573 = vunpack.c.l.b16 %v333
    %v1574 = vunpack.c.h.b16 %v333
    %v1575 = vunpack.c.l.b16 %v334
    %v1576 = vunpack.c.h.b16 %v334
    %v1577 = vunpack.c.l.b16 %v335
    %v1578 = vunpack.c.h.b16 %v335
    %v1579 = vunpack.c.l.b16 %v336
    %v1580 = vunpack.c.h.b16 %v336
    %v1581 = vunpack.c.l.b16 %v337
    %v1582 = vunpack.c.h.b16 %v337
    %v1583 = vunpack.c.l.b16 %v338
    %v1584 = vunpack.c.h.b16 %v338
    %v1585 = vunpack.c.l.b16 %v339
    %v1586 = vunpack.c.h.b16 %v339
    %v1587 = vunpack.c.l.b16 %v340
    %v1588 = vunpack.c.h.b16 %v340
    %v1589 = vunpack.c.l.b16 %v341
    %v1590 = vunpack.c.h.b16 %v341
    %v1591 = vunpack.c.l.b16 %v342
    %v1592 = vunpack.c.h.b16 %v342
    %v1593 = vunpack.c.l.b16 %v343
    %v1594 = vunpack.c.h.b16 %v343
    %v1595 = vunpack.c.l.b16 %v344
    %v1596 = vunpack.c.h.b16 %v344
    %v1597 = vunpack.c.l.b16 %v345
    %v1598 = vunpack.c.h.b16 %v345
    %v1599 = vunpack.c.l.b16 %v346
    %v1600 = vunpack.c.h.b16 %v346
    %v1601 = vunpack.c.l.b16 %v347
    %v1602 = vunpack.c.h.b16 %v347
    %v1603 = vunpack.c.l.b16 %v348
    %v1604 = vunpack.c.h.b16 %v348
    %v1605 = vunpack.c.l.b16 %v349
    %v1606 = vunpack.c.h.b16 %v349
    %v1607 = vunpack.c.l.b16 %v350
    %v1608 = vunpack.c.h.b16 %v350
    %v1609 = vunpack.c.l.b16 %v351
    %v1610 = vunpack.c.h.b16 %v351
    %v1611 = vunpack.c.l.b16 %v352
    %v1612 = vunpack.c.h.b16 %v352
    %v1613 = vunpack.c.l.b16 %v353
    %v1614 = vunpack.c.h.b16 %v353
    %v1615 = vunpack.c.l.b16 %v354
    %v1616 = vunpack.c.h.b16 %v354
    %v1617 = vunpack.c.l.b16 %v355
    %v1618 = vunpack.c.h.b16 %v355
    %v1619 = vunpack.c.l.b16 %v356
    %v1620 = vunpack.c.h.b16 %v356
    %v1621 = vunpack.c.l.b16 %v357
    %v1622 = vunpack.c.h.b16 %v357
    %v1623 = vunpack.c.l.b16 %v358
    %v1624 = vunpack.c.h.b16 %v358
    %v1625 = vunpack.c.l.b16 %v359
    %v1626 = vunpack.c.h.b16 %v359
    %v1627 = vunpack.c.l.b16 %v360
    %v1628 = vunpack.c.h.b16 %v360
    %v1629 = vunpack.c.l.b16 %v361
    %v1630 = vunpack.c.h.b16 %v361
    %v1631 = vunpack.c.l.b16 %v362
    %v1632 = vunpack.c.h.b16 %v362
    %v1633 = vunpack.c.l.b16 %v363
    %v1634 = vunpack.c.h.b16 %v363
    %v1635 = vunpack.c.l.b16 %v364
    %v1636 = vunpack.c.h.b16 %v364
    %v1637 = vunpack.c.l.b16 %v365
    %v1638 = vunpack.c.h.b16 %v365
    %v1639 = vunpack.c.l.b16 %v366
    %v1640 = vunpack.c.h.b16 %v366
    %v1641 = vunpack.c.l.b16 %v367
    %v1642 = vunpack.c.h.b16 %v367
    %v1643 = vunpack.c.l.b16 %v368
    %v1644 = vunpack.c.h.b16 %v368
    %v1645 = vunpack.c.l.b16 %v369
    %v1646 = vunpack.c.h.b16 %v369
    %v1647 = vunpack.c.l.b16 %v370
    %v1648 = vunpack.c.h.b16 %v370
    %v1649 = vunpack.c.l.b16 %v371
    %v1650 = vunpack.c.h.b16 %v371
    %v1651 = vunpack.c.l.b16 %v372
    %v1652 = vunpack.c.h.b16 %v372
    %v1653 = vunpack.c.l.b16 %v373
    %v1654 = vunpack.c.h.b16 %v373
    %v1655 = vunpack.c.l.b16 %v374
    %v1656 = vunpack.c.h.b16 %v374
    %v1657 = vunpack.c.l.b16 %v375
    %v1658 = vunpack.c.h.b16 %v375
    %v1659 = vunpack.c.l.b16 %v376
    %v1660 = vunpack.c.h.b16 %v376
    %v1661 = vunpack.c.l.b16 %v377
    %v1662 = vunpack.c.h.b16 %v377
    %v1663 = vunpack.c.l.b16 %v378
    %v1664 = vunpack.c.h.b16 %v378
    %v1665 = vunpack.c.l.b16 %v379
    %v1666 = vunpack.c.h.b16 %v379
    %v1667 = vunpack.c.l.b16 %v380
    %v1668 = vunpack.c.h.b16 %v380
    %v1669 = vunpack.c.l.b16 %v381
    %v1670 = vunpack.c.h.b16 %v381
    %v1671 = vunpack.c.l.b16 %v382
    %v1672 = vunpack.c.h.b16 %v382
    %v1673 = vunpack.c.l.b16 %v383
    %v1674 = vunpack.c.h.b16 %v383
    %v1675 = vunpack.c.l.b16 %v384
    %v1676 = vunpack.c.h.b16 %v384
    %v1677 = vunpack.c.l.b16 %v385
    %v1678 = vunpack.c.h.b16 %v385
    %v1679 = vunpack.c.l.b16 %v386
    %v1680 = vunpack.c.h.b16 %v386
    %v1681 = vunpack.c.l.b16 %v387
    %v1682 = vunpack.c.h.b16 %v387
    %v1683 = vunpack.c.l.b16 %v388
    %v1684 = vunpack.c.h.b16 %v388
    %v1685 = vunpack.c.l.b16 %v389
    %v1686 = vunpack.c.h.b16 %v389
    %v1687 = vunpack.c.l.b16 %v390
    %v1688 = vunpack.c.h.b16 %v390
    %v1689 = vunpack.c.l.b16 %v391
    %v1690 = vunpack.c.h.b16 %v391
    %v1691 = vunpack.c.l.b16 %v392
    %v1692 = vunpack.c.h.b16 %v392
    %v1693 = vunpack.c.l.b16 %v393
    %v1694 = vunpack.c.h.b16 %v393
    %v1695 = vunpack.c.l.b16 %v394
    %v1696 = vunpack.c.h.b16 %v394
    %v1697 = vunpack.c.l.b16 %v395
    %v1698 = vunpack.c.h.b16 %v395
    %v1699 = vunpack.c.l.b16 %v396
    %v1700 = vunpack.c.h.b16 %v396
    %v1701 = vunpack.c.l.b16 %v397
    %v1702 = vunpack.c.h.b16 %v397
    %v1703 = vunpack.c.l.b16 %v398
    %v1704 = vunpack.c.h.b16 %v398
    %v1705 = vunpack.c.l.b16 %v399
    %v1706 = vunpack.c.h.b16 %v399
    %v1707 = vunpack.c.l.b16 %v400
    %v1708 = vunpack.c.h.b16 %v400
    %v1709 = vunpack.c.l.b16 %v401
    %v1710 = vunpack.c.h.b16 %v401
    %v1711 = vunpack.c.l.b16 %v402
    %v1712 = vunpack.c.h.b16 %v402
    %v1713 = vunpack.c.l.b16 %v403
    %v1714 = vunpack.c.h.b16 %v403
    %v1715 = vunpack.c.l.b16 %v404
    %v1716 = vunpack.c.h.b16 %v404
    %v1717 = vunpack.c.l.b16 %v405
    %v1718 = vunpack.c.h.b16 %v405
    %v1719 = vunpack.c.l.b16 %v406
    %v1720 = vunpack.c.h.b16 %v406
    %v1721 = vunpack.c.l.b16 %v407
    %v1722 = vunpack.c.h.b16 %v407
    %v1723 = vunpack.c.l.b16 %v408
    %v1724 = vunpack.c.h.b16 %v408
    %v1725 = vunpack.c.l.b16 %v409
    %v1726 = vunpack.c.h.b16 %v409
    %v1727 = vunpack.c.l.b16 %v410
    %v1728 = vunpack.c.h.b16 %v410
    %v1729 = vunpack.c.l.b16 %v411
    %v1730 = vunpack.c.h.b16 %v411
    %v1731 = vunpack.c.l.b16 %v412
    %v1732 = vunpack.c.h.b16 %v412
    %v1733 = vunpack.c.l.b16 %v413
    %v1734 = vunpack.c.h.b16 %v413
    %v1735 = vunpack.c.l.b16 %v414
    %v1736 = vunpack.c.h.b16 %v414
    %v1737 = vunpack.c.l.b16 %v415
    %v1738 = vunpack.c.h.b16 %v415
    %v1739 = vunpack.c.l.b16 %v416
    %v1740 = vunpack.c.h.b16 %v416
    %v1741 = vunpack.c.l.b16 %v417
    %v1742 = vunpack.c.h.b16 %v417
    %v1743 = vunpack.c.l.b16 %v418
    %v1744 = vunpack.c.h.b16 %v418
    %v1745 = vunpack.c.l.b16 %v419
    %v1746 = vunpack.c.h.b16 %v419
    %v1747 = vunpack.c.l.b16 %v420
    %v1748 = vunpack.c.h.b16 %v420
    %v1749 = vunpack.c.l.b16 %v421
    %v1750 = vunpack.c.h.b16 %v421
    %v1751 = vunpack.c.l.b16 %v422
    %v1752 = vunpack.c.h.b16 %v422
    %v1753 = vunpack.c.l.b16 %v423
    %v1754 = vunpack.c.h.b16 %v423
    %v1755 = vunpack.c.l.b16 %v424
    %v1756 = vunpack.c.h.b16 %v424
    %v1757 = vunpack.c.l.b16 %v425
    %v1758 = vunpack.c.h.b16 %v425
    %v1759 = vunpack.c.l.b16 %v426
    %v1760 = vunpack.c.h.b16 %v426
    %v1761 = vunpack.c.l.b16 %v427
    %v1762 = vunpack.c.h.b16 %v427
    %v1763 = vunpack.c.l.b16 %v428
    %v1764 = vunpack.c.h.b16 %v428
    %v1765 = vunpack.c.l.b16 %v429
    %v1766 = vunpack.c.h.b16 %v429
    %v1767 = vunpack.c.l.b16 %v430
    %v1768 = vunpack.c.h.b16 %v430
    %v1769 = vunpack.c.l.b16 %v431
    %v1770 = vunpack.c.h.b16 %v431
    %v1771 = vunpack.c.l.b16 %v432
    %v1772 = vunpack.c.h.b16 %v432
    %v1773 = vunpack.c.l.b16 %v433
    %v1774 = vunpack.c.h.b16 %v433
    %v1775 = vunpack.c.l.b16 %v434
    %v1776 = vunpack.c.h.b16 %v434
    %v1777 = vunpack.c.l.b16 %v435
    %v1778 = vunpack.c.h.b16 %v435
    %v1779 = vunpack.c.l.b16 %v436
    %v1780 = vunpack.c.h.b16 %v436
    %v1781 = vunpack.c.l.b16 %v437
    %v1782 = vunpack.c.h.b16 %v437
    %v1783 = vunpack.c.l.b16 %v438
    %v1784 = vunpack.c.h.b16 %v438
    %v1785 = vunpack.c.l.b16 %v439
    %v1786 = vunpack.c.h.b16 %v439
    %v1787 = vunpack.c.l.b16 %v440
    %v1788 = vunpack.c.h.b16 %v440
    %v1789 = vunpack.c.l.b16 %v441
    %v1790 = vunpack.c.h.b16 %v441
    %v1791 = vunpack.c.l.b16 %v442
    %v1792 = vunpack.c.h.b16 %v442
    %v1793 = vunpack.c.l.b16 %v443
    %v1794 = vunpack.c.h.b16 %v443
    %v1795 = vunpack.c.l.b16 %v444
    %v1796 = vunpack.c.h.b16 %v444
    %v1797 = vunpack.c.l.b16 %v445
    %v1798 = vunpack.c.h.b16 %v445
    %v1799 = vunpack.c.l.b16 %v446
    %v1800 = vunpack.c.h.b16 %v446
    %v1801 = vunpack.c.l.b16 %v447
    %v1802 = vunpack.c.h.b16 %v447
    %v1803 = vunpack.c.l.b16 %v448
    %v1804 = vunpack.c.h.b16 %v448
    %v1805 = vunpack.c.l.b16 %v449
    %v1806 = vunpack.c.h.b16 %v449
    %v1807 = vunpack.c.l.b16 %v450
    %v1808 = vunpack.c.h.b16 %v450
    %v1809 = vunpack.c.l.b16 %v451
    %v1810 = vunpack.c.h.b16 %v451
    %v1811 = vunpack.c.l.b16 %v452
    %v1812 = vunpack.c.h.b16 %v452
    %v1813 = vunpack.c.l.b16 %v453
    %v1814 = vunpack.c.h.b16 %v453
    %v1815 = vunpack.c.l.b16 %v454
    %v1816 = vunpack.c.h.b16 %v454
    %v1817 = vunpack.c.l.b16 %v455
    %v1818 = vunpack.c.h.b16 %v455
    %v1819 = vunpack.c.l.b16 %v456
    %v1820 = vunpack.c.h.b16 %v456
    %v1821 = vunpack.c.l.b16 %v457
    %v1822 = vunpack.c.h.b16 %v457
    %v1823 = vunpack.c.l.b16 %v458
    %v1824 = vunpack.c.h.b16 %v458
    %v1825 = vunpack.c.l.b16 %v459
    %v1826 = vunpack.c.h.b16 %v459
    %v1827 = vunpack.c.l.b16 %v460
    %v1828 = vunpack.c.h.b16 %v460
    %v1829 = vunpack.c.l.b16 %v461
    %v1830 = vunpack.c.h.b16 %v461
    %v1831 = vunpack.c.l.b16 %v462
    %v1832 = vunpack.c.h.b16 %v462
    %v1833 = vunpack.c.l.b16 %v463
    %v1834 = vunpack.c.h.b16 %v463
    %v1835 = vunpack.c.l.b16 %v464
    %v1836 = vunpack.c.h.b16 %v464
    %v1837 = vunpack.c.l.b16 %v465
    %v1838 = vunpack.c.h.b16 %v465
    %v1839 = vunpack.c.l.b16 %v466
    %v1840 = vunpack.c.h.b16 %v466
    %v1841 = vunpack.c.l.b16 %v467
    %v1842 = vunpack.c.h.b16 %v467
    %v1843 = vunpack.c.l.b16 %v468
    %v1844 = vunpack.c.h.b16 %v468
    %v1845 = vunpack.c.l.b16 %v469
    %v1846 = vunpack.c.h.b16 %v469
    %v1847 = vunpack.c.l.b16 %v470
    %v1848 = vunpack.c.h.b16 %v470
    %v1849 = vunpack.c.l.b16 %v471
    %v1850 = vunpack.c.h.b16 %v471
    %v1851 = vunpack.c.l.b16 %v472
    %v1852 = vunpack.c.h.b16 %v472
    %v1853 = vunpack.c.l.b16 %v473
    %v1854 = vunpack.c.h.b16 %v473
    %v1855 = vunpack.c.l.b16 %v474
    %v1856 = vunpack.c.h.b16 %v474
    %v1857 = vunpack.c.l.b16 %v475
    %v1858 = vunpack.c.h.b16 %v475
    %v1859 = vunpack.c.l.b16 %v476
    %v1860 = vunpack.c.h.b16 %v476
    %v1861 = vunpack.c.l.b16 %v477
    %v1862 = vunpack.c.h.b16 %v477
    %v1863 = vunpack.c.l.b16 %v478
    %v1864 = vunpack.c.h.b16 %v478
    %v1865 = vunpack.c.l.b16 %v479
    %v1866 = vunpack.c.h.b16 %v479
    %v1867 = vunpack.c.l.b16 %v480
    %v1868 = vunpack.c.h.b16 %v480
    %v1869 = vunpack.c.l.b16 %v481
    %v1870 = vunpack.c.h.b16 %v481
    %v1871 = vunpack.c.l.b16 %v482
    %v1872 = vunpack.c.h.b16 %v482
    %v1873 = vunpack.c.l.b16 %v483
    %v1874 = vunpack.c.h.b16 %v483
    %v1875 = vunpack.c.l.b16 %v484
    %v1876 = vunpack.c.h.b16 %v484
    %v1877 = vunpack.c.l.b16 %v485
    %v1878 = vunpack.c.h.b16 %v485
    %v1879 = vunpack.c.l.b16 %v486
    %v1880 = vunpack.c.h.b16 %v486
    %v1881 = vunpack.c.l.b16 %v487
    %v1882 = vunpack.c.h.b16 %v487
    %v1883 = vunpack.c.l.b16 %v488
    %v1884 = vunpack.c.h.b16 %v488
    %v1885 = vunpack.c.l.b16 %v489
    %v1886 = vunpack.c.h.b16 %v489
    %v1887 = vunpack.c.l.b16 %v490
    %v1888 = vunpack.c.h.b16 %v490
    %v1889 = vunpack.c.l.b16 %v491
    %v1890 = vunpack.c.h.b16 %v491
    %v1891 = vunpack.c.l.b16 %v492
    %v1892 = vunpack.c.h.b16 %v492
    %v1893 = vunpack.c.l.b16 %v493
    %v1894 = vunpack.c.h.b16 %v493
    %v1895 = vunpack.c.l.b16 %v494
    %v1896 = vunpack.c.h.b16 %v494
    %v1897 = vunpack.c.l.b16 %v495
    %v1898 = vunpack.c.h.b16 %v495
    %v1899 = vunpack.c.l.b16 %v496
    %v1900 = vunpack.c.h.b16 %v496
    %v1901 = vunpack.c.l.b16 %v497
    %v1902 = vunpack.c.h.b16 %v497
    %v1903 = vunpack.c.l.b16 %v498
    %v1904 = vunpack.c.h.b16 %v498
    %v1905 = vunpack.c.l.b16 %v499
    %v1906 = vunpack.c.h.b16 %v499
    %v1907 = vunpack.c.l.b16 %v500
    %v1908 = vunpack.c.h.b16 %v500
    %v1909 = vpack.c.b16 %v1399, %v1397
    %v1910 = vpack.c.b16 %v1400, %v1398
    %v1911 = vpack.c.b16 %v1403, %v1401
    %v1912 = vpack.c.b16 %v1404, %v1402
    %v1913 = vpack.c.b16 %v1407, %v1405
    %v1914 = vpack.c.b16 %v1408, %v1406
    %v1915 = vpack.c.b16 %v1411, %v1409
    %v1916 = vpack.c.b16 %v1412, %v1410
    %v1917 = vpack.c.b16 %v1415, %v1413
    %v1918 = vpack.c.b16 %v1416, %v1414
    %v1919 = vpack.c.b16 %v1419, %v1417
    %v1920 = vpack.c.b16 %v1420, %v1418
    %v1921 = vpack.c.b16 %v1423, %v1421
    %v1922 = vpack.c.b16 %v1424, %v1422
    %v1923 = vpack.c.b16 %v1427, %v1425
    %v1924 = vpack.c.b16 %v1428, %v1426
    %v1925 = vpack.c.b16 %v1431, %v1429
    %v1926 = vpack.c.b16 %v1432, %v1430
    %v1927 = vpack.c.b16 %v1435, %v1433
    %v1928 = vpack.c.b16 %v1436, %v1434
    %v1929 = vpack.c.b16 %v1439, %v1437
    %v1930 = vpack.c.b16 %v1440, %v1438
    %v1931 = vpack.c.b16 %v1443, %v1441
    %v1932 = vpack.c.b16 %v1444, %v1442
    %v1933 = vpack.c.b16 %v1447, %v1445
    %v1934 = vpack.c.b16 %v1448, %v1446
    %v1935 = vpack.c.b16 %v1451, %v1449
    %v1936 = vpack.c.b16 %v1452, %v1450
    %v1937 = vpack.c.b16 %v1455, %v1453
    %v1938 = vpack.c.b16 %v1456, %v1454
    %v1939 = vpack.c.b16 %v1459, %v1457
    %v1940 = vpack.c.b16 %v1460, %v1458
    %v1941 = vpack.c.b16 %v1463, %v1461
    %v1942 = vpack.c.b16 %v1464, %v1462
    %v1943 = vpack.c.b16 %v1467, %v1465
    %v1944 = vpack.c.b16 %v1468, %v1466
    %v1945 = vpack.c.b16 %v1471, %v1469
    %v1946 = vpack.c.b16 %v1472, %v1470
    %v1947 = vpack.c.b16 %v1475, %v1473
    %v1948 = vpack.c.b16 %v1476, %v1474
    %v1949 = vpack.c.b16 %v1479, %v1477
    %v1950 = vpack.c.b16 %v1480, %v1478
    %v1951 = vpack.c.b16 %v1483, %v1481
    %v1952 = vpack.c.b16 %v1484, %v1482
    %v1953 = vpack.c.b16 %v1487, %v1485
    %v1954 = vpack.c.b16 %v1488, %v1486
    %v1955 = vpack.c.b16 %v1491, %v1489
    %v1956 = vpack.c.b16 %v1492, %v1490
    %v1957 = vpack.c.b16 %v1495, %v1493
    %v1958 = vpack.c.b16 %v1496, %v1494
    %v1959 = vpack.c.b16 %v1499, %v1497
    %v1960 = vpack.c.b16 %v1500, %v1498
    %v1961 = vpack.c.b16 %v1503, %v1501
    %v1962 = vpack.c.b16 %v1504, %v1502
    %v1963 = vpack.c.b16 %v1507, %v1505
    %v1964 = vpack.c.b16 %v1508, %v1506
    %v1965 = vpack.c.b16 %v1511, %v1509
    %v1966 = vpack.c.b16 %v1512, %v1510
    %v1967 = vpack.c.b16 %v1515, %v1513
    %v1968 = vpack.c.b16 %v1516, %v1514
    %v1969 = vpack.c.b16 %v1519, %v1517
    %v1970 = vpack.c.b16 %v1520, %v1518
    %v1971 = vpack.c.b16 %v1523, %v1521
    %v1972 = vpack.c.b16 %v1524, %v1522
    %v1973 = vpack.c.b16 %v1527, %v1525
    %v1974 = vpack.c.b16 %v1528, %v1526
    %v1975 = vpack.c.b16 %v1531, %v1529
    %v1976 = vpack.c.b16 %v1532, %v1530
    %v1977 = vpack.c.b16 %v1535, %v1533
    %v1978 = vpack.c.b16 %v1536, %v1534
    %v1979 = vpack.c.b16 %v1539, %v1537
    %v1980 = vpack.c.b16 %v1540, %v1538
    %v1981 = vpack.c.b16 %v1543, %v1541
    %v1982 = vpack.c.b16 %v1544, %v1542
    %v1983 = vpack.c.b16 %v1547, %v1545
    %v1984 = vpack.c.b16 %v1548, %v1546
    %v1985 = vpack.c.b16 %v1551, %v1549
    %v1986 = vpack.c.b16 %v1552, %v1550
    %v1987 = vpack.c.b16 %v1555, %v1553
    %v1988 = vpack.c.b16 %v1556, %v1554
    %v1989 = vpack.c.b16 %v1559, %v1557
    %v1990 = vpack.c.b16 %v1560, %v1558
    %v1991 = vpack.c.b16 %v1563, %v1561
    %v1992 = vpack.c.b16 %v1564, %v1562
    %v1993 = vpack.c.b16 %v1567, %v1565
    %v1994 = vpack.c.b16 %v1568, %v1566
    %v1995 = vpack.c.b16 %v1571, %v1569
    %v1996 = vpack.c.b16 %v1572, %v1570
    %v1997 = vpack.c.b16 %v1575, %v1573
    %v1998 = vpack.c.b16 %v1576, %v1574
    %v1999 = vpack.c.b16 %v1579, %v1577
    %v2000 = vpack.c.b16 %v1580, %v1578
    %v2001 = vpack.c.b16 %v1583, %v1581
    %v2002 = vpack.c.b16 %v1584, %v1582
    %v2003 = vpack.c.b16 %v1587, %v1585
    %v2004 = vpack.c.b16 %v1588, %v1586
    %v2005 = vpack.c.b16 %v1591, %v1589
    %v2006 = vpack.c.b16 %v1592, %v1590
    %v2007 = vpack.c.b16 %v1595, %v1593
    %v2008 = vpack.c.b16 %v1596, %v1594
    %v2009 = vpack.c.b16 %v1599, %v1597
    %v2010 = vpack.c.b16 %v1600, %v1598
    %v2011 = vpack.c.b16 %v1603, %v1601
    %v2012 = vpack.c.b16 %v1604, %v1602
    %v2013 = vpack.c.b16 %v1607, %v1605
    %v2014 = vpack.c.b16 %v1608, %v1606
    %v2015 = vpack.c.b16 %v1611, %v1609
    %v2016 = vpack.c.b16 %v1612, %v1610
    %v2017 = vpack.c.b16 %v1615, %v1613
    %v2018 = vpack.c.b16 %v1616, %v1614
    %v2019 = vpack.c.b16 %v1619, %v1617
    %v2020 = vpack.c.b16 %v1620, %v1618
    %v2021 = vpack.c.b16 %v1623, %v1621
    %v2022 = vpack.c.b16 %v1624, %v1622
    %v2023 = vpack.c.b16 %v1627, %v1625
    %v2024 = vpack.c.b16 %v1628, %v1626
    %v2025 = vpack.c.b16 %v1631, %v1629
    %v2026 = vpack.c.b16 %v1632, %v1630
    %v2027 = vpack.c.b16 %v1635, %v1633
    %v2028 = vpack.c.b16 %v1636, %v1634
    %v2029 = vpack.c.b16 %v1639, %v1637
    %v2030 = vpack.c.b16 %v1640, %v1638
    %v2031 = vpack.c.b16 %v1643, %v1641
    %v2032 = vpack.c.b16 %v1644, %v1642
    %v2033 = vpack.c.b16 %v1647, %v1645
    %v2034 = vpack.c.b16 %v1648, %v1646
    %v2035 = vpack.c.b16 %v1651, %v1649
    %v2036 = vpack.c.b16 %v1652, %v1650
    %v2037 = vpack.c.b16 %v1655, %v1653
    %v2038 = vpack.c.b16 %v1656, %v1654
    %v2039 = vpack.c.b16 %v1659, %v1657
    %v2040 = vpack.c.b16 %v1660, %v1658
    %v2041 = vpack.c.b16 %v1663, %v1661
    %v2042 = vpack.c.b16 %v1664, %v1662
    %v2043 = vpack.c.b16 %v1667, %v1665
    %v2044 = vpack.c.b16 %v1668, %v1666
    %v2045 = vpack.c.b16 %v1671, %v1669
    %v2046 = vpack.c.b16 %v1672, %v1670
    %v2047 = vpack.c.b16 %v1675, %v1673
    %v2048 = vpack.c.b16 %v1676, %v1674
    %v2049 = vpack.c.b16 %v1679, %v1677
    %v2050 = vpack.c.b16 %v1680, %v1678
    %v2051 = vpack.c.b16 %v1683, %v1681
    %v2052 = vpack.c.b16 %v1684, %v1682
    %v2053 = vpack.c.b16 %v1687, %v1685
    %v2054 = vpack.c.b16 %v1688, %v1686
    %v2055 = vpack.c.b16 %v1691, %v1689
    %v2056 = vpack.c.b16 %v1692, %v1690
    %v2057 = vpack.c.b16 %v1695, %v1693
    %v2058 = vpack.c.b16 %v1696, %v1694
    %v2059 = vpack.c.b16 %v1699, %v1697
    %v2060 = vpack.c.b16 %v1700, %v1698
    %v2061 = vpack.c.b16 %v1703, %v1701
    %v2062 = vpack.c.b16 %v1704, %v1702
    %v2063 = vpack.c.b16 %v1707, %v1705
    %v2064 = vpack.c.b16 %v1708, %v1706
    %v2065 = vpack.c.b16 %v1711, %v1709
    %v2066 = vpack.c.b16 %v1712, %v1710
    %v2067 = vpack.c.b16 %v1715, %v1713
    %v2068 = vpack.c.b16 %v1716, %v1714
    %v2069 = vpack.c.b16 %v1719, %v1717
    %v2070 = vpack.c.b16 %v1720, %v1718
    %v2071 = vpack.c.b16 %v1723, %v1721
    %v2072 = vpack.c.b16 %v1724, %v1722
    %v2073 = vpack.c.b16 %v1727, %v1725
    %v2074 = vpack.c.b16 %v1728, %v1726
    %v2075 = vpack.c.b16 %v1731, %v1729
    %v2076 = vpack.c.b16 %v1732, %v1730
    %v2077 = vpack.c.b16 %v1735, %v1733
    %v2078 = vpack.c.b16 %v1736, %v1734
    %v2079 = vpack.c.b16 %v1739, %v1737
    %v2080 = vpack.c.b16 %v1740, %v1738
    %v2081 = vpack.c.b16 %v1743, %v1741
    %v2082 = vpack.c.b16 %v1744, %v1742
    %v2083 = vpack.c.b16 %v1747, %v1745
    %v2084 = vpack.c.b16 %v1748, %v1746
    %v2085 = vpack.c.b16 %v1751, %v1749
    %v2086 = vpack.c.b16 %v1752, %v1750
    %v2087 = vpack.c.b16 %v1755, %v1753
    %v2088 = vpack.c.b16 %v1756, %v1754
    %v2089 = vpack.c.b16 %v1759, %v1757
    %v2090 = vpack.c.b16 %v1760, %v1758
    %v2091 = vpack.c.b16 %v1763, %v1761
    %v2092 = vpack.c.b16 %v1764, %v1762
    %v2093 = vpack.c.b16 %v1767, %v1765
    %v2094 = vpack.c.b16 %v1768, %v1766
    %v2095 = vpack.c.b16 %v1771, %v1769
    %v2096 = vpack.c.b16 %v1772, %v1770
    %v2097 = vpack.c.b16 %v1775, %v1773
    %v2098 = vpack.c.b16 %v1776, %v1774
    %v2099 = vpack.c.b16 %v1779, %v1777
    %v2100 = vpack.c.b16 %v1780, %v1778
    %v2101 = vpack.c.b16 %v1783, %v1781
    %v2102 = vpack.c.b16 %v1784, %v1782
    %v2103 = vpack.c.b16 %v1787, %v1785
    %v2104 = vpack.c.b16 %v1788, %v1786
    %v2105 = vpack.c.b16 %v1791, %v1789
    %v2106 = vpack.c.b16 %v1792, %v1790
    %v2107 = vpack.c.b16 %v1795, %v1793
    %v2108 = vpack.c.b16 %v1796, %v1794
    %v2109 = vpack.c.b16 %v1799, %v1797
    %v2110 = vpack.c.b16 %v1800, %v1798
    %v2111 = vpack.c.b16 %v1803, %v1801
    %v2112 = vpack.c.b16 %v1804, %v1802
    %v2113 = vpack.c.b16 %v1807, %v1805
    %v2114 = vpack.c.b16 %v1808, %v1806
    %v2115 = vpack.c.b16 %v1811, %v1809
    %v2116 = vpack.c.b16 %v1812, %v1810
    %v2117 = vpack.c.b16 %v1815, %v1813
    %v2118 = vpack.c.b16 %v1816, %v1814
    %v2119 = vpack.c.b16 %v1819, %v1817
    %v2120 = vpack.c.b16 %v1820, %v1818
    %v2121 = vpack.c.b16 %v1823, %v1821
    %v2122 = vpack.c.b16 %v1824, %v1822
    %v2123 = vpack.c.b16 %v1827, %v1825
    %v2124 = vpack.c.b16 %v1828, %v1826
    %v2125 = vpack.c.b16 %v1831, %v1829
    %v2126 = vpack.c.b16 %v1832, %v1830
    %v2127 = vpack.c.b16 %v1835, %v1833
    %v2128 = vpack.c.b16 %v1836, %v1834
    %v2129 = vpack.c.b16 %v1839, %v1837
    %v2130 = vpack.c.b16 %v1840, %v1838
    %v2131 = vpack.c.b16 %v1843, %v1841
    %v2132 = vpack.c.b16 %v1844, %v1842
    %v2133 = vpack.c.b16 %v1847, %v1845
    %v2134 = vpack.c.b16 %v1848, %v1846
    %v2135 = vpack.c.b16 %v1851, %v1849
    %v2136 = vpack.c.b16 %v1852, %v1850
    %v2137 = vpack.c.b16 %v1855, %v1853
    %v2138 = vpack.c.b16 %v1856, %v1854
    %v2139 = vpack.c.b16 %v1859, %v1857
    %v2140 = vpack.c.b16 %v1860, %v1858
    %v2141 = vpack.c.b16 %v1863, %v1861
    %v2142 = vpack.c.b16 %v1864, %v1862
    %v2143 = vpack.c.b16 %v1867, %v1865
    %v2144 = vpack.c.b16 %v1868, %v1866
    %v2145 = vpack.c.b16 %v1871, %v1869
    %v2146 = vpack.c.b16 %v1872, %v1870
    %v2147 = vpack.c.b16 %v1875, %v1873
    %v2148 = vpack.c.b16 %v1876, %v1874
    %v2149 = vpack.c.b16 %v1879, %v1877
    %v2150 = vpack.c.b16 %v1880, %v1878
    %v2151 = vpack.c.b16 %v1883, %v1881
    %v2152 = vpack.c.b16 %v1884, %v1882
    %v2153 = vpack.c.b16 %v1887, %v1885
    %v2154 = vpack.c.b16 %v1888, %v1886
    %v2155 = vpack.c.b16 %v1891, %v1889
    %v2156 = vpack.c.b16 %v1892, %v1890
    %v2157 = vpack.c.b16 %v1895, %v1893
    %v2158 = vpack.c.b16 %v1896, %v1894
    %v2159 = vpack.c.b16 %v1899, %v1897
    %v2160 = vpack.c.b16 %v1900, %v1898
    %v2161 = vpack.c.b16 %v1903, %v1901
    %v2162 = vpack.c.b16 %v1904, %v1902
    %v2163 = vpack.c.b16 %v1907, %v1905
    %v2164 = vpack.c.b16 %v1908, %v1906
    %2421 = vmatprep.subr.bf16.mxu0 %v1910
    %2422 = vmatpush1.bf16.msra.mxu0 %v1909
    %2423 = vmatprep.subr.bf16.mxu0 %v1912
    %2424 = vmatpush1.bf16.msra.mxu0 %v1911
    %2425 = vmatprep.subr.bf16.mxu0 %v1914
    %2426 = vmatpush1.bf16.msra.mxu0 %v1913
    %2427 = vmatprep.subr.bf16.mxu0 %v1916
    %2428 = vmatpush1.bf16.msra.mxu0 %v1915
    %2429 = vmatprep.subr.bf16.mxu0 %v1918
    %2430 = vmatpush1.bf16.msra.mxu0 %v1917
    %2431 = vmatprep.subr.bf16.mxu0 %v1920
    %2432 = vmatpush1.bf16.msra.mxu0 %v1919
    %2433 = vmatprep.subr.bf16.mxu0 %v1922
    %2434 = vmatpush1.bf16.msra.mxu0 %v1921
    %2435 = vmatprep.subr.bf16.mxu0 %v1924
    %2436 = vmatpush1.bf16.msra.mxu0 %v1923
    %2437 = vmatprep.subr.bf16.mxu0 %v1926
    %2438 = vmatpush1.bf16.msra.mxu0 %v1925
    %2439 = vmatprep.subr.bf16.mxu0 %v1928
    %2440 = vmatpush1.bf16.msra.mxu0 %v1927
    %2441 = vmatprep.subr.bf16.mxu0 %v1930
    %2442 = vmatpush1.bf16.msra.mxu0 %v1929
    %2443 = vmatprep.subr.bf16.mxu0 %v1932
    %2444 = vmatpush1.bf16.msra.mxu0 %v1931
    %2445 = vmatprep.subr.bf16.mxu0 %v1934
    %2446 = vmatpush1.bf16.msra.mxu0 %v1933
    %2447 = vmatprep.subr.bf16.mxu0 %v1936
    %2448 = vmatpush1.bf16.msra.mxu0 %v1935
    %2449 = vmatprep.subr.bf16.mxu0 %v1938
    %2450 = vmatpush1.bf16.msra.mxu0 %v1937
    %2451 = vmatprep.subr.bf16.mxu0 %v1940
    %2452 = vmatpush1.bf16.msra.mxu0 %v1939
    %2453 = vmatprep.mubr.bf16.mxu0 %v886
    %2454 = vmatmul.mubr.bf16.gmra.mrb[0].mxu0 %v885
    %v2455 = vpop.f32.mrb[0].mxu0
    %v2456 = vadd.f32 0.0, %v2455
    %v2457 = vpop.f32.mrb[0].mxu0
    %v2458 = vadd.f32 0.0, %v2457
    %v2459 = vpop.f32.mrb[0].mxu0
    %v2460 = vadd.f32 0.0, %v2459
    %v2461 = vpop.f32.mrb[0].mxu0
    %v2462 = vadd.f32 0.0, %v2461
    %2463 = vmatprep.mubr.bf16.mxu0 %v902
    %2464 = vmatmul.mubr.bf16.gmra.mrb[0].mxu0 %v901
    %v2465 = vpop.f32.mrb[0].mxu0
    %v2466 = vadd.f32 0.0, %v2465
    %v2467 = vpop.f32.mrb[0].mxu0
    %v2468 = vadd.f32 0.0, %v2467
    %v2469 = vpop.f32.mrb[0].mxu0
    %v2470 = vadd.f32 0.0, %v2469
    %v2471 = vpop.f32.mrb[0].mxu0
    %v2472 = vadd.f32 0.0, %v2471
    %2473 = vmatprep.mubr.bf16.mxu0 %v918
    %2474 = vmatmul.mubr.bf16.gmra.mrb[0].mxu0 %v917
    %v2475 = vpop.f32.mrb[0].mxu0
    %v2476 = vadd.f32 0.0, %v2475
    %v2477 = vpop.f32.mrb[0].mxu0
    %v2478 = vadd.f32 0.0, %v2477
    %v2479 = vpop.f32.mrb[0].mxu0
    %v2480 = vadd.f32 0.0, %v2479
    %v2481 = vpop.f32.mrb[0].mxu0
    %v2482 = vadd.f32 0.0, %v2481
    %2483 = vmatprep.mubr.bf16.mxu0 %v934
    %2484 = vmatmul.mubr.bf16.gmra.mrb[0].mxu0 %v933
    %v2485 = vpop.f32.mrb[0].mxu0
    %v2486 = vadd.f32 0.0, %v2485
    %v2487 = vpop.f32.mrb[0].mxu0
    %v2488 = vadd.f32 0.0, %v2487
    %v2489 = vpop.f32.mrb[0].mxu0
    %v2490 = vadd.f32 0.0, %v2489
    %v2491 = vpop.f32.mrb[0].mxu0
    %v2492 = vadd.f32 0.0, %v2491
    %2493 = vmatprep.mubr.bf16.mxu0 %v950
    %2494 = vmatmul.mubr.bf16.gmra.mrb[0].mxu0 %v949
    %v2495 = vpop.f32.mrb[0].mxu0
    %v2496 = vadd.f32 0.0, %v2495
    %v2497 = vpop.f32.mrb[0].mxu0
    %v2498 = vadd.f32 0.0, %v2497
    %v2499 = vpop.f32.mrb[0].mxu0
    %v2500 = vadd.f32 0.0, %v2499
    %v2501 = vpop.f32.mrb[0].mxu0
    %v2502 = vadd.f32 0.0, %v2501
    %2503 = vmatprep.mubr.bf16.mxu0 %v966
    %2504 = vmatmul.mubr.bf16.gmra.mrb[0].mxu0 %v965
    %v2505 = vpop.f32.mrb[0].mxu0
    %v2506 = vadd.f32 0.0, %v2505
    %v2507 = vpop.f32.mrb[0].mxu0
    %v2508 = vadd.f32 0.0, %v2507
    %v2509 = vpop.f32.mrb[0].mxu0
    %v2510 = vadd.f32 0.0, %v2509
    %v2511 = vpop.f32.mrb[0].mxu0
    %v2512 = vadd.f32 0.0, %v2511
    %2513 = vmatprep.mubr.bf16.mxu0 %v982
    %2514 = vmatmul.mubr.bf16.gmra.mrb[0].mxu0 %v981
    %v2515 = vpop.f32.mrb[0].mxu0
    %v2516 = vadd.f32 0.0, %v2515
    %v2517 = vpop.f32.mrb[0].mxu0
    %v2518 = vadd.f32 0.0, %v2517
    %v2519 = vpop.f32.mrb[0].mxu0
    %v2520 = vadd.f32 0.0, %v2519
    %v2521 = vpop.f32.mrb[0].mxu0
    %v2522 = vadd.f32 0.0, %v2521
    %2523 = vmatprep.mubr.bf16.mxu0 %v998
    %2524 = vmatmul.mubr.bf16.gmra.mrb[0].mxu0 %v997
    %v2525 = vpop.f32.mrb[0].mxu0
    %v2526 = vadd.f32 0.0, %v2525
    %v2527 = vpop.f32.mrb[0].mxu0
    %v2528 = vadd.f32 0.0, %v2527
    %v2529 = vpop.f32.mrb[0].mxu0
    %v2530 = vadd.f32 0.0, %v2529
    %v2531 = vpop.f32.mrb[0].mxu0
    %v2532 = vadd.f32 0.0, %v2531
    %2533 = vdwg.mxu0
    %2534 = vmatprep.subr.bf16.mxu0 %v1942
    %2535 = vmatpush1.bf16.msra.mxu0 %v1941
    %2536 = vmatprep.subr.bf16.mxu0 %v1944
    %2537 = vmatpush1.bf16.msra.mxu0 %v1943
    %2538 = vmatprep.subr.bf16.mxu0 %v1946
    %2539 = vmatpush1.bf16.msra.mxu0 %v1945
    %2540 = vmatprep.subr.bf16.mxu0 %v1948
    %2541 = vmatpush1.bf16.msra.mxu0 %v1947
    %2542 = vmatprep.subr.bf16.mxu0 %v1950
    %2543 = vmatpush1.bf16.msra.mxu0 %v1949
    %2544 = vmatprep.subr.bf16.mxu0 %v1952
    %2545 = vmatpush1.bf16.msra.mxu0 %v1951
    %2546 = vmatprep.subr.bf16.mxu0 %v1954
    %2547 = vmatpush1.bf16.msra.mxu0 %v1953
    %2548 = vmatprep.subr.bf16.mxu0 %v1956
    %2549 = vmatpush1.bf16.msra.mxu0 %v1955
    %2550 = vmatprep.subr.bf16.mxu0 %v1958
    %2551 = vmatpush1.bf16.msra.mxu0 %v1957
    %2552 = vmatprep.subr.bf16.mxu0 %v1960
    %2553 = vmatpush1.bf16.msra.mxu0 %v1959
    %2554 = vmatprep.subr.bf16.mxu0 %v1962
    %2555 = vmatpush1.bf16.msra.mxu0 %v1961
    %2556 = vmatprep.subr.bf16.mxu0 %v1964
    %2557 = vmatpush1.bf16.msra.mxu0 %v1963
    %2558 = vmatprep.subr.bf16.mxu0 %v1966
    %2559 = vmatpush1.bf16.msra.mxu0 %v1965
    %2560 = vmatprep.subr.bf16.mxu0 %v1968
    %2561 = vmatpush1.bf16.msra.mxu0 %v1967
    %2562 = vmatprep.subr.bf16.mxu0 %v1970
    %2563 = vmatpush1.bf16.msra.mxu0 %v1969
    %2564 = vmatprep.subr.bf16.mxu0 %v1972
    %2565 = vmatpush1.bf16.msra.mxu0 %v1971
    %2566 = vmatprep.mubr.bf16.mxu0 %v888
    %2567 = vmatmul.mubr.bf16.gmra.mrb[0].mxu0 %v887
    %v2568 = vpop.f32.mrb[0].mxu0
    %v2569 = vadd.f32 %v2456, %v2568
    %v2570 = vpop.f32.mrb[0].mxu0
    %v2571 = vadd.f32 %v2458, %v2570
    %v2572 = vpop.f32.mrb[0].mxu0
    %v2573 = vadd.f32 %v2460, %v2572
    %v2574 = vpop.f32.mrb[0].mxu0
    %v2575 = vadd.f32 %v2462, %v2574
    %2576 = vmatprep.mubr.bf16.mxu0 %v904
    %2577 = vmatmul.mubr.bf16.gmra.mrb[0].mxu0 %v903
    %v2578 = vpop.f32.mrb[0].mxu0
    %v2579 = vadd.f32 %v2466, %v2578
    %v2580 = vpop.f32.mrb[0].mxu0
    %v2581 = vadd.f32 %v2468, %v2580
    %v2582 = vpop.f32.mrb[0].mxu0
    %v2583 = vadd.f32 %v2470, %v2582
    %v2584 = vpop.f32.mrb[0].mxu0
    %v2585 = vadd.f32 %v2472, %v2584
    %2586 = vmatprep.mubr.bf16.mxu0 %v920
    %2587 = vmatmul.mubr.bf16.gmra.mrb[0].mxu0 %v919
    %v2588 = vpop.f32.mrb[0].mxu0
    %v2589 = vadd.f32 %v2476, %v2588
    %v2590 = vpop.f32.mrb[0].mxu0
    %v2591 = vadd.f32 %v2478, %v2590
    %v2592 = vpop.f32.mrb[0].mxu0
    %v2593 = vadd.f32 %v2480, %v2592
    %v2594 = vpop.f32.mrb[0].mxu0
    %v2595 = vadd.f32 %v2482, %v2594
    %2596 = vmatprep.mubr.bf16.mxu0 %v936
    %2597 = vmatmul.mubr.bf16.gmra.mrb[0].mxu0 %v935
    %v2598 = vpop.f32.mrb[0].mxu0
    %v2599 = vadd.f32 %v2486, %v2598
    %v2600 = vpop.f32.mrb[0].mxu0
    %v2601 = vadd.f32 %v2488, %v2600
    %v2602 = vpop.f32.mrb[0].mxu0
    %v2603 = vadd.f32 %v2490, %v2602
    %v2604 = vpop.f32.mrb[0].mxu0
    %v2605 = vadd.f32 %v2492, %v2604
    %2606 = vmatprep.mubr.bf16.mxu0 %v952
    %2607 = vmatmul.mubr.bf16.gmra.mrb[0].mxu0 %v951
    %v2608 = vpop.f32.mrb[0].mxu0
    %v2609 = vadd.f32 %v2496, %v2608
    %v2610 = vpop.f32.mrb[0].mxu0
    %v2611 = vadd.f32 %v2498, %v2610
    %v2612 = vpop.f32.mrb[0].mxu0
    %v2613 = vadd.f32 %v2500, %v2612
    %v2614 = vpop.f32.mrb[0].mxu0
    %v2615 = vadd.f32 %v2502, %v2614
    %2616 = vmatprep.mubr.bf16.mxu0 %v968
    %2617 = vmatmul.mubr.bf16.gmra.mrb[0].mxu0 %v967
    %v2618 = vpop.f32.mrb[0].mxu0
    %v2619 = vadd.f32 %v2506, %v2618
    %v2620 = vpop.f32.mrb[0].mxu0
    %v2621 = vadd.f32 %v2508, %v2620
    %v2622 = vpop.f32.mrb[0].mxu0
    %v2623 = vadd.f32 %v2510, %v2622
    %v2624 = vpop.f32.mrb[0].mxu0
    %v2625 = vadd.f32 %v2512, %v2624
    %2626 = vmatprep.mubr.bf16.mxu0 %v984
    %2627 = vmatmul.mubr.bf16.gmra.mrb[0].mxu0 %v983
    %v2628 = vpop.f32.mrb[0].mxu0
    %v2629 = vadd.f32 %v2516, %v2628
    %v2630 = vpop.f32.mrb[0].mxu0
    %v2631 = vadd.f32 %v2518, %v2630
    %v2632 = vpop.f32.mrb[0].mxu0
    %v2633 = vadd.f32 %v2520, %v2632
    %v2634 = vpop.f32.mrb[0].mxu0
    %v2635 = vadd.f32 %v2522, %v2634
    %2636 = vmatprep.mubr.bf16.mxu0 %v1000
    %2637 = vmatmul.mubr.bf16.gmra.mrb[0].mxu0 %v999
    %v2638 = vpop.f32.mrb[0].mxu0
    %v2639 = vadd.f32 %v2526, %v2638
    %v2640 = vpop.f32.mrb[0].mxu0
    %v2641 = vadd.f32 %v2528, %v2640
    %v2642 = vpop.f32.mrb[0].mxu0
    %v2643 = vadd.f32 %v2530, %v2642
    %v2644 = vpop.f32.mrb[0].mxu0
    %v2645 = vadd.f32 %v2532, %v2644
    %2646 = vdwg.mxu0
    %2647 = vmatprep.subr.bf16.mxu0 %v1974
    %2648 = vmatpush1.bf16.msra.mxu0 %v1973
    %2649 = vmatprep.subr.bf16.mxu0 %v1976
    %2650 = vmatpush1.bf16.msra.mxu0 %v1975
    %2651 = vmatprep.subr.bf16.mxu0 %v1978
    %2652 = vmatpush1.bf16.msra.mxu0 %v1977
    %2653 = vmatprep.subr.bf16.mxu0 %v1980
    %2654 = vmatpush1.bf16.msra.mxu0 %v1979
    %2655 = vmatprep.subr.bf16.mxu0 %v1982
    %2656 = vmatpush1.bf16.msra.mxu0 %v1981
    %2657 = vmatprep.subr.bf16.mxu0 %v1984
    %2658 = vmatpush1.bf16.msra.mxu0 %v1983
    %2659 = vmatprep.subr.bf16.mxu0 %v1986
    %2660 = vmatpush1.bf16.msra.mxu0 %v1985
    %2661 = vmatprep.subr.bf16.mxu0 %v1988
    %2662 = vmatpush1.bf16.msra.mxu0 %v1987
    %2663 = vmatprep.subr.bf16.mxu0 %v1990
    %2664 = vmatpush1.bf16.msra.mxu0 %v1989
    %2665 = vmatprep.subr.bf16.mxu0 %v1992
    %2666 = vmatpush1.bf16.msra.mxu0 %v1991
    %2667 = vmatprep.subr.bf16.mxu0 %v1994
    %2668 = vmatpush1.bf16.msra.mxu0 %v1993
    %2669 = vmatprep.subr.bf16.mxu0 %v1996
    %2670 = vmatpush1.bf16.msra.mxu0 %v1995
    %2671 = vmatprep.subr.bf16.mxu0 %v1998
    %2672 = vmatpush1.bf16.msra.mxu0 %v1997
    %2673 = vmatprep.subr.bf16.mxu0 %v2000
    %2674 = vmatpush1.bf16.msra.mxu0 %v1999
    %2675 = vmatprep.subr.bf16.mxu0 %v2002
    %2676 = vmatpush1.bf16.msra.mxu0 %v2001
    %2677 = vmatprep.subr.bf16.mxu0 %v2004
    %2678 = vmatpush1.bf16.msra.mxu0 %v2003
    %2679 = vmatprep.mubr.bf16.mxu0 %v890
    %2680 = vmatmul.mubr.bf16.gmra.mrb[0].mxu0 %v889
    %v2681 = vpop.f32.mrb[0].mxu0
    %v2682 = vadd.f32 %v2569, %v2681
    %v2683 = vpop.f32.mrb[0].mxu0
    %v2684 = vadd.f32 %v2571, %v2683
    %v2685 = vpop.f32.mrb[0].mxu0
    %v2686 = vadd.f32 %v2573, %v2685
    %v2687 = vpop.f32.mrb[0].mxu0
    %v2688 = vadd.f32 %v2575, %v2687
    %2689 = vmatprep.mubr.bf16.mxu0 %v906
    %2690 = vmatmul.mubr.bf16.gmra.mrb[0].mxu0 %v905
    %v2691 = vpop.f32.mrb[0].mxu0
    %v2692 = vadd.f32 %v2579, %v2691
    %v2693 = vpop.f32.mrb[0].mxu0
    %v2694 = vadd.f32 %v2581, %v2693
    %v2695 = vpop.f32.mrb[0].mxu0
    %v2696 = vadd.f32 %v2583, %v2695
    %v2697 = vpop.f32.mrb[0].mxu0
    %v2698 = vadd.f32 %v2585, %v2697
    %2699 = vmatprep.mubr.bf16.mxu0 %v922
    %2700 = vmatmul.mubr.bf16.gmra.mrb[0].mxu0 %v921
    %v2701 = vpop.f32.mrb[0].mxu0
    %v2702 = vadd.f32 %v2589, %v2701
    %v2703 = vpop.f32.mrb[0].mxu0
    %v2704 = vadd.f32 %v2591, %v2703
    %v2705 = vpop.f32.mrb[0].mxu0
    %v2706 = vadd.f32 %v2593, %v2705
    %v2707 = vpop.f32.mrb[0].mxu0
    %v2708 = vadd.f32 %v2595, %v2707
    %2709 = vmatprep.mubr.bf16.mxu0 %v938
    %2710 = vmatmul.mubr.bf16.gmra.mrb[0].mxu0 %v937
    %v2711 = vpop.f32.mrb[0].mxu0
    %v2712 = vadd.f32 %v2599, %v2711
    %v2713 = vpop.f32.mrb[0].mxu0
    %v2714 = vadd.f32 %v2601, %v2713
    %v2715 = vpop.f32.mrb[0].mxu0
    %v2716 = vadd.f32 %v2603, %v2715
    %v2717 = vpop.f32.mrb[0].mxu0
    %v2718 = vadd.f32 %v2605, %v2717
    %2719 = vmatprep.mubr.bf16.mxu0 %v954
    %2720 = vmatmul.mubr.bf16.gmra.mrb[0].mxu0 %v953
    %v2721 = vpop.f32.mrb[0].mxu0
    %v2722 = vadd.f32 %v2609, %v2721
    %v2723 = vpop.f32.mrb[0].mxu0
    %v2724 = vadd.f32 %v2611, %v2723
    %v2725 = vpop.f32.mrb[0].mxu0
    %v2726 = vadd.f32 %v2613, %v2725
    %v2727 = vpop.f32.mrb[0].mxu0
    %v2728 = vadd.f32 %v2615, %v2727
    %2729 = vmatprep.mubr.bf16.mxu0 %v970
    %2730 = vmatmul.mubr.bf16.gmra.mrb[0].mxu0 %v969
    %v2731 = vpop.f32.mrb[0].mxu0
    %v2732 = vadd.f32 %v2619, %v2731
    %v2733 = vpop.f32.mrb[0].mxu0
    %v2734 = vadd.f32 %v2621, %v2733
    %v2735 = vpop.f32.mrb[0].mxu0
    %v2736 = vadd.f32 %v2623, %v2735
    %v2737 = vpop.f32.mrb[0].mxu0
    %v2738 = vadd.f32 %v2625, %v2737
    %2739 = vmatprep.mubr.bf16.mxu0 %v986
    %2740 = vmatmul.mubr.bf16.gmra.mrb[0].mxu0 %v985
    %v2741 = vpop.f32.mrb[0].mxu0
    %v2742 = vadd.f32 %v2629, %v2741
    %v2743 = vpop.f32.mrb[0].mxu0
    %v2744 = vadd.f32 %v2631, %v2743
    %v2745 = vpop.f32.mrb[0].mxu0
    %v2746 = vadd.f32 %v2633, %v2745
    %v2747 = vpop.f32.mrb[0].mxu0
    %v2748 = vadd.f32 %v2635, %v2747
    %2749 = vmatprep.mubr.bf16.mxu0 %v1002
    %2750 = vmatmul.mubr.bf16.gmra.mrb[0].mxu0 %v1001
    %v2751 = vpop.f32.mrb[0].mxu0
    %v2752 = vadd.f32 %v2639, %v2751
    %v2753 = vpop.f32.mrb[0].mxu0
    %v2754 = vadd.f32 %v2641, %v2753
    %v2755 = vpop.f32.mrb[0].mxu0
    %v2756 = vadd.f32 %v2643, %v2755
    %v2757 = vpop.f32.mrb[0].mxu0
    %v2758 = vadd.f32 %v2645, %v2757
    %2759 = vdwg.mxu0
    %2760 = vmatprep.subr.bf16.mxu0 %v2006
    %2761 = vmatpush1.bf16.msra.mxu0 %v2005
    %2762 = vmatprep.subr.bf16.mxu0 %v2008
    %2763 = vmatpush1.bf16.msra.mxu0 %v2007
    %2764 = vmatprep.subr.bf16.mxu0 %v2010
    %2765 = vmatpush1.bf16.msra.mxu0 %v2009
    %2766 = vmatprep.subr.bf16.mxu0 %v2012
    %2767 = vmatpush1.bf16.msra.mxu0 %v2011
    %2768 = vmatprep.subr.bf16.mxu0 %v2014
    %2769 = vmatpush1.bf16.msra.mxu0 %v2013
    %2770 = vmatprep.subr.bf16.mxu0 %v2016
    %2771 = vmatpush1.bf16.msra.mxu0 %v2015
    %2772 = vmatprep.subr.bf16.mxu0 %v2018
    %2773 = vmatpush1.bf16.msra.mxu0 %v2017
    %2774 = vmatprep.subr.bf16.mxu0 %v2020
    %2775 = vmatpush1.bf16.msra.mxu0 %v2019
    %2776 = vmatprep.subr.bf16.mxu0 %v2022
    %2777 = vmatpush1.bf16.msra.mxu0 %v2021
    %2778 = vmatprep.subr.bf16.mxu0 %v2024
    %2779 = vmatpush1.bf16.msra.mxu0 %v2023
    %2780 = vmatprep.subr.bf16.mxu0 %v2026
    %2781 = vmatpush1.bf16.msra.mxu0 %v2025
    %2782 = vmatprep.subr.bf16.mxu0 %v2028
    %2783 = vmatpush1.bf16.msra.mxu0 %v2027
    %2784 = vmatprep.subr.bf16.mxu0 %v2030
    %2785 = vmatpush1.bf16.msra.mxu0 %v2029
    %2786 = vmatprep.subr.bf16.mxu0 %v2032
    %2787 = vmatpush1.bf16.msra.mxu0 %v2031
    %2788 = vmatprep.subr.bf16.mxu0 %v2034
    %2789 = vmatpush1.bf16.msra.mxu0 %v2033
    %2790 = vmatprep.subr.bf16.mxu0 %v2036
    %2791 = vmatpush1.bf16.msra.mxu0 %v2035
    %2792 = vmatprep.mubr.bf16.mxu0 %v892
    %2793 = vmatmul.mubr.bf16.gmra.mrb[0].mxu0 %v891
    %v2794 = vpop.f32.mrb[0].mxu0
    %v2795 = vadd.f32 %v2682, %v2794
    %v2796 = vpop.f32.mrb[0].mxu0
    %v2797 = vadd.f32 %v2684, %v2796
    %v2798 = vpop.f32.mrb[0].mxu0
    %v2799 = vadd.f32 %v2686, %v2798
    %v2800 = vpop.f32.mrb[0].mxu0
    %v2801 = vadd.f32 %v2688, %v2800
    %2802 = vmatprep.mubr.bf16.mxu0 %v908
    %2803 = vmatmul.mubr.bf16.gmra.mrb[0].mxu0 %v907
    %v2804 = vpop.f32.mrb[0].mxu0
    %v2805 = vadd.f32 %v2692, %v2804
    %v2806 = vpop.f32.mrb[0].mxu0
    %v2807 = vadd.f32 %v2694, %v2806
    %v2808 = vpop.f32.mrb[0].mxu0
    %v2809 = vadd.f32 %v2696, %v2808
    %v2810 = vpop.f32.mrb[0].mxu0
    %v2811 = vadd.f32 %v2698, %v2810
    %2812 = vmatprep.mubr.bf16.mxu0 %v924
    %2813 = vmatmul.mubr.bf16.gmra.mrb[0].mxu0 %v923
    %v2814 = vpop.f32.mrb[0].mxu0
    %v2815 = vadd.f32 %v2702, %v2814
    %v2816 = vpop.f32.mrb[0].mxu0
    %v2817 = vadd.f32 %v2704, %v2816
    %v2818 = vpop.f32.mrb[0].mxu0
    %v2819 = vadd.f32 %v2706, %v2818
    %v2820 = vpop.f32.mrb[0].mxu0
    %v2821 = vadd.f32 %v2708, %v2820
    %2822 = vmatprep.mubr.bf16.mxu0 %v940
    %2823 = vmatmul.mubr.bf16.gmra.mrb[0].mxu0 %v939
    %v2824 = vpop.f32.mrb[0].mxu0
    %v2825 = vadd.f32 %v2712, %v2824
    %v2826 = vpop.f32.mrb[0].mxu0
    %v2827 = vadd.f32 %v2714, %v2826
    %v2828 = vpop.f32.mrb[0].mxu0
    %v2829 = vadd.f32 %v2716, %v2828
    %v2830 = vpop.f32.mrb[0].mxu0
    %v2831 = vadd.f32 %v2718, %v2830
    %2832 = vmatprep.mubr.bf16.mxu0 %v956
    %2833 = vmatmul.mubr.bf16.gmra.mrb[0].mxu0 %v955
    %v2834 = vpop.f32.mrb[0].mxu0
    %v2835 = vadd.f32 %v2722, %v2834
    %v2836 = vpop.f32.mrb[0].mxu0
    %v2837 = vadd.f32 %v2724, %v2836
    %v2838 = vpop.f32.mrb[0].mxu0
    %v2839 = vadd.f32 %v2726, %v2838
    %v2840 = vpop.f32.mrb[0].mxu0
    %v2841 = vadd.f32 %v2728, %v2840
    %2842 = vmatprep.mubr.bf16.mxu0 %v972
    %2843 = vmatmul.mubr.bf16.gmra.mrb[0].mxu0 %v971
    %v2844 = vpop.f32.mrb[0].mxu0
    %v2845 = vadd.f32 %v2732, %v2844
    %v2846 = vpop.f32.mrb[0].mxu0
    %v2847 = vadd.f32 %v2734, %v2846
    %v2848 = vpop.f32.mrb[0].mxu0
    %v2849 = vadd.f32 %v2736, %v2848
    %v2850 = vpop.f32.mrb[0].mxu0
    %v2851 = vadd.f32 %v2738, %v2850
    %2852 = vmatprep.mubr.bf16.mxu0 %v988
    %2853 = vmatmul.mubr.bf16.gmra.mrb[0].mxu0 %v987
    %v2854 = vpop.f32.mrb[0].mxu0
    %v2855 = vadd.f32 %v2742, %v2854
    %v2856 = vpop.f32.mrb[0].mxu0
    %v2857 = vadd.f32 %v2744, %v2856
    %v2858 = vpop.f32.mrb[0].mxu0
    %v2859 = vadd.f32 %v2746, %v2858
    %v2860 = vpop.f32.mrb[0].mxu0
    %v2861 = vadd.f32 %v2748, %v2860
    %2862 = vmatprep.mubr.bf16.mxu0 %v1004
    %2863 = vmatmul.mubr.bf16.gmra.mrb[0].mxu0 %v1003
    %v2864 = vpop.f32.mrb[0].mxu0
    %v2865 = vadd.f32 %v2752, %v2864
    %v2866 = vpop.f32.mrb[0].mxu0
    %v2867 = vadd.f32 %v2754, %v2866
    %v2868 = vpop.f32.mrb[0].mxu0
    %v2869 = vadd.f32 %v2756, %v2868
    %v2870 = vpop.f32.mrb[0].mxu0
    %v2871 = vadd.f32 %v2758, %v2870
    %2872 = vdwg.mxu0
    %2873 = vmatprep.subr.bf16.mxu0 %v2038
    %2874 = vmatpush1.bf16.msra.mxu0 %v2037
    %2875 = vmatprep.subr.bf16.mxu0 %v2040
    %2876 = vmatpush1.bf16.msra.mxu0 %v2039
    %2877 = vmatprep.subr.bf16.mxu0 %v2042
    %2878 = vmatpush1.bf16.msra.mxu0 %v2041
    %2879 = vmatprep.subr.bf16.mxu0 %v2044
    %2880 = vmatpush1.bf16.msra.mxu0 %v2043
    %2881 = vmatprep.subr.bf16.mxu0 %v2046
    %2882 = vmatpush1.bf16.msra.mxu0 %v2045
    %2883 = vmatprep.subr.bf16.mxu0 %v2048
    %2884 = vmatpush1.bf16.msra.mxu0 %v2047
    %2885 = vmatprep.subr.bf16.mxu0 %v2050
    %2886 = vmatpush1.bf16.msra.mxu0 %v2049
    %2887 = vmatprep.subr.bf16.mxu0 %v2052
    %2888 = vmatpush1.bf16.msra.mxu0 %v2051
    %2889 = vmatprep.subr.bf16.mxu0 %v2054
    %2890 = vmatpush1.bf16.msra.mxu0 %v2053
    %2891 = vmatprep.subr.bf16.mxu0 %v2056
    %2892 = vmatpush1.bf16.msra.mxu0 %v2055
    %2893 = vmatprep.subr.bf16.mxu0 %v2058
    %2894 = vmatpush1.bf16.msra.mxu0 %v2057
    %2895 = vmatprep.subr.bf16.mxu0 %v2060
    %2896 = vmatpush1.bf16.msra.mxu0 %v2059
    %2897 = vmatprep.subr.bf16.mxu0 %v2062
    %2898 = vmatpush1.bf16.msra.mxu0 %v2061
    %2899 = vmatprep.subr.bf16.mxu0 %v2064
    %2900 = vmatpush1.bf16.msra.mxu0 %v2063
    %2901 = vmatprep.subr.bf16.mxu0 %v2066
    %2902 = vmatpush1.bf16.msra.mxu0 %v2065
    %2903 = vmatprep.subr.bf16.mxu0 %v2068
    %2904 = vmatpush1.bf16.msra.mxu0 %v2067
    %2905 = vmatprep.mubr.bf16.mxu0 %v894
    %2906 = vmatmul.mubr.bf16.gmra.mrb[0].mxu0 %v893
    %v2907 = vpop.f32.mrb[0].mxu0
    %v2908 = vadd.f32 %v2795, %v2907
    %v2909 = vpop.f32.mrb[0].mxu0
    %v2910 = vadd.f32 %v2797, %v2909
    %v2911 = vpop.f32.mrb[0].mxu0
    %v2912 = vadd.f32 %v2799, %v2911
    %v2913 = vpop.f32.mrb[0].mxu0
    %v2914 = vadd.f32 %v2801, %v2913
    %2915 = vmatprep.mubr.bf16.mxu0 %v910
    %2916 = vmatmul.mubr.bf16.gmra.mrb[0].mxu0 %v909
    %v2917 = vpop.f32.mrb[0].mxu0
    %v2918 = vadd.f32 %v2805, %v2917
    %v2919 = vpop.f32.mrb[0].mxu0
    %v2920 = vadd.f32 %v2807, %v2919
    %v2921 = vpop.f32.mrb[0].mxu0
    %v2922 = vadd.f32 %v2809, %v2921
    %v2923 = vpop.f32.mrb[0].mxu0
    %v2924 = vadd.f32 %v2811, %v2923
    %2925 = vmatprep.mubr.bf16.mxu0 %v926
    %2926 = vmatmul.mubr.bf16.gmra.mrb[0].mxu0 %v925
    %v2927 = vpop.f32.mrb[0].mxu0
    %v2928 = vadd.f32 %v2815, %v2927
    %v2929 = vpop.f32.mrb[0].mxu0
    %v2930 = vadd.f32 %v2817, %v2929
    %v2931 = vpop.f32.mrb[0].mxu0
    %v2932 = vadd.f32 %v2819, %v2931
    %v2933 = vpop.f32.mrb[0].mxu0
    %v2934 = vadd.f32 %v2821, %v2933
    %2935 = vmatprep.mubr.bf16.mxu0 %v942
    %2936 = vmatmul.mubr.bf16.gmra.mrb[0].mxu0 %v941
    %v2937 = vpop.f32.mrb[0].mxu0
    %v2938 = vadd.f32 %v2825, %v2937
    %v2939 = vpop.f32.mrb[0].mxu0
    %v2940 = vadd.f32 %v2827, %v2939
    %v2941 = vpop.f32.mrb[0].mxu0
    %v2942 = vadd.f32 %v2829, %v2941
    %v2943 = vpop.f32.mrb[0].mxu0
    %v2944 = vadd.f32 %v2831, %v2943
    %2945 = vmatprep.mubr.bf16.mxu0 %v958
    %2946 = vmatmul.mubr.bf16.gmra.mrb[0].mxu0 %v957
    %v2947 = vpop.f32.mrb[0].mxu0
    %v2948 = vadd.f32 %v2835, %v2947
    %v2949 = vpop.f32.mrb[0].mxu0
    %v2950 = vadd.f32 %v2837, %v2949
    %v2951 = vpop.f32.mrb[0].mxu0
    %v2952 = vadd.f32 %v2839, %v2951
    %v2953 = vpop.f32.mrb[0].mxu0
    %v2954 = vadd.f32 %v2841, %v2953
    %2955 = vmatprep.mubr.bf16.mxu0 %v974
    %2956 = vmatmul.mubr.bf16.gmra.mrb[0].mxu0 %v973
    %v2957 = vpop.f32.mrb[0].mxu0
    %v2958 = vadd.f32 %v2845, %v2957
    %v2959 = vpop.f32.mrb[0].mxu0
    %v2960 = vadd.f32 %v2847, %v2959
    %v2961 = vpop.f32.mrb[0].mxu0
    %v2962 = vadd.f32 %v2849, %v2961
    %v2963 = vpop.f32.mrb[0].mxu0
    %v2964 = vadd.f32 %v2851, %v2963
    %2965 = vmatprep.mubr.bf16.mxu0 %v990
    %2966 = vmatmul.mubr.bf16.gmra.mrb[0].mxu0 %v989
    %v2967 = vpop.f32.mrb[0].mxu0
    %v2968 = vadd.f32 %v2855, %v2967
    %v2969 = vpop.f32.mrb[0].mxu0
    %v2970 = vadd.f32 %v2857, %v2969
    %v2971 = vpop.f32.mrb[0].mxu0
    %v2972 = vadd.f32 %v2859, %v2971
    %v2973 = vpop.f32.mrb[0].mxu0
    %v2974 = vadd.f32 %v2861, %v2973
    %2975 = vmatprep.mubr.bf16.mxu0 %v1006
    %2976 = vmatmul.mubr.bf16.gmra.mrb[0].mxu0 %v1005
    %v2977 = vpop.f32.mrb[0].mxu0
    %v2978 = vadd.f32 %v2865, %v2977
    %v2979 = vpop.f32.mrb[0].mxu0
    %v2980 = vadd.f32 %v2867, %v2979
    %v2981 = vpop.f32.mrb[0].mxu0
    %v2982 = vadd.f32 %v2869, %v2981
    %v2983 = vpop.f32.mrb[0].mxu0
    %v2984 = vadd.f32 %v2871, %v2983
    %2985 = vdwg.mxu0
    %2986 = vmatprep.subr.bf16.mxu0 %v2070
    %2987 = vmatpush1.bf16.msra.mxu0 %v2069
    %2988 = vmatprep.subr.bf16.mxu0 %v2072
    %2989 = vmatpush1.bf16.msra.mxu0 %v2071
    %2990 = vmatprep.subr.bf16.mxu0 %v2074
    %2991 = vmatpush1.bf16.msra.mxu0 %v2073
    %2992 = vmatprep.subr.bf16.mxu0 %v2076
    %2993 = vmatpush1.bf16.msra.mxu0 %v2075
    %2994 = vmatprep.subr.bf16.mxu0 %v2078
    %2995 = vmatpush1.bf16.msra.mxu0 %v2077
    %2996 = vmatprep.subr.bf16.mxu0 %v2080
    %2997 = vmatpush1.bf16.msra.mxu0 %v2079
    %2998 = vmatprep.subr.bf16.mxu0 %v2082
    %2999 = vmatpush1.bf16.msra.mxu0 %v2081
    %3000 = vmatprep.subr.bf16.mxu0 %v2084
    %3001 = vmatpush1.bf16.msra.mxu0 %v2083
    %3002 = vmatprep.subr.bf16.mxu0 %v2086
    %3003 = vmatpush1.bf16.msra.mxu0 %v2085
    %3004 = vmatprep.subr.bf16.mxu0 %v2088
    %3005 = vmatpush1.bf16.msra.mxu0 %v2087
    %3006 = vmatprep.subr.bf16.mxu0 %v2090
    %3007 = vmatpush1.bf16.msra.mxu0 %v2089
    %3008 = vmatprep.subr.bf16.mxu0 %v2092
    %3009 = vmatpush1.bf16.msra.mxu0 %v2091
    %3010 = vmatprep.subr.bf16.mxu0 %v2094
    %3011 = vmatpush1.bf16.msra.mxu0 %v2093
    %3012 = vmatprep.subr.bf16.mxu0 %v2096
    %3013 = vmatpush1.bf16.msra.mxu0 %v2095
    %3014 = vmatprep.subr.bf16.mxu0 %v2098
    %3015 = vmatpush1.bf16.msra.mxu0 %v2097
    %3016 = vmatprep.subr.bf16.mxu0 %v2100
    %3017 = vmatpush1.bf16.msra.mxu0 %v2099
    %3018 = vmatprep.mubr.bf16.mxu0 %v896
    %3019 = vmatmul.mubr.bf16.gmra.mrb[0].mxu0 %v895
    %v3020 = vpop.f32.mrb[0].mxu0
    %v3021 = vadd.f32 %v2908, %v3020
    %v3022 = vpop.f32.mrb[0].mxu0
    %v3023 = vadd.f32 %v2910, %v3022
    %v3024 = vpop.f32.mrb[0].mxu0
    %v3025 = vadd.f32 %v2912, %v3024
    %v3026 = vpop.f32.mrb[0].mxu0
    %v3027 = vadd.f32 %v2914, %v3026
    %3028 = vmatprep.mubr.bf16.mxu0 %v912
    %3029 = vmatmul.mubr.bf16.gmra.mrb[0].mxu0 %v911
    %v3030 = vpop.f32.mrb[0].mxu0
    %v3031 = vadd.f32 %v2918, %v3030
    %v3032 = vpop.f32.mrb[0].mxu0
    %v3033 = vadd.f32 %v2920, %v3032
    %v3034 = vpop.f32.mrb[0].mxu0
    %v3035 = vadd.f32 %v2922, %v3034
    %v3036 = vpop.f32.mrb[0].mxu0
    %v3037 = vadd.f32 %v2924, %v3036
    %3038 = vmatprep.mubr.bf16.mxu0 %v928
    %3039 = vmatmul.mubr.bf16.gmra.mrb[0].mxu0 %v927
    %v3040 = vpop.f32.mrb[0].mxu0
    %v3041 = vadd.f32 %v2928, %v3040
    %v3042 = vpop.f32.mrb[0].mxu0
    %v3043 = vadd.f32 %v2930, %v3042
    %v3044 = vpop.f32.mrb[0].mxu0
    %v3045 = vadd.f32 %v2932, %v3044
    %v3046 = vpop.f32.mrb[0].mxu0
    %v3047 = vadd.f32 %v2934, %v3046
    %3048 = vmatprep.mubr.bf16.mxu0 %v944
    %3049 = vmatmul.mubr.bf16.gmra.mrb[0].mxu0 %v943
    %v3050 = vpop.f32.mrb[0].mxu0
    %v3051 = vadd.f32 %v2938, %v3050
    %v3052 = vpop.f32.mrb[0].mxu0
    %v3053 = vadd.f32 %v2940, %v3052
    %v3054 = vpop.f32.mrb[0].mxu0
    %v3055 = vadd.f32 %v2942, %v3054
    %v3056 = vpop.f32.mrb[0].mxu0
    %v3057 = vadd.f32 %v2944, %v3056
    %3058 = vmatprep.mubr.bf16.mxu0 %v960
    %3059 = vmatmul.mubr.bf16.gmra.mrb[0].mxu0 %v959
    %v3060 = vpop.f32.mrb[0].mxu0
    %v3061 = vadd.f32 %v2948, %v3060
    %v3062 = vpop.f32.mrb[0].mxu0
    %v3063 = vadd.f32 %v2950, %v3062
    %v3064 = vpop.f32.mrb[0].mxu0
    %v3065 = vadd.f32 %v2952, %v3064
    %v3066 = vpop.f32.mrb[0].mxu0
    %v3067 = vadd.f32 %v2954, %v3066
    %3068 = vmatprep.mubr.bf16.mxu0 %v976
    %3069 = vmatmul.mubr.bf16.gmra.mrb[0].mxu0 %v975
    %v3070 = vpop.f32.mrb[0].mxu0
    %v3071 = vadd.f32 %v2958, %v3070
    %v3072 = vpop.f32.mrb[0].mxu0
    %v3073 = vadd.f32 %v2960, %v3072
    %v3074 = vpop.f32.mrb[0].mxu0
    %v3075 = vadd.f32 %v2962, %v3074
    %v3076 = vpop.f32.mrb[0].mxu0
    %v3077 = vadd.f32 %v2964, %v3076
    %3078 = vmatprep.mubr.bf16.mxu0 %v992
    %3079 = vmatmul.mubr.bf16.gmra.mrb[0].mxu0 %v991
    %v3080 = vpop.f32.mrb[0].mxu0
    %v3081 = vadd.f32 %v2968, %v3080
    %v3082 = vpop.f32.mrb[0].mxu0
    %v3083 = vadd.f32 %v2970, %v3082
    %v3084 = vpop.f32.mrb[0].mxu0
    %v3085 = vadd.f32 %v2972, %v3084
    %v3086 = vpop.f32.mrb[0].mxu0
    %v3087 = vadd.f32 %v2974, %v3086
    %3088 = vmatprep.mubr.bf16.mxu0 %v1008
    %3089 = vmatmul.mubr.bf16.gmra.mrb[0].mxu0 %v1007
    %v3090 = vpop.f32.mrb[0].mxu0
    %v3091 = vadd.f32 %v2978, %v3090
    %v3092 = vpop.f32.mrb[0].mxu0
    %v3093 = vadd.f32 %v2980, %v3092
    %v3094 = vpop.f32.mrb[0].mxu0
    %v3095 = vadd.f32 %v2982, %v3094
    %v3096 = vpop.f32.mrb[0].mxu0
    %v3097 = vadd.f32 %v2984, %v3096
    %3098 = vdwg.mxu0
    %3099 = vmatprep.subr.bf16.mxu0 %v2102
    %3100 = vmatpush1.bf16.msra.mxu0 %v2101
    %3101 = vmatprep.subr.bf16.mxu0 %v2104
    %3102 = vmatpush1.bf16.msra.mxu0 %v2103
    %3103 = vmatprep.subr.bf16.mxu0 %v2106
    %3104 = vmatpush1.bf16.msra.mxu0 %v2105
    %3105 = vmatprep.subr.bf16.mxu0 %v2108
    %3106 = vmatpush1.bf16.msra.mxu0 %v2107
    %3107 = vmatprep.subr.bf16.mxu0 %v2110
    %3108 = vmatpush1.bf16.msra.mxu0 %v2109
    %3109 = vmatprep.subr.bf16.mxu0 %v2112
    %3110 = vmatpush1.bf16.msra.mxu0 %v2111
    %3111 = vmatprep.subr.bf16.mxu0 %v2114
    %3112 = vmatpush1.bf16.msra.mxu0 %v2113
    %3113 = vmatprep.subr.bf16.mxu0 %v2116
    %3114 = vmatpush1.bf16.msra.mxu0 %v2115
    %3115 = vmatprep.subr.bf16.mxu0 %v2118
    %3116 = vmatpush1.bf16.msra.mxu0 %v2117
    %3117 = vmatprep.subr.bf16.mxu0 %v2120
    %3118 = vmatpush1.bf16.msra.mxu0 %v2119
    %3119 = vmatprep.subr.bf16.mxu0 %v2122
    %3120 = vmatpush1.bf16.msra.mxu0 %v2121
    %3121 = vmatprep.subr.bf16.mxu0 %v2124
    %3122 = vmatpush1.bf16.msra.mxu0 %v2123
    %3123 = vmatprep.subr.bf16.mxu0 %v2126
    %3124 = vmatpush1.bf16.msra.mxu0 %v2125
    %3125 = vmatprep.subr.bf16.mxu0 %v2128
    %3126 = vmatpush1.bf16.msra.mxu0 %v2127
    %3127 = vmatprep.subr.bf16.mxu0 %v2130
    %3128 = vmatpush1.bf16.msra.mxu0 %v2129
    %3129 = vmatprep.subr.bf16.mxu0 %v2132
    %3130 = vmatpush1.bf16.msra.mxu0 %v2131
    %3131 = vmatprep.mubr.bf16.mxu0 %v898
    %3132 = vmatmul.mubr.bf16.gmra.mrb[0].mxu0 %v897
    %v3133 = vpop.f32.mrb[0].mxu0
    %v3134 = vadd.f32 %v3021, %v3133
    %v3135 = vpop.f32.mrb[0].mxu0
    %v3136 = vadd.f32 %v3023, %v3135
    %v3137 = vpop.f32.mrb[0].mxu0
    %v3138 = vadd.f32 %v3025, %v3137
    %v3139 = vpop.f32.mrb[0].mxu0
    %v3140 = vadd.f32 %v3027, %v3139
    %3141 = vmatprep.mubr.bf16.mxu0 %v914
    %3142 = vmatmul.mubr.bf16.gmra.mrb[0].mxu0 %v913
    %v3143 = vpop.f32.mrb[0].mxu0
    %v3144 = vadd.f32 %v3031, %v3143
    %v3145 = vpop.f32.mrb[0].mxu0
    %v3146 = vadd.f32 %v3033, %v3145
    %v3147 = vpop.f32.mrb[0].mxu0
    %v3148 = vadd.f32 %v3035, %v3147
    %v3149 = vpop.f32.mrb[0].mxu0
    %v3150 = vadd.f32 %v3037, %v3149
    %3151 = vmatprep.mubr.bf16.mxu0 %v930
    %3152 = vmatmul.mubr.bf16.gmra.mrb[0].mxu0 %v929
    %v3153 = vpop.f32.mrb[0].mxu0
    %v3154 = vadd.f32 %v3041, %v3153
    %v3155 = vpop.f32.mrb[0].mxu0
    %v3156 = vadd.f32 %v3043, %v3155
    %v3157 = vpop.f32.mrb[0].mxu0
    %v3158 = vadd.f32 %v3045, %v3157
    %v3159 = vpop.f32.mrb[0].mxu0
    %v3160 = vadd.f32 %v3047, %v3159
    %3161 = vmatprep.mubr.bf16.mxu0 %v946
    %3162 = vmatmul.mubr.bf16.gmra.mrb[0].mxu0 %v945
    %v3163 = vpop.f32.mrb[0].mxu0
    %v3164 = vadd.f32 %v3051, %v3163
    %v3165 = vpop.f32.mrb[0].mxu0
    %v3166 = vadd.f32 %v3053, %v3165
    %v3167 = vpop.f32.mrb[0].mxu0
    %v3168 = vadd.f32 %v3055, %v3167
    %v3169 = vpop.f32.mrb[0].mxu0
    %v3170 = vadd.f32 %v3057, %v3169
    %3171 = vmatprep.mubr.bf16.mxu0 %v962
    %3172 = vmatmul.mubr.bf16.gmra.mrb[0].mxu0 %v961
    %v3173 = vpop.f32.mrb[0].mxu0
    %v3174 = vadd.f32 %v3061, %v3173
    %v3175 = vpop.f32.mrb[0].mxu0
    %v3176 = vadd.f32 %v3063, %v3175
    %v3177 = vpop.f32.mrb[0].mxu0
    %v3178 = vadd.f32 %v3065, %v3177
    %v3179 = vpop.f32.mrb[0].mxu0
    %v3180 = vadd.f32 %v3067, %v3179
    %3181 = vmatprep.mubr.bf16.mxu0 %v978
    %3182 = vmatmul.mubr.bf16.gmra.mrb[0].mxu0 %v977
    %v3183 = vpop.f32.mrb[0].mxu0
    %v3184 = vadd.f32 %v3071, %v3183
    %v3185 = vpop.f32.mrb[0].mxu0
    %v3186 = vadd.f32 %v3073, %v3185
    %v3187 = vpop.f32.mrb[0].mxu0
    %v3188 = vadd.f32 %v3075, %v3187
    %v3189 = vpop.f32.mrb[0].mxu0
    %v3190 = vadd.f32 %v3077, %v3189
    %3191 = vmatprep.mubr.bf16.mxu0 %v994
    %3192 = vmatmul.mubr.bf16.gmra.mrb[0].mxu0 %v993
    %v3193 = vpop.f32.mrb[0].mxu0
    %v3194 = vadd.f32 %v3081, %v3193
    %v3195 = vpop.f32.mrb[0].mxu0
    %v3196 = vadd.f32 %v3083, %v3195
    %v3197 = vpop.f32.mrb[0].mxu0
    %v3198 = vadd.f32 %v3085, %v3197
    %v3199 = vpop.f32.mrb[0].mxu0
    %v3200 = vadd.f32 %v3087, %v3199
    %3201 = vmatprep.mubr.bf16.mxu0 %v1010
    %3202 = vmatmul.mubr.bf16.gmra.mrb[0].mxu0 %v1009
    %v3203 = vpop.f32.mrb[0].mxu0
    %v3204 = vadd.f32 %v3091, %v3203
    %v3205 = vpop.f32.mrb[0].mxu0
    %v3206 = vadd.f32 %v3093, %v3205
    %v3207 = vpop.f32.mrb[0].mxu0
    %v3208 = vadd.f32 %v3095, %v3207
    %v3209 = vpop.f32.mrb[0].mxu0
    %v3210 = vadd.f32 %v3097, %v3209
    %3211 = vdwg.mxu0
    %3212 = vmatprep.subr.bf16.mxu0 %v2134
    %3213 = vmatpush1.bf16.msra.mxu0 %v2133
    %3214 = vmatprep.subr.bf16.mxu0 %v2136
    %3215 = vmatpush1.bf16.msra.mxu0 %v2135
    %3216 = vmatprep.subr.bf16.mxu0 %v2138
    %3217 = vmatpush1.bf16.msra.mxu0 %v2137
    %3218 = vmatprep.subr.bf16.mxu0 %v2140
    %3219 = vmatpush1.bf16.msra.mxu0 %v2139
    %3220 = vmatprep.subr.bf16.mxu0 %v2142
    %3221 = vmatpush1.bf16.msra.mxu0 %v2141
    %3222 = vmatprep.subr.bf16.mxu0 %v2144
    %3223 = vmatpush1.bf16.msra.mxu0 %v2143
    %3224 = vmatprep.subr.bf16.mxu0 %v2146
    %3225 = vmatpush1.bf16.msra.mxu0 %v2145
    %3226 = vmatprep.subr.bf16.mxu0 %v2148
    %3227 = vmatpush1.bf16.msra.mxu0 %v2147
    %3228 = vmatprep.subr.bf16.mxu0 %v2150
    %3229 = vmatpush1.bf16.msra.mxu0 %v2149
    %3230 = vmatprep.subr.bf16.mxu0 %v2152
    %3231 = vmatpush1.bf16.msra.mxu0 %v2151
    %3232 = vmatprep.subr.bf16.mxu0 %v2154
    %3233 = vmatpush1.bf16.msra.mxu0 %v2153
    %3234 = vmatprep.subr.bf16.mxu0 %v2156
    %3235 = vmatpush1.bf16.msra.mxu0 %v2155
    %3236 = vmatprep.subr.bf16.mxu0 %v2158
    %3237 = vmatpush1.bf16.msra.mxu0 %v2157
    %3238 = vmatprep.subr.bf16.mxu0 %v2160
    %3239 = vmatpush1.bf16.msra.mxu0 %v2159
    %3240 = vmatprep.subr.bf16.mxu0 %v2162
    %3241 = vmatpush1.bf16.msra.mxu0 %v2161
    %3242 = vmatprep.subr.bf16.mxu0 %v2164
    %3243 = vmatpush1.bf16.msra.mxu0 %v2163
    %3244 = vmatprep.mubr.bf16.mxu0 %v900
    %3245 = vmatmul.mubr.bf16.gmra.mrb[0].mxu0 %v899
    %v3246 = vpop.f32.mrb[0].mxu0
    %v3247 = vadd.f32 %v3134, %v3246
    %v3248 = vpop.f32.mrb[0].mxu0
    %v3249 = vadd.f32 %v3136, %v3248
    %v3250 = vpop.f32.mrb[0].mxu0
    %v3251 = vadd.f32 %v3138, %v3250
    %v3252 = vpop.f32.mrb[0].mxu0
    %v3253 = vadd.f32 %v3140, %v3252
    %3254 = vmatprep.mubr.bf16.mxu0 %v916
    %3255 = vmatmul.mubr.bf16.gmra.mrb[0].mxu0 %v915
    %v3256 = vpop.f32.mrb[0].mxu0
    %v3257 = vadd.f32 %v3144, %v3256
    %v3258 = vpop.f32.mrb[0].mxu0
    %v3259 = vadd.f32 %v3146, %v3258
    %v3260 = vpop.f32.mrb[0].mxu0
    %v3261 = vadd.f32 %v3148, %v3260
    %v3262 = vpop.f32.mrb[0].mxu0
    %v3263 = vadd.f32 %v3150, %v3262
    %3264 = vmatprep.mubr.bf16.mxu0 %v932
    %3265 = vmatmul.mubr.bf16.gmra.mrb[0].mxu0 %v931
    %v3266 = vpop.f32.mrb[0].mxu0
    %v3267 = vadd.f32 %v3154, %v3266
    %v3268 = vpop.f32.mrb[0].mxu0
    %v3269 = vadd.f32 %v3156, %v3268
    %v3270 = vpop.f32.mrb[0].mxu0
    %v3271 = vadd.f32 %v3158, %v3270
    %v3272 = vpop.f32.mrb[0].mxu0
    %v3273 = vadd.f32 %v3160, %v3272
    %3274 = vmatprep.mubr.bf16.mxu0 %v948
    %3275 = vmatmul.mubr.bf16.gmra.mrb[0].mxu0 %v947
    %v3276 = vpop.f32.mrb[0].mxu0
    %v3277 = vadd.f32 %v3164, %v3276
    %v3278 = vpop.f32.mrb[0].mxu0
    %v3279 = vadd.f32 %v3166, %v3278
    %v3280 = vpop.f32.mrb[0].mxu0
    %v3281 = vadd.f32 %v3168, %v3280
    %v3282 = vpop.f32.mrb[0].mxu0
    %v3283 = vadd.f32 %v3170, %v3282
    %3284 = vmatprep.mubr.bf16.mxu0 %v964
    %3285 = vmatmul.mubr.bf16.gmra.mrb[0].mxu0 %v963
    %v3286 = vpop.f32.mrb[0].mxu0
    %v3287 = vadd.f32 %v3174, %v3286
    %v3288 = vpop.f32.mrb[0].mxu0
    %v3289 = vadd.f32 %v3176, %v3288
    %v3290 = vpop.f32.mrb[0].mxu0
    %v3291 = vadd.f32 %v3178, %v3290
    %v3292 = vpop.f32.mrb[0].mxu0
    %v3293 = vadd.f32 %v3180, %v3292
    %3294 = vmatprep.mubr.bf16.mxu0 %v980
    %3295 = vmatmul.mubr.bf16.gmra.mrb[0].mxu0 %v979
    %v3296 = vpop.f32.mrb[0].mxu0
    %v3297 = vadd.f32 %v3184, %v3296
    %v3298 = vpop.f32.mrb[0].mxu0
    %v3299 = vadd.f32 %v3186, %v3298
    %v3300 = vpop.f32.mrb[0].mxu0
    %v3301 = vadd.f32 %v3188, %v3300
    %v3302 = vpop.f32.mrb[0].mxu0
    %v3303 = vadd.f32 %v3190, %v3302
    %3304 = vmatprep.mubr.bf16.mxu0 %v996
    %3305 = vmatmul.mubr.bf16.gmra.mrb[0].mxu0 %v995
    %v3306 = vpop.f32.mrb[0].mxu0
    %v3307 = vadd.f32 %v3194, %v3306
    %v3308 = vpop.f32.mrb[0].mxu0
    %v3309 = vadd.f32 %v3196, %v3308
    %v3310 = vpop.f32.mrb[0].mxu0
    %v3311 = vadd.f32 %v3198, %v3310
    %v3312 = vpop.f32.mrb[0].mxu0
    %v3313 = vadd.f32 %v3200, %v3312
    %3314 = vmatprep.mubr.bf16.mxu0 %v1012
    %3315 = vmatmul.mubr.bf16.gmra.mrb[0].mxu0 %v1011
    %v3316 = vpop.f32.mrb[0].mxu0
    %v3317 = vadd.f32 %v3204, %v3316
    %v3318 = vpop.f32.mrb[0].mxu0
    %v3319 = vadd.f32 %v3206, %v3318
    %v3320 = vpop.f32.mrb[0].mxu0
    %v3321 = vadd.f32 %v3208, %v3320
    %v3322 = vpop.f32.mrb[0].mxu0
    %v3323 = vadd.f32 %v3210, %v3322
    %3324 = vdwg.mxu0
    %3341 = vrot.lane.b32.xlu0 %v3247, 64
    %v3342 = vpop.permute.xlu0 %3341
    %3343 = vrot.lane.b32.xlu0 %v3251, 64
    %v3344 = vpop.permute.xlu0 %3343
    %3345 = vrot.lane.b32.xlu0 %v3257, 64
    %v3346 = vpop.permute.xlu0 %3345
    %3347 = vrot.lane.b32.xlu0 %v3261, 64
    %v3348 = vpop.permute.xlu0 %3347
    %3349 = vrot.lane.b32.xlu0 %v3267, 64
    %v3350 = vpop.permute.xlu0 %3349
    %3351 = vrot.lane.b32.xlu0 %v3271, 64
    %v3352 = vpop.permute.xlu0 %3351
    %3353 = vrot.lane.b32.xlu0 %v3277, 64
    %v3354 = vpop.permute.xlu0 %3353
    %3355 = vrot.lane.b32.xlu0 %v3281, 64
    %v3356 = vpop.permute.xlu0 %3355
    %3357 = vrot.lane.b32.xlu0 %v3287, 64
    %v3358 = vpop.permute.xlu0 %3357
    %3359 = vrot.lane.b32.xlu0 %v3291, 64
    %v3360 = vpop.permute.xlu0 %3359
    %3361 = vrot.lane.b32.xlu0 %v3297, 64
    %v3362 = vpop.permute.xlu0 %3361
    %3363 = vrot.lane.b32.xlu0 %v3301, 64
    %v3364 = vpop.permute.xlu0 %3363
    %3365 = vrot.lane.b32.xlu0 %v3307, 64
    %v3366 = vpop.permute.xlu0 %3365
    %3367 = vrot.lane.b32.xlu0 %v3311, 64
    %v3368 = vpop.permute.xlu0 %3367
    %3369 = vrot.lane.b32.xlu0 %v3317, 64
    %v3370 = vpop.permute.xlu0 %3369
    %3371 = vrot.lane.b32.xlu0 %v3321, 64
    %v3372 = vpop.permute.xlu0 %3371
    %v3389 = vmax.f32 %v3247, %v3342
    %v3390 = vmax.f32 %v3251, %v3344
    %v3391 = vmax.f32 %v3257, %v3346
    %v3392 = vmax.f32 %v3261, %v3348
    %v3393 = vmax.f32 %v3267, %v3350
    %v3394 = vmax.f32 %v3271, %v3352
    %v3395 = vmax.f32 %v3277, %v3354
    %v3396 = vmax.f32 %v3281, %v3356
    %v3397 = vmax.f32 %v3287, %v3358
    %v3398 = vmax.f32 %v3291, %v3360
    %v3399 = vmax.f32 %v3297, %v3362
    %v3400 = vmax.f32 %v3301, %v3364
    %v3401 = vmax.f32 %v3307, %v3366
    %v3402 = vmax.f32 %v3311, %v3368
    %v3403 = vmax.f32 %v3317, %v3370
    %v3404 = vmax.f32 %v3321, %v3372
    %3421 = vrot.lane.b32.xlu0 %v3249, 64
    %v3422 = vpop.permute.xlu0 %3421
    %3423 = vrot.lane.b32.xlu0 %v3253, 64
    %v3424 = vpop.permute.xlu0 %3423
    %3425 = vrot.lane.b32.xlu0 %v3259, 64
    %v3426 = vpop.permute.xlu0 %3425
    %3427 = vrot.lane.b32.xlu0 %v3263, 64
    %v3428 = vpop.permute.xlu0 %3427
    %3429 = vrot.lane.b32.xlu0 %v3269, 64
    %v3430 = vpop.permute.xlu0 %3429
    %3431 = vrot.lane.b32.xlu0 %v3273, 64
    %v3432 = vpop.permute.xlu0 %3431
    %3433 = vrot.lane.b32.xlu0 %v3279, 64
    %v3434 = vpop.permute.xlu0 %3433
    %3435 = vrot.lane.b32.xlu0 %v3283, 64
    %v3436 = vpop.permute.xlu0 %3435
    %3437 = vrot.lane.b32.xlu0 %v3289, 64
    %v3438 = vpop.permute.xlu0 %3437
    %3439 = vrot.lane.b32.xlu0 %v3293, 64
    %v3440 = vpop.permute.xlu0 %3439
    %3441 = vrot.lane.b32.xlu0 %v3299, 64
    %v3442 = vpop.permute.xlu0 %3441
    %3443 = vrot.lane.b32.xlu0 %v3303, 64
    %v3444 = vpop.permute.xlu0 %3443
    %3445 = vrot.lane.b32.xlu0 %v3309, 64
    %v3446 = vpop.permute.xlu0 %3445
    %3447 = vrot.lane.b32.xlu0 %v3313, 64
    %v3448 = vpop.permute.xlu0 %3447
    %3449 = vrot.lane.b32.xlu0 %v3319, 64
    %v3450 = vpop.permute.xlu0 %3449
    %3451 = vrot.lane.b32.xlu0 %v3323, 64
    %v3452 = vpop.permute.xlu0 %3451
    %v3469 = vmax.f32 %v3249, %v3422
    %v3470 = vmax.f32 %v3253, %v3424
    %v3471 = vmax.f32 %v3259, %v3426
    %v3472 = vmax.f32 %v3263, %v3428
    %v3473 = vmax.f32 %v3269, %v3430
    %v3474 = vmax.f32 %v3273, %v3432
    %v3475 = vmax.f32 %v3279, %v3434
    %v3476 = vmax.f32 %v3283, %v3436
    %v3477 = vmax.f32 %v3289, %v3438
    %v3478 = vmax.f32 %v3293, %v3440
    %v3479 = vmax.f32 %v3299, %v3442
    %v3480 = vmax.f32 %v3303, %v3444
    %v3481 = vmax.f32 %v3309, %v3446
    %v3482 = vmax.f32 %v3313, %v3448
    %v3483 = vmax.f32 %v3319, %v3450
    %v3484 = vmax.f32 %v3323, %v3452
    %v3485 = vmax.f32 %v3389, %v3469
    %v3486 = vmax.f32 %v3390, %v3470
    %v3487 = vmax.f32 %v3391, %v3471
    %v3488 = vmax.f32 %v3392, %v3472
    %v3489 = vmax.f32 %v3393, %v3473
    %v3490 = vmax.f32 %v3394, %v3474
    %v3491 = vmax.f32 %v3395, %v3475
    %v3492 = vmax.f32 %v3396, %v3476
    %v3493 = vmax.f32 %v3397, %v3477
    %v3494 = vmax.f32 %v3398, %v3478
    %v3495 = vmax.f32 %v3399, %v3479
    %v3496 = vmax.f32 %v3400, %v3480
    %v3497 = vmax.f32 %v3401, %v3481
    %v3498 = vmax.f32 %v3402, %v3482
    %v3499 = vmax.f32 %v3403, %v3483
    %v3500 = vmax.f32 %v3404, %v3484
    %v3501 = vld [vmem:[#allocation7] sm:$0x1]
    %v3503 = vlaneseq
    %v3504 = vshrl.u32 %v3503, 7
    %v3505 = vsub.s32 0, %v3504
    %v3506 = vrot.slane %v3501, %v3505
    %v3508 = vadd.f32 %v3485, %v3506
    %v3509 = vadd.f32 %v3486, %v3506
    %v3510 = vadd.f32 %v3487, %v3506
    %v3511 = vadd.f32 %v3488, %v3506
    %v3512 = vadd.f32 %v3489, %v3506
    %v3513 = vadd.f32 %v3490, %v3506
    %v3514 = vadd.f32 %v3491, %v3506
    %v3515 = vadd.f32 %v3492, %v3506
    %v3516 = vadd.f32 %v3493, %v3506
    %v3517 = vadd.f32 %v3494, %v3506
    %v3518 = vadd.f32 %v3495, %v3506
    %v3519 = vadd.f32 %v3496, %v3506
    %v3520 = vadd.f32 %v3497, %v3506
    %v3521 = vadd.f32 %v3498, %v3506
    %v3522 = vadd.f32 %v3499, %v3506
    %v3523 = vadd.f32 %v3500, %v3506
    %v3524 = vmax.f32 %v3508, 0.0
    %v3525 = vmax.f32 %v3509, 0.0
    %v3526 = vmax.f32 %v3510, 0.0
    %v3527 = vmax.f32 %v3511, 0.0
    %v3528 = vmax.f32 %v3512, 0.0
    %v3529 = vmax.f32 %v3513, 0.0
    %v3530 = vmax.f32 %v3514, 0.0
    %v3531 = vmax.f32 %v3515, 0.0
    %v3532 = vmax.f32 %v3516, 0.0
    %v3533 = vmax.f32 %v3517, 0.0
    %v3534 = vmax.f32 %v3518, 0.0
    %v3535 = vmax.f32 %v3519, 0.0
    %v3536 = vmax.f32 %v3520, 0.0
    %v3537 = vmax.f32 %v3521, 0.0
    %v3538 = vmax.f32 %v3522, 0.0
    %v3539 = vmax.f32 %v3523, 0.0
    %v3540 = vpack.c.bf16 %v3525, %v3524
    %v3541 = vpack.c.bf16 %v3527, %v3526
    %v3542 = vpack.c.bf16 %v3529, %v3528
    %v3543 = vpack.c.bf16 %v3531, %v3530
    %v3544 = vpack.c.bf16 %v3533, %v3532
    %v3545 = vpack.c.bf16 %v3535, %v3534
    %v3546 = vpack.c.bf16 %v3537, %v3536
    %v3547 = vpack.c.bf16 %v3539, %v3538
    %v3548 = vld [vmem:[#allocation8] sm:$0xf]
    %v3549 = vld [vmem:[#allocation8 + $0x4] sm:$0xf]
    %v3550 = vld [vmem:[#allocation8 + $0x8] sm:$0xf]
    %v3551 = vld [vmem:[#allocation8 + $0xc] sm:$0xf]
    %v3552 = vld [vmem:[#allocation8 + $0x10] sm:$0xf]
    %v3553 = vld [vmem:[#allocation8 + $0x14] sm:$0xf]
    %v3554 = vld [vmem:[#allocation8 + $0x18] sm:$0xf]
    %v3555 = vld [vmem:[#allocation8 + $0x1c] sm:$0xf]
    %v3556 = vld [vmem:[#allocation10] sm:$0x1]
    %v3558 = vlaneseq
    %v3559 = vshrl.u32 %v3558, 7
    %v3560 = vsub.s32 0, %v3559
    %v3561 = vrot.slane %v3556, %v3560
    %v3571 = vunpack.c.l.b16 %v3548
    %v3572 = vunpack.c.l.b16 %v3549
    %v3573 = vunpack.c.l.b16 %v3550
    %v3574 = vunpack.c.l.b16 %v3551
    %v3575 = vunpack.c.l.b16 %v3552
    %v3576 = vunpack.c.l.b16 %v3553
    %v3577 = vunpack.c.l.b16 %v3554
    %v3578 = vunpack.c.l.b16 %v3555
    %v3579 = vpack.c.b16 %v3572, %v3571
    %v3580 = vpack.c.b16 %v3574, %v3573
    %v3581 = vpack.c.b16 %v3576, %v3575
    %v3582 = vpack.c.b16 %v3578, %v3577
    %vm3587 = vcmask 523264
    %v3589 = vsel %vm3587, %v3540, 0
    %v3592 = vsel %vm3587, %v3541, 0
    %v3595 = vsel %vm3587, %v3542, 0
    %v3598 = vsel %vm3587, %v3543, 0
    %v3601 = vsel %vm3587, %v3544, 0
    %v3604 = vsel %vm3587, %v3545, 0
    %v3607 = vsel %vm3587, %v3546, 0
    %v3610 = vsel %vm3587, %v3547, 0
    %3612 = vmatprep.subr.bf16.mxu0 0
    %3613 = vmatpush1.bf16.msra.mxu0 %v3579
    %3614 = vmatprep.subr.bf16.mxu0 0
    %3615 = vmatpush1.bf16.msra.mxu0 %v3580
    %3616 = vmatprep.subr.bf16.mxu0 0
    %3617 = vmatpush1.bf16.msra.mxu0 %v3581
    %3618 = vmatprep.subr.bf16.mxu0 0
    %3619 = vmatpush1.bf16.msra.mxu0 %v3582
    %3620 = vmatprep.subr.bf16.mxu0 0
    %3621 = vmatpush1.bf16.msra.mxu0 0
    %3622 = vmatprep.subr.bf16.mxu0 0
    %3623 = vmatpush1.bf16.msra.mxu0 0
    %3624 = vmatprep.subr.bf16.mxu0 0
    %3625 = vmatpush1.bf16.msra.mxu0 0
    %3626 = vmatprep.subr.bf16.mxu0 0
    %3627 = vmatpush1.bf16.msra.mxu0 0
    %3628 = vmatprep.subr.bf16.mxu0 0
    %3629 = vmatpush1.bf16.msra.mxu0 0
    %3630 = vmatprep.subr.bf16.mxu0 0
    %3631 = vmatpush1.bf16.msra.mxu0 0
    %3632 = vmatprep.subr.bf16.mxu0 0
    %3633 = vmatpush1.bf16.msra.mxu0 0
    %3634 = vmatprep.subr.bf16.mxu0 0
    %3635 = vmatpush1.bf16.msra.mxu0 0
    %3636 = vmatprep.subr.bf16.mxu0 0
    %3637 = vmatpush1.bf16.msra.mxu0 0
    %3638 = vmatprep.subr.bf16.mxu0 0
    %3639 = vmatpush1.bf16.msra.mxu0 0
    %3640 = vmatprep.subr.bf16.mxu0 0
    %3641 = vmatpush1.bf16.msra.mxu0 0
    %3642 = vmatprep.subr.bf16.mxu0 0
    %3643 = vmatpush1.bf16.msra.mxu0 0
    %3644 = vmatprep.mubr.bf16.mxu0 0
    %3645 = vmatmul.mubr.bf16.gmra.mrb[0].mxu0 %v3589
    %v3646 = vpop.f32.mrb[0].mxu0
    %v3647 = vadd.f32 %v3561, %v3646
    %v3648 = vpop.f32.mrb[0].mxu0
    %v3649 = vpop.f32.mrb[0].mxu0
    %v3650 = vadd.f32 %v3561, %v3649
    %v3651 = vpop.f32.mrb[0].mxu0
    %3652 = vmatprep.mubr.bf16.mxu0 0
    %3653 = vmatmul.mubr.bf16.gmra.mrb[0].mxu0 %v3592
    %v3654 = vpop.f32.mrb[0].mxu0
    %v3655 = vadd.f32 %v3561, %v3654
    %v3656 = vpop.f32.mrb[0].mxu0
    %v3657 = vpop.f32.mrb[0].mxu0
    %v3658 = vadd.f32 %v3561, %v3657
    %v3659 = vpop.f32.mrb[0].mxu0
    %3660 = vmatprep.mubr.bf16.mxu0 0
    %3661 = vmatmul.mubr.bf16.gmra.mrb[0].mxu0 %v3595
    %v3662 = vpop.f32.mrb[0].mxu0
    %v3663 = vadd.f32 %v3561, %v3662
    %v3664 = vpop.f32.mrb[0].mxu0
    %v3665 = vpop.f32.mrb[0].mxu0
    %v3666 = vadd.f32 %v3561, %v3665
    %v3667 = vpop.f32.mrb[0].mxu0
    %3668 = vmatprep.mubr.bf16.mxu0 0
    %3669 = vmatmul.mubr.bf16.gmra.mrb[0].mxu0 %v3598
    %v3670 = vpop.f32.mrb[0].mxu0
    %v3671 = vadd.f32 %v3561, %v3670
    %v3672 = vpop.f32.mrb[0].mxu0
    %v3673 = vpop.f32.mrb[0].mxu0
    %v3674 = vadd.f32 %v3561, %v3673
    %v3675 = vpop.f32.mrb[0].mxu0
    %3676 = vmatprep.mubr.bf16.mxu0 0
    %3677 = vmatmul.mubr.bf16.gmra.mrb[0].mxu0 %v3601
    %v3678 = vpop.f32.mrb[0].mxu0
    %v3679 = vadd.f32 %v3561, %v3678
    %v3680 = vpop.f32.mrb[0].mxu0
    %v3681 = vpop.f32.mrb[0].mxu0
    %v3682 = vadd.f32 %v3561, %v3681
    %v3683 = vpop.f32.mrb[0].mxu0
    %3684 = vmatprep.mubr.bf16.mxu0 0
    %3685 = vmatmul.mubr.bf16.gmra.mrb[0].mxu0 %v3604
    %v3686 = vpop.f32.mrb[0].mxu0
    %v3687 = vadd.f32 %v3561, %v3686
    %v3688 = vpop.f32.mrb[0].mxu0
    %v3689 = vpop.f32.mrb[0].mxu0
    %v3690 = vadd.f32 %v3561, %v3689
    %v3691 = vpop.f32.mrb[0].mxu0
    %3692 = vmatprep.mubr.bf16.mxu0 0
    %3693 = vmatmul.mubr.bf16.gmra.mrb[0].mxu0 %v3607
    %v3694 = vpop.f32.mrb[0].mxu0
    %v3695 = vadd.f32 %v3561, %v3694
    %v3696 = vpop.f32.mrb[0].mxu0
    %v3697 = vpop.f32.mrb[0].mxu0
    %v3698 = vadd.f32 %v3561, %v3697
    %v3699 = vpop.f32.mrb[0].mxu0
    %3700 = vmatprep.mubr.bf16.mxu0 0
    %3701 = vmatmul.mubr.bf16.gmra.mrb[0].mxu0 %v3610
    %v3702 = vpop.f32.mrb[0].mxu0
    %v3703 = vadd.f32 %v3561, %v3702
    %v3704 = vpop.f32.mrb[0].mxu0
    %v3705 = vpop.f32.mrb[0].mxu0
    %v3706 = vadd.f32 %v3561, %v3705
    %v3707 = vpop.f32.mrb[0].mxu0
    %3708 = vdwg.mxu0
    %v3709 = vmax.f32 %v3647, 0.0
    %v3710 = vmax.f32 %v3650, 0.0
    %v3711 = vmax.f32 %v3655, 0.0
    %v3712 = vmax.f32 %v3658, 0.0
    %v3713 = vmax.f32 %v3663, 0.0
    %v3714 = vmax.f32 %v3666, 0.0
    %v3715 = vmax.f32 %v3671, 0.0
    %v3716 = vmax.f32 %v3674, 0.0
    %v3717 = vmax.f32 %v3679, 0.0
    %v3718 = vmax.f32 %v3682, 0.0
    %v3719 = vmax.f32 %v3687, 0.0
    %v3720 = vmax.f32 %v3690, 0.0
    %v3721 = vmax.f32 %v3695, 0.0
    %v3722 = vmax.f32 %v3698, 0.0
    %v3723 = vmax.f32 %v3703, 0.0
    %v3724 = vmax.f32 %v3706, 0.0
    %v3725 = vpack.c.bf16 %v3710, %v3709
    %v3726 = vpack.c.bf16 %v3712, %v3711
    %v3727 = vpack.c.bf16 %v3714, %v3713
    %v3728 = vpack.c.bf16 %v3716, %v3715
    %v3729 = vpack.c.bf16 %v3718, %v3717
    %v3730 = vpack.c.bf16 %v3720, %v3719
    %v3731 = vpack.c.bf16 %v3722, %v3721
    %v3732 = vpack.c.bf16 %v3724, %v3723
    %v3733 = vld [vmem:[#allocation11] sm:$0xf]
    %v3734 = vld [vmem:[#allocation11 + $0x4] sm:$0xf]
    %v3735 = vld [vmem:[#allocation11 + $0x8] sm:$0xf]
    %v3736 = vld [vmem:[#allocation11 + $0xc] sm:$0xf]
    %v3737 = vld [vmem:[#allocation11 + $0x10] sm:$0xf]
    %v3738 = vld [vmem:[#allocation11 + $0x14] sm:$0xf]
    %v3739 = vld [vmem:[#allocation11 + $0x18] sm:$0xf]
    %v3740 = vld [vmem:[#allocation11 + $0x1c] sm:$0xf]
    %v3741 = vld [vmem:[#allocation11 + $0x20] sm:$0xf]
    %v3742 = vld [vmem:[#allocation11 + $0x24] sm:$0xf]
    %v3743 = vld [vmem:[#allocation11 + $0x28] sm:$0xf]
    %v3744 = vld [vmem:[#allocation11 + $0x2c] sm:$0xf]
    %v3745 = vld [vmem:[#allocation11 + $0x30] sm:$0xf]
    %v3746 = vld [vmem:[#allocation11 + $0x34] sm:$0xf]
    %v3747 = vld [vmem:[#allocation11 + $0x38] sm:$0xf]
    %v3748 = vld [vmem:[#allocation11 + $0x3c] sm:$0xf]
    %v3749 = vld [vmem:[#allocation13] sm:$0x1]
    %v3751 = vlaneseq
    %v3752 = vshrl.u32 %v3751, 7
    %v3753 = vsub.s32 0, %v3752
    %v3754 = vrot.slane %v3749, %v3753
    %v3772 = vunpack.c.l.b16 %v3733
    %v3773 = vunpack.c.l.b16 %v3734
    %v3774 = vunpack.c.l.b16 %v3735
    %v3775 = vunpack.c.l.b16 %v3736
    %v3776 = vunpack.c.l.b16 %v3737
    %v3777 = vunpack.c.l.b16 %v3738
    %v3778 = vunpack.c.l.b16 %v3739
    %v3779 = vunpack.c.l.b16 %v3740
    %v3780 = vunpack.c.l.b16 %v3741
    %v3781 = vunpack.c.l.b16 %v3742
    %v3782 = vunpack.c.l.b16 %v3743
    %v3783 = vunpack.c.l.b16 %v3744
    %v3784 = vunpack.c.l.b16 %v3745
    %v3785 = vunpack.c.l.b16 %v3746
    %v3786 = vunpack.c.l.b16 %v3747
    %v3787 = vunpack.c.l.b16 %v3748
    %v3788 = vpack.c.b16 %v3773, %v3772
    %v3789 = vpack.c.b16 %v3775, %v3774
    %v3790 = vpack.c.b16 %v3777, %v3776
    %v3791 = vpack.c.b16 %v3779, %v3778
    %v3792 = vpack.c.b16 %v3781, %v3780
    %v3793 = vpack.c.b16 %v3783, %v3782
    %v3794 = vpack.c.b16 %v3785, %v3784
    %v3795 = vpack.c.b16 %v3787, %v3786
    %3804 = vmatprep.subr.bf16.mxu0 0
    %3805 = vmatpush1.bf16.msra.mxu0 %v3788
    %3806 = vmatprep.subr.bf16.mxu0 0
    %3807 = vmatpush1.bf16.msra.mxu0 %v3789
    %3808 = vmatprep.subr.bf16.mxu0 0
    %3809 = vmatpush1.bf16.msra.mxu0 %v3790
    %3810 = vmatprep.subr.bf16.mxu0 0
    %3811 = vmatpush1.bf16.msra.mxu0 %v3791
    %3812 = vmatprep.subr.bf16.mxu0 0
    %3813 = vmatpush1.bf16.msra.mxu0 %v3792
    %3814 = vmatprep.subr.bf16.mxu0 0
    %3815 = vmatpush1.bf16.msra.mxu0 %v3793
    %3816 = vmatprep.subr.bf16.mxu0 0
    %3817 = vmatpush1.bf16.msra.mxu0 %v3794
    %3818 = vmatprep.subr.bf16.mxu0 0
    %3819 = vmatpush1.bf16.msra.mxu0 %v3795
    %3820 = vmatprep.subr.bf16.mxu0 0
    %3821 = vmatpush1.bf16.msra.mxu0 0
    %3822 = vmatprep.subr.bf16.mxu0 0
    %3823 = vmatpush1.bf16.msra.mxu0 0
    %3824 = vmatprep.subr.bf16.mxu0 0
    %3825 = vmatpush1.bf16.msra.mxu0 0
    %3826 = vmatprep.subr.bf16.mxu0 0
    %3827 = vmatpush1.bf16.msra.mxu0 0
    %3828 = vmatprep.subr.bf16.mxu0 0
    %3829 = vmatpush1.bf16.msra.mxu0 0
    %3830 = vmatprep.subr.bf16.mxu0 0
    %3831 = vmatpush1.bf16.msra.mxu0 0
    %3832 = vmatprep.subr.bf16.mxu0 0
    %3833 = vmatpush1.bf16.msra.mxu0 0
    %3834 = vmatprep.subr.bf16.mxu0 0
    %3835 = vmatpush1.bf16.msra.mxu0 0
    %3836 = vmatprep.mubr.bf16.mxu0 0
    %3837 = vmatmul.mubr.bf16.gmra.mrb[0].mxu0 %v3725
    %v3838 = vpop.f32.mrb[0].mxu0
    %v3839 = vadd.f32 %v3754, %v3838
    %v3840 = vpop.f32.mrb[0].mxu0
    %v3841 = vpop.f32.mrb[0].mxu0
    %v3842 = vadd.f32 %v3754, %v3841
    %v3843 = vpop.f32.mrb[0].mxu0
    %3844 = vmatprep.mubr.bf16.mxu0 0
    %3845 = vmatmul.mubr.bf16.gmra.mrb[0].mxu0 %v3726
    %v3846 = vpop.f32.mrb[0].mxu0
    %v3847 = vadd.f32 %v3754, %v3846
    %v3848 = vpop.f32.mrb[0].mxu0
    %v3849 = vpop.f32.mrb[0].mxu0
    %v3850 = vadd.f32 %v3754, %v3849
    %v3851 = vpop.f32.mrb[0].mxu0
    %3852 = vmatprep.mubr.bf16.mxu0 0
    %3853 = vmatmul.mubr.bf16.gmra.mrb[0].mxu0 %v3727
    %v3854 = vpop.f32.mrb[0].mxu0
    %v3855 = vadd.f32 %v3754, %v3854
    %v3856 = vpop.f32.mrb[0].mxu0
    %v3857 = vpop.f32.mrb[0].mxu0
    %v3858 = vadd.f32 %v3754, %v3857
    %v3859 = vpop.f32.mrb[0].mxu0
    %3860 = vmatprep.mubr.bf16.mxu0 0
    %3861 = vmatmul.mubr.bf16.gmra.mrb[0].mxu0 %v3728
    %v3862 = vpop.f32.mrb[0].mxu0
    %v3863 = vadd.f32 %v3754, %v3862
    %v3864 = vpop.f32.mrb[0].mxu0
    %v3865 = vpop.f32.mrb[0].mxu0
    %v3866 = vadd.f32 %v3754, %v3865
    %v3867 = vpop.f32.mrb[0].mxu0
    %3868 = vmatprep.mubr.bf16.mxu0 0
    %3869 = vmatmul.mubr.bf16.gmra.mrb[0].mxu0 %v3729
    %v3870 = vpop.f32.mrb[0].mxu0
    %v3871 = vadd.f32 %v3754, %v3870
    %v3872 = vpop.f32.mrb[0].mxu0
    %v3873 = vpop.f32.mrb[0].mxu0
    %v3874 = vadd.f32 %v3754, %v3873
    %v3875 = vpop.f32.mrb[0].mxu0
    %3876 = vmatprep.mubr.bf16.mxu0 0
    %3877 = vmatmul.mubr.bf16.gmra.mrb[0].mxu0 %v3730
    %v3878 = vpop.f32.mrb[0].mxu0
    %v3879 = vadd.f32 %v3754, %v3878
    %v3880 = vpop.f32.mrb[0].mxu0
    %v3881 = vpop.f32.mrb[0].mxu0
    %v3882 = vadd.f32 %v3754, %v3881
    %v3883 = vpop.f32.mrb[0].mxu0
    %3884 = vmatprep.mubr.bf16.mxu0 0
    %3885 = vmatmul.mubr.bf16.gmra.mrb[0].mxu0 %v3731
    %v3886 = vpop.f32.mrb[0].mxu0
    %v3887 = vadd.f32 %v3754, %v3886
    %v3888 = vpop.f32.mrb[0].mxu0
    %v3889 = vpop.f32.mrb[0].mxu0
    %v3890 = vadd.f32 %v3754, %v3889
    %v3891 = vpop.f32.mrb[0].mxu0
    %3892 = vmatprep.mubr.bf16.mxu0 0
    %3893 = vmatmul.mubr.bf16.gmra.mrb[0].mxu0 %v3732
    %v3894 = vpop.f32.mrb[0].mxu0
    %v3895 = vadd.f32 %v3754, %v3894
    %v3896 = vpop.f32.mrb[0].mxu0
    %v3897 = vpop.f32.mrb[0].mxu0
    %v3898 = vadd.f32 %v3754, %v3897
    %v3899 = vpop.f32.mrb[0].mxu0
    %3900 = vdwg.mxu0
    %3901 = vst [vmem:[#allocation14] sm:$0xff] %v3839
    %3902 = vst [vmem:[#allocation14 + $0x8] sm:$0xff] %v3842
    %3903 = vst [vmem:[#allocation14 + $0x10] sm:$0xff] %v3847
    %3904 = vst [vmem:[#allocation14 + $0x18] sm:$0xff] %v3850
    %3905 = vst [vmem:[#allocation14 + $0x20] sm:$0xff] %v3855
    %3906 = vst [vmem:[#allocation14 + $0x28] sm:$0xff] %v3858
    %3907 = vst [vmem:[#allocation14 + $0x30] sm:$0xff] %v3863
    %3908 = vst [vmem:[#allocation14 + $0x38] sm:$0xff] %v3866
    %3909 = vst [vmem:[#allocation14 + $0x40] sm:$0xff] %v3871
    %3910 = vst [vmem:[#allocation14 + $0x48] sm:$0xff] %v3874
    %3911 = vst [vmem:[#allocation14 + $0x50] sm:$0xff] %v3879
    %3912 = vst [vmem:[#allocation14 + $0x58] sm:$0xff] %v3882
    %3913 = vst [vmem:[#allocation14 + $0x60] sm:$0xff] %v3887
    %3914 = vst [vmem:[#allocation14 + $0x68] sm:$0xff] %v3890
    %3915 = vst [vmem:[#allocation14 + $0x70] sm:$0xff] %v3895
    %3916 = vst [vmem:[#allocation14 + $0x78] sm:$0xff] %v3898
    // Predicated region
    $region58: #{mnist_cnn_forward.5} parent=1 // pred_check
      _
    $region59: #{mnist_cnn_forward.5} parent=1 // pred_check_branch
      %3918 = sbr.rel (0) target = $region61
    $region60: #{mnist_cnn_forward.5} parent=1 // pred_region
      %s3920 = ssub.s32 2048, 2048
      %3921 = vsyncadd [#allocation4], %s3920
      %s3922 = sshll.u32 [#allocation14], 4
      %s3923 = int_to_ptr.vmem [resolvable:$true] %s3922
      %3928 = dma.vmem_to_hbm [thread:$0]  %s3923, 2048, %s7, [#allocation4], 128, 128, 8
    $region61: #{mnist_cnn_forward.5} parent=1 // pred_fallthru
      _
    // Predicated region
    $region62: #{mnist_cnn_forward.5} parent=1 // pred_check
      _
    $region63: #{mnist_cnn_forward.5} parent=1 // pred_check_branch
      %3930 = sbr.rel (0) target = $region65
    $region64: #{mnist_cnn_forward.5} parent=1 // pred_region
      %3931 = dma.done [#allocation4], 2048
    $region65: #{mnist_cnn_forward.5} parent=1 // pred_fallthru
      _
    %3932 = vsyncpa [#allocation3], 1
    %3933 = vsyncpa [#allocation6], 1
    %3934 = vsyncpa [#allocation9], 1
    %3935 = vsyncpa [#allocation12], 1
    %3936 = vsyncpa [#allocation4], 1

</llo_original>
